<compile_context>
chip_gen: v7x
topology: tpu7x:2x2x1
jax: 0.10.0
libtpu: 0.0.40
codegen_flags: <defaults>
</compile_context>

<pallas_src>
import functools

import jax
import jax.numpy as jnp
from jax import lax
from jax.experimental import pallas as pl
from jax.experimental.pallas import tpu as pltpu

BN_EPS = 1e-5


# ----------------------------- host-side helpers -----------------------------
def _spectral_normalize(w, key, n_power_iter=1, eps=1e-12):
    """nn.utils.spectral_norm equivalent: W / sigma, sigma from power iteration."""
    cout = w.shape[0]
    w_mat = w.reshape(cout, -1)
    u = jax.random.normal(key, (cout,), jnp.float32)
    u = u / (jnp.linalg.norm(u) + eps)
    v = None
    for _ in range(n_power_iter):
        v = w_mat.T @ u
        v = v / (jnp.linalg.norm(v) + eps)
        u = w_mat @ v
        u = u / (jnp.linalg.norm(u) + eps)
    sigma = u @ (w_mat @ v)
    return w / sigma


def _make_planes(x_pad, stride, k, Ho, Wo):
    """Space-to-depth stride decomposition of the zero-padded NHWC input.

    Plane p = py*stride + px holds x_pad[:, py::stride, px::stride, :], so that
    output pixel (y, x) and kernel tap (ky, kx) read
        plane[(ky % s) * s + (kx % s)][y + ky // s, x + kx // s].
    Memory-neutral (unlike im2col's k^2 HBM inflation).
    Returns (B * stride*stride, Hpp, Wpp, C), Hpp, Wpp.
    """
    B, Hp, Wp, C = x_pad.shape
    Hpp = Ho + (k - 1) // stride
    Wpp = Wo + (k - 1) // stride
    planes = []
    for py in range(stride):
        for px in range(stride):
            p = x_pad[:, py::stride, px::stride, :]
            ph = max(0, Hpp - p.shape[1])
            pw = max(0, Wpp - p.shape[2])
            if ph or pw:
                p = jnp.pad(p, ((0, 0), (0, ph), (0, pw), (0, 0)))
            planes.append(p[:, :Hpp, :Wpp, :])
    planes = jnp.stack(planes, axis=1)                 # (B, s*s, Hpp, Wpp, C)
    return planes.reshape(B * stride * stride, Hpp, Wpp, C), Hpp, Wpp


# --------------------------- fused conv+BN+act kernel -------------------------
def _conv_bn_act_kernel(x_ref, w_ref, scale_ref, shift_ref, out_ref,
                        *, k, stride, th, wo, act):
    """One (batch, output-row-tile) grid step of fused conv5x5 + BN + act."""
    t = pl.program_id(1)
    r0 = pl.multiple_of(t * th, th)                    # first output row of tile
    cout = out_ref.shape[-1]
    acc = jnp.zeros((th * wo, cout), jnp.float32)
    for ky in range(k):                                # unrolled k*k taps
        for kx in range(k):
            p = (ky % stride) * stride + (kx % stride)
            oy, ox = ky // stride, kx // stride
            patch = x_ref[p, pl.ds(r0 + oy, th), pl.ds(ox, wo), :]  # (th, wo, Cin)
            patch2d = patch.reshape(th * wo, patch.shape[-1])
            acc = acc + jnp.dot(patch2d, w_ref[ky * k + kx],
                                preferred_element_type=jnp.float32)
    # folded conv-bias + inference BatchNorm affine
    y = acc * scale_ref[...] + shift_ref[...]
    if act == "relu":
        y = jnp.maximum(y, 0.0)
    out_ref[0] = y.reshape(th, wo, cout).astype(out_ref.dtype)


def conv5x5_bn_act(x_nhwc, w_oihw, bias, bn_gamma, bn_beta, bn_mean, bn_var,
                   *, stride, act):
    """Conv2dLayer forward: spectral-normalized conv + BatchNorm + activation."""
    B, H, W, Cin = x_nhwc.shape
    Cout, _, k, _ = w_oihw.shape
    pad = (k - 1) // 2
    Ho = (H + 2 * pad - k) // stride + 1
    Wo = (W + 2 * pad - k) // stride + 1
    x_pad = jnp.pad(x_nhwc, ((0, 0), (pad, pad), (pad, pad), (0, 0)))
    planes, Hpp, Wpp = _make_planes(x_pad, stride, k, Ho, Wo)
    P = stride * stride

    # per-tap weight matrices, lane-dense in Cout: (k*k, Cin, Cout)
    w_taps = jnp.transpose(w_oihw, (2, 3, 1, 0)).reshape(k * k, Cin, Cout)
    # fold conv bias + inference-mode BatchNorm into one per-channel affine
    scale = bn_gamma / jnp.sqrt(bn_var + BN_EPS)
    shift = bn_beta - bn_mean * scale + bias * scale

    th = min(Ho, 8)                                    # output-row tile
    while Ho % th:
        th -= 1
    grid = (B, Ho // th)

    kernel = functools.partial(_conv_bn_act_kernel, k=k, stride=stride,
                               th=th, wo=Wo, act=act)
    return pl.pallas_call(
        kernel,
        out_shape=jax.ShapeDtypeStruct((B, Ho, Wo, Cout), jnp.float32),
        grid_spec=pltpu.PrefetchScalarGridSpec(
            num_scalar_prefetch=0,
            grid=grid,
            in_specs=[
                # parity planes of one batch: resident across the row-tile axis
                pl.BlockSpec((P, Hpp, Wpp, Cin), lambda b, t: (b, 0, 0, 0)),
                # weights / affine: constant index_map -> stay VMEM-resident
                pl.BlockSpec((k * k, Cin, Cout), lambda b, t: (0, 0, 0)),
                pl.BlockSpec((1, Cout), lambda b, t: (0, 0)),
                pl.BlockSpec((1, Cout), lambda b, t: (0, 0)),
            ],
            out_specs=pl.BlockSpec((1, th, Wo, Cout), lambda b, t: (b, t, 0, 0)),
        ),
        compiler_params=pltpu.CompilerParams(
            dimension_semantics=("parallel", "parallel")),
    )(planes, w_taps, scale.reshape(1, Cout), shift.reshape(1, Cout))


# ----------------------------- self-attention kernel --------------------------
def _self_attn_kernel(x_ref, wf_ref, bf_ref, wg_ref, bg_ref, wv_ref, bv_ref,
                      o_ref):
    x = x_ref[0]                                                     # (N, C)
    f = jnp.dot(x, wf_ref[...], preferred_element_type=jnp.float32) + bf_ref[...]
    g = jnp.dot(x, wg_ref[...], preferred_element_type=jnp.float32) + bg_ref[...]
    logits = lax.dot_general(f, g, (((1,), (1,)), ((), ())),
                             preferred_element_type=jnp.float32)     # (N, N)
    logits = logits - jnp.max(logits, axis=-1, keepdims=True)
    e = jnp.exp(logits)
    # softmax over keys; N is tiny here so use the exact reciprocal. For large
    # N switch to pl.reciprocal(..., approx=True) to push the divide onto EUP.
    att = e * pl.reciprocal(jnp.sum(e, axis=-1, keepdims=True), approx=False)
    v = jnp.dot(x, wv_ref[...], preferred_element_type=jnp.float32) + bv_ref[...]
    out = jnp.dot(att, v, preferred_element_type=jnp.float32) + x    # residual
    o_ref[0] = jnp.maximum(out, 0.0)                                 # trailing nn.ReLU


def self_attention_relu(x_nhwc, wf, bf, wg, bg, wh, bh, gamma):
    B, H, W, C = x_nhwc.shape
    N = H * W
    C8 = wf.shape[0]
    x_flat = x_nhwc.reshape(B, N, C)
    wv = (gamma * wh).T                      # gamma folded into value projection
    bv = (gamma * bh).reshape(1, C)
    out = pl.pallas_call(
        _self_attn_kernel,
        out_shape=jax.ShapeDtypeStruct((B, N, C), jnp.float32),
        grid_spec=pltpu.PrefetchScalarGridSpec(
            num_scalar_prefetch=0,
            grid=(B,),
            in_specs=[
                pl.BlockSpec((1, N, C), lambda b: (b, 0, 0)),
                pl.BlockSpec((C, C8), lambda b: (0, 0)),
                pl.BlockSpec((1, C8), lambda b: (0, 0)),
                pl.BlockSpec((C, C8), lambda b: (0, 0)),
                pl.BlockSpec((1, C8), lambda b: (0, 0)),
                pl.BlockSpec((C, C), lambda b: (0, 0)),
                pl.BlockSpec((1, C), lambda b: (0, 0)),
            ],
            out_specs=pl.BlockSpec((1, N, C), lambda b: (b, 0, 0)),
        ),
        compiler_params=pltpu.CompilerParams(dimension_semantics=("parallel",)),
    )(x_flat, wf.T, bf.reshape(1, C8), wg.T, bg.reshape(1, C8), wv, bv)
    return out.reshape(B, H, W, C)


# --------------------------------- full forward -------------------------------
def patch_discriminator_forward(img, mask, params):
    x = jnp.concatenate([img, mask], axis=1)          # (B, 2, H, W), like torch.cat
    x = jnp.transpose(x, (0, 2, 3, 1))                # NHWC for the kernels
    layers = params["layers"]
    n = len(layers)
    for i, lp in enumerate(layers):
        x = conv5x5_bn_act(x, lp["w"], lp["b"], lp["gamma"], lp["beta"],
                           lp["mean"], lp["var"],
                           stride=lp["stride"], act=lp["act"])
        if i == n - 2:                                # SelfAttention + ReLU slot
            a = params["attn"]
            x = self_attention_relu(x, a["wf"], a["bf"], a["wg"], a["bg"],
                                    a["wh"], a["bh"], a["gamma"])
    return jnp.transpose(x, (0, 3, 1, 2))             # back to NCHW


# ---------------------------------- parameters --------------------------------
def init_params(key, in_ch=2, out_channels=(64, 128, 256, 256, 256, 256), k=5):
    n = len(out_channels)
    in_chs = (in_ch,) + tuple(out_channels[:-1])
    strides = (1,) + (2,) * (n - 1)
    acts = ("relu",) * (n - 1) + ("none",)
    keys = jax.random.split(key, n + 1)
    layers = []
    for i in range(n):
        ks = jax.random.split(keys[i], 7)
        cin, cout = in_chs[i], out_channels[i]
        w = 0.05 * jax.random.normal(ks[0], (cout, cin, k, k), jnp.float32)
        w = _spectral_normalize(w, ks[1])             # sn=True on every layer
        layers.append(dict(
            w=w,
            b=0.1 * jax.random.normal(ks[2], (cout,), jnp.float32),
            gamma=1.0 + 0.2 * jax.random.normal(ks[3], (cout,), jnp.float32),
            beta=0.1 * jax.random.normal(ks[4], (cout,), jnp.float32),
            mean=0.1 * jax.random.normal(ks[5], (cout,), jnp.float32),
            var=jax.random.uniform(ks[6], (cout,), jnp.float32, 0.5, 1.5),
            stride=strides[i], act=acts[i]))
    C = out_channels[-2]
    C8 = C // 8
    ak = jax.random.split(keys[n], 6)
    attn = dict(
        wf=0.05 * jax.random.normal(ak[0], (C8, C), jnp.float32),
        bf=0.1 * jax.random.normal(ak[1], (C8,), jnp.float32),
        wg=0.05 * jax.random.normal(ak[2], (C8, C), jnp.float32),
        bg=0.1 * jax.random.normal(ak[3], (C8,), jnp.float32),
        wh=0.05 * jax.random.normal(ak[4], (C, C), jnp.float32),
        bh=0.1 * jax.random.normal(ak[5], (C,), jnp.float32),
        # PyTorch initializes gamma=0 (attention branch off); use a nonzero
        # value so the attention path is actually exercised by the check.
        gamma=jnp.float32(0.5))
    return dict(layers=layers, attn=attn)


# ------------------------- pure-JAX reference (check) -------------------------
def _reference_self_attention(x, a):
    B, C, H, W = x.shape
    n = H * W
    xf = x.reshape(B, C, n)
    hi = lax.Precision.HIGHEST
    f = jnp.einsum("oc,bcn->bon", a["wf"], xf, precision=hi) + a["bf"][None, :, None]
    g = jnp.einsum("oc,bcn->bon", a["wg"], xf, precision=hi) + a["bg"][None, :, None]
    att = jax.nn.softmax(jnp.einsum("boi,boj->bij", f, g, precision=hi), axis=-1)
    v = jnp.einsum("oc,bcn->bon", a["wh"], xf, precision=hi) + a["bh"][None, :, None]
    out = jnp.einsum("bcj,bij->bci", v, att, precision=hi)
    out = a["gamma"] * out + xf
    return jnp.maximum(out.reshape(B, C, H, W), 0.0)    # appended nn.ReLU layer


def _reference_forward(img, mask, params):
    x = jnp.concatenate([img, mask], axis=1)            # NCHW
    layers = params["layers"]
    n = len(layers)
    for i, lp in enumerate(layers):
        s = lp["stride"]
        k = lp["w"].shape[2]
        pad = (k - 1) // 2
        z = lax.conv_general_dilated(
            x, lp["w"], (s, s), [(pad, pad), (pad, pad)],
            dimension_numbers=("NCHW", "OIHW", "NCHW"),
            precision=lax.Precision.HIGHEST)
        z = z + lp["b"][None, :, None, None]
        z = ((z - lp["mean"][None, :, None, None])
             / jnp.sqrt(lp["var"] + BN_EPS)[None, :, None, None]
             * lp["gamma"][None, :, None, None]
             + lp["beta"][None, :, None, None])
        if lp["act"] == "relu":
            z = jnp.maximum(z, 0.0)
        x = z
        if i == n - 2:
            x = _reference_self_attention(x, params["attn"])
    return x


# ------------------------------------ main ------------------------------------
if __name__ == "__main__":
    root = jax.random.PRNGKey(0)
    kp, ki, km = jax.random.split(root, 3)
    B, H, W = 2, 32, 32
    img = jax.random.normal(ki, (B, 1, H, W), jnp.float32)
    mask = (jax.random.uniform(km, (B, 1, H, W)) > 0.7).astype(jnp.float32)

    params = init_params(kp)

    out = patch_discriminator_forward(img, mask, params)
    out = jax.block_until_ready(out)

    ref = _reference_forward(img, mask, params)
    assert out.shape == ref.shape, (out.shape, ref.shape)
    err = float(jnp.max(jnp.abs(out - ref)))
    tol = 2e-3 * max(1.0, float(jnp.max(jnp.abs(ref))))
    assert err <= tol, f"max_err={err} tol={tol}"
    print("KERNEL_OK")
</pallas_src>

<mosaic_0001>
module attributes {stable_mosaic.version = 11 : i64} {
  func.func @_conv_bn_act_kernel(%arg0: i32, %arg1: i32, %arg2: memref<1x36x36x2xf32, #tpu.memory_space<vmem>>, %arg3: memref<25x2x64xf32, #tpu.memory_space<vmem>>, %arg4: memref<1x64xf32, #tpu.memory_space<vmem>>, %arg5: memref<1x64xf32, #tpu.memory_space<vmem>>, %arg6: memref<1x8x32x64xf32, #tpu.memory_space<vmem>>) attributes {dimension_semantics = [#tpu.dimension_semantics<parallel>, #tpu.dimension_semantics<parallel>], iteration_bounds = array<i64: 2, 4>, scalar_prefetch = 0 : i64, scratch_operands = 0 : i64, tpu.core_type = #tpu.core_type<tc>, window_params = [{transform_indices = @transform_0, window_bounds = array<i64: 1, 36, 36, 2>}, {pipeline_mode = #tpu.pipeline_mode<synchronous>, transform_indices = @transform_1, window_bounds = array<i64: 25, 2, 64>}, {pipeline_mode = #tpu.pipeline_mode<synchronous>, transform_indices = @transform_2, window_bounds = array<i64: 1, 64>}, {pipeline_mode = #tpu.pipeline_mode<synchronous>, transform_indices = @transform_3, window_bounds = array<i64: 1, 64>}, {transform_indices = @transform_4, window_bounds = array<i64: 1, 8, 32, 64>}]} {
    %c8_i32 = arith.constant 8 : i32
    %0 = arith.muli %arg1, %c8_i32 : i32
    %1 = tpu.assume_multiple %0, 8 : i32
    %cst = arith.constant 0.000000e+00 : f32
    %2 = vector.broadcast %cst : f32 to vector<256x64xf32>
    %c0_i32 = arith.constant 0 : i32
    %3 = arith.addi %1, %c0_i32 : i32
    %c0 = arith.constant 0 : index
    %4 = arith.index_cast %3 : i32 to index
    %c0_0 = arith.constant 0 : index
    %c0_1 = arith.constant 0 : index
    %5 = vector.load %arg2[%c0, %4, %c0_0, %c0_1] : memref<1x36x36x2xf32, #tpu.memory_space<vmem>>, vector<1x8x32x2xf32>
    %6 = vector.shape_cast %5 : vector<1x8x32x2xf32> to vector<8x32x2xf32>
    %7 = vector.shape_cast %6 : vector<8x32x2xf32> to vector<256x2xf32>
    %c0_2 = arith.constant 0 : index
    %c0_3 = arith.constant 0 : index
    %c0_4 = arith.constant 0 : index
    %8 = vector.load %arg3[%c0_2, %c0_3, %c0_4] : memref<25x2x64xf32, #tpu.memory_space<vmem>>, vector<1x2x64xf32>
    %9 = vector.shape_cast %8 : vector<1x2x64xf32> to vector<2x64xf32>
    %cst_5 = arith.constant dense<0.000000e+00> : vector<256x64xf32>
    %10 = tpu.matmul %7, %9, %cst_5 {dimension_numbers = #tpu.dot_dimension_numbers<[1], [0], [0], [1], [0, 0, 1, 1], [], []>} : vector<256x2xf32>, vector<2x64xf32>, vector<256x64xf32> -> vector<256x64xf32>
    %11 = arith.addf %2, %10 : vector<256x64xf32>
    %c0_i32_6 = arith.constant 0 : i32
    %12 = arith.addi %1, %c0_i32_6 : i32
    %c0_7 = arith.constant 0 : index
    %13 = arith.index_cast %12 : i32 to index
    %c1 = arith.constant 1 : index
    %c0_8 = arith.constant 0 : index
    %14 = vector.load %arg2[%c0_7, %13, %c1, %c0_8] : memref<1x36x36x2xf32, #tpu.memory_space<vmem>>, vector<1x8x32x2xf32>
    %15 = vector.shape_cast %14 : vector<1x8x32x2xf32> to vector<8x32x2xf32>
    %16 = vector.shape_cast %15 : vector<8x32x2xf32> to vector<256x2xf32>
    %c1_9 = arith.constant 1 : index
    %c0_10 = arith.constant 0 : index
    %c0_11 = arith.constant 0 : index
    %17 = vector.load %arg3[%c1_9, %c0_10, %c0_11] : memref<25x2x64xf32, #tpu.memory_space<vmem>>, vector<1x2x64xf32>
    %18 = vector.shape_cast %17 : vector<1x2x64xf32> to vector<2x64xf32>
    %cst_12 = arith.constant dense<0.000000e+00> : vector<256x64xf32>
    %19 = tpu.matmul %16, %18, %cst_12 {dimension_numbers = #tpu.dot_dimension_numbers<[1], [0], [0], [1], [0, 0, 1, 1], [], []>} : vector<256x2xf32>, vector<2x64xf32>, vector<256x64xf32> -> vector<256x64xf32>
    %20 = arith.addf %11, %19 : vector<256x64xf32>
    %c0_i32_13 = arith.constant 0 : i32
    %21 = arith.addi %1, %c0_i32_13 : i32
    %c0_14 = arith.constant 0 : index
    %22 = arith.index_cast %21 : i32 to index
    %c2 = arith.constant 2 : index
    %c0_15 = arith.constant 0 : index
    %23 = vector.load %arg2[%c0_14, %22, %c2, %c0_15] : memref<1x36x36x2xf32, #tpu.memory_space<vmem>>, vector<1x8x32x2xf32>
    %24 = vector.shape_cast %23 : vector<1x8x32x2xf32> to vector<8x32x2xf32>
    %25 = vector.shape_cast %24 : vector<8x32x2xf32> to vector<256x2xf32>
    %c2_16 = arith.constant 2 : index
    %c0_17 = arith.constant 0 : index
    %c0_18 = arith.constant 0 : index
    %26 = vector.load %arg3[%c2_16, %c0_17, %c0_18] : memref<25x2x64xf32, #tpu.memory_space<vmem>>, vector<1x2x64xf32>
    %27 = vector.shape_cast %26 : vector<1x2x64xf32> to vector<2x64xf32>
    %cst_19 = arith.constant dense<0.000000e+00> : vector<256x64xf32>
    %28 = tpu.matmul %25, %27, %cst_19 {dimension_numbers = #tpu.dot_dimension_numbers<[1], [0], [0], [1], [0, 0, 1, 1], [], []>} : vector<256x2xf32>, vector<2x64xf32>, vector<256x64xf32> -> vector<256x64xf32>
    %29 = arith.addf %20, %28 : vector<256x64xf32>
    %c0_i32_20 = arith.constant 0 : i32
    %30 = arith.addi %1, %c0_i32_20 : i32
    %c0_21 = arith.constant 0 : index
    %31 = arith.index_cast %30 : i32 to index
    %c3 = arith.constant 3 : index
    %c0_22 = arith.constant 0 : index
    %32 = vector.load %arg2[%c0_21, %31, %c3, %c0_22] : memref<1x36x36x2xf32, #tpu.memory_space<vmem>>, vector<1x8x32x2xf32>
    %33 = vector.shape_cast %32 : vector<1x8x32x2xf32> to vector<8x32x2xf32>
    %34 = vector.shape_cast %33 : vector<8x32x2xf32> to vector<256x2xf32>
    %c3_23 = arith.constant 3 : index
    %c0_24 = arith.constant 0 : index
    %c0_25 = arith.constant 0 : index
    %35 = vector.load %arg3[%c3_23, %c0_24, %c0_25] : memref<25x2x64xf32, #tpu.memory_space<vmem>>, vector<1x2x64xf32>
    %36 = vector.shape_cast %35 : vector<1x2x64xf32> to vector<2x64xf32>
    %cst_26 = arith.constant dense<0.000000e+00> : vector<256x64xf32>
    %37 = tpu.matmul %34, %36, %cst_26 {dimension_numbers = #tpu.dot_dimension_numbers<[1], [0], [0], [1], [0, 0, 1, 1], [], []>} : vector<256x2xf32>, vector<2x64xf32>, vector<256x64xf32> -> vector<256x64xf32>
    %38 = arith.addf %29, %37 : vector<256x64xf32>
    %c0_i32_27 = arith.constant 0 : i32
    %39 = arith.addi %1, %c0_i32_27 : i32
    %c0_28 = arith.constant 0 : index
    %40 = arith.index_cast %39 : i32 to index
    %c4 = arith.constant 4 : index
    %c0_29 = arith.constant 0 : index
    %41 = vector.load %arg2[%c0_28, %40, %c4, %c0_29] : memref<1x36x36x2xf32, #tpu.memory_space<vmem>>, vector<1x8x32x2xf32>
    %42 = vector.shape_cast %41 : vector<1x8x32x2xf32> to vector<8x32x2xf32>
    %43 = vector.shape_cast %42 : vector<8x32x2xf32> to vector<256x2xf32>
    %c4_30 = arith.constant 4 : index
    %c0_31 = arith.constant 0 : index
    %c0_32 = arith.constant 0 : index
    %44 = vector.load %arg3[%c4_30, %c0_31, %c0_32] : memref<25x2x64xf32, #tpu.memory_space<vmem>>, vector<1x2x64xf32>
    %45 = vector.shape_cast %44 : vector<1x2x64xf32> to vector<2x64xf32>
    %cst_33 = arith.constant dense<0.000000e+00> : vector<256x64xf32>
    %46 = tpu.matmul %43, %45, %cst_33 {dimension_numbers = #tpu.dot_dimension_numbers<[1], [0], [0], [1], [0, 0, 1, 1], [], []>} : vector<256x2xf32>, vector<2x64xf32>, vector<256x64xf32> -> vector<256x64xf32>
    %47 = arith.addf %38, %46 : vector<256x64xf32>
    %c1_i32 = arith.constant 1 : i32
    %48 = arith.addi %1, %c1_i32 : i32
    %c0_34 = arith.constant 0 : index
    %49 = arith.index_cast %48 : i32 to index
    %c0_35 = arith.constant 0 : index
    %c0_36 = arith.constant 0 : index
    %50 = vector.load %arg2[%c0_34, %49, %c0_35, %c0_36] : memref<1x36x36x2xf32, #tpu.memory_space<vmem>>, vector<1x8x32x2xf32>
    %51 = vector.shape_cast %50 : vector<1x8x32x2xf32> to vector<8x32x2xf32>
    %52 = vector.shape_cast %51 : vector<8x32x2xf32> to vector<256x2xf32>
    %c5 = arith.constant 5 : index
    %c0_37 = arith.constant 0 : index
    %c0_38 = arith.constant 0 : index
    %53 = vector.load %arg3[%c5, %c0_37, %c0_38] : memref<25x2x64xf32, #tpu.memory_space<vmem>>, vector<1x2x64xf32>
    %54 = vector.shape_cast %53 : vector<1x2x64xf32> to vector<2x64xf32>
    %cst_39 = arith.constant dense<0.000000e+00> : vector<256x64xf32>
    %55 = tpu.matmul %52, %54, %cst_39 {dimension_numbers = #tpu.dot_dimension_numbers<[1], [0], [0], [1], [0, 0, 1, 1], [], []>} : vector<256x2xf32>, vector<2x64xf32>, vector<256x64xf32> -> vector<256x64xf32>
    %56 = arith.addf %47, %55 : vector<256x64xf32>
    %c1_i32_40 = arith.constant 1 : i32
    %57 = arith.addi %1, %c1_i32_40 : i32
    %c0_41 = arith.constant 0 : index
    %58 = arith.index_cast %57 : i32 to index
    %c1_42 = arith.constant 1 : index
    %c0_43 = arith.constant 0 : index
    %59 = vector.load %arg2[%c0_41, %58, %c1_42, %c0_43] : memref<1x36x36x2xf32, #tpu.memory_space<vmem>>, vector<1x8x32x2xf32>
    %60 = vector.shape_cast %59 : vector<1x8x32x2xf32> to vector<8x32x2xf32>
    %61 = vector.shape_cast %60 : vector<8x32x2xf32> to vector<256x2xf32>
    %c6 = arith.constant 6 : index
    %c0_44 = arith.constant 0 : index
    %c0_45 = arith.constant 0 : index
    %62 = vector.load %arg3[%c6, %c0_44, %c0_45] : memref<25x2x64xf32, #tpu.memory_space<vmem>>, vector<1x2x64xf32>
    %63 = vector.shape_cast %62 : vector<1x2x64xf32> to vector<2x64xf32>
    %cst_46 = arith.constant dense<0.000000e+00> : vector<256x64xf32>
    %64 = tpu.matmul %61, %63, %cst_46 {dimension_numbers = #tpu.dot_dimension_numbers<[1], [0], [0], [1], [0, 0, 1, 1], [], []>} : vector<256x2xf32>, vector<2x64xf32>, vector<256x64xf32> -> vector<256x64xf32>
    %65 = arith.addf %56, %64 : vector<256x64xf32>
    %c1_i32_47 = arith.constant 1 : i32
    %66 = arith.addi %1, %c1_i32_47 : i32
    %c0_48 = arith.constant 0 : index
    %67 = arith.index_cast %66 : i32 to index
    %c2_49 = arith.constant 2 : index
    %c0_50 = arith.constant 0 : index
    %68 = vector.load %arg2[%c0_48, %67, %c2_49, %c0_50] : memref<1x36x36x2xf32, #tpu.memory_space<vmem>>, vector<1x8x32x2xf32>
    %69 = vector.shape_cast %68 : vector<1x8x32x2xf32> to vector<8x32x2xf32>
    %70 = vector.shape_cast %69 : vector<8x32x2xf32> to vector<256x2xf32>
    %c7 = arith.constant 7 : index
    %c0_51 = arith.constant 0 : index
    %c0_52 = arith.constant 0 : index
    %71 = vector.load %arg3[%c7, %c0_51, %c0_52] : memref<25x2x64xf32, #tpu.memory_space<vmem>>, vector<1x2x64xf32>
    %72 = vector.shape_cast %71 : vector<1x2x64xf32> to vector<2x64xf32>
    %cst_53 = arith.constant dense<0.000000e+00> : vector<256x64xf32>
    %73 = tpu.matmul %70, %72, %cst_53 {dimension_numbers = #tpu.dot_dimension_numbers<[1], [0], [0], [1], [0, 0, 1, 1], [], []>} : vector<256x2xf32>, vector<2x64xf32>, vector<256x64xf32> -> vector<256x64xf32>
    %74 = arith.addf %65, %73 : vector<256x64xf32>
    %c1_i32_54 = arith.constant 1 : i32
    %75 = arith.addi %1, %c1_i32_54 : i32
    %c0_55 = arith.constant 0 : index
    %76 = arith.index_cast %75 : i32 to index
    %c3_56 = arith.constant 3 : index
    %c0_57 = arith.constant 0 : index
    %77 = vector.load %arg2[%c0_55, %76, %c3_56, %c0_57] : memref<1x36x36x2xf32, #tpu.memory_space<vmem>>, vector<1x8x32x2xf32>
    %78 = vector.shape_cast %77 : vector<1x8x32x2xf32> to vector<8x32x2xf32>
    %79 = vector.shape_cast %78 : vector<8x32x2xf32> to vector<256x2xf32>
    %c8 = arith.constant 8 : index
    %c0_58 = arith.constant 0 : index
    %c0_59 = arith.constant 0 : index
    %80 = vector.load %arg3[%c8, %c0_58, %c0_59] : memref<25x2x64xf32, #tpu.memory_space<vmem>>, vector<1x2x64xf32>
    %81 = vector.shape_cast %80 : vector<1x2x64xf32> to vector<2x64xf32>
    %cst_60 = arith.constant dense<0.000000e+00> : vector<256x64xf32>
    %82 = tpu.matmul %79, %81, %cst_60 {dimension_numbers = #tpu.dot_dimension_numbers<[1], [0], [0], [1], [0, 0, 1, 1], [], []>} : vector<256x2xf32>, vector<2x64xf32>, vector<256x64xf32> -> vector<256x64xf32>
    %83 = arith.addf %74, %82 : vector<256x64xf32>
    %c1_i32_61 = arith.constant 1 : i32
    %84 = arith.addi %1, %c1_i32_61 : i32
    %c0_62 = arith.constant 0 : index
    %85 = arith.index_cast %84 : i32 to index
    %c4_63 = arith.constant 4 : index
    %c0_64 = arith.constant 0 : index
    %86 = vector.load %arg2[%c0_62, %85, %c4_63, %c0_64] : memref<1x36x36x2xf32, #tpu.memory_space<vmem>>, vector<1x8x32x2xf32>
    %87 = vector.shape_cast %86 : vector<1x8x32x2xf32> to vector<8x32x2xf32>
    %88 = vector.shape_cast %87 : vector<8x32x2xf32> to vector<256x2xf32>
    %c9 = arith.constant 9 : index
    %c0_65 = arith.constant 0 : index
    %c0_66 = arith.constant 0 : index
    %89 = vector.load %arg3[%c9, %c0_65, %c0_66] : memref<25x2x64xf32, #tpu.memory_space<vmem>>, vector<1x2x64xf32>
    %90 = vector.shape_cast %89 : vector<1x2x64xf32> to vector<2x64xf32>
    %cst_67 = arith.constant dense<0.000000e+00> : vector<256x64xf32>
    %91 = tpu.matmul %88, %90, %cst_67 {dimension_numbers = #tpu.dot_dimension_numbers<[1], [0], [0], [1], [0, 0, 1, 1], [], []>} : vector<256x2xf32>, vector<2x64xf32>, vector<256x64xf32> -> vector<256x64xf32>
    %92 = arith.addf %83, %91 : vector<256x64xf32>
    %c2_i32 = arith.constant 2 : i32
    %93 = arith.addi %1, %c2_i32 : i32
    %c0_68 = arith.constant 0 : index
    %94 = arith.index_cast %93 : i32 to index
    %c0_69 = arith.constant 0 : index
    %c0_70 = arith.constant 0 : index
    %95 = vector.load %arg2[%c0_68, %94, %c0_69, %c0_70] : memref<1x36x36x2xf32, #tpu.memory_space<vmem>>, vector<1x8x32x2xf32>
    %96 = vector.shape_cast %95 : vector<1x8x32x2xf32> to vector<8x32x2xf32>
    %97 = vector.shape_cast %96 : vector<8x32x2xf32> to vector<256x2xf32>
    %c10 = arith.constant 10 : index
    %c0_71 = arith.constant 0 : index
    %c0_72 = arith.constant 0 : index
    %98 = vector.load %arg3[%c10, %c0_71, %c0_72] : memref<25x2x64xf32, #tpu.memory_space<vmem>>, vector<1x2x64xf32>
    %99 = vector.shape_cast %98 : vector<1x2x64xf32> to vector<2x64xf32>
    %cst_73 = arith.constant dense<0.000000e+00> : vector<256x64xf32>
    %100 = tpu.matmul %97, %99, %cst_73 {dimension_numbers = #tpu.dot_dimension_numbers<[1], [0], [0], [1], [0, 0, 1, 1], [], []>} : vector<256x2xf32>, vector<2x64xf32>, vector<256x64xf32> -> vector<256x64xf32>
    %101 = arith.addf %92, %100 : vector<256x64xf32>
    %c2_i32_74 = arith.constant 2 : i32
    %102 = arith.addi %1, %c2_i32_74 : i32
    %c0_75 = arith.constant 0 : index
    %103 = arith.index_cast %102 : i32 to index
    %c1_76 = arith.constant 1 : index
    %c0_77 = arith.constant 0 : index
    %104 = vector.load %arg2[%c0_75, %103, %c1_76, %c0_77] : memref<1x36x36x2xf32, #tpu.memory_space<vmem>>, vector<1x8x32x2xf32>
    %105 = vector.shape_cast %104 : vector<1x8x32x2xf32> to vector<8x32x2xf32>
    %106 = vector.shape_cast %105 : vector<8x32x2xf32> to vector<256x2xf32>
    %c11 = arith.constant 11 : index
    %c0_78 = arith.constant 0 : index
    %c0_79 = arith.constant 0 : index
    %107 = vector.load %arg3[%c11, %c0_78, %c0_79] : memref<25x2x64xf32, #tpu.memory_space<vmem>>, vector<1x2x64xf32>
    %108 = vector.shape_cast %107 : vector<1x2x64xf32> to vector<2x64xf32>
    %cst_80 = arith.constant dense<0.000000e+00> : vector<256x64xf32>
    %109 = tpu.matmul %106, %108, %cst_80 {dimension_numbers = #tpu.dot_dimension_numbers<[1], [0], [0], [1], [0, 0, 1, 1], [], []>} : vector<256x2xf32>, vector<2x64xf32>, vector<256x64xf32> -> vector<256x64xf32>
    %110 = arith.addf %101, %109 : vector<256x64xf32>
    %c2_i32_81 = arith.constant 2 : i32
    %111 = arith.addi %1, %c2_i32_81 : i32
    %c0_82 = arith.constant 0 : index
    %112 = arith.index_cast %111 : i32 to index
    %c2_83 = arith.constant 2 : index
    %c0_84 = arith.constant 0 : index
    %113 = vector.load %arg2[%c0_82, %112, %c2_83, %c0_84] : memref<1x36x36x2xf32, #tpu.memory_space<vmem>>, vector<1x8x32x2xf32>
    %114 = vector.shape_cast %113 : vector<1x8x32x2xf32> to vector<8x32x2xf32>
    %115 = vector.shape_cast %114 : vector<8x32x2xf32> to vector<256x2xf32>
    %c12 = arith.constant 12 : index
    %c0_85 = arith.constant 0 : index
    %c0_86 = arith.constant 0 : index
    %116 = vector.load %arg3[%c12, %c0_85, %c0_86] : memref<25x2x64xf32, #tpu.memory_space<vmem>>, vector<1x2x64xf32>
    %117 = vector.shape_cast %116 : vector<1x2x64xf32> to vector<2x64xf32>
    %cst_87 = arith.constant dense<0.000000e+00> : vector<256x64xf32>
    %118 = tpu.matmul %115, %117, %cst_87 {dimension_numbers = #tpu.dot_dimension_numbers<[1], [0], [0], [1], [0, 0, 1, 1], [], []>} : vector<256x2xf32>, vector<2x64xf32>, vector<256x64xf32> -> vector<256x64xf32>
    %119 = arith.addf %110, %118 : vector<256x64xf32>
    %c2_i32_88 = arith.constant 2 : i32
    %120 = arith.addi %1, %c2_i32_88 : i32
    %c0_89 = arith.constant 0 : index
    %121 = arith.index_cast %120 : i32 to index
    %c3_90 = arith.constant 3 : index
    %c0_91 = arith.constant 0 : index
    %122 = vector.load %arg2[%c0_89, %121, %c3_90, %c0_91] : memref<1x36x36x2xf32, #tpu.memory_space<vmem>>, vector<1x8x32x2xf32>
    %123 = vector.shape_cast %122 : vector<1x8x32x2xf32> to vector<8x32x2xf32>
    %124 = vector.shape_cast %123 : vector<8x32x2xf32> to vector<256x2xf32>
    %c13 = arith.constant 13 : index
    %c0_92 = arith.constant 0 : index
    %c0_93 = arith.constant 0 : index
    %125 = vector.load %arg3[%c13, %c0_92, %c0_93] : memref<25x2x64xf32, #tpu.memory_space<vmem>>, vector<1x2x64xf32>
    %126 = vector.shape_cast %125 : vector<1x2x64xf32> to vector<2x64xf32>
    %cst_94 = arith.constant dense<0.000000e+00> : vector<256x64xf32>
    %127 = tpu.matmul %124, %126, %cst_94 {dimension_numbers = #tpu.dot_dimension_numbers<[1], [0], [0], [1], [0, 0, 1, 1], [], []>} : vector<256x2xf32>, vector<2x64xf32>, vector<256x64xf32> -> vector<256x64xf32>
    %128 = arith.addf %119, %127 : vector<256x64xf32>
    %c2_i32_95 = arith.constant 2 : i32
    %129 = arith.addi %1, %c2_i32_95 : i32
    %c0_96 = arith.constant 0 : index
    %130 = arith.index_cast %129 : i32 to index
    %c4_97 = arith.constant 4 : index
    %c0_98 = arith.constant 0 : index
    %131 = vector.load %arg2[%c0_96, %130, %c4_97, %c0_98] : memref<1x36x36x2xf32, #tpu.memory_space<vmem>>, vector<1x8x32x2xf32>
    %132 = vector.shape_cast %131 : vector<1x8x32x2xf32> to vector<8x32x2xf32>
    %133 = vector.shape_cast %132 : vector<8x32x2xf32> to vector<256x2xf32>
    %c14 = arith.constant 14 : index
    %c0_99 = arith.constant 0 : index
    %c0_100 = arith.constant 0 : index
    %134 = vector.load %arg3[%c14, %c0_99, %c0_100] : memref<25x2x64xf32, #tpu.memory_space<vmem>>, vector<1x2x64xf32>
    %135 = vector.shape_cast %134 : vector<1x2x64xf32> to vector<2x64xf32>
    %cst_101 = arith.constant dense<0.000000e+00> : vector<256x64xf32>
    %136 = tpu.matmul %133, %135, %cst_101 {dimension_numbers = #tpu.dot_dimension_numbers<[1], [0], [0], [1], [0, 0, 1, 1], [], []>} : vector<256x2xf32>, vector<2x64xf32>, vector<256x64xf32> -> vector<256x64xf32>
    %137 = arith.addf %128, %136 : vector<256x64xf32>
    %c3_i32 = arith.constant 3 : i32
    %138 = arith.addi %1, %c3_i32 : i32
    %c0_102 = arith.constant 0 : index
    %139 = arith.index_cast %138 : i32 to index
    %c0_103 = arith.constant 0 : index
    %c0_104 = arith.constant 0 : index
    %140 = vector.load %arg2[%c0_102, %139, %c0_103, %c0_104] : memref<1x36x36x2xf32, #tpu.memory_space<vmem>>, vector<1x8x32x2xf32>
    %141 = vector.shape_cast %140 : vector<1x8x32x2xf32> to vector<8x32x2xf32>
    %142 = vector.shape_cast %141 : vector<8x32x2xf32> to vector<256x2xf32>
    %c15 = arith.constant 15 : index
    %c0_105 = arith.constant 0 : index
    %c0_106 = arith.constant 0 : index
    %143 = vector.load %arg3[%c15, %c0_105, %c0_106] : memref<25x2x64xf32, #tpu.memory_space<vmem>>, vector<1x2x64xf32>
    %144 = vector.shape_cast %143 : vector<1x2x64xf32> to vector<2x64xf32>
    %cst_107 = arith.constant dense<0.000000e+00> : vector<256x64xf32>
    %145 = tpu.matmul %142, %144, %cst_107 {dimension_numbers = #tpu.dot_dimension_numbers<[1], [0], [0], [1], [0, 0, 1, 1], [], []>} : vector<256x2xf32>, vector<2x64xf32>, vector<256x64xf32> -> vector<256x64xf32>
    %146 = arith.addf %137, %145 : vector<256x64xf32>
    %c3_i32_108 = arith.constant 3 : i32
    %147 = arith.addi %1, %c3_i32_108 : i32
    %c0_109 = arith.constant 0 : index
    %148 = arith.index_cast %147 : i32 to index
    %c1_110 = arith.constant 1 : index
    %c0_111 = arith.constant 0 : index
    %149 = vector.load %arg2[%c0_109, %148, %c1_110, %c0_111] : memref<1x36x36x2xf32, #tpu.memory_space<vmem>>, vector<1x8x32x2xf32>
    %150 = vector.shape_cast %149 : vector<1x8x32x2xf32> to vector<8x32x2xf32>
    %151 = vector.shape_cast %150 : vector<8x32x2xf32> to vector<256x2xf32>
    %c16 = arith.constant 16 : index
    %c0_112 = arith.constant 0 : index
    %c0_113 = arith.constant 0 : index
    %152 = vector.load %arg3[%c16, %c0_112, %c0_113] : memref<25x2x64xf32, #tpu.memory_space<vmem>>, vector<1x2x64xf32>
    %153 = vector.shape_cast %152 : vector<1x2x64xf32> to vector<2x64xf32>
    %cst_114 = arith.constant dense<0.000000e+00> : vector<256x64xf32>
    %154 = tpu.matmul %151, %153, %cst_114 {dimension_numbers = #tpu.dot_dimension_numbers<[1], [0], [0], [1], [0, 0, 1, 1], [], []>} : vector<256x2xf32>, vector<2x64xf32>, vector<256x64xf32> -> vector<256x64xf32>
    %155 = arith.addf %146, %154 : vector<256x64xf32>
    %c3_i32_115 = arith.constant 3 : i32
    %156 = arith.addi %1, %c3_i32_115 : i32
    %c0_116 = arith.constant 0 : index
    %157 = arith.index_cast %156 : i32 to index
    %c2_117 = arith.constant 2 : index
    %c0_118 = arith.constant 0 : index
    %158 = vector.load %arg2[%c0_116, %157, %c2_117, %c0_118] : memref<1x36x36x2xf32, #tpu.memory_space<vmem>>, vector<1x8x32x2xf32>
    %159 = vector.shape_cast %158 : vector<1x8x32x2xf32> to vector<8x32x2xf32>
    %160 = vector.shape_cast %159 : vector<8x32x2xf32> to vector<256x2xf32>
    %c17 = arith.constant 17 : index
    %c0_119 = arith.constant 0 : index
    %c0_120 = arith.constant 0 : index
    %161 = vector.load %arg3[%c17, %c0_119, %c0_120] : memref<25x2x64xf32, #tpu.memory_space<vmem>>, vector<1x2x64xf32>
    %162 = vector.shape_cast %161 : vector<1x2x64xf32> to vector<2x64xf32>
    %cst_121 = arith.constant dense<0.000000e+00> : vector<256x64xf32>
    %163 = tpu.matmul %160, %162, %cst_121 {dimension_numbers = #tpu.dot_dimension_numbers<[1], [0], [0], [1], [0, 0, 1, 1], [], []>} : vector<256x2xf32>, vector<2x64xf32>, vector<256x64xf32> -> vector<256x64xf32>
    %164 = arith.addf %155, %163 : vector<256x64xf32>
    %c3_i32_122 = arith.constant 3 : i32
    %165 = arith.addi %1, %c3_i32_122 : i32
    %c0_123 = arith.constant 0 : index
    %166 = arith.index_cast %165 : i32 to index
    %c3_124 = arith.constant 3 : index
    %c0_125 = arith.constant 0 : index
    %167 = vector.load %arg2[%c0_123, %166, %c3_124, %c0_125] : memref<1x36x36x2xf32, #tpu.memory_space<vmem>>, vector<1x8x32x2xf32>
    %168 = vector.shape_cast %167 : vector<1x8x32x2xf32> to vector<8x32x2xf32>
    %169 = vector.shape_cast %168 : vector<8x32x2xf32> to vector<256x2xf32>
    %c18 = arith.constant 18 : index
    %c0_126 = arith.constant 0 : index
    %c0_127 = arith.constant 0 : index
    %170 = vector.load %arg3[%c18, %c0_126, %c0_127] : memref<25x2x64xf32, #tpu.memory_space<vmem>>, vector<1x2x64xf32>
    %171 = vector.shape_cast %170 : vector<1x2x64xf32> to vector<2x64xf32>
    %cst_128 = arith.constant dense<0.000000e+00> : vector<256x64xf32>
    %172 = tpu.matmul %169, %171, %cst_128 {dimension_numbers = #tpu.dot_dimension_numbers<[1], [0], [0], [1], [0, 0, 1, 1], [], []>} : vector<256x2xf32>, vector<2x64xf32>, vector<256x64xf32> -> vector<256x64xf32>
    %173 = arith.addf %164, %172 : vector<256x64xf32>
    %c3_i32_129 = arith.constant 3 : i32
    %174 = arith.addi %1, %c3_i32_129 : i32
    %c0_130 = arith.constant 0 : index
    %175 = arith.index_cast %174 : i32 to index
    %c4_131 = arith.constant 4 : index
    %c0_132 = arith.constant 0 : index
    %176 = vector.load %arg2[%c0_130, %175, %c4_131, %c0_132] : memref<1x36x36x2xf32, #tpu.memory_space<vmem>>, vector<1x8x32x2xf32>
    %177 = vector.shape_cast %176 : vector<1x8x32x2xf32> to vector<8x32x2xf32>
    %178 = vector.shape_cast %177 : vector<8x32x2xf32> to vector<256x2xf32>
    %c19 = arith.constant 19 : index
    %c0_133 = arith.constant 0 : index
    %c0_134 = arith.constant 0 : index
    %179 = vector.load %arg3[%c19, %c0_133, %c0_134] : memref<25x2x64xf32, #tpu.memory_space<vmem>>, vector<1x2x64xf32>
    %180 = vector.shape_cast %179 : vector<1x2x64xf32> to vector<2x64xf32>
    %cst_135 = arith.constant dense<0.000000e+00> : vector<256x64xf32>
    %181 = tpu.matmul %178, %180, %cst_135 {dimension_numbers = #tpu.dot_dimension_numbers<[1], [0], [0], [1], [0, 0, 1, 1], [], []>} : vector<256x2xf32>, vector<2x64xf32>, vector<256x64xf32> -> vector<256x64xf32>
    %182 = arith.addf %173, %181 : vector<256x64xf32>
    %c4_i32 = arith.constant 4 : i32
    %183 = arith.addi %1, %c4_i32 : i32
    %c0_136 = arith.constant 0 : index
    %184 = arith.index_cast %183 : i32 to index
    %c0_137 = arith.constant 0 : index
    %c0_138 = arith.constant 0 : index
    %185 = vector.load %arg2[%c0_136, %184, %c0_137, %c0_138] : memref<1x36x36x2xf32, #tpu.memory_space<vmem>>, vector<1x8x32x2xf32>
    %186 = vector.shape_cast %185 : vector<1x8x32x2xf32> to vector<8x32x2xf32>
    %187 = vector.shape_cast %186 : vector<8x32x2xf32> to vector<256x2xf32>
    %c20 = arith.constant 20 : index
    %c0_139 = arith.constant 0 : index
    %c0_140 = arith.constant 0 : index
    %188 = vector.load %arg3[%c20, %c0_139, %c0_140] : memref<25x2x64xf32, #tpu.memory_space<vmem>>, vector<1x2x64xf32>
    %189 = vector.shape_cast %188 : vector<1x2x64xf32> to vector<2x64xf32>
    %cst_141 = arith.constant dense<0.000000e+00> : vector<256x64xf32>
    %190 = tpu.matmul %187, %189, %cst_141 {dimension_numbers = #tpu.dot_dimension_numbers<[1], [0], [0], [1], [0, 0, 1, 1], [], []>} : vector<256x2xf32>, vector<2x64xf32>, vector<256x64xf32> -> vector<256x64xf32>
    %191 = arith.addf %182, %190 : vector<256x64xf32>
    %c4_i32_142 = arith.constant 4 : i32
    %192 = arith.addi %1, %c4_i32_142 : i32
    %c0_143 = arith.constant 0 : index
    %193 = arith.index_cast %192 : i32 to index
    %c1_144 = arith.constant 1 : index
    %c0_145 = arith.constant 0 : index
    %194 = vector.load %arg2[%c0_143, %193, %c1_144, %c0_145] : memref<1x36x36x2xf32, #tpu.memory_space<vmem>>, vector<1x8x32x2xf32>
    %195 = vector.shape_cast %194 : vector<1x8x32x2xf32> to vector<8x32x2xf32>
    %196 = vector.shape_cast %195 : vector<8x32x2xf32> to vector<256x2xf32>
    %c21 = arith.constant 21 : index
    %c0_146 = arith.constant 0 : index
    %c0_147 = arith.constant 0 : index
    %197 = vector.load %arg3[%c21, %c0_146, %c0_147] : memref<25x2x64xf32, #tpu.memory_space<vmem>>, vector<1x2x64xf32>
    %198 = vector.shape_cast %197 : vector<1x2x64xf32> to vector<2x64xf32>
    %cst_148 = arith.constant dense<0.000000e+00> : vector<256x64xf32>
    %199 = tpu.matmul %196, %198, %cst_148 {dimension_numbers = #tpu.dot_dimension_numbers<[1], [0], [0], [1], [0, 0, 1, 1], [], []>} : vector<256x2xf32>, vector<2x64xf32>, vector<256x64xf32> -> vector<256x64xf32>
    %200 = arith.addf %191, %199 : vector<256x64xf32>
    %c4_i32_149 = arith.constant 4 : i32
    %201 = arith.addi %1, %c4_i32_149 : i32
    %c0_150 = arith.constant 0 : index
    %202 = arith.index_cast %201 : i32 to index
    %c2_151 = arith.constant 2 : index
    %c0_152 = arith.constant 0 : index
    %203 = vector.load %arg2[%c0_150, %202, %c2_151, %c0_152] : memref<1x36x36x2xf32, #tpu.memory_space<vmem>>, vector<1x8x32x2xf32>
    %204 = vector.shape_cast %203 : vector<1x8x32x2xf32> to vector<8x32x2xf32>
    %205 = vector.shape_cast %204 : vector<8x32x2xf32> to vector<256x2xf32>
    %c22 = arith.constant 22 : index
    %c0_153 = arith.constant 0 : index
    %c0_154 = arith.constant 0 : index
    %206 = vector.load %arg3[%c22, %c0_153, %c0_154] : memref<25x2x64xf32, #tpu.memory_space<vmem>>, vector<1x2x64xf32>
    %207 = vector.shape_cast %206 : vector<1x2x64xf32> to vector<2x64xf32>
    %cst_155 = arith.constant dense<0.000000e+00> : vector<256x64xf32>
    %208 = tpu.matmul %205, %207, %cst_155 {dimension_numbers = #tpu.dot_dimension_numbers<[1], [0], [0], [1], [0, 0, 1, 1], [], []>} : vector<256x2xf32>, vector<2x64xf32>, vector<256x64xf32> -> vector<256x64xf32>
    %209 = arith.addf %200, %208 : vector<256x64xf32>
    %c4_i32_156 = arith.constant 4 : i32
    %210 = arith.addi %1, %c4_i32_156 : i32
    %c0_157 = arith.constant 0 : index
    %211 = arith.index_cast %210 : i32 to index
    %c3_158 = arith.constant 3 : index
    %c0_159 = arith.constant 0 : index
    %212 = vector.load %arg2[%c0_157, %211, %c3_158, %c0_159] : memref<1x36x36x2xf32, #tpu.memory_space<vmem>>, vector<1x8x32x2xf32>
    %213 = vector.shape_cast %212 : vector<1x8x32x2xf32> to vector<8x32x2xf32>
    %214 = vector.shape_cast %213 : vector<8x32x2xf32> to vector<256x2xf32>
    %c23 = arith.constant 23 : index
    %c0_160 = arith.constant 0 : index
    %c0_161 = arith.constant 0 : index
    %215 = vector.load %arg3[%c23, %c0_160, %c0_161] : memref<25x2x64xf32, #tpu.memory_space<vmem>>, vector<1x2x64xf32>
    %216 = vector.shape_cast %215 : vector<1x2x64xf32> to vector<2x64xf32>
    %cst_162 = arith.constant dense<0.000000e+00> : vector<256x64xf32>
    %217 = tpu.matmul %214, %216, %cst_162 {dimension_numbers = #tpu.dot_dimension_numbers<[1], [0], [0], [1], [0, 0, 1, 1], [], []>} : vector<256x2xf32>, vector<2x64xf32>, vector<256x64xf32> -> vector<256x64xf32>
    %218 = arith.addf %209, %217 : vector<256x64xf32>
    %c4_i32_163 = arith.constant 4 : i32
    %219 = arith.addi %1, %c4_i32_163 : i32
    %c0_164 = arith.constant 0 : index
    %220 = arith.index_cast %219 : i32 to index
    %c4_165 = arith.constant 4 : index
    %c0_166 = arith.constant 0 : index
    %221 = vector.load %arg2[%c0_164, %220, %c4_165, %c0_166] : memref<1x36x36x2xf32, #tpu.memory_space<vmem>>, vector<1x8x32x2xf32>
    %222 = vector.shape_cast %221 : vector<1x8x32x2xf32> to vector<8x32x2xf32>
    %223 = vector.shape_cast %222 : vector<8x32x2xf32> to vector<256x2xf32>
    %c24 = arith.constant 24 : index
    %c0_167 = arith.constant 0 : index
    %c0_168 = arith.constant 0 : index
    %224 = vector.load %arg3[%c24, %c0_167, %c0_168] : memref<25x2x64xf32, #tpu.memory_space<vmem>>, vector<1x2x64xf32>
    %225 = vector.shape_cast %224 : vector<1x2x64xf32> to vector<2x64xf32>
    %cst_169 = arith.constant dense<0.000000e+00> : vector<256x64xf32>
    %226 = tpu.matmul %223, %225, %cst_169 {dimension_numbers = #tpu.dot_dimension_numbers<[1], [0], [0], [1], [0, 0, 1, 1], [], []>} : vector<256x2xf32>, vector<2x64xf32>, vector<256x64xf32> -> vector<256x64xf32>
    %227 = arith.addf %218, %226 : vector<256x64xf32>
    %c0_170 = arith.constant 0 : index
    %c0_171 = arith.constant 0 : index
    %228 = vector.load %arg4[%c0_170, %c0_171] : memref<1x64xf32, #tpu.memory_space<vmem>>, vector<1x64xf32>
    %229 = vector.broadcast %228 : vector<1x64xf32> to vector<256x64xf32>
    %230 = arith.mulf %227, %229 : vector<256x64xf32>
    %c0_172 = arith.constant 0 : index
    %c0_173 = arith.constant 0 : index
    %231 = vector.load %arg5[%c0_172, %c0_173] : memref<1x64xf32, #tpu.memory_space<vmem>>, vector<1x64xf32>
    %232 = vector.broadcast %231 : vector<1x64xf32> to vector<256x64xf32>
    %233 = arith.addf %230, %232 : vector<256x64xf32>
    %cst_174 = arith.constant 0.000000e+00 : f32
    %234 = vector.broadcast %cst_174 : f32 to vector<256x64xf32>
    %235 = arith.maximumf %233, %234 : vector<256x64xf32>
    %236 = vector.shape_cast %235 : vector<256x64xf32> to vector<8x32x64xf32>
    %c0_175 = arith.constant 0 : index
    %c0_176 = arith.constant 0 : index
    %c0_177 = arith.constant 0 : index
    %c0_178 = arith.constant 0 : index
    %237 = vector.load %arg6[%c0_175, %c0_176, %c0_177, %c0_178] : memref<1x8x32x64xf32, #tpu.memory_space<vmem>>, vector<1x8x32x64xf32>
    %238 = vector.shape_cast %237 : vector<1x8x32x64xf32> to vector<8x32x64xf32>
    %239 = vector.shape_cast %236 : vector<8x32x64xf32> to vector<1x8x32x64xf32>
    tpu.vector_store %arg6[%c0_175, %c0_176, %c0_177, %c0_178], %239 {strides = array<i32>} : memref<1x8x32x64xf32, #tpu.memory_space<vmem>>, vector<1x8x32x64xf32>,
    return
  }
  func.func @transform_0(%arg0: i32, %arg1: i32) -> (i32, i32, i32, i32) {
    %c0_i32 = arith.constant 0 : i32
    %c0_i32_0 = arith.constant 0 : i32
    %c0_i32_1 = arith.constant 0 : i32
    %c0_i32_2 = arith.constant 0 : i32
    return %arg0, %c0_i32, %c0_i32_0, %c0_i32_1 : i32, i32, i32, i32
  }
  func.func @transform_1(%arg0: i32, %arg1: i32) -> (i32, i32, i32) {
    %c0_i32 = arith.constant 0 : i32
    %c0_i32_0 = arith.constant 0 : i32
    %c0_i32_1 = arith.constant 0 : i32
    %c0_i32_2 = arith.constant 0 : i32
    return %c0_i32, %c0_i32_0, %c0_i32_1 : i32, i32, i32
  }
  func.func @transform_2(%arg0: i32, %arg1: i32) -> (i32, i32) {
    %c0_i32 = arith.constant 0 : i32
    %c0_i32_0 = arith.constant 0 : i32
    %c0_i32_1 = arith.constant 0 : i32
    return %c0_i32, %c0_i32_0 : i32, i32
  }
  func.func @transform_3(%arg0: i32, %arg1: i32) -> (i32, i32) {
    %c0_i32 = arith.constant 0 : i32
    %c0_i32_0 = arith.constant 0 : i32
    %c0_i32_1 = arith.constant 0 : i32
    return %c0_i32, %c0_i32_0 : i32, i32
  }
  func.func @transform_4(%arg0: i32, %arg1: i32) -> (i32, i32, i32, i32) {
    %c0_i32 = arith.constant 0 : i32
    %c0_i32_0 = arith.constant 0 : i32
    %c0_i32_1 = arith.constant 0 : i32
    return %arg0, %arg1, %c0_i32, %c0_i32_0 : i32, i32, i32, i32
  }
}

</mosaic_0001>

<llo_original>
// kernel: tpu_custom_call.1
$region0: #{tpu_custom_call.1}
  #allocation0 [shape = 'u32[]', space=smem, size = 0x4, offset = 0x4, fixed_abs, tag = 'smem constant byte address 0x4 - core index']
  #allocation1 [shape = 'u32[144,128]{1,0:T(1,128)}', space=vmem, size = 0x12000, scoped, tag = 'internal scratch']
  %s0 = inlined_call_operand.vmem [shape: f32[2,36,36,2], index: 0, kind: input, shape index: {}]
  %s1 = inlined_call_operand.vmem [shape: f32[25,2,64], index: 1, kind: input, shape index: {}]
  %s2 = inlined_call_operand.vmem [shape: f32[1,64], index: 2, kind: input, shape index: {}]
  %s3 = inlined_call_operand.vmem [shape: f32[1,64], index: 3, kind: input, shape index: {}]
  %s4 = inlined_call_operand.hbm [shape: f32[2,32,32,64], index: 4, kind: output, shape index: {}]
  %s5 = sld [smem:[#allocation0]]
  $region49: #{tpu_custom_call.1} parent=0
    _
  %s7 = ssub.s32 1, %s5
  %s8 = scalar_select 0, %s7, %s5
  $region1: #{tpu_custom_call.1} parent=0
    #allocation2 [shape = 'u8[262144]{0}', space=vmem, size = 0x40000, scoped, tag = 'output window, operand 0']
    #allocation3 [shape = 's32[2]{0}', space=sflag, size = 0x8, scoped, tag = 'scoped memory for tpu_custom_call.1']
    %9 = vsyncpa [#allocation3], 0
    %s10 = scalar_lea.sflag [#allocation3], 1
    %11 = vsyncpa %s10, 0
    loop: start=0, step=1, limit=10
    $region2: #{tpu_custom_call.1} parent=1 // loop_pre_header
      _
    $region3: #{tpu_custom_call.1} parent=1 // loop_header
      %s13 = sphi 0, %s17
      %p14 = scmp.ge.s32.totalorder %s13, 10
      %s20 = sphi 0, %s32
      %s21 = sphi 0, %s28
      %s22 = sphi 0, %s20
      %s23 = sphi 0, %s21
      %s24 = sphi 0, %s22
      %s25 = sphi 0, %s23
      %s35 = sphi 0, %s37
      %s38 = sphi 0, %s35
      %s39 = sphi 0, %s38
      %s55 = sphi 0, %s39
      %s59 = sphi 0, %s59
      %s61 = sphi 0, %s59
      %s62 = sphi 0, %s61
      %s76 = sphi 0, %s62
      %s80 = sphi 0, %s80
      %s82 = sphi 0, %s80
      %s83 = sphi 0, %s82
      %s97 = sphi 0, %s83
      %s101 = sphi 0, %s101
      %s103 = sphi 0, %s101
      %s104 = sphi 0, %s103
      %s118 = sphi 0, %s104
      %s126 = sphi 0, %s128
      %s129 = sphi 0, %s126
      %s130 = sphi 0, %s129
      %s146 = sphi 0, %s130
    $region4: #{tpu_custom_call.1} parent=1 // loop_header_branch
      %16 = sbr.rel (%p14) target = $region8
    $region5: #{tpu_custom_call.1} parent=1 // loop_body
      %s18 = ssub.s32 %s13, 1
      %s19 = ssub.s32 %s13, 2
      %s26 = sadd.s32 1, %s21
      %p27 = scmp.ge.s32.totalorder %s26, 4
      %s28 = scalar_select %p27, 0, %s26
      %s29 = sadd.s32 1, %s20
      %s30 = scalar_select %p27, %s29, %s20
      %p31 = scmp.ge.s32.totalorder %s30, 2
      %s32 = scalar_select %p31, 0, %s30
      %s33 = ssub.s32 %s20, %s32
      %p34 = scmp.eq.s32.totalorder %s33, 0
      %s36 = sadd.s32 %s35, 1
      %s37 = scalar_select %p34, %s35, %s36
      %p40 = pneg %p34
      %p41 = scmp.eq.s32.totalorder %s13, 7
      %p42 = por %p40, %p41
      %p43 = scmp.ne.s32.totalorder %s35, %s38
      %p44 = scmp.eq.s32.totalorder %s13, 0
      %p45 = por %p43, %p44
      %p46 = scmp.ne.s32.totalorder %s35, %s38
      %p47 = scmp.eq.s32.totalorder %s18, 7
      %p48 = por %p46, %p47
      %p49 = scmp.ne.s32.totalorder %s38, %s39
      %p50 = scmp.eq.s32.totalorder %s18, 0
      %p51 = por %p49, %p50
      %p52 = scmp.ne.s32.totalorder %s38, %s39
      %p53 = scmp.eq.s32.totalorder %s19, 7
      %p54 = por %p52, %p53
      %p56 = scmp.ne.s32.totalorder %s39, %s55
      %p57 = scmp.eq.s32.totalorder %s19, 0
      %p58 = por %p56, %p57
      %s60 = sadd.s32 %s59, 1
      %p63 = scmp.eq.s32.totalorder %s13, 7
      %p64 = scmp.ne.s32.totalorder %s59, %s61
      %p65 = scmp.eq.s32.totalorder %s13, 0
      %p66 = por %p64, %p65
      %p67 = scmp.ne.s32.totalorder %s59, %s61
      %p68 = scmp.eq.s32.totalorder %s18, 7
      %p69 = por %p67, %p68
      %p70 = scmp.ne.s32.totalorder %s61, %s62
      %p71 = scmp.eq.s32.totalorder %s18, 0
      %p72 = por %p70, %p71
      %p73 = scmp.ne.s32.totalorder %s61, %s62
      %p74 = scmp.eq.s32.totalorder %s19, 7
      %p75 = por %p73, %p74
      %p77 = scmp.ne.s32.totalorder %s62, %s76
      %p78 = scmp.eq.s32.totalorder %s19, 0
      %p79 = por %p77, %p78
      %s81 = sadd.s32 %s80, 1
      %p84 = scmp.eq.s32.totalorder %s13, 7
      %p85 = scmp.ne.s32.totalorder %s80, %s82
      %p86 = scmp.eq.s32.totalorder %s13, 0
      %p87 = por %p85, %p86
      %p88 = scmp.ne.s32.totalorder %s80, %s82
      %p89 = scmp.eq.s32.totalorder %s18, 7
      %p90 = por %p88, %p89
      %p91 = scmp.ne.s32.totalorder %s82, %s83
      %p92 = scmp.eq.s32.totalorder %s18, 0
      %p93 = por %p91, %p92
      %p94 = scmp.ne.s32.totalorder %s82, %s83
      %p95 = scmp.eq.s32.totalorder %s19, 7
      %p96 = por %p94, %p95
      %p98 = scmp.ne.s32.totalorder %s83, %s97
      %p99 = scmp.eq.s32.totalorder %s19, 0
      %p100 = por %p98, %p99
      %s102 = sadd.s32 %s101, 1
      %p105 = scmp.eq.s32.totalorder %s13, 7
      %p106 = scmp.ne.s32.totalorder %s101, %s103
      %p107 = scmp.eq.s32.totalorder %s13, 0
      %p108 = por %p106, %p107
      %p109 = scmp.ne.s32.totalorder %s101, %s103
      %p110 = scmp.eq.s32.totalorder %s18, 7
      %p111 = por %p109, %p110
      %p112 = scmp.ne.s32.totalorder %s103, %s104
      %p113 = scmp.eq.s32.totalorder %s18, 0
      %p114 = por %p112, %p113
      %p115 = scmp.ne.s32.totalorder %s103, %s104
      %p116 = scmp.eq.s32.totalorder %s19, 7
      %p117 = por %p115, %p116
      %p119 = scmp.ne.s32.totalorder %s104, %s118
      %p120 = scmp.eq.s32.totalorder %s19, 0
      %p121 = por %p119, %p120
      %s122 = ssub.s32 %s20, %s32
      %s123 = ssub.s32 %s21, %s28
      %s124 = sor.u32 %s122, %s123
      %p125 = scmp.eq.s32.totalorder %s124, 0
      %s127 = sadd.s32 %s126, 1
      %s128 = scalar_select %p125, %s126, %s127
      %p131 = pneg %p125
      %p132 = scmp.eq.s32.totalorder %s13, 7
      %p133 = por %p131, %p132
      %p134 = scmp.ne.s32.totalorder %s126, %s129
      %p135 = scmp.eq.s32.totalorder %s13, 0
      %p136 = por %p134, %p135
      %p137 = scmp.ne.s32.totalorder %s126, %s129
      %p138 = scmp.eq.s32.totalorder %s18, 7
      %p139 = por %p137, %p138
      %p140 = scmp.ne.s32.totalorder %s129, %s130
      %p141 = scmp.eq.s32.totalorder %s18, 0
      %p142 = por %p140, %p141
      %p143 = scmp.ne.s32.totalorder %s129, %s130
      %p144 = scmp.eq.s32.totalorder %s19, 7
      %p145 = por %p143, %p144
      %p147 = scmp.ne.s32.totalorder %s130, %s146
      %p148 = scmp.eq.s32.totalorder %s19, 0
      %p149 = por %p147, %p148
      %p150 = scmp.le.s32.totalorder 1, %s13
      %p151 = scmp.lt.s32.totalorder %s13, 9
      %p152 = pnand %p150, %p151
      %p153 = pneg %p152
      // Predicated region
      $region9: #{tpu_custom_call.1} parent=5 // pred_check
        _
      $region10: #{tpu_custom_call.1} parent=5 // pred_check_branch
        %155 = sbr.rel (%p152) target = $region12
      $region11: #{tpu_custom_call.1} parent=5 // pred_region
        %s156 = ssub.s32 %s13, 1
        // Predicated region
        $region13: #{tpu_custom_call.1} parent=11 // pred_check
          %p157 = pneg %p72
        $region14: #{tpu_custom_call.1} parent=11 // pred_check_branch
          %159 = sbr.rel (%p157) target = $region16
        $region15: #{tpu_custom_call.1} parent=11 // pred_region
          _
        $region16: #{tpu_custom_call.1} parent=11 // pred_fallthru
          _
        // Predicated region
        $region17: #{tpu_custom_call.1} parent=11 // pred_check
          %p160 = pneg %p93
        $region18: #{tpu_custom_call.1} parent=11 // pred_check_branch
          %162 = sbr.rel (%p160) target = $region20
        $region19: #{tpu_custom_call.1} parent=11 // pred_region
          _
        $region20: #{tpu_custom_call.1} parent=11 // pred_fallthru
          _
        // Predicated region
        $region21: #{tpu_custom_call.1} parent=11 // pred_check
          %p163 = pneg %p114
        $region22: #{tpu_custom_call.1} parent=11 // pred_check_branch
          %165 = sbr.rel (%p163) target = $region24
        $region23: #{tpu_custom_call.1} parent=11 // pred_region
          _
        $region24: #{tpu_custom_call.1} parent=11 // pred_fallthru
          _
      $region12: #{tpu_custom_call.1} parent=5 // pred_fallthru
        _
      %p166 = scmp.lt.s32.totalorder %s13, 8
      // Predicated region
      $region25: #{tpu_custom_call.1} parent=5 // pred_check
        %p167 = pneg %p166
      $region26: #{tpu_custom_call.1} parent=5 // pred_check_branch
        %169 = sbr.rel (%p167) target = $region28
      $region27: #{tpu_custom_call.1} parent=5 // pred_region
        // Predicated region
        $region29: #{tpu_custom_call.1} parent=27 // pred_check
          %p170 = pneg %p45
        $region30: #{tpu_custom_call.1} parent=27 // pred_check_branch
          %172 = sbr.rel (%p170) target = $region32
        $region31: #{tpu_custom_call.1} parent=27 // pred_region
          %p173 = scmp.lt.s32.totalorder %s20, 1
          %s174 = scalar_select %p173, %s20, 1
          %s175 = smul.addr %s174, 180
          %s176 = smul.addr %s175, 8
          %s177 = scalar_lea.vmem %s0, %s176
        $region32: #{tpu_custom_call.1} parent=27 // pred_fallthru
          _
      $region28: #{tpu_custom_call.1} parent=5 // pred_fallthru
        _
      %p178 = scmp.le.s32.totalorder 1, %s13
      %p179 = scmp.lt.s32.totalorder %s13, 9
      %p180 = pnand %p178, %p179
      %p181 = pneg %p180
      // Predicated region
      $region33: #{tpu_custom_call.1} parent=5 // pred_check
        _
      $region34: #{tpu_custom_call.1} parent=5 // pred_check_branch
        %183 = sbr.rel (%p180) target = $region36
      $region35: #{tpu_custom_call.1} parent=5 // pred_region
        %s184 = ssub.s32 %s13, 1
        %p185 = scmp.lt.s32.totalorder %s22, 1
        %s186 = scalar_select %p185, %s22, 1
        %s187 = smul.addr %s186, 180
        %s188 = smul.addr %s187, 8
        %s189 = scalar_lea.vmem %s0, %s188
        %p190 = pneg %p51
        %p191 = pneg %p48
        %p192 = pneg %p72
        %p193 = pneg %p69
        %p194 = pneg %p93
        %p195 = pneg %p90
        %p196 = pneg %p114
        %p197 = pneg %p111
        %p198 = pneg %p142
        %p199 = pneg %p139
        %s200 = sand.u32 %s129, 1
        %s201 = scalar_lea.sflag [#allocation3], %s200
        %s202 = sand.u32 %s129, 1
        %s203 = smul.addr %s202, 256
        %s204 = scalar_lea.vmem [#allocation2], %s203
        %p205 = scmp.lt.s32.totalorder %s22, 1
        %s206 = scalar_select %p205, %s22, 1
        %s207 = smul.addr %s206, 180
        %s208 = smul.addr %s207, 8
        %s209 = scalar_lea.vmem %s0, %s208
        %s210 = smul.u32 8, %s23
        %s211 = smul.u32 %s23, 8
        %s212 = smul.u32 %s211, 40
        %s213 = scalar_lea.vmem %s209, %s212
        %v214 = vld [vmem:[%s213] sm:$0xff]
        %v215 = vld [vmem:[%s213 + $0x8] sm:$0xff]
        %v216 = vld [vmem:[%s213 + $0x10] sm:$0xff]
        %v217 = vld [vmem:[%s213 + $0x18] sm:$0xff]
        %v218 = vld [vmem:[%s213 + $0x28] sm:$0xff]
        %v219 = vld [vmem:[%s213 + $0x30] sm:$0xff]
        %v220 = vld [vmem:[%s213 + $0x38] sm:$0xff]
        %v221 = vld [vmem:[%s213 + $0x40] sm:$0xff]
        %v222 = vld [vmem:[%s213 + $0x50] sm:$0xff]
        %v223 = vld [vmem:[%s213 + $0x58] sm:$0xff]
        %v224 = vld [vmem:[%s213 + $0x60] sm:$0xff]
        %v225 = vld [vmem:[%s213 + $0x68] sm:$0xff]
        %v226 = vld [vmem:[%s213 + $0x78] sm:$0xff]
        %v227 = vld [vmem:[%s213 + $0x80] sm:$0xff]
        %v228 = vld [vmem:[%s213 + $0x88] sm:$0xff]
        %v229 = vld [vmem:[%s213 + $0x90] sm:$0xff]
        %v230 = vld [vmem:[%s213 + $0xa0] sm:$0xff]
        %v231 = vld [vmem:[%s213 + $0xa8] sm:$0xff]
        %v232 = vld [vmem:[%s213 + $0xb0] sm:$0xff]
        %v233 = vld [vmem:[%s213 + $0xb8] sm:$0xff]
        %v234 = vld [vmem:[%s213 + $0xc8] sm:$0xff]
        %v235 = vld [vmem:[%s213 + $0xd0] sm:$0xff]
        %v236 = vld [vmem:[%s213 + $0xd8] sm:$0xff]
        %v237 = vld [vmem:[%s213 + $0xe0] sm:$0xff]
        %v238 = vld [vmem:[%s213 + $0xf0] sm:$0xff]
        %v239 = vld [vmem:[%s213 + $0xf8] sm:$0xff]
        %v240 = vld [vmem:[%s213 + $0x100] sm:$0xff]
        %v241 = vld [vmem:[%s213 + $0x108] sm:$0xff]
        %v242 = vld [vmem:[%s213 + $0x118] sm:$0xff]
        %v243 = vld [vmem:[%s213 + $0x120] sm:$0xff]
        %v244 = vld [vmem:[%s213 + $0x128] sm:$0xff]
        %v245 = vld [vmem:[%s213 + $0x130] sm:$0xff]
        %v246 = vld [vmem:[%s1] sm:$0x3]
        %v247 = vld [vmem:[%s213 + $0x1] sm:$0xff]
        %v248 = vld [vmem:[%s213 + $0x9] sm:$0xff]
        %v249 = vld [vmem:[%s213 + $0x11] sm:$0xff]
        %v250 = vld [vmem:[%s213 + $0x19] sm:$0xff]
        %v251 = vld [vmem:[%s213 + $0x29] sm:$0xff]
        %v252 = vld [vmem:[%s213 + $0x31] sm:$0xff]
        %v253 = vld [vmem:[%s213 + $0x39] sm:$0xff]
        %v254 = vld [vmem:[%s213 + $0x41] sm:$0xff]
        %v255 = vld [vmem:[%s213 + $0x51] sm:$0xff]
        %v256 = vld [vmem:[%s213 + $0x59] sm:$0xff]
        %v257 = vld [vmem:[%s213 + $0x61] sm:$0xff]
        %v258 = vld [vmem:[%s213 + $0x69] sm:$0xff]
        %v259 = vld [vmem:[%s213 + $0x79] sm:$0xff]
        %v260 = vld [vmem:[%s213 + $0x81] sm:$0xff]
        %v261 = vld [vmem:[%s213 + $0x89] sm:$0xff]
        %v262 = vld [vmem:[%s213 + $0x91] sm:$0xff]
        %v263 = vld [vmem:[%s213 + $0xa1] sm:$0xff]
        %v264 = vld [vmem:[%s213 + $0xa9] sm:$0xff]
        %v265 = vld [vmem:[%s213 + $0xb1] sm:$0xff]
        %v266 = vld [vmem:[%s213 + $0xb9] sm:$0xff]
        %v267 = vld [vmem:[%s213 + $0xc9] sm:$0xff]
        %v268 = vld [vmem:[%s213 + $0xd1] sm:$0xff]
        %v269 = vld [vmem:[%s213 + $0xd9] sm:$0xff]
        %v270 = vld [vmem:[%s213 + $0xe1] sm:$0xff]
        %v271 = vld [vmem:[%s213 + $0xf1] sm:$0xff]
        %v272 = vld [vmem:[%s213 + $0xf9] sm:$0xff]
        %v273 = vld [vmem:[%s213 + $0x101] sm:$0xff]
        %v274 = vld [vmem:[%s213 + $0x109] sm:$0xff]
        %v275 = vld [vmem:[%s213 + $0x119] sm:$0xff]
        %v276 = vld [vmem:[%s213 + $0x121] sm:$0xff]
        %v277 = vld [vmem:[%s213 + $0x129] sm:$0xff]
        %v278 = vld [vmem:[%s213 + $0x131] sm:$0xff]
        %s279 = scalar_lea.vmem %s1, 2
        %v280 = vld [vmem:[%s279] sm:$0x3]
        %vm281 = vcmask 15360
        %v283 = vsel %vm281, %v247, 0
        %v286 = vsel %vm281, %v248, 0
        %v289 = vsel %vm281, %v249, 0
        %v292 = vsel %vm281, %v250, 0
        %v295 = vsel %vm281, %v251, 0
        %v298 = vsel %vm281, %v252, 0
        %v301 = vsel %vm281, %v253, 0
        %v304 = vsel %vm281, %v254, 0
        %v307 = vsel %vm281, %v255, 0
        %v310 = vsel %vm281, %v256, 0
        %v313 = vsel %vm281, %v257, 0
        %v316 = vsel %vm281, %v258, 0
        %v319 = vsel %vm281, %v259, 0
        %v322 = vsel %vm281, %v260, 0
        %v325 = vsel %vm281, %v261, 0
        %v328 = vsel %vm281, %v262, 0
        %v331 = vsel %vm281, %v263, 0
        %v334 = vsel %vm281, %v264, 0
        %v337 = vsel %vm281, %v265, 0
        %v340 = vsel %vm281, %v266, 0
        %v343 = vsel %vm281, %v267, 0
        %v346 = vsel %vm281, %v268, 0
        %v349 = vsel %vm281, %v269, 0
        %v352 = vsel %vm281, %v270, 0
        %v355 = vsel %vm281, %v271, 0
        %v358 = vsel %vm281, %v272, 0
        %v361 = vsel %vm281, %v273, 0
        %v364 = vsel %vm281, %v274, 0
        %v367 = vsel %vm281, %v275, 0
        %v370 = vsel %vm281, %v276, 0
        %v373 = vsel %vm281, %v277, 0
        %v376 = vsel %vm281, %v278, 0
        %vm378 = vcmask 1041408
        %v380 = vsel %vm378, %v280, 0
        %382 = vmatprep.subr.mxu0 0.0
        %383 = vmatpush1.msra.mxu0 %v380
        %384 = vmatprep.subr.mxu0 0.0
        %385 = vmatpush1.msra.mxu0 0.0
        %386 = vmatprep.subr.mxu0 0.0
        %387 = vmatpush1.msra.mxu0 0.0
        %388 = vmatprep.subr.mxu0 0.0
        %389 = vmatpush1.msra.mxu0 0.0
        %390 = vmatprep.subr.mxu0 0.0
        %391 = vmatpush1.msra.mxu0 0.0
        %392 = vmatprep.subr.mxu0 0.0
        %393 = vmatpush1.msra.mxu0 0.0
        %394 = vmatprep.subr.mxu0 0.0
        %395 = vmatpush1.msra.mxu0 0.0
        %396 = vmatprep.subr.mxu0 0.0
        %397 = vmatpush1.msra.mxu0 0.0
        %398 = vmatprep.subr.mxu0 0.0
        %399 = vmatpush1.msra.mxu0 0.0
        %400 = vmatprep.subr.mxu0 0.0
        %401 = vmatpush1.msra.mxu0 0.0
        %402 = vmatprep.subr.mxu0 0.0
        %403 = vmatpush1.msra.mxu0 0.0
        %404 = vmatprep.subr.mxu0 0.0
        %405 = vmatpush1.msra.mxu0 0.0
        %406 = vmatprep.subr.mxu0 0.0
        %407 = vmatpush1.msra.mxu0 0.0
        %408 = vmatprep.subr.mxu0 0.0
        %409 = vmatpush1.msra.mxu0 0.0
        %410 = vmatprep.subr.mxu0 0.0
        %411 = vmatpush1.msra.mxu0 0.0
        %412 = vmatprep.subr.mxu0 0.0
        %413 = vmatpush1.msra.mxu0 0.0
        %414 = vmatprep.subr.mxu0 0.0
        %415 = vmatpush1.msra.mxu0 0.0
        %416 = vmatprep.subr.mxu0 0.0
        %417 = vmatpush1.msra.mxu0 0.0
        %418 = vmatprep.subr.mxu0 0.0
        %419 = vmatpush1.msra.mxu0 0.0
        %420 = vmatprep.subr.mxu0 0.0
        %421 = vmatpush1.msra.mxu0 0.0
        %422 = vmatprep.subr.mxu0 0.0
        %423 = vmatpush1.msra.mxu0 0.0
        %424 = vmatprep.subr.mxu0 0.0
        %425 = vmatpush1.msra.mxu0 0.0
        %426 = vmatprep.subr.mxu0 0.0
        %427 = vmatpush1.msra.mxu0 0.0
        %428 = vmatprep.subr.mxu0 0.0
        %429 = vmatpush1.msra.mxu0 0.0
        %430 = vmatprep.subr.mxu0 0.0
        %431 = vmatpush1.msra.mxu0 0.0
        %432 = vmatprep.subr.mxu0 0.0
        %433 = vmatpush1.msra.mxu0 0.0
        %434 = vmatprep.subr.mxu0 0.0
        %435 = vmatpush1.msra.mxu0 0.0
        %436 = vmatprep.subr.mxu0 0.0
        %437 = vmatpush1.msra.mxu0 0.0
        %438 = vmatprep.subr.mxu0 0.0
        %439 = vmatpush1.msra.mxu0 0.0
        %440 = vmatprep.subr.mxu0 0.0
        %441 = vmatpush1.msra.mxu0 0.0
        %442 = vmatprep.subr.mxu0 0.0
        %443 = vmatpush1.msra.mxu0 0.0
        %444 = vmatprep.subr.mxu0 0.0
        %445 = vmatpush1.msra.mxu0 0.0
        %446 = vmatprep.mubr.f32.mxu0 0.0
        %447 = vmatmul.mubr.f32.gmra.mrb[0].mxu0 %v283
        %v448 = vpop.f32.mrb[0].mxu0
        %v449 = vadd.f32 0.0, %v448
        %v450 = vpop.f32.mrb[0].mxu0
        %451 = vmatprep.mubr.f32.mxu0 0.0
        %452 = vmatmul.mubr.f32.gmra.mrb[0].mxu0 %v286
        %v453 = vpop.f32.mrb[0].mxu0
        %v454 = vadd.f32 0.0, %v453
        %v455 = vpop.f32.mrb[0].mxu0
        %456 = vmatprep.mubr.f32.mxu0 0.0
        %457 = vmatmul.mubr.f32.gmra.mrb[0].mxu0 %v289
        %v458 = vpop.f32.mrb[0].mxu0
        %v459 = vadd.f32 0.0, %v458
        %v460 = vpop.f32.mrb[0].mxu0
        %461 = vmatprep.mubr.f32.mxu0 0.0
        %462 = vmatmul.mubr.f32.gmra.mrb[0].mxu0 %v292
        %v463 = vpop.f32.mrb[0].mxu0
        %v464 = vadd.f32 0.0, %v463
        %v465 = vpop.f32.mrb[0].mxu0
        %466 = vmatprep.mubr.f32.mxu0 0.0
        %467 = vmatmul.mubr.f32.gmra.mrb[0].mxu0 %v295
        %v468 = vpop.f32.mrb[0].mxu0
        %v469 = vadd.f32 0.0, %v468
        %v470 = vpop.f32.mrb[0].mxu0
        %471 = vmatprep.mubr.f32.mxu0 0.0
        %472 = vmatmul.mubr.f32.gmra.mrb[0].mxu0 %v298
        %v473 = vpop.f32.mrb[0].mxu0
        %v474 = vadd.f32 0.0, %v473
        %v475 = vpop.f32.mrb[0].mxu0
        %476 = vmatprep.mubr.f32.mxu0 0.0
        %477 = vmatmul.mubr.f32.gmra.mrb[0].mxu0 %v301
        %v478 = vpop.f32.mrb[0].mxu0
        %v479 = vadd.f32 0.0, %v478
        %v480 = vpop.f32.mrb[0].mxu0
        %481 = vmatprep.mubr.f32.mxu0 0.0
        %482 = vmatmul.mubr.f32.gmra.mrb[0].mxu0 %v304
        %v483 = vpop.f32.mrb[0].mxu0
        %v484 = vadd.f32 0.0, %v483
        %v485 = vpop.f32.mrb[0].mxu0
        %486 = vmatprep.mubr.f32.mxu0 0.0
        %487 = vmatmul.mubr.f32.gmra.mrb[0].mxu0 %v307
        %v488 = vpop.f32.mrb[0].mxu0
        %v489 = vadd.f32 0.0, %v488
        %v490 = vpop.f32.mrb[0].mxu0
        %491 = vmatprep.mubr.f32.mxu0 0.0
        %492 = vmatmul.mubr.f32.gmra.mrb[0].mxu0 %v310
        %v493 = vpop.f32.mrb[0].mxu0
        %v494 = vadd.f32 0.0, %v493
        %v495 = vpop.f32.mrb[0].mxu0
        %496 = vmatprep.mubr.f32.mxu0 0.0
        %497 = vmatmul.mubr.f32.gmra.mrb[0].mxu0 %v313
        %v498 = vpop.f32.mrb[0].mxu0
        %v499 = vadd.f32 0.0, %v498
        %v500 = vpop.f32.mrb[0].mxu0
        %501 = vmatprep.mubr.f32.mxu0 0.0
        %502 = vmatmul.mubr.f32.gmra.mrb[0].mxu0 %v316
        %v503 = vpop.f32.mrb[0].mxu0
        %v504 = vadd.f32 0.0, %v503
        %v505 = vpop.f32.mrb[0].mxu0
        %506 = vmatprep.mubr.f32.mxu0 0.0
        %507 = vmatmul.mubr.f32.gmra.mrb[0].mxu0 %v319
        %v508 = vpop.f32.mrb[0].mxu0
        %v509 = vadd.f32 0.0, %v508
        %v510 = vpop.f32.mrb[0].mxu0
        %511 = vmatprep.mubr.f32.mxu0 0.0
        %512 = vmatmul.mubr.f32.gmra.mrb[0].mxu0 %v322
        %v513 = vpop.f32.mrb[0].mxu0
        %v514 = vadd.f32 0.0, %v513
        %v515 = vpop.f32.mrb[0].mxu0
        %516 = vmatprep.mubr.f32.mxu0 0.0
        %517 = vmatmul.mubr.f32.gmra.mrb[0].mxu0 %v325
        %v518 = vpop.f32.mrb[0].mxu0
        %v519 = vadd.f32 0.0, %v518
        %v520 = vpop.f32.mrb[0].mxu0
        %521 = vmatprep.mubr.f32.mxu0 0.0
        %522 = vmatmul.mubr.f32.gmra.mrb[0].mxu0 %v328
        %v523 = vpop.f32.mrb[0].mxu0
        %v524 = vadd.f32 0.0, %v523
        %v525 = vpop.f32.mrb[0].mxu0
        %526 = vmatprep.mubr.f32.mxu0 0.0
        %527 = vmatmul.mubr.f32.gmra.mrb[0].mxu0 %v331
        %v528 = vpop.f32.mrb[0].mxu0
        %v529 = vadd.f32 0.0, %v528
        %v530 = vpop.f32.mrb[0].mxu0
        %531 = vmatprep.mubr.f32.mxu0 0.0
        %532 = vmatmul.mubr.f32.gmra.mrb[0].mxu0 %v334
        %v533 = vpop.f32.mrb[0].mxu0
        %v534 = vadd.f32 0.0, %v533
        %v535 = vpop.f32.mrb[0].mxu0
        %536 = vmatprep.mubr.f32.mxu0 0.0
        %537 = vmatmul.mubr.f32.gmra.mrb[0].mxu0 %v337
        %v538 = vpop.f32.mrb[0].mxu0
        %v539 = vadd.f32 0.0, %v538
        %v540 = vpop.f32.mrb[0].mxu0
        %541 = vmatprep.mubr.f32.mxu0 0.0
        %542 = vmatmul.mubr.f32.gmra.mrb[0].mxu0 %v340
        %v543 = vpop.f32.mrb[0].mxu0
        %v544 = vadd.f32 0.0, %v543
        %v545 = vpop.f32.mrb[0].mxu0
        %546 = vmatprep.mubr.f32.mxu0 0.0
        %547 = vmatmul.mubr.f32.gmra.mrb[0].mxu0 %v343
        %v548 = vpop.f32.mrb[0].mxu0
        %v549 = vadd.f32 0.0, %v548
        %v550 = vpop.f32.mrb[0].mxu0
        %551 = vmatprep.mubr.f32.mxu0 0.0
        %552 = vmatmul.mubr.f32.gmra.mrb[0].mxu0 %v346
        %v553 = vpop.f32.mrb[0].mxu0
        %v554 = vadd.f32 0.0, %v553
        %v555 = vpop.f32.mrb[0].mxu0
        %556 = vmatprep.mubr.f32.mxu0 0.0
        %557 = vmatmul.mubr.f32.gmra.mrb[0].mxu0 %v349
        %v558 = vpop.f32.mrb[0].mxu0
        %v559 = vadd.f32 0.0, %v558
        %v560 = vpop.f32.mrb[0].mxu0
        %561 = vmatprep.mubr.f32.mxu0 0.0
        %562 = vmatmul.mubr.f32.gmra.mrb[0].mxu0 %v352
        %v563 = vpop.f32.mrb[0].mxu0
        %v564 = vadd.f32 0.0, %v563
        %v565 = vpop.f32.mrb[0].mxu0
        %566 = vmatprep.mubr.f32.mxu0 0.0
        %567 = vmatmul.mubr.f32.gmra.mrb[0].mxu0 %v355
        %v568 = vpop.f32.mrb[0].mxu0
        %v569 = vadd.f32 0.0, %v568
        %v570 = vpop.f32.mrb[0].mxu0
        %571 = vmatprep.mubr.f32.mxu0 0.0
        %572 = vmatmul.mubr.f32.gmra.mrb[0].mxu0 %v358
        %v573 = vpop.f32.mrb[0].mxu0
        %v574 = vadd.f32 0.0, %v573
        %v575 = vpop.f32.mrb[0].mxu0
        %576 = vmatprep.mubr.f32.mxu0 0.0
        %577 = vmatmul.mubr.f32.gmra.mrb[0].mxu0 %v361
        %v578 = vpop.f32.mrb[0].mxu0
        %v579 = vadd.f32 0.0, %v578
        %v580 = vpop.f32.mrb[0].mxu0
        %581 = vmatprep.mubr.f32.mxu0 0.0
        %582 = vmatmul.mubr.f32.gmra.mrb[0].mxu0 %v364
        %v583 = vpop.f32.mrb[0].mxu0
        %v584 = vadd.f32 0.0, %v583
        %v585 = vpop.f32.mrb[0].mxu0
        %586 = vmatprep.mubr.f32.mxu0 0.0
        %587 = vmatmul.mubr.f32.gmra.mrb[0].mxu0 %v367
        %v588 = vpop.f32.mrb[0].mxu0
        %v589 = vadd.f32 0.0, %v588
        %v590 = vpop.f32.mrb[0].mxu0
        %591 = vmatprep.mubr.f32.mxu0 0.0
        %592 = vmatmul.mubr.f32.gmra.mrb[0].mxu0 %v370
        %v593 = vpop.f32.mrb[0].mxu0
        %v594 = vadd.f32 0.0, %v593
        %v595 = vpop.f32.mrb[0].mxu0
        %596 = vmatprep.mubr.f32.mxu0 0.0
        %597 = vmatmul.mubr.f32.gmra.mrb[0].mxu0 %v373
        %v598 = vpop.f32.mrb[0].mxu0
        %v599 = vadd.f32 0.0, %v598
        %v600 = vpop.f32.mrb[0].mxu0
        %601 = vmatprep.mubr.f32.mxu0 0.0
        %602 = vmatmul.mubr.f32.gmra.mrb[0].mxu0 %v376
        %v603 = vpop.f32.mrb[0].mxu0
        %v604 = vadd.f32 0.0, %v603
        %v605 = vpop.f32.mrb[0].mxu0
        %606 = vdwg.mxu0
        %v608 = vsel %vm281, %v214, 0
        %v611 = vsel %vm281, %v215, 0
        %v614 = vsel %vm281, %v216, 0
        %v617 = vsel %vm281, %v217, 0
        %v620 = vsel %vm281, %v218, 0
        %v623 = vsel %vm281, %v219, 0
        %v626 = vsel %vm281, %v220, 0
        %v629 = vsel %vm281, %v221, 0
        %v632 = vsel %vm281, %v222, 0
        %v635 = vsel %vm281, %v223, 0
        %v638 = vsel %vm281, %v224, 0
        %v641 = vsel %vm281, %v225, 0
        %v644 = vsel %vm281, %v226, 0
        %v647 = vsel %vm281, %v227, 0
        %v650 = vsel %vm281, %v228, 0
        %v653 = vsel %vm281, %v229, 0
        %v656 = vsel %vm281, %v230, 0
        %v659 = vsel %vm281, %v231, 0
        %v662 = vsel %vm281, %v232, 0
        %v665 = vsel %vm281, %v233, 0
        %v668 = vsel %vm281, %v234, 0
        %v671 = vsel %vm281, %v235, 0
        %v674 = vsel %vm281, %v236, 0
        %v677 = vsel %vm281, %v237, 0
        %v680 = vsel %vm281, %v238, 0
        %v683 = vsel %vm281, %v239, 0
        %v686 = vsel %vm281, %v240, 0
        %v689 = vsel %vm281, %v241, 0
        %v692 = vsel %vm281, %v242, 0
        %v695 = vsel %vm281, %v243, 0
        %v698 = vsel %vm281, %v244, 0
        %v701 = vsel %vm281, %v245, 0
        %v704 = vsel %vm378, %v246, 0
        %706 = vmatprep.subr.mxu0 0.0
        %707 = vmatpush1.msra.mxu0 %v704
        %708 = vmatprep.subr.mxu0 0.0
        %709 = vmatpush1.msra.mxu0 0.0
        %710 = vmatprep.subr.mxu0 0.0
        %711 = vmatpush1.msra.mxu0 0.0
        %712 = vmatprep.subr.mxu0 0.0
        %713 = vmatpush1.msra.mxu0 0.0
        %714 = vmatprep.subr.mxu0 0.0
        %715 = vmatpush1.msra.mxu0 0.0
        %716 = vmatprep.subr.mxu0 0.0
        %717 = vmatpush1.msra.mxu0 0.0
        %718 = vmatprep.subr.mxu0 0.0
        %719 = vmatpush1.msra.mxu0 0.0
        %720 = vmatprep.subr.mxu0 0.0
        %721 = vmatpush1.msra.mxu0 0.0
        %722 = vmatprep.subr.mxu0 0.0
        %723 = vmatpush1.msra.mxu0 0.0
        %724 = vmatprep.subr.mxu0 0.0
        %725 = vmatpush1.msra.mxu0 0.0
        %726 = vmatprep.subr.mxu0 0.0
        %727 = vmatpush1.msra.mxu0 0.0
        %728 = vmatprep.subr.mxu0 0.0
        %729 = vmatpush1.msra.mxu0 0.0
        %730 = vmatprep.subr.mxu0 0.0
        %731 = vmatpush1.msra.mxu0 0.0
        %732 = vmatprep.subr.mxu0 0.0
        %733 = vmatpush1.msra.mxu0 0.0
        %734 = vmatprep.subr.mxu0 0.0
        %735 = vmatpush1.msra.mxu0 0.0
        %736 = vmatprep.subr.mxu0 0.0
        %737 = vmatpush1.msra.mxu0 0.0
        %738 = vmatprep.subr.mxu0 0.0
        %739 = vmatpush1.msra.mxu0 0.0
        %740 = vmatprep.subr.mxu0 0.0
        %741 = vmatpush1.msra.mxu0 0.0
        %742 = vmatprep.subr.mxu0 0.0
        %743 = vmatpush1.msra.mxu0 0.0
        %744 = vmatprep.subr.mxu0 0.0
        %745 = vmatpush1.msra.mxu0 0.0
        %746 = vmatprep.subr.mxu0 0.0
        %747 = vmatpush1.msra.mxu0 0.0
        %748 = vmatprep.subr.mxu0 0.0
        %749 = vmatpush1.msra.mxu0 0.0
        %750 = vmatprep.subr.mxu0 0.0
        %751 = vmatpush1.msra.mxu0 0.0
        %752 = vmatprep.subr.mxu0 0.0
        %753 = vmatpush1.msra.mxu0 0.0
        %754 = vmatprep.subr.mxu0 0.0
        %755 = vmatpush1.msra.mxu0 0.0
        %756 = vmatprep.subr.mxu0 0.0
        %757 = vmatpush1.msra.mxu0 0.0
        %758 = vmatprep.subr.mxu0 0.0
        %759 = vmatpush1.msra.mxu0 0.0
        %760 = vmatprep.subr.mxu0 0.0
        %761 = vmatpush1.msra.mxu0 0.0
        %762 = vmatprep.subr.mxu0 0.0
        %763 = vmatpush1.msra.mxu0 0.0
        %764 = vmatprep.subr.mxu0 0.0
        %765 = vmatpush1.msra.mxu0 0.0
        %766 = vmatprep.subr.mxu0 0.0
        %767 = vmatpush1.msra.mxu0 0.0
        %768 = vmatprep.subr.mxu0 0.0
        %769 = vmatpush1.msra.mxu0 0.0
        %770 = vmatprep.mubr.f32.mxu0 0.0
        %771 = vmatmul.mubr.f32.gmra.mrb[0].mxu0 %v608
        %v772 = vpop.f32.mrb[0].mxu0
        %v773 = vadd.f32 %v449, %v772
        %v774 = vpop.f32.mrb[0].mxu0
        %775 = vmatprep.mubr.f32.mxu0 0.0
        %776 = vmatmul.mubr.f32.gmra.mrb[0].mxu0 %v611
        %v777 = vpop.f32.mrb[0].mxu0
        %v778 = vadd.f32 %v454, %v777
        %v779 = vpop.f32.mrb[0].mxu0
        %780 = vmatprep.mubr.f32.mxu0 0.0
        %781 = vmatmul.mubr.f32.gmra.mrb[0].mxu0 %v614
        %v782 = vpop.f32.mrb[0].mxu0
        %v783 = vadd.f32 %v459, %v782
        %v784 = vpop.f32.mrb[0].mxu0
        %785 = vmatprep.mubr.f32.mxu0 0.0
        %786 = vmatmul.mubr.f32.gmra.mrb[0].mxu0 %v617
        %v787 = vpop.f32.mrb[0].mxu0
        %v788 = vadd.f32 %v464, %v787
        %v789 = vpop.f32.mrb[0].mxu0
        %790 = vmatprep.mubr.f32.mxu0 0.0
        %791 = vmatmul.mubr.f32.gmra.mrb[0].mxu0 %v620
        %v792 = vpop.f32.mrb[0].mxu0
        %v793 = vadd.f32 %v469, %v792
        %v794 = vpop.f32.mrb[0].mxu0
        %795 = vmatprep.mubr.f32.mxu0 0.0
        %796 = vmatmul.mubr.f32.gmra.mrb[0].mxu0 %v623
        %v797 = vpop.f32.mrb[0].mxu0
        %v798 = vadd.f32 %v474, %v797
        %v799 = vpop.f32.mrb[0].mxu0
        %800 = vmatprep.mubr.f32.mxu0 0.0
        %801 = vmatmul.mubr.f32.gmra.mrb[0].mxu0 %v626
        %v802 = vpop.f32.mrb[0].mxu0
        %v803 = vadd.f32 %v479, %v802
        %v804 = vpop.f32.mrb[0].mxu0
        %805 = vmatprep.mubr.f32.mxu0 0.0
        %806 = vmatmul.mubr.f32.gmra.mrb[0].mxu0 %v629
        %v807 = vpop.f32.mrb[0].mxu0
        %v808 = vadd.f32 %v484, %v807
        %v809 = vpop.f32.mrb[0].mxu0
        %810 = vmatprep.mubr.f32.mxu0 0.0
        %811 = vmatmul.mubr.f32.gmra.mrb[0].mxu0 %v632
        %v812 = vpop.f32.mrb[0].mxu0
        %v813 = vadd.f32 %v489, %v812
        %v814 = vpop.f32.mrb[0].mxu0
        %815 = vmatprep.mubr.f32.mxu0 0.0
        %816 = vmatmul.mubr.f32.gmra.mrb[0].mxu0 %v635
        %v817 = vpop.f32.mrb[0].mxu0
        %v818 = vadd.f32 %v494, %v817
        %v819 = vpop.f32.mrb[0].mxu0
        %820 = vmatprep.mubr.f32.mxu0 0.0
        %821 = vmatmul.mubr.f32.gmra.mrb[0].mxu0 %v638
        %v822 = vpop.f32.mrb[0].mxu0
        %v823 = vadd.f32 %v499, %v822
        %v824 = vpop.f32.mrb[0].mxu0
        %825 = vmatprep.mubr.f32.mxu0 0.0
        %826 = vmatmul.mubr.f32.gmra.mrb[0].mxu0 %v641
        %v827 = vpop.f32.mrb[0].mxu0
        %v828 = vadd.f32 %v504, %v827
        %v829 = vpop.f32.mrb[0].mxu0
        %830 = vmatprep.mubr.f32.mxu0 0.0
        %831 = vmatmul.mubr.f32.gmra.mrb[0].mxu0 %v644
        %v832 = vpop.f32.mrb[0].mxu0
        %v833 = vadd.f32 %v509, %v832
        %v834 = vpop.f32.mrb[0].mxu0
        %835 = vmatprep.mubr.f32.mxu0 0.0
        %836 = vmatmul.mubr.f32.gmra.mrb[0].mxu0 %v647
        %v837 = vpop.f32.mrb[0].mxu0
        %v838 = vadd.f32 %v514, %v837
        %v839 = vpop.f32.mrb[0].mxu0
        %840 = vmatprep.mubr.f32.mxu0 0.0
        %841 = vmatmul.mubr.f32.gmra.mrb[0].mxu0 %v650
        %v842 = vpop.f32.mrb[0].mxu0
        %v843 = vadd.f32 %v519, %v842
        %v844 = vpop.f32.mrb[0].mxu0
        %845 = vmatprep.mubr.f32.mxu0 0.0
        %846 = vmatmul.mubr.f32.gmra.mrb[0].mxu0 %v653
        %v847 = vpop.f32.mrb[0].mxu0
        %v848 = vadd.f32 %v524, %v847
        %v849 = vpop.f32.mrb[0].mxu0
        %850 = vmatprep.mubr.f32.mxu0 0.0
        %851 = vmatmul.mubr.f32.gmra.mrb[0].mxu0 %v656
        %v852 = vpop.f32.mrb[0].mxu0
        %v853 = vadd.f32 %v529, %v852
        %v854 = vpop.f32.mrb[0].mxu0
        %855 = vmatprep.mubr.f32.mxu0 0.0
        %856 = vmatmul.mubr.f32.gmra.mrb[0].mxu0 %v659
        %v857 = vpop.f32.mrb[0].mxu0
        %v858 = vadd.f32 %v534, %v857
        %v859 = vpop.f32.mrb[0].mxu0
        %860 = vmatprep.mubr.f32.mxu0 0.0
        %861 = vmatmul.mubr.f32.gmra.mrb[0].mxu0 %v662
        %v862 = vpop.f32.mrb[0].mxu0
        %v863 = vadd.f32 %v539, %v862
        %v864 = vpop.f32.mrb[0].mxu0
        %865 = vmatprep.mubr.f32.mxu0 0.0
        %866 = vmatmul.mubr.f32.gmra.mrb[0].mxu0 %v665
        %v867 = vpop.f32.mrb[0].mxu0
        %v868 = vadd.f32 %v544, %v867
        %v869 = vpop.f32.mrb[0].mxu0
        %870 = vmatprep.mubr.f32.mxu0 0.0
        %871 = vmatmul.mubr.f32.gmra.mrb[0].mxu0 %v668
        %v872 = vpop.f32.mrb[0].mxu0
        %v873 = vadd.f32 %v549, %v872
        %v874 = vpop.f32.mrb[0].mxu0
        %875 = vmatprep.mubr.f32.mxu0 0.0
        %876 = vmatmul.mubr.f32.gmra.mrb[0].mxu0 %v671
        %v877 = vpop.f32.mrb[0].mxu0
        %v878 = vadd.f32 %v554, %v877
        %v879 = vpop.f32.mrb[0].mxu0
        %880 = vmatprep.mubr.f32.mxu0 0.0
        %881 = vmatmul.mubr.f32.gmra.mrb[0].mxu0 %v674
        %v882 = vpop.f32.mrb[0].mxu0
        %v883 = vadd.f32 %v559, %v882
        %v884 = vpop.f32.mrb[0].mxu0
        %885 = vmatprep.mubr.f32.mxu0 0.0
        %886 = vmatmul.mubr.f32.gmra.mrb[0].mxu0 %v677
        %v887 = vpop.f32.mrb[0].mxu0
        %v888 = vadd.f32 %v564, %v887
        %v889 = vpop.f32.mrb[0].mxu0
        %890 = vmatprep.mubr.f32.mxu0 0.0
        %891 = vmatmul.mubr.f32.gmra.mrb[0].mxu0 %v680
        %v892 = vpop.f32.mrb[0].mxu0
        %v893 = vadd.f32 %v569, %v892
        %v894 = vpop.f32.mrb[0].mxu0
        %895 = vmatprep.mubr.f32.mxu0 0.0
        %896 = vmatmul.mubr.f32.gmra.mrb[0].mxu0 %v683
        %v897 = vpop.f32.mrb[0].mxu0
        %v898 = vadd.f32 %v574, %v897
        %v899 = vpop.f32.mrb[0].mxu0
        %900 = vmatprep.mubr.f32.mxu0 0.0
        %901 = vmatmul.mubr.f32.gmra.mrb[0].mxu0 %v686
        %v902 = vpop.f32.mrb[0].mxu0
        %v903 = vadd.f32 %v579, %v902
        %v904 = vpop.f32.mrb[0].mxu0
        %905 = vmatprep.mubr.f32.mxu0 0.0
        %906 = vmatmul.mubr.f32.gmra.mrb[0].mxu0 %v689
        %v907 = vpop.f32.mrb[0].mxu0
        %v908 = vadd.f32 %v584, %v907
        %v909 = vpop.f32.mrb[0].mxu0
        %910 = vmatprep.mubr.f32.mxu0 0.0
        %911 = vmatmul.mubr.f32.gmra.mrb[0].mxu0 %v692
        %v912 = vpop.f32.mrb[0].mxu0
        %v913 = vadd.f32 %v589, %v912
        %v914 = vpop.f32.mrb[0].mxu0
        %915 = vmatprep.mubr.f32.mxu0 0.0
        %916 = vmatmul.mubr.f32.gmra.mrb[0].mxu0 %v695
        %v917 = vpop.f32.mrb[0].mxu0
        %v918 = vadd.f32 %v594, %v917
        %v919 = vpop.f32.mrb[0].mxu0
        %920 = vmatprep.mubr.f32.mxu0 0.0
        %921 = vmatmul.mubr.f32.gmra.mrb[0].mxu0 %v698
        %v922 = vpop.f32.mrb[0].mxu0
        %v923 = vadd.f32 %v599, %v922
        %v924 = vpop.f32.mrb[0].mxu0
        %925 = vmatprep.mubr.f32.mxu0 0.0
        %926 = vmatmul.mubr.f32.gmra.mrb[0].mxu0 %v701
        %v927 = vpop.f32.mrb[0].mxu0
        %v928 = vadd.f32 %v604, %v927
        %v929 = vpop.f32.mrb[0].mxu0
        %930 = vdwg.mxu0
        %v931 = vld [vmem:[%s213 + $0x2] sm:$0xff]
        %v932 = vld [vmem:[%s213 + $0xa] sm:$0xff]
        %v933 = vld [vmem:[%s213 + $0x12] sm:$0xff]
        %v934 = vld [vmem:[%s213 + $0x1a] sm:$0xff]
        %v935 = vld [vmem:[%s213 + $0x2a] sm:$0xff]
        %v936 = vld [vmem:[%s213 + $0x32] sm:$0xff]
        %v937 = vld [vmem:[%s213 + $0x3a] sm:$0xff]
        %v938 = vld [vmem:[%s213 + $0x42] sm:$0xff]
        %v939 = vld [vmem:[%s213 + $0x52] sm:$0xff]
        %v940 = vld [vmem:[%s213 + $0x5a] sm:$0xff]
        %v941 = vld [vmem:[%s213 + $0x62] sm:$0xff]
        %v942 = vld [vmem:[%s213 + $0x6a] sm:$0xff]
        %v943 = vld [vmem:[%s213 + $0x7a] sm:$0xff]
        %v944 = vld [vmem:[%s213 + $0x82] sm:$0xff]
        %v945 = vld [vmem:[%s213 + $0x8a] sm:$0xff]
        %v946 = vld [vmem:[%s213 + $0x92] sm:$0xff]
        %v947 = vld [vmem:[%s213 + $0xa2] sm:$0xff]
        %v948 = vld [vmem:[%s213 + $0xaa] sm:$0xff]
        %v949 = vld [vmem:[%s213 + $0xb2] sm:$0xff]
        %v950 = vld [vmem:[%s213 + $0xba] sm:$0xff]
        %v951 = vld [vmem:[%s213 + $0xca] sm:$0xff]
        %v952 = vld [vmem:[%s213 + $0xd2] sm:$0xff]
        %v953 = vld [vmem:[%s213 + $0xda] sm:$0xff]
        %v954 = vld [vmem:[%s213 + $0xe2] sm:$0xff]
        %v955 = vld [vmem:[%s213 + $0xf2] sm:$0xff]
        %v956 = vld [vmem:[%s213 + $0xfa] sm:$0xff]
        %v957 = vld [vmem:[%s213 + $0x102] sm:$0xff]
        %v958 = vld [vmem:[%s213 + $0x10a] sm:$0xff]
        %v959 = vld [vmem:[%s213 + $0x11a] sm:$0xff]
        %v960 = vld [vmem:[%s213 + $0x122] sm:$0xff]
        %v961 = vld [vmem:[%s213 + $0x12a] sm:$0xff]
        %v962 = vld [vmem:[%s213 + $0x132] sm:$0xff]
        %s963 = scalar_lea.vmem %s1, 4
        %v964 = vld [vmem:[%s963] sm:$0x3]
        %v966 = vsel %vm281, %v931, 0
        %v969 = vsel %vm281, %v932, 0
        %v972 = vsel %vm281, %v933, 0
        %v975 = vsel %vm281, %v934, 0
        %v978 = vsel %vm281, %v935, 0
        %v981 = vsel %vm281, %v936, 0
        %v984 = vsel %vm281, %v937, 0
        %v987 = vsel %vm281, %v938, 0
        %v990 = vsel %vm281, %v939, 0
        %v993 = vsel %vm281, %v940, 0
        %v996 = vsel %vm281, %v941, 0
        %v999 = vsel %vm281, %v942, 0
        %v1002 = vsel %vm281, %v943, 0
        %v1005 = vsel %vm281, %v944, 0
        %v1008 = vsel %vm281, %v945, 0
        %v1011 = vsel %vm281, %v946, 0
        %v1014 = vsel %vm281, %v947, 0
        %v1017 = vsel %vm281, %v948, 0
        %v1020 = vsel %vm281, %v949, 0
        %v1023 = vsel %vm281, %v950, 0
        %v1026 = vsel %vm281, %v951, 0
        %v1029 = vsel %vm281, %v952, 0
        %v1032 = vsel %vm281, %v953, 0
        %v1035 = vsel %vm281, %v954, 0
        %v1038 = vsel %vm281, %v955, 0
        %v1041 = vsel %vm281, %v956, 0
        %v1044 = vsel %vm281, %v957, 0
        %v1047 = vsel %vm281, %v958, 0
        %v1050 = vsel %vm281, %v959, 0
        %v1053 = vsel %vm281, %v960, 0
        %v1056 = vsel %vm281, %v961, 0
        %v1059 = vsel %vm281, %v962, 0
        %v1062 = vsel %vm378, %v964, 0
        %1064 = vmatprep.subr.mxu0 0.0
        %1065 = vmatpush1.msra.mxu0 %v1062
        %1066 = vmatprep.subr.mxu0 0.0
        %1067 = vmatpush1.msra.mxu0 0.0
        %1068 = vmatprep.subr.mxu0 0.0
        %1069 = vmatpush1.msra.mxu0 0.0
        %1070 = vmatprep.subr.mxu0 0.0
        %1071 = vmatpush1.msra.mxu0 0.0
        %1072 = vmatprep.subr.mxu0 0.0
        %1073 = vmatpush1.msra.mxu0 0.0
        %1074 = vmatprep.subr.mxu0 0.0
        %1075 = vmatpush1.msra.mxu0 0.0
        %1076 = vmatprep.subr.mxu0 0.0
        %1077 = vmatpush1.msra.mxu0 0.0
        %1078 = vmatprep.subr.mxu0 0.0
        %1079 = vmatpush1.msra.mxu0 0.0
        %1080 = vmatprep.subr.mxu0 0.0
        %1081 = vmatpush1.msra.mxu0 0.0
        %1082 = vmatprep.subr.mxu0 0.0
        %1083 = vmatpush1.msra.mxu0 0.0
        %1084 = vmatprep.subr.mxu0 0.0
        %1085 = vmatpush1.msra.mxu0 0.0
        %1086 = vmatprep.subr.mxu0 0.0
        %1087 = vmatpush1.msra.mxu0 0.0
        %1088 = vmatprep.subr.mxu0 0.0
        %1089 = vmatpush1.msra.mxu0 0.0
        %1090 = vmatprep.subr.mxu0 0.0
        %1091 = vmatpush1.msra.mxu0 0.0
        %1092 = vmatprep.subr.mxu0 0.0
        %1093 = vmatpush1.msra.mxu0 0.0
        %1094 = vmatprep.subr.mxu0 0.0
        %1095 = vmatpush1.msra.mxu0 0.0
        %1096 = vmatprep.subr.mxu0 0.0
        %1097 = vmatpush1.msra.mxu0 0.0
        %1098 = vmatprep.subr.mxu0 0.0
        %1099 = vmatpush1.msra.mxu0 0.0
        %1100 = vmatprep.subr.mxu0 0.0
        %1101 = vmatpush1.msra.mxu0 0.0
        %1102 = vmatprep.subr.mxu0 0.0
        %1103 = vmatpush1.msra.mxu0 0.0
        %1104 = vmatprep.subr.mxu0 0.0
        %1105 = vmatpush1.msra.mxu0 0.0
        %1106 = vmatprep.subr.mxu0 0.0
        %1107 = vmatpush1.msra.mxu0 0.0
        %1108 = vmatprep.subr.mxu0 0.0
        %1109 = vmatpush1.msra.mxu0 0.0
        %1110 = vmatprep.subr.mxu0 0.0
        %1111 = vmatpush1.msra.mxu0 0.0
        %1112 = vmatprep.subr.mxu0 0.0
        %1113 = vmatpush1.msra.mxu0 0.0
        %1114 = vmatprep.subr.mxu0 0.0
        %1115 = vmatpush1.msra.mxu0 0.0
        %1116 = vmatprep.subr.mxu0 0.0
        %1117 = vmatpush1.msra.mxu0 0.0
        %1118 = vmatprep.subr.mxu0 0.0
        %1119 = vmatpush1.msra.mxu0 0.0
        %1120 = vmatprep.subr.mxu0 0.0
        %1121 = vmatpush1.msra.mxu0 0.0
        %1122 = vmatprep.subr.mxu0 0.0
        %1123 = vmatpush1.msra.mxu0 0.0
        %1124 = vmatprep.subr.mxu0 0.0
        %1125 = vmatpush1.msra.mxu0 0.0
        %1126 = vmatprep.subr.mxu0 0.0
        %1127 = vmatpush1.msra.mxu0 0.0
        %1128 = vmatprep.mubr.f32.mxu0 0.0
        %1129 = vmatmul.mubr.f32.gmra.mrb[0].mxu0 %v966
        %v1130 = vpop.f32.mrb[0].mxu0
        %v1131 = vadd.f32 0.0, %v1130
        %v1132 = vpop.f32.mrb[0].mxu0
        %1133 = vmatprep.mubr.f32.mxu0 0.0
        %1134 = vmatmul.mubr.f32.gmra.mrb[0].mxu0 %v969
        %v1135 = vpop.f32.mrb[0].mxu0
        %v1136 = vadd.f32 0.0, %v1135
        %v1137 = vpop.f32.mrb[0].mxu0
        %1138 = vmatprep.mubr.f32.mxu0 0.0
        %1139 = vmatmul.mubr.f32.gmra.mrb[0].mxu0 %v972
        %v1140 = vpop.f32.mrb[0].mxu0
        %v1141 = vadd.f32 0.0, %v1140
        %v1142 = vpop.f32.mrb[0].mxu0
        %1143 = vmatprep.mubr.f32.mxu0 0.0
        %1144 = vmatmul.mubr.f32.gmra.mrb[0].mxu0 %v975
        %v1145 = vpop.f32.mrb[0].mxu0
        %v1146 = vadd.f32 0.0, %v1145
        %v1147 = vpop.f32.mrb[0].mxu0
        %1148 = vmatprep.mubr.f32.mxu0 0.0
        %1149 = vmatmul.mubr.f32.gmra.mrb[0].mxu0 %v978
        %v1150 = vpop.f32.mrb[0].mxu0
        %v1151 = vadd.f32 0.0, %v1150
        %v1152 = vpop.f32.mrb[0].mxu0
        %1153 = vmatprep.mubr.f32.mxu0 0.0
        %1154 = vmatmul.mubr.f32.gmra.mrb[0].mxu0 %v981
        %v1155 = vpop.f32.mrb[0].mxu0
        %v1156 = vadd.f32 0.0, %v1155
        %v1157 = vpop.f32.mrb[0].mxu0
        %1158 = vmatprep.mubr.f32.mxu0 0.0
        %1159 = vmatmul.mubr.f32.gmra.mrb[0].mxu0 %v984
        %v1160 = vpop.f32.mrb[0].mxu0
        %v1161 = vadd.f32 0.0, %v1160
        %v1162 = vpop.f32.mrb[0].mxu0
        %1163 = vmatprep.mubr.f32.mxu0 0.0
        %1164 = vmatmul.mubr.f32.gmra.mrb[0].mxu0 %v987
        %v1165 = vpop.f32.mrb[0].mxu0
        %v1166 = vadd.f32 0.0, %v1165
        %v1167 = vpop.f32.mrb[0].mxu0
        %1168 = vmatprep.mubr.f32.mxu0 0.0
        %1169 = vmatmul.mubr.f32.gmra.mrb[0].mxu0 %v990
        %v1170 = vpop.f32.mrb[0].mxu0
        %v1171 = vadd.f32 0.0, %v1170
        %v1172 = vpop.f32.mrb[0].mxu0
        %1173 = vmatprep.mubr.f32.mxu0 0.0
        %1174 = vmatmul.mubr.f32.gmra.mrb[0].mxu0 %v993
        %v1175 = vpop.f32.mrb[0].mxu0
        %v1176 = vadd.f32 0.0, %v1175
        %v1177 = vpop.f32.mrb[0].mxu0
        %1178 = vmatprep.mubr.f32.mxu0 0.0
        %1179 = vmatmul.mubr.f32.gmra.mrb[0].mxu0 %v996
        %v1180 = vpop.f32.mrb[0].mxu0
        %v1181 = vadd.f32 0.0, %v1180
        %v1182 = vpop.f32.mrb[0].mxu0
        %1183 = vmatprep.mubr.f32.mxu0 0.0
        %1184 = vmatmul.mubr.f32.gmra.mrb[0].mxu0 %v999
        %v1185 = vpop.f32.mrb[0].mxu0
        %v1186 = vadd.f32 0.0, %v1185
        %v1187 = vpop.f32.mrb[0].mxu0
        %1188 = vmatprep.mubr.f32.mxu0 0.0
        %1189 = vmatmul.mubr.f32.gmra.mrb[0].mxu0 %v1002
        %v1190 = vpop.f32.mrb[0].mxu0
        %v1191 = vadd.f32 0.0, %v1190
        %v1192 = vpop.f32.mrb[0].mxu0
        %1193 = vmatprep.mubr.f32.mxu0 0.0
        %1194 = vmatmul.mubr.f32.gmra.mrb[0].mxu0 %v1005
        %v1195 = vpop.f32.mrb[0].mxu0
        %v1196 = vadd.f32 0.0, %v1195
        %v1197 = vpop.f32.mrb[0].mxu0
        %1198 = vmatprep.mubr.f32.mxu0 0.0
        %1199 = vmatmul.mubr.f32.gmra.mrb[0].mxu0 %v1008
        %v1200 = vpop.f32.mrb[0].mxu0
        %v1201 = vadd.f32 0.0, %v1200
        %v1202 = vpop.f32.mrb[0].mxu0
        %1203 = vmatprep.mubr.f32.mxu0 0.0
        %1204 = vmatmul.mubr.f32.gmra.mrb[0].mxu0 %v1011
        %v1205 = vpop.f32.mrb[0].mxu0
        %v1206 = vadd.f32 0.0, %v1205
        %v1207 = vpop.f32.mrb[0].mxu0
        %1208 = vmatprep.mubr.f32.mxu0 0.0
        %1209 = vmatmul.mubr.f32.gmra.mrb[0].mxu0 %v1014
        %v1210 = vpop.f32.mrb[0].mxu0
        %v1211 = vadd.f32 0.0, %v1210
        %v1212 = vpop.f32.mrb[0].mxu0
        %1213 = vmatprep.mubr.f32.mxu0 0.0
        %1214 = vmatmul.mubr.f32.gmra.mrb[0].mxu0 %v1017
        %v1215 = vpop.f32.mrb[0].mxu0
        %v1216 = vadd.f32 0.0, %v1215
        %v1217 = vpop.f32.mrb[0].mxu0
        %1218 = vmatprep.mubr.f32.mxu0 0.0
        %1219 = vmatmul.mubr.f32.gmra.mrb[0].mxu0 %v1020
        %v1220 = vpop.f32.mrb[0].mxu0
        %v1221 = vadd.f32 0.0, %v1220
        %v1222 = vpop.f32.mrb[0].mxu0
        %1223 = vmatprep.mubr.f32.mxu0 0.0
        %1224 = vmatmul.mubr.f32.gmra.mrb[0].mxu0 %v1023
        %v1225 = vpop.f32.mrb[0].mxu0
        %v1226 = vadd.f32 0.0, %v1225
        %v1227 = vpop.f32.mrb[0].mxu0
        %1228 = vmatprep.mubr.f32.mxu0 0.0
        %1229 = vmatmul.mubr.f32.gmra.mrb[0].mxu0 %v1026
        %v1230 = vpop.f32.mrb[0].mxu0
        %v1231 = vadd.f32 0.0, %v1230
        %v1232 = vpop.f32.mrb[0].mxu0
        %1233 = vmatprep.mubr.f32.mxu0 0.0
        %1234 = vmatmul.mubr.f32.gmra.mrb[0].mxu0 %v1029
        %v1235 = vpop.f32.mrb[0].mxu0
        %v1236 = vadd.f32 0.0, %v1235
        %v1237 = vpop.f32.mrb[0].mxu0
        %1238 = vmatprep.mubr.f32.mxu0 0.0
        %1239 = vmatmul.mubr.f32.gmra.mrb[0].mxu0 %v1032
        %v1240 = vpop.f32.mrb[0].mxu0
        %v1241 = vadd.f32 0.0, %v1240
        %v1242 = vpop.f32.mrb[0].mxu0
        %1243 = vmatprep.mubr.f32.mxu0 0.0
        %1244 = vmatmul.mubr.f32.gmra.mrb[0].mxu0 %v1035
        %v1245 = vpop.f32.mrb[0].mxu0
        %v1246 = vadd.f32 0.0, %v1245
        %v1247 = vpop.f32.mrb[0].mxu0
        %1248 = vmatprep.mubr.f32.mxu0 0.0
        %1249 = vmatmul.mubr.f32.gmra.mrb[0].mxu0 %v1038
        %v1250 = vpop.f32.mrb[0].mxu0
        %v1251 = vadd.f32 0.0, %v1250
        %v1252 = vpop.f32.mrb[0].mxu0
        %1253 = vmatprep.mubr.f32.mxu0 0.0
        %1254 = vmatmul.mubr.f32.gmra.mrb[0].mxu0 %v1041
        %v1255 = vpop.f32.mrb[0].mxu0
        %v1256 = vadd.f32 0.0, %v1255
        %v1257 = vpop.f32.mrb[0].mxu0
        %1258 = vmatprep.mubr.f32.mxu0 0.0
        %1259 = vmatmul.mubr.f32.gmra.mrb[0].mxu0 %v1044
        %v1260 = vpop.f32.mrb[0].mxu0
        %v1261 = vadd.f32 0.0, %v1260
        %v1262 = vpop.f32.mrb[0].mxu0
        %1263 = vmatprep.mubr.f32.mxu0 0.0
        %1264 = vmatmul.mubr.f32.gmra.mrb[0].mxu0 %v1047
        %v1265 = vpop.f32.mrb[0].mxu0
        %v1266 = vadd.f32 0.0, %v1265
        %v1267 = vpop.f32.mrb[0].mxu0
        %1268 = vmatprep.mubr.f32.mxu0 0.0
        %1269 = vmatmul.mubr.f32.gmra.mrb[0].mxu0 %v1050
        %v1270 = vpop.f32.mrb[0].mxu0
        %v1271 = vadd.f32 0.0, %v1270
        %v1272 = vpop.f32.mrb[0].mxu0
        %1273 = vmatprep.mubr.f32.mxu0 0.0
        %1274 = vmatmul.mubr.f32.gmra.mrb[0].mxu0 %v1053
        %v1275 = vpop.f32.mrb[0].mxu0
        %v1276 = vadd.f32 0.0, %v1275
        %v1277 = vpop.f32.mrb[0].mxu0
        %1278 = vmatprep.mubr.f32.mxu0 0.0
        %1279 = vmatmul.mubr.f32.gmra.mrb[0].mxu0 %v1056
        %v1280 = vpop.f32.mrb[0].mxu0
        %v1281 = vadd.f32 0.0, %v1280
        %v1282 = vpop.f32.mrb[0].mxu0
        %1283 = vmatprep.mubr.f32.mxu0 0.0
        %1284 = vmatmul.mubr.f32.gmra.mrb[0].mxu0 %v1059
        %v1285 = vpop.f32.mrb[0].mxu0
        %v1286 = vadd.f32 0.0, %v1285
        %v1287 = vpop.f32.mrb[0].mxu0
        %1288 = vdwg.mxu0
        %v1289 = vadd.f32 %v773, %v1131
        %v1290 = vadd.f32 %v778, %v1136
        %v1291 = vadd.f32 %v783, %v1141
        %v1292 = vadd.f32 %v788, %v1146
        %v1293 = vadd.f32 %v793, %v1151
        %v1294 = vadd.f32 %v798, %v1156
        %v1295 = vadd.f32 %v803, %v1161
        %v1296 = vadd.f32 %v808, %v1166
        %v1297 = vadd.f32 %v813, %v1171
        %v1298 = vadd.f32 %v818, %v1176
        %v1299 = vadd.f32 %v823, %v1181
        %v1300 = vadd.f32 %v828, %v1186
        %v1301 = vadd.f32 %v833, %v1191
        %v1302 = vadd.f32 %v838, %v1196
        %v1303 = vadd.f32 %v843, %v1201
        %v1304 = vadd.f32 %v848, %v1206
        %v1305 = vadd.f32 %v853, %v1211
        %v1306 = vadd.f32 %v858, %v1216
        %v1307 = vadd.f32 %v863, %v1221
        %v1308 = vadd.f32 %v868, %v1226
        %v1309 = vadd.f32 %v873, %v1231
        %v1310 = vadd.f32 %v878, %v1236
        %v1311 = vadd.f32 %v883, %v1241
        %v1312 = vadd.f32 %v888, %v1246
        %v1313 = vadd.f32 %v893, %v1251
        %v1314 = vadd.f32 %v898, %v1256
        %v1315 = vadd.f32 %v903, %v1261
        %v1316 = vadd.f32 %v908, %v1266
        %v1317 = vadd.f32 %v913, %v1271
        %v1318 = vadd.f32 %v918, %v1276
        %v1319 = vadd.f32 %v923, %v1281
        %v1320 = vadd.f32 %v928, %v1286
        %v1321 = vld [vmem:[%s213 + $0x3] sm:$0xff]
        %v1322 = vld [vmem:[%s213 + $0xb] sm:$0xff]
        %v1323 = vld [vmem:[%s213 + $0x13] sm:$0xff]
        %v1324 = vld [vmem:[%s213 + $0x1b] sm:$0xff]
        %v1325 = vld [vmem:[%s213 + $0x2b] sm:$0xff]
        %v1326 = vld [vmem:[%s213 + $0x33] sm:$0xff]
        %v1327 = vld [vmem:[%s213 + $0x3b] sm:$0xff]
        %v1328 = vld [vmem:[%s213 + $0x43] sm:$0xff]
        %v1329 = vld [vmem:[%s213 + $0x53] sm:$0xff]
        %v1330 = vld [vmem:[%s213 + $0x5b] sm:$0xff]
        %v1331 = vld [vmem:[%s213 + $0x63] sm:$0xff]
        %v1332 = vld [vmem:[%s213 + $0x6b] sm:$0xff]
        %v1333 = vld [vmem:[%s213 + $0x7b] sm:$0xff]
        %v1334 = vld [vmem:[%s213 + $0x83] sm:$0xff]
        %v1335 = vld [vmem:[%s213 + $0x8b] sm:$0xff]
        %v1336 = vld [vmem:[%s213 + $0x93] sm:$0xff]
        %v1337 = vld [vmem:[%s213 + $0xa3] sm:$0xff]
        %v1338 = vld [vmem:[%s213 + $0xab] sm:$0xff]
        %v1339 = vld [vmem:[%s213 + $0xb3] sm:$0xff]
        %v1340 = vld [vmem:[%s213 + $0xbb] sm:$0xff]
        %v1341 = vld [vmem:[%s213 + $0xcb] sm:$0xff]
        %v1342 = vld [vmem:[%s213 + $0xd3] sm:$0xff]
        %v1343 = vld [vmem:[%s213 + $0xdb] sm:$0xff]
        %v1344 = vld [vmem:[%s213 + $0xe3] sm:$0xff]
        %v1345 = vld [vmem:[%s213 + $0xf3] sm:$0xff]
        %v1346 = vld [vmem:[%s213 + $0xfb] sm:$0xff]
        %v1347 = vld [vmem:[%s213 + $0x103] sm:$0xff]
        %v1348 = vld [vmem:[%s213 + $0x10b] sm:$0xff]
        %v1349 = vld [vmem:[%s213 + $0x11b] sm:$0xff]
        %v1350 = vld [vmem:[%s213 + $0x123] sm:$0xff]
        %v1351 = vld [vmem:[%s213 + $0x12b] sm:$0xff]
        %v1352 = vld [vmem:[%s213 + $0x133] sm:$0xff]
        %s1353 = scalar_lea.vmem %s1, 6
        %v1354 = vld [vmem:[%s1353] sm:$0x3]
        %v1356 = vsel %vm281, %v1321, 0
        %v1359 = vsel %vm281, %v1322, 0
        %v1362 = vsel %vm281, %v1323, 0
        %v1365 = vsel %vm281, %v1324, 0
        %v1368 = vsel %vm281, %v1325, 0
        %v1371 = vsel %vm281, %v1326, 0
        %v1374 = vsel %vm281, %v1327, 0
        %v1377 = vsel %vm281, %v1328, 0
        %v1380 = vsel %vm281, %v1329, 0
        %v1383 = vsel %vm281, %v1330, 0
        %v1386 = vsel %vm281, %v1331, 0
        %v1389 = vsel %vm281, %v1332, 0
        %v1392 = vsel %vm281, %v1333, 0
        %v1395 = vsel %vm281, %v1334, 0
        %v1398 = vsel %vm281, %v1335, 0
        %v1401 = vsel %vm281, %v1336, 0
        %v1404 = vsel %vm281, %v1337, 0
        %v1407 = vsel %vm281, %v1338, 0
        %v1410 = vsel %vm281, %v1339, 0
        %v1413 = vsel %vm281, %v1340, 0
        %v1416 = vsel %vm281, %v1341, 0
        %v1419 = vsel %vm281, %v1342, 0
        %v1422 = vsel %vm281, %v1343, 0
        %v1425 = vsel %vm281, %v1344, 0
        %v1428 = vsel %vm281, %v1345, 0
        %v1431 = vsel %vm281, %v1346, 0
        %v1434 = vsel %vm281, %v1347, 0
        %v1437 = vsel %vm281, %v1348, 0
        %v1440 = vsel %vm281, %v1349, 0
        %v1443 = vsel %vm281, %v1350, 0
        %v1446 = vsel %vm281, %v1351, 0
        %v1449 = vsel %vm281, %v1352, 0
        %v1452 = vsel %vm378, %v1354, 0
        %1454 = vmatprep.subr.mxu0 0.0
        %1455 = vmatpush1.msra.mxu0 %v1452
        %1456 = vmatprep.subr.mxu0 0.0
        %1457 = vmatpush1.msra.mxu0 0.0
        %1458 = vmatprep.subr.mxu0 0.0
        %1459 = vmatpush1.msra.mxu0 0.0
        %1460 = vmatprep.subr.mxu0 0.0
        %1461 = vmatpush1.msra.mxu0 0.0
        %1462 = vmatprep.subr.mxu0 0.0
        %1463 = vmatpush1.msra.mxu0 0.0
        %1464 = vmatprep.subr.mxu0 0.0
        %1465 = vmatpush1.msra.mxu0 0.0
        %1466 = vmatprep.subr.mxu0 0.0
        %1467 = vmatpush1.msra.mxu0 0.0
        %1468 = vmatprep.subr.mxu0 0.0
        %1469 = vmatpush1.msra.mxu0 0.0
        %1470 = vmatprep.subr.mxu0 0.0
        %1471 = vmatpush1.msra.mxu0 0.0
        %1472 = vmatprep.subr.mxu0 0.0
        %1473 = vmatpush1.msra.mxu0 0.0
        %1474 = vmatprep.subr.mxu0 0.0
        %1475 = vmatpush1.msra.mxu0 0.0
        %1476 = vmatprep.subr.mxu0 0.0
        %1477 = vmatpush1.msra.mxu0 0.0
        %1478 = vmatprep.subr.mxu0 0.0
        %1479 = vmatpush1.msra.mxu0 0.0
        %1480 = vmatprep.subr.mxu0 0.0
        %1481 = vmatpush1.msra.mxu0 0.0
        %1482 = vmatprep.subr.mxu0 0.0
        %1483 = vmatpush1.msra.mxu0 0.0
        %1484 = vmatprep.subr.mxu0 0.0
        %1485 = vmatpush1.msra.mxu0 0.0
        %1486 = vmatprep.subr.mxu0 0.0
        %1487 = vmatpush1.msra.mxu0 0.0
        %1488 = vmatprep.subr.mxu0 0.0
        %1489 = vmatpush1.msra.mxu0 0.0
        %1490 = vmatprep.subr.mxu0 0.0
        %1491 = vmatpush1.msra.mxu0 0.0
        %1492 = vmatprep.subr.mxu0 0.0
        %1493 = vmatpush1.msra.mxu0 0.0
        %1494 = vmatprep.subr.mxu0 0.0
        %1495 = vmatpush1.msra.mxu0 0.0
        %1496 = vmatprep.subr.mxu0 0.0
        %1497 = vmatpush1.msra.mxu0 0.0
        %1498 = vmatprep.subr.mxu0 0.0
        %1499 = vmatpush1.msra.mxu0 0.0
        %1500 = vmatprep.subr.mxu0 0.0
        %1501 = vmatpush1.msra.mxu0 0.0
        %1502 = vmatprep.subr.mxu0 0.0
        %1503 = vmatpush1.msra.mxu0 0.0
        %1504 = vmatprep.subr.mxu0 0.0
        %1505 = vmatpush1.msra.mxu0 0.0
        %1506 = vmatprep.subr.mxu0 0.0
        %1507 = vmatpush1.msra.mxu0 0.0
        %1508 = vmatprep.subr.mxu0 0.0
        %1509 = vmatpush1.msra.mxu0 0.0
        %1510 = vmatprep.subr.mxu0 0.0
        %1511 = vmatpush1.msra.mxu0 0.0
        %1512 = vmatprep.subr.mxu0 0.0
        %1513 = vmatpush1.msra.mxu0 0.0
        %1514 = vmatprep.subr.mxu0 0.0
        %1515 = vmatpush1.msra.mxu0 0.0
        %1516 = vmatprep.subr.mxu0 0.0
        %1517 = vmatpush1.msra.mxu0 0.0
        %1518 = vmatprep.mubr.f32.mxu0 0.0
        %1519 = vmatmul.mubr.f32.gmra.mrb[0].mxu0 %v1356
        %v1520 = vpop.f32.mrb[0].mxu0
        %v1521 = vadd.f32 0.0, %v1520
        %v1522 = vpop.f32.mrb[0].mxu0
        %1523 = vmatprep.mubr.f32.mxu0 0.0
        %1524 = vmatmul.mubr.f32.gmra.mrb[0].mxu0 %v1359
        %v1525 = vpop.f32.mrb[0].mxu0
        %v1526 = vadd.f32 0.0, %v1525
        %v1527 = vpop.f32.mrb[0].mxu0
        %1528 = vmatprep.mubr.f32.mxu0 0.0
        %1529 = vmatmul.mubr.f32.gmra.mrb[0].mxu0 %v1362
        %v1530 = vpop.f32.mrb[0].mxu0
        %v1531 = vadd.f32 0.0, %v1530
        %v1532 = vpop.f32.mrb[0].mxu0
        %1533 = vmatprep.mubr.f32.mxu0 0.0
        %1534 = vmatmul.mubr.f32.gmra.mrb[0].mxu0 %v1365
        %v1535 = vpop.f32.mrb[0].mxu0
        %v1536 = vadd.f32 0.0, %v1535
        %v1537 = vpop.f32.mrb[0].mxu0
        %1538 = vmatprep.mubr.f32.mxu0 0.0
        %1539 = vmatmul.mubr.f32.gmra.mrb[0].mxu0 %v1368
        %v1540 = vpop.f32.mrb[0].mxu0
        %v1541 = vadd.f32 0.0, %v1540
        %v1542 = vpop.f32.mrb[0].mxu0
        %1543 = vmatprep.mubr.f32.mxu0 0.0
        %1544 = vmatmul.mubr.f32.gmra.mrb[0].mxu0 %v1371
        %v1545 = vpop.f32.mrb[0].mxu0
        %v1546 = vadd.f32 0.0, %v1545
        %v1547 = vpop.f32.mrb[0].mxu0
        %1548 = vmatprep.mubr.f32.mxu0 0.0
        %1549 = vmatmul.mubr.f32.gmra.mrb[0].mxu0 %v1374
        %v1550 = vpop.f32.mrb[0].mxu0
        %v1551 = vadd.f32 0.0, %v1550
        %v1552 = vpop.f32.mrb[0].mxu0
        %1553 = vmatprep.mubr.f32.mxu0 0.0
        %1554 = vmatmul.mubr.f32.gmra.mrb[0].mxu0 %v1377
        %v1555 = vpop.f32.mrb[0].mxu0
        %v1556 = vadd.f32 0.0, %v1555
        %v1557 = vpop.f32.mrb[0].mxu0
        %1558 = vmatprep.mubr.f32.mxu0 0.0
        %1559 = vmatmul.mubr.f32.gmra.mrb[0].mxu0 %v1380
        %v1560 = vpop.f32.mrb[0].mxu0
        %v1561 = vadd.f32 0.0, %v1560
        %v1562 = vpop.f32.mrb[0].mxu0
        %1563 = vmatprep.mubr.f32.mxu0 0.0
        %1564 = vmatmul.mubr.f32.gmra.mrb[0].mxu0 %v1383
        %v1565 = vpop.f32.mrb[0].mxu0
        %v1566 = vadd.f32 0.0, %v1565
        %v1567 = vpop.f32.mrb[0].mxu0
        %1568 = vmatprep.mubr.f32.mxu0 0.0
        %1569 = vmatmul.mubr.f32.gmra.mrb[0].mxu0 %v1386
        %v1570 = vpop.f32.mrb[0].mxu0
        %v1571 = vadd.f32 0.0, %v1570
        %v1572 = vpop.f32.mrb[0].mxu0
        %1573 = vmatprep.mubr.f32.mxu0 0.0
        %1574 = vmatmul.mubr.f32.gmra.mrb[0].mxu0 %v1389
        %v1575 = vpop.f32.mrb[0].mxu0
        %v1576 = vadd.f32 0.0, %v1575
        %v1577 = vpop.f32.mrb[0].mxu0
        %1578 = vmatprep.mubr.f32.mxu0 0.0
        %1579 = vmatmul.mubr.f32.gmra.mrb[0].mxu0 %v1392
        %v1580 = vpop.f32.mrb[0].mxu0
        %v1581 = vadd.f32 0.0, %v1580
        %v1582 = vpop.f32.mrb[0].mxu0
        %1583 = vmatprep.mubr.f32.mxu0 0.0
        %1584 = vmatmul.mubr.f32.gmra.mrb[0].mxu0 %v1395
        %v1585 = vpop.f32.mrb[0].mxu0
        %v1586 = vadd.f32 0.0, %v1585
        %v1587 = vpop.f32.mrb[0].mxu0
        %1588 = vmatprep.mubr.f32.mxu0 0.0
        %1589 = vmatmul.mubr.f32.gmra.mrb[0].mxu0 %v1398
        %v1590 = vpop.f32.mrb[0].mxu0
        %v1591 = vadd.f32 0.0, %v1590
        %v1592 = vpop.f32.mrb[0].mxu0
        %1593 = vmatprep.mubr.f32.mxu0 0.0
        %1594 = vmatmul.mubr.f32.gmra.mrb[0].mxu0 %v1401
        %v1595 = vpop.f32.mrb[0].mxu0
        %v1596 = vadd.f32 0.0, %v1595
        %v1597 = vpop.f32.mrb[0].mxu0
        %1598 = vmatprep.mubr.f32.mxu0 0.0
        %1599 = vmatmul.mubr.f32.gmra.mrb[0].mxu0 %v1404
        %v1600 = vpop.f32.mrb[0].mxu0
        %v1601 = vadd.f32 0.0, %v1600
        %v1602 = vpop.f32.mrb[0].mxu0
        %1603 = vmatprep.mubr.f32.mxu0 0.0
        %1604 = vmatmul.mubr.f32.gmra.mrb[0].mxu0 %v1407
        %v1605 = vpop.f32.mrb[0].mxu0
        %v1606 = vadd.f32 0.0, %v1605
        %v1607 = vpop.f32.mrb[0].mxu0
        %1608 = vmatprep.mubr.f32.mxu0 0.0
        %1609 = vmatmul.mubr.f32.gmra.mrb[0].mxu0 %v1410
        %v1610 = vpop.f32.mrb[0].mxu0
        %v1611 = vadd.f32 0.0, %v1610
        %v1612 = vpop.f32.mrb[0].mxu0
        %1613 = vmatprep.mubr.f32.mxu0 0.0
        %1614 = vmatmul.mubr.f32.gmra.mrb[0].mxu0 %v1413
        %v1615 = vpop.f32.mrb[0].mxu0
        %v1616 = vadd.f32 0.0, %v1615
        %v1617 = vpop.f32.mrb[0].mxu0
        %1618 = vmatprep.mubr.f32.mxu0 0.0
        %1619 = vmatmul.mubr.f32.gmra.mrb[0].mxu0 %v1416
        %v1620 = vpop.f32.mrb[0].mxu0
        %v1621 = vadd.f32 0.0, %v1620
        %v1622 = vpop.f32.mrb[0].mxu0
        %1623 = vmatprep.mubr.f32.mxu0 0.0
        %1624 = vmatmul.mubr.f32.gmra.mrb[0].mxu0 %v1419
        %v1625 = vpop.f32.mrb[0].mxu0
        %v1626 = vadd.f32 0.0, %v1625
        %v1627 = vpop.f32.mrb[0].mxu0
        %1628 = vmatprep.mubr.f32.mxu0 0.0
        %1629 = vmatmul.mubr.f32.gmra.mrb[0].mxu0 %v1422
        %v1630 = vpop.f32.mrb[0].mxu0
        %v1631 = vadd.f32 0.0, %v1630
        %v1632 = vpop.f32.mrb[0].mxu0
        %1633 = vmatprep.mubr.f32.mxu0 0.0
        %1634 = vmatmul.mubr.f32.gmra.mrb[0].mxu0 %v1425
        %v1635 = vpop.f32.mrb[0].mxu0
        %v1636 = vadd.f32 0.0, %v1635
        %v1637 = vpop.f32.mrb[0].mxu0
        %1638 = vmatprep.mubr.f32.mxu0 0.0
        %1639 = vmatmul.mubr.f32.gmra.mrb[0].mxu0 %v1428
        %v1640 = vpop.f32.mrb[0].mxu0
        %v1641 = vadd.f32 0.0, %v1640
        %v1642 = vpop.f32.mrb[0].mxu0
        %1643 = vmatprep.mubr.f32.mxu0 0.0
        %1644 = vmatmul.mubr.f32.gmra.mrb[0].mxu0 %v1431
        %v1645 = vpop.f32.mrb[0].mxu0
        %v1646 = vadd.f32 0.0, %v1645
        %v1647 = vpop.f32.mrb[0].mxu0
        %1648 = vmatprep.mubr.f32.mxu0 0.0
        %1649 = vmatmul.mubr.f32.gmra.mrb[0].mxu0 %v1434
        %v1650 = vpop.f32.mrb[0].mxu0
        %v1651 = vadd.f32 0.0, %v1650
        %v1652 = vpop.f32.mrb[0].mxu0
        %1653 = vmatprep.mubr.f32.mxu0 0.0
        %1654 = vmatmul.mubr.f32.gmra.mrb[0].mxu0 %v1437
        %v1655 = vpop.f32.mrb[0].mxu0
        %v1656 = vadd.f32 0.0, %v1655
        %v1657 = vpop.f32.mrb[0].mxu0
        %1658 = vmatprep.mubr.f32.mxu0 0.0
        %1659 = vmatmul.mubr.f32.gmra.mrb[0].mxu0 %v1440
        %v1660 = vpop.f32.mrb[0].mxu0
        %v1661 = vadd.f32 0.0, %v1660
        %v1662 = vpop.f32.mrb[0].mxu0
        %1663 = vmatprep.mubr.f32.mxu0 0.0
        %1664 = vmatmul.mubr.f32.gmra.mrb[0].mxu0 %v1443
        %v1665 = vpop.f32.mrb[0].mxu0
        %v1666 = vadd.f32 0.0, %v1665
        %v1667 = vpop.f32.mrb[0].mxu0
        %1668 = vmatprep.mubr.f32.mxu0 0.0
        %1669 = vmatmul.mubr.f32.gmra.mrb[0].mxu0 %v1446
        %v1670 = vpop.f32.mrb[0].mxu0
        %v1671 = vadd.f32 0.0, %v1670
        %v1672 = vpop.f32.mrb[0].mxu0
        %1673 = vmatprep.mubr.f32.mxu0 0.0
        %1674 = vmatmul.mubr.f32.gmra.mrb[0].mxu0 %v1449
        %v1675 = vpop.f32.mrb[0].mxu0
        %v1676 = vadd.f32 0.0, %v1675
        %v1677 = vpop.f32.mrb[0].mxu0
        %1678 = vdwg.mxu0
        %v1679 = vadd.f32 %v1289, %v1521
        %v1680 = vadd.f32 %v1290, %v1526
        %v1681 = vadd.f32 %v1291, %v1531
        %v1682 = vadd.f32 %v1292, %v1536
        %v1683 = vadd.f32 %v1293, %v1541
        %v1684 = vadd.f32 %v1294, %v1546
        %v1685 = vadd.f32 %v1295, %v1551
        %v1686 = vadd.f32 %v1296, %v1556
        %v1687 = vadd.f32 %v1297, %v1561
        %v1688 = vadd.f32 %v1298, %v1566
        %v1689 = vadd.f32 %v1299, %v1571
        %v1690 = vadd.f32 %v1300, %v1576
        %v1691 = vadd.f32 %v1301, %v1581
        %v1692 = vadd.f32 %v1302, %v1586
        %v1693 = vadd.f32 %v1303, %v1591
        %v1694 = vadd.f32 %v1304, %v1596
        %v1695 = vadd.f32 %v1305, %v1601
        %v1696 = vadd.f32 %v1306, %v1606
        %v1697 = vadd.f32 %v1307, %v1611
        %v1698 = vadd.f32 %v1308, %v1616
        %v1699 = vadd.f32 %v1309, %v1621
        %v1700 = vadd.f32 %v1310, %v1626
        %v1701 = vadd.f32 %v1311, %v1631
        %v1702 = vadd.f32 %v1312, %v1636
        %v1703 = vadd.f32 %v1313, %v1641
        %v1704 = vadd.f32 %v1314, %v1646
        %v1705 = vadd.f32 %v1315, %v1651
        %v1706 = vadd.f32 %v1316, %v1656
        %v1707 = vadd.f32 %v1317, %v1661
        %v1708 = vadd.f32 %v1318, %v1666
        %v1709 = vadd.f32 %v1319, %v1671
        %v1710 = vadd.f32 %v1320, %v1676
        %v1711 = vld [vmem:[%s213 + $0x4] sm:$0xff]
        %v1712 = vld [vmem:[%s213 + $0xc] sm:$0xff]
        %v1713 = vld [vmem:[%s213 + $0x14] sm:$0xff]
        %v1714 = vld [vmem:[%s213 + $0x1c] sm:$0xff]
        %v1715 = vld [vmem:[%s213 + $0x2c] sm:$0xff]
        %v1716 = vld [vmem:[%s213 + $0x34] sm:$0xff]
        %v1717 = vld [vmem:[%s213 + $0x3c] sm:$0xff]
        %v1718 = vld [vmem:[%s213 + $0x44] sm:$0xff]
        %v1719 = vld [vmem:[%s213 + $0x54] sm:$0xff]
        %v1720 = vld [vmem:[%s213 + $0x5c] sm:$0xff]
        %v1721 = vld [vmem:[%s213 + $0x64] sm:$0xff]
        %v1722 = vld [vmem:[%s213 + $0x6c] sm:$0xff]
        %v1723 = vld [vmem:[%s213 + $0x7c] sm:$0xff]
        %v1724 = vld [vmem:[%s213 + $0x84] sm:$0xff]
        %v1725 = vld [vmem:[%s213 + $0x8c] sm:$0xff]
        %v1726 = vld [vmem:[%s213 + $0x94] sm:$0xff]
        %v1727 = vld [vmem:[%s213 + $0xa4] sm:$0xff]
        %v1728 = vld [vmem:[%s213 + $0xac] sm:$0xff]
        %v1729 = vld [vmem:[%s213 + $0xb4] sm:$0xff]
        %v1730 = vld [vmem:[%s213 + $0xbc] sm:$0xff]
        %v1731 = vld [vmem:[%s213 + $0xcc] sm:$0xff]
        %v1732 = vld [vmem:[%s213 + $0xd4] sm:$0xff]
        %v1733 = vld [vmem:[%s213 + $0xdc] sm:$0xff]
        %v1734 = vld [vmem:[%s213 + $0xe4] sm:$0xff]
        %v1735 = vld [vmem:[%s213 + $0xf4] sm:$0xff]
        %v1736 = vld [vmem:[%s213 + $0xfc] sm:$0xff]
        %v1737 = vld [vmem:[%s213 + $0x104] sm:$0xff]
        %v1738 = vld [vmem:[%s213 + $0x10c] sm:$0xff]
        %v1739 = vld [vmem:[%s213 + $0x11c] sm:$0xff]
        %v1740 = vld [vmem:[%s213 + $0x124] sm:$0xff]
        %v1741 = vld [vmem:[%s213 + $0x12c] sm:$0xff]
        %v1742 = vld [vmem:[%s213 + $0x134] sm:$0xff]
        %s1743 = scalar_lea.vmem %s1, 8
        %v1744 = vld [vmem:[%s1743] sm:$0x3]
        %v1746 = vsel %vm281, %v1711, 0
        %v1749 = vsel %vm281, %v1712, 0
        %v1752 = vsel %vm281, %v1713, 0
        %v1755 = vsel %vm281, %v1714, 0
        %v1758 = vsel %vm281, %v1715, 0
        %v1761 = vsel %vm281, %v1716, 0
        %v1764 = vsel %vm281, %v1717, 0
        %v1767 = vsel %vm281, %v1718, 0
        %v1770 = vsel %vm281, %v1719, 0
        %v1773 = vsel %vm281, %v1720, 0
        %v1776 = vsel %vm281, %v1721, 0
        %v1779 = vsel %vm281, %v1722, 0
        %v1782 = vsel %vm281, %v1723, 0
        %v1785 = vsel %vm281, %v1724, 0
        %v1788 = vsel %vm281, %v1725, 0
        %v1791 = vsel %vm281, %v1726, 0
        %v1794 = vsel %vm281, %v1727, 0
        %v1797 = vsel %vm281, %v1728, 0
        %v1800 = vsel %vm281, %v1729, 0
        %v1803 = vsel %vm281, %v1730, 0
        %v1806 = vsel %vm281, %v1731, 0
        %v1809 = vsel %vm281, %v1732, 0
        %v1812 = vsel %vm281, %v1733, 0
        %v1815 = vsel %vm281, %v1734, 0
        %v1818 = vsel %vm281, %v1735, 0
        %v1821 = vsel %vm281, %v1736, 0
        %v1824 = vsel %vm281, %v1737, 0
        %v1827 = vsel %vm281, %v1738, 0
        %v1830 = vsel %vm281, %v1739, 0
        %v1833 = vsel %vm281, %v1740, 0
        %v1836 = vsel %vm281, %v1741, 0
        %v1839 = vsel %vm281, %v1742, 0
        %v1842 = vsel %vm378, %v1744, 0
        %1844 = vmatprep.subr.mxu0 0.0
        %1845 = vmatpush1.msra.mxu0 %v1842
        %1846 = vmatprep.subr.mxu0 0.0
        %1847 = vmatpush1.msra.mxu0 0.0
        %1848 = vmatprep.subr.mxu0 0.0
        %1849 = vmatpush1.msra.mxu0 0.0
        %1850 = vmatprep.subr.mxu0 0.0
        %1851 = vmatpush1.msra.mxu0 0.0
        %1852 = vmatprep.subr.mxu0 0.0
        %1853 = vmatpush1.msra.mxu0 0.0
        %1854 = vmatprep.subr.mxu0 0.0
        %1855 = vmatpush1.msra.mxu0 0.0
        %1856 = vmatprep.subr.mxu0 0.0
        %1857 = vmatpush1.msra.mxu0 0.0
        %1858 = vmatprep.subr.mxu0 0.0
        %1859 = vmatpush1.msra.mxu0 0.0
        %1860 = vmatprep.subr.mxu0 0.0
        %1861 = vmatpush1.msra.mxu0 0.0
        %1862 = vmatprep.subr.mxu0 0.0
        %1863 = vmatpush1.msra.mxu0 0.0
        %1864 = vmatprep.subr.mxu0 0.0
        %1865 = vmatpush1.msra.mxu0 0.0
        %1866 = vmatprep.subr.mxu0 0.0
        %1867 = vmatpush1.msra.mxu0 0.0
        %1868 = vmatprep.subr.mxu0 0.0
        %1869 = vmatpush1.msra.mxu0 0.0
        %1870 = vmatprep.subr.mxu0 0.0
        %1871 = vmatpush1.msra.mxu0 0.0
        %1872 = vmatprep.subr.mxu0 0.0
        %1873 = vmatpush1.msra.mxu0 0.0
        %1874 = vmatprep.subr.mxu0 0.0
        %1875 = vmatpush1.msra.mxu0 0.0
        %1876 = vmatprep.subr.mxu0 0.0
        %1877 = vmatpush1.msra.mxu0 0.0
        %1878 = vmatprep.subr.mxu0 0.0
        %1879 = vmatpush1.msra.mxu0 0.0
        %1880 = vmatprep.subr.mxu0 0.0
        %1881 = vmatpush1.msra.mxu0 0.0
        %1882 = vmatprep.subr.mxu0 0.0
        %1883 = vmatpush1.msra.mxu0 0.0
        %1884 = vmatprep.subr.mxu0 0.0
        %1885 = vmatpush1.msra.mxu0 0.0
        %1886 = vmatprep.subr.mxu0 0.0
        %1887 = vmatpush1.msra.mxu0 0.0
        %1888 = vmatprep.subr.mxu0 0.0
        %1889 = vmatpush1.msra.mxu0 0.0
        %1890 = vmatprep.subr.mxu0 0.0
        %1891 = vmatpush1.msra.mxu0 0.0
        %1892 = vmatprep.subr.mxu0 0.0
        %1893 = vmatpush1.msra.mxu0 0.0
        %1894 = vmatprep.subr.mxu0 0.0
        %1895 = vmatpush1.msra.mxu0 0.0
        %1896 = vmatprep.subr.mxu0 0.0
        %1897 = vmatpush1.msra.mxu0 0.0
        %1898 = vmatprep.subr.mxu0 0.0
        %1899 = vmatpush1.msra.mxu0 0.0
        %1900 = vmatprep.subr.mxu0 0.0
        %1901 = vmatpush1.msra.mxu0 0.0
        %1902 = vmatprep.subr.mxu0 0.0
        %1903 = vmatpush1.msra.mxu0 0.0
        %1904 = vmatprep.subr.mxu0 0.0
        %1905 = vmatpush1.msra.mxu0 0.0
        %1906 = vmatprep.subr.mxu0 0.0
        %1907 = vmatpush1.msra.mxu0 0.0
        %1908 = vmatprep.mubr.f32.mxu0 0.0
        %1909 = vmatmul.mubr.f32.gmra.mrb[0].mxu0 %v1746
        %v1910 = vpop.f32.mrb[0].mxu0
        %v1911 = vadd.f32 0.0, %v1910
        %v1912 = vpop.f32.mrb[0].mxu0
        %1913 = vmatprep.mubr.f32.mxu0 0.0
        %1914 = vmatmul.mubr.f32.gmra.mrb[0].mxu0 %v1749
        %v1915 = vpop.f32.mrb[0].mxu0
        %v1916 = vadd.f32 0.0, %v1915
        %v1917 = vpop.f32.mrb[0].mxu0
        %1918 = vmatprep.mubr.f32.mxu0 0.0
        %1919 = vmatmul.mubr.f32.gmra.mrb[0].mxu0 %v1752
        %v1920 = vpop.f32.mrb[0].mxu0
        %v1921 = vadd.f32 0.0, %v1920
        %v1922 = vpop.f32.mrb[0].mxu0
        %1923 = vmatprep.mubr.f32.mxu0 0.0
        %1924 = vmatmul.mubr.f32.gmra.mrb[0].mxu0 %v1755
        %v1925 = vpop.f32.mrb[0].mxu0
        %v1926 = vadd.f32 0.0, %v1925
        %v1927 = vpop.f32.mrb[0].mxu0
        %1928 = vmatprep.mubr.f32.mxu0 0.0
        %1929 = vmatmul.mubr.f32.gmra.mrb[0].mxu0 %v1758
        %v1930 = vpop.f32.mrb[0].mxu0
        %v1931 = vadd.f32 0.0, %v1930
        %v1932 = vpop.f32.mrb[0].mxu0
        %1933 = vmatprep.mubr.f32.mxu0 0.0
        %1934 = vmatmul.mubr.f32.gmra.mrb[0].mxu0 %v1761
        %v1935 = vpop.f32.mrb[0].mxu0
        %v1936 = vadd.f32 0.0, %v1935
        %v1937 = vpop.f32.mrb[0].mxu0
        %1938 = vmatprep.mubr.f32.mxu0 0.0
        %1939 = vmatmul.mubr.f32.gmra.mrb[0].mxu0 %v1764
        %v1940 = vpop.f32.mrb[0].mxu0
        %v1941 = vadd.f32 0.0, %v1940
        %v1942 = vpop.f32.mrb[0].mxu0
        %1943 = vmatprep.mubr.f32.mxu0 0.0
        %1944 = vmatmul.mubr.f32.gmra.mrb[0].mxu0 %v1767
        %v1945 = vpop.f32.mrb[0].mxu0
        %v1946 = vadd.f32 0.0, %v1945
        %v1947 = vpop.f32.mrb[0].mxu0
        %1948 = vmatprep.mubr.f32.mxu0 0.0
        %1949 = vmatmul.mubr.f32.gmra.mrb[0].mxu0 %v1770
        %v1950 = vpop.f32.mrb[0].mxu0
        %v1951 = vadd.f32 0.0, %v1950
        %v1952 = vpop.f32.mrb[0].mxu0
        %1953 = vmatprep.mubr.f32.mxu0 0.0
        %1954 = vmatmul.mubr.f32.gmra.mrb[0].mxu0 %v1773
        %v1955 = vpop.f32.mrb[0].mxu0
        %v1956 = vadd.f32 0.0, %v1955
        %v1957 = vpop.f32.mrb[0].mxu0
        %1958 = vmatprep.mubr.f32.mxu0 0.0
        %1959 = vmatmul.mubr.f32.gmra.mrb[0].mxu0 %v1776
        %v1960 = vpop.f32.mrb[0].mxu0
        %v1961 = vadd.f32 0.0, %v1960
        %v1962 = vpop.f32.mrb[0].mxu0
        %1963 = vmatprep.mubr.f32.mxu0 0.0
        %1964 = vmatmul.mubr.f32.gmra.mrb[0].mxu0 %v1779
        %v1965 = vpop.f32.mrb[0].mxu0
        %v1966 = vadd.f32 0.0, %v1965
        %v1967 = vpop.f32.mrb[0].mxu0
        %1968 = vmatprep.mubr.f32.mxu0 0.0
        %1969 = vmatmul.mubr.f32.gmra.mrb[0].mxu0 %v1782
        %v1970 = vpop.f32.mrb[0].mxu0
        %v1971 = vadd.f32 0.0, %v1970
        %v1972 = vpop.f32.mrb[0].mxu0
        %1973 = vmatprep.mubr.f32.mxu0 0.0
        %1974 = vmatmul.mubr.f32.gmra.mrb[0].mxu0 %v1785
        %v1975 = vpop.f32.mrb[0].mxu0
        %v1976 = vadd.f32 0.0, %v1975
        %v1977 = vpop.f32.mrb[0].mxu0
        %1978 = vmatprep.mubr.f32.mxu0 0.0
        %1979 = vmatmul.mubr.f32.gmra.mrb[0].mxu0 %v1788
        %v1980 = vpop.f32.mrb[0].mxu0
        %v1981 = vadd.f32 0.0, %v1980
        %v1982 = vpop.f32.mrb[0].mxu0
        %1983 = vmatprep.mubr.f32.mxu0 0.0
        %1984 = vmatmul.mubr.f32.gmra.mrb[0].mxu0 %v1791
        %v1985 = vpop.f32.mrb[0].mxu0
        %v1986 = vadd.f32 0.0, %v1985
        %v1987 = vpop.f32.mrb[0].mxu0
        %1988 = vmatprep.mubr.f32.mxu0 0.0
        %1989 = vmatmul.mubr.f32.gmra.mrb[0].mxu0 %v1794
        %v1990 = vpop.f32.mrb[0].mxu0
        %v1991 = vadd.f32 0.0, %v1990
        %v1992 = vpop.f32.mrb[0].mxu0
        %1993 = vmatprep.mubr.f32.mxu0 0.0
        %1994 = vmatmul.mubr.f32.gmra.mrb[0].mxu0 %v1797
        %v1995 = vpop.f32.mrb[0].mxu0
        %v1996 = vadd.f32 0.0, %v1995
        %v1997 = vpop.f32.mrb[0].mxu0
        %1998 = vmatprep.mubr.f32.mxu0 0.0
        %1999 = vmatmul.mubr.f32.gmra.mrb[0].mxu0 %v1800
        %v2000 = vpop.f32.mrb[0].mxu0
        %v2001 = vadd.f32 0.0, %v2000
        %v2002 = vpop.f32.mrb[0].mxu0
        %2003 = vmatprep.mubr.f32.mxu0 0.0
        %2004 = vmatmul.mubr.f32.gmra.mrb[0].mxu0 %v1803
        %v2005 = vpop.f32.mrb[0].mxu0
        %v2006 = vadd.f32 0.0, %v2005
        %v2007 = vpop.f32.mrb[0].mxu0
        %2008 = vmatprep.mubr.f32.mxu0 0.0
        %2009 = vmatmul.mubr.f32.gmra.mrb[0].mxu0 %v1806
        %v2010 = vpop.f32.mrb[0].mxu0
        %v2011 = vadd.f32 0.0, %v2010
        %v2012 = vpop.f32.mrb[0].mxu0
        %2013 = vmatprep.mubr.f32.mxu0 0.0
        %2014 = vmatmul.mubr.f32.gmra.mrb[0].mxu0 %v1809
        %v2015 = vpop.f32.mrb[0].mxu0
        %v2016 = vadd.f32 0.0, %v2015
        %v2017 = vpop.f32.mrb[0].mxu0
        %2018 = vmatprep.mubr.f32.mxu0 0.0
        %2019 = vmatmul.mubr.f32.gmra.mrb[0].mxu0 %v1812
        %v2020 = vpop.f32.mrb[0].mxu0
        %v2021 = vadd.f32 0.0, %v2020
        %v2022 = vpop.f32.mrb[0].mxu0
        %2023 = vmatprep.mubr.f32.mxu0 0.0
        %2024 = vmatmul.mubr.f32.gmra.mrb[0].mxu0 %v1815
        %v2025 = vpop.f32.mrb[0].mxu0
        %v2026 = vadd.f32 0.0, %v2025
        %v2027 = vpop.f32.mrb[0].mxu0
        %2028 = vmatprep.mubr.f32.mxu0 0.0
        %2029 = vmatmul.mubr.f32.gmra.mrb[0].mxu0 %v1818
        %v2030 = vpop.f32.mrb[0].mxu0
        %v2031 = vadd.f32 0.0, %v2030
        %v2032 = vpop.f32.mrb[0].mxu0
        %2033 = vmatprep.mubr.f32.mxu0 0.0
        %2034 = vmatmul.mubr.f32.gmra.mrb[0].mxu0 %v1821
        %v2035 = vpop.f32.mrb[0].mxu0
        %v2036 = vadd.f32 0.0, %v2035
        %v2037 = vpop.f32.mrb[0].mxu0
        %2038 = vmatprep.mubr.f32.mxu0 0.0
        %2039 = vmatmul.mubr.f32.gmra.mrb[0].mxu0 %v1824
        %v2040 = vpop.f32.mrb[0].mxu0
        %v2041 = vadd.f32 0.0, %v2040
        %v2042 = vpop.f32.mrb[0].mxu0
        %2043 = vmatprep.mubr.f32.mxu0 0.0
        %2044 = vmatmul.mubr.f32.gmra.mrb[0].mxu0 %v1827
        %v2045 = vpop.f32.mrb[0].mxu0
        %v2046 = vadd.f32 0.0, %v2045
        %v2047 = vpop.f32.mrb[0].mxu0
        %2048 = vmatprep.mubr.f32.mxu0 0.0
        %2049 = vmatmul.mubr.f32.gmra.mrb[0].mxu0 %v1830
        %v2050 = vpop.f32.mrb[0].mxu0
        %v2051 = vadd.f32 0.0, %v2050
        %v2052 = vpop.f32.mrb[0].mxu0
        %2053 = vmatprep.mubr.f32.mxu0 0.0
        %2054 = vmatmul.mubr.f32.gmra.mrb[0].mxu0 %v1833
        %v2055 = vpop.f32.mrb[0].mxu0
        %v2056 = vadd.f32 0.0, %v2055
        %v2057 = vpop.f32.mrb[0].mxu0
        %2058 = vmatprep.mubr.f32.mxu0 0.0
        %2059 = vmatmul.mubr.f32.gmra.mrb[0].mxu0 %v1836
        %v2060 = vpop.f32.mrb[0].mxu0
        %v2061 = vadd.f32 0.0, %v2060
        %v2062 = vpop.f32.mrb[0].mxu0
        %2063 = vmatprep.mubr.f32.mxu0 0.0
        %2064 = vmatmul.mubr.f32.gmra.mrb[0].mxu0 %v1839
        %v2065 = vpop.f32.mrb[0].mxu0
        %v2066 = vadd.f32 0.0, %v2065
        %v2067 = vpop.f32.mrb[0].mxu0
        %2068 = vdwg.mxu0
        %v2069 = vadd.f32 %v1679, %v1911
        %v2070 = vadd.f32 %v1680, %v1916
        %v2071 = vadd.f32 %v1681, %v1921
        %v2072 = vadd.f32 %v1682, %v1926
        %v2073 = vadd.f32 %v1683, %v1931
        %v2074 = vadd.f32 %v1684, %v1936
        %v2075 = vadd.f32 %v1685, %v1941
        %v2076 = vadd.f32 %v1686, %v1946
        %v2077 = vadd.f32 %v1687, %v1951
        %v2078 = vadd.f32 %v1688, %v1956
        %v2079 = vadd.f32 %v1689, %v1961
        %v2080 = vadd.f32 %v1690, %v1966
        %v2081 = vadd.f32 %v1691, %v1971
        %v2082 = vadd.f32 %v1692, %v1976
        %v2083 = vadd.f32 %v1693, %v1981
        %v2084 = vadd.f32 %v1694, %v1986
        %v2085 = vadd.f32 %v1695, %v1991
        %v2086 = vadd.f32 %v1696, %v1996
        %v2087 = vadd.f32 %v1697, %v2001
        %v2088 = vadd.f32 %v1698, %v2006
        %v2089 = vadd.f32 %v1699, %v2011
        %v2090 = vadd.f32 %v1700, %v2016
        %v2091 = vadd.f32 %v1701, %v2021
        %v2092 = vadd.f32 %v1702, %v2026
        %v2093 = vadd.f32 %v1703, %v2031
        %v2094 = vadd.f32 %v1704, %v2036
        %v2095 = vadd.f32 %v1705, %v2041
        %v2096 = vadd.f32 %v1706, %v2046
        %v2097 = vadd.f32 %v1707, %v2051
        %v2098 = vadd.f32 %v1708, %v2056
        %v2099 = vadd.f32 %v1709, %v2061
        %v2100 = vadd.f32 %v1710, %v2066
        %s2101 = sadd.s32 %s211, 1
        %s2102 = smul.u32 %s2101, 40
        %s2103 = scalar_lea.vmem %s209, %s2102
        %v2104 = vld [vmem:[%s2103] sm:$0xff]
        %v2105 = vld [vmem:[%s2103 + $0x8] sm:$0xff]
        %v2106 = vld [vmem:[%s2103 + $0x10] sm:$0xff]
        %v2107 = vld [vmem:[%s2103 + $0x18] sm:$0xff]
        %v2108 = vld [vmem:[%s2103 + $0x28] sm:$0xff]
        %v2109 = vld [vmem:[%s2103 + $0x30] sm:$0xff]
        %v2110 = vld [vmem:[%s2103 + $0x38] sm:$0xff]
        %v2111 = vld [vmem:[%s2103 + $0x40] sm:$0xff]
        %v2112 = vld [vmem:[%s2103 + $0x50] sm:$0xff]
        %v2113 = vld [vmem:[%s2103 + $0x58] sm:$0xff]
        %v2114 = vld [vmem:[%s2103 + $0x60] sm:$0xff]
        %v2115 = vld [vmem:[%s2103 + $0x68] sm:$0xff]
        %v2116 = vld [vmem:[%s2103 + $0x78] sm:$0xff]
        %v2117 = vld [vmem:[%s2103 + $0x80] sm:$0xff]
        %v2118 = vld [vmem:[%s2103 + $0x88] sm:$0xff]
        %v2119 = vld [vmem:[%s2103 + $0x90] sm:$0xff]
        %v2120 = vld [vmem:[%s2103 + $0xa0] sm:$0xff]
        %v2121 = vld [vmem:[%s2103 + $0xa8] sm:$0xff]
        %v2122 = vld [vmem:[%s2103 + $0xb0] sm:$0xff]
        %v2123 = vld [vmem:[%s2103 + $0xb8] sm:$0xff]
        %v2124 = vld [vmem:[%s2103 + $0xc8] sm:$0xff]
        %v2125 = vld [vmem:[%s2103 + $0xd0] sm:$0xff]
        %v2126 = vld [vmem:[%s2103 + $0xd8] sm:$0xff]
        %v2127 = vld [vmem:[%s2103 + $0xe0] sm:$0xff]
        %v2128 = vld [vmem:[%s2103 + $0xf0] sm:$0xff]
        %v2129 = vld [vmem:[%s2103 + $0xf8] sm:$0xff]
        %v2130 = vld [vmem:[%s2103 + $0x100] sm:$0xff]
        %v2131 = vld [vmem:[%s2103 + $0x108] sm:$0xff]
        %v2132 = vld [vmem:[%s2103 + $0x118] sm:$0xff]
        %v2133 = vld [vmem:[%s2103 + $0x120] sm:$0xff]
        %v2134 = vld [vmem:[%s2103 + $0x128] sm:$0xff]
        %v2135 = vld [vmem:[%s2103 + $0x130] sm:$0xff]
        %s2136 = scalar_lea.vmem %s1, 10
        %v2137 = vld [vmem:[%s2136] sm:$0x3]
        %v2139 = vsel %vm281, %v2104, 0
        %v2142 = vsel %vm281, %v2105, 0
        %v2145 = vsel %vm281, %v2106, 0
        %v2148 = vsel %vm281, %v2107, 0
        %v2151 = vsel %vm281, %v2108, 0
        %v2154 = vsel %vm281, %v2109, 0
        %v2157 = vsel %vm281, %v2110, 0
        %v2160 = vsel %vm281, %v2111, 0
        %v2163 = vsel %vm281, %v2112, 0
        %v2166 = vsel %vm281, %v2113, 0
        %v2169 = vsel %vm281, %v2114, 0
        %v2172 = vsel %vm281, %v2115, 0
        %v2175 = vsel %vm281, %v2116, 0
        %v2178 = vsel %vm281, %v2117, 0
        %v2181 = vsel %vm281, %v2118, 0
        %v2184 = vsel %vm281, %v2119, 0
        %v2187 = vsel %vm281, %v2120, 0
        %v2190 = vsel %vm281, %v2121, 0
        %v2193 = vsel %vm281, %v2122, 0
        %v2196 = vsel %vm281, %v2123, 0
        %v2199 = vsel %vm281, %v2124, 0
        %v2202 = vsel %vm281, %v2125, 0
        %v2205 = vsel %vm281, %v2126, 0
        %v2208 = vsel %vm281, %v2127, 0
        %v2211 = vsel %vm281, %v2128, 0
        %v2214 = vsel %vm281, %v2129, 0
        %v2217 = vsel %vm281, %v2130, 0
        %v2220 = vsel %vm281, %v2131, 0
        %v2223 = vsel %vm281, %v2132, 0
        %v2226 = vsel %vm281, %v2133, 0
        %v2229 = vsel %vm281, %v2134, 0
        %v2232 = vsel %vm281, %v2135, 0
        %v2235 = vsel %vm378, %v2137, 0
        %2237 = vmatprep.subr.mxu0 0.0
        %2238 = vmatpush1.msra.mxu0 %v2235
        %2239 = vmatprep.subr.mxu0 0.0
        %2240 = vmatpush1.msra.mxu0 0.0
        %2241 = vmatprep.subr.mxu0 0.0
        %2242 = vmatpush1.msra.mxu0 0.0
        %2243 = vmatprep.subr.mxu0 0.0
        %2244 = vmatpush1.msra.mxu0 0.0
        %2245 = vmatprep.subr.mxu0 0.0
        %2246 = vmatpush1.msra.mxu0 0.0
        %2247 = vmatprep.subr.mxu0 0.0
        %2248 = vmatpush1.msra.mxu0 0.0
        %2249 = vmatprep.subr.mxu0 0.0
        %2250 = vmatpush1.msra.mxu0 0.0
        %2251 = vmatprep.subr.mxu0 0.0
        %2252 = vmatpush1.msra.mxu0 0.0
        %2253 = vmatprep.subr.mxu0 0.0
        %2254 = vmatpush1.msra.mxu0 0.0
        %2255 = vmatprep.subr.mxu0 0.0
        %2256 = vmatpush1.msra.mxu0 0.0
        %2257 = vmatprep.subr.mxu0 0.0
        %2258 = vmatpush1.msra.mxu0 0.0
        %2259 = vmatprep.subr.mxu0 0.0
        %2260 = vmatpush1.msra.mxu0 0.0
        %2261 = vmatprep.subr.mxu0 0.0
        %2262 = vmatpush1.msra.mxu0 0.0
        %2263 = vmatprep.subr.mxu0 0.0
        %2264 = vmatpush1.msra.mxu0 0.0
        %2265 = vmatprep.subr.mxu0 0.0
        %2266 = vmatpush1.msra.mxu0 0.0
        %2267 = vmatprep.subr.mxu0 0.0
        %2268 = vmatpush1.msra.mxu0 0.0
        %2269 = vmatprep.subr.mxu0 0.0
        %2270 = vmatpush1.msra.mxu0 0.0
        %2271 = vmatprep.subr.mxu0 0.0
        %2272 = vmatpush1.msra.mxu0 0.0
        %2273 = vmatprep.subr.mxu0 0.0
        %2274 = vmatpush1.msra.mxu0 0.0
        %2275 = vmatprep.subr.mxu0 0.0
        %2276 = vmatpush1.msra.mxu0 0.0
        %2277 = vmatprep.subr.mxu0 0.0
        %2278 = vmatpush1.msra.mxu0 0.0
        %2279 = vmatprep.subr.mxu0 0.0
        %2280 = vmatpush1.msra.mxu0 0.0
        %2281 = vmatprep.subr.mxu0 0.0
        %2282 = vmatpush1.msra.mxu0 0.0
        %2283 = vmatprep.subr.mxu0 0.0
        %2284 = vmatpush1.msra.mxu0 0.0
        %2285 = vmatprep.subr.mxu0 0.0
        %2286 = vmatpush1.msra.mxu0 0.0
        %2287 = vmatprep.subr.mxu0 0.0
        %2288 = vmatpush1.msra.mxu0 0.0
        %2289 = vmatprep.subr.mxu0 0.0
        %2290 = vmatpush1.msra.mxu0 0.0
        %2291 = vmatprep.subr.mxu0 0.0
        %2292 = vmatpush1.msra.mxu0 0.0
        %2293 = vmatprep.subr.mxu0 0.0
        %2294 = vmatpush1.msra.mxu0 0.0
        %2295 = vmatprep.subr.mxu0 0.0
        %2296 = vmatpush1.msra.mxu0 0.0
        %2297 = vmatprep.subr.mxu0 0.0
        %2298 = vmatpush1.msra.mxu0 0.0
        %2299 = vmatprep.subr.mxu0 0.0
        %2300 = vmatpush1.msra.mxu0 0.0
        %2301 = vmatprep.mubr.f32.mxu0 0.0
        %2302 = vmatmul.mubr.f32.gmra.mrb[0].mxu0 %v2139
        %v2303 = vpop.f32.mrb[0].mxu0
        %v2304 = vadd.f32 0.0, %v2303
        %v2305 = vpop.f32.mrb[0].mxu0
        %2306 = vmatprep.mubr.f32.mxu0 0.0
        %2307 = vmatmul.mubr.f32.gmra.mrb[0].mxu0 %v2142
        %v2308 = vpop.f32.mrb[0].mxu0
        %v2309 = vadd.f32 0.0, %v2308
        %v2310 = vpop.f32.mrb[0].mxu0
        %2311 = vmatprep.mubr.f32.mxu0 0.0
        %2312 = vmatmul.mubr.f32.gmra.mrb[0].mxu0 %v2145
        %v2313 = vpop.f32.mrb[0].mxu0
        %v2314 = vadd.f32 0.0, %v2313
        %v2315 = vpop.f32.mrb[0].mxu0
        %2316 = vmatprep.mubr.f32.mxu0 0.0
        %2317 = vmatmul.mubr.f32.gmra.mrb[0].mxu0 %v2148
        %v2318 = vpop.f32.mrb[0].mxu0
        %v2319 = vadd.f32 0.0, %v2318
        %v2320 = vpop.f32.mrb[0].mxu0
        %2321 = vmatprep.mubr.f32.mxu0 0.0
        %2322 = vmatmul.mubr.f32.gmra.mrb[0].mxu0 %v2151
        %v2323 = vpop.f32.mrb[0].mxu0
        %v2324 = vadd.f32 0.0, %v2323
        %v2325 = vpop.f32.mrb[0].mxu0
        %2326 = vmatprep.mubr.f32.mxu0 0.0
        %2327 = vmatmul.mubr.f32.gmra.mrb[0].mxu0 %v2154
        %v2328 = vpop.f32.mrb[0].mxu0
        %v2329 = vadd.f32 0.0, %v2328
        %v2330 = vpop.f32.mrb[0].mxu0
        %2331 = vmatprep.mubr.f32.mxu0 0.0
        %2332 = vmatmul.mubr.f32.gmra.mrb[0].mxu0 %v2157
        %v2333 = vpop.f32.mrb[0].mxu0
        %v2334 = vadd.f32 0.0, %v2333
        %v2335 = vpop.f32.mrb[0].mxu0
        %2336 = vmatprep.mubr.f32.mxu0 0.0
        %2337 = vmatmul.mubr.f32.gmra.mrb[0].mxu0 %v2160
        %v2338 = vpop.f32.mrb[0].mxu0
        %v2339 = vadd.f32 0.0, %v2338
        %v2340 = vpop.f32.mrb[0].mxu0
        %2341 = vmatprep.mubr.f32.mxu0 0.0
        %2342 = vmatmul.mubr.f32.gmra.mrb[0].mxu0 %v2163
        %v2343 = vpop.f32.mrb[0].mxu0
        %v2344 = vadd.f32 0.0, %v2343
        %v2345 = vpop.f32.mrb[0].mxu0
        %2346 = vmatprep.mubr.f32.mxu0 0.0
        %2347 = vmatmul.mubr.f32.gmra.mrb[0].mxu0 %v2166
        %v2348 = vpop.f32.mrb[0].mxu0
        %v2349 = vadd.f32 0.0, %v2348
        %v2350 = vpop.f32.mrb[0].mxu0
        %2351 = vmatprep.mubr.f32.mxu0 0.0
        %2352 = vmatmul.mubr.f32.gmra.mrb[0].mxu0 %v2169
        %v2353 = vpop.f32.mrb[0].mxu0
        %v2354 = vadd.f32 0.0, %v2353
        %v2355 = vpop.f32.mrb[0].mxu0
        %2356 = vmatprep.mubr.f32.mxu0 0.0
        %2357 = vmatmul.mubr.f32.gmra.mrb[0].mxu0 %v2172
        %v2358 = vpop.f32.mrb[0].mxu0
        %v2359 = vadd.f32 0.0, %v2358
        %v2360 = vpop.f32.mrb[0].mxu0
        %2361 = vmatprep.mubr.f32.mxu0 0.0
        %2362 = vmatmul.mubr.f32.gmra.mrb[0].mxu0 %v2175
        %v2363 = vpop.f32.mrb[0].mxu0
        %v2364 = vadd.f32 0.0, %v2363
        %v2365 = vpop.f32.mrb[0].mxu0
        %2366 = vmatprep.mubr.f32.mxu0 0.0
        %2367 = vmatmul.mubr.f32.gmra.mrb[0].mxu0 %v2178
        %v2368 = vpop.f32.mrb[0].mxu0
        %v2369 = vadd.f32 0.0, %v2368
        %v2370 = vpop.f32.mrb[0].mxu0
        %2371 = vmatprep.mubr.f32.mxu0 0.0
        %2372 = vmatmul.mubr.f32.gmra.mrb[0].mxu0 %v2181
        %v2373 = vpop.f32.mrb[0].mxu0
        %v2374 = vadd.f32 0.0, %v2373
        %v2375 = vpop.f32.mrb[0].mxu0
        %2376 = vmatprep.mubr.f32.mxu0 0.0
        %2377 = vmatmul.mubr.f32.gmra.mrb[0].mxu0 %v2184
        %v2378 = vpop.f32.mrb[0].mxu0
        %v2379 = vadd.f32 0.0, %v2378
        %v2380 = vpop.f32.mrb[0].mxu0
        %2381 = vmatprep.mubr.f32.mxu0 0.0
        %2382 = vmatmul.mubr.f32.gmra.mrb[0].mxu0 %v2187
        %v2383 = vpop.f32.mrb[0].mxu0
        %v2384 = vadd.f32 0.0, %v2383
        %v2385 = vpop.f32.mrb[0].mxu0
        %2386 = vmatprep.mubr.f32.mxu0 0.0
        %2387 = vmatmul.mubr.f32.gmra.mrb[0].mxu0 %v2190
        %v2388 = vpop.f32.mrb[0].mxu0
        %v2389 = vadd.f32 0.0, %v2388
        %v2390 = vpop.f32.mrb[0].mxu0
        %2391 = vmatprep.mubr.f32.mxu0 0.0
        %2392 = vmatmul.mubr.f32.gmra.mrb[0].mxu0 %v2193
        %v2393 = vpop.f32.mrb[0].mxu0
        %v2394 = vadd.f32 0.0, %v2393
        %v2395 = vpop.f32.mrb[0].mxu0
        %2396 = vmatprep.mubr.f32.mxu0 0.0
        %2397 = vmatmul.mubr.f32.gmra.mrb[0].mxu0 %v2196
        %v2398 = vpop.f32.mrb[0].mxu0
        %v2399 = vadd.f32 0.0, %v2398
        %v2400 = vpop.f32.mrb[0].mxu0
        %2401 = vmatprep.mubr.f32.mxu0 0.0
        %2402 = vmatmul.mubr.f32.gmra.mrb[0].mxu0 %v2199
        %v2403 = vpop.f32.mrb[0].mxu0
        %v2404 = vadd.f32 0.0, %v2403
        %v2405 = vpop.f32.mrb[0].mxu0
        %2406 = vmatprep.mubr.f32.mxu0 0.0
        %2407 = vmatmul.mubr.f32.gmra.mrb[0].mxu0 %v2202
        %v2408 = vpop.f32.mrb[0].mxu0
        %v2409 = vadd.f32 0.0, %v2408
        %v2410 = vpop.f32.mrb[0].mxu0
        %2411 = vmatprep.mubr.f32.mxu0 0.0
        %2412 = vmatmul.mubr.f32.gmra.mrb[0].mxu0 %v2205
        %v2413 = vpop.f32.mrb[0].mxu0
        %v2414 = vadd.f32 0.0, %v2413
        %v2415 = vpop.f32.mrb[0].mxu0
        %2416 = vmatprep.mubr.f32.mxu0 0.0
        %2417 = vmatmul.mubr.f32.gmra.mrb[0].mxu0 %v2208
        %v2418 = vpop.f32.mrb[0].mxu0
        %v2419 = vadd.f32 0.0, %v2418
        %v2420 = vpop.f32.mrb[0].mxu0
        %2421 = vmatprep.mubr.f32.mxu0 0.0
        %2422 = vmatmul.mubr.f32.gmra.mrb[0].mxu0 %v2211
        %v2423 = vpop.f32.mrb[0].mxu0
        %v2424 = vadd.f32 0.0, %v2423
        %v2425 = vpop.f32.mrb[0].mxu0
        %2426 = vmatprep.mubr.f32.mxu0 0.0
        %2427 = vmatmul.mubr.f32.gmra.mrb[0].mxu0 %v2214
        %v2428 = vpop.f32.mrb[0].mxu0
        %v2429 = vadd.f32 0.0, %v2428
        %v2430 = vpop.f32.mrb[0].mxu0
        %2431 = vmatprep.mubr.f32.mxu0 0.0
        %2432 = vmatmul.mubr.f32.gmra.mrb[0].mxu0 %v2217
        %v2433 = vpop.f32.mrb[0].mxu0
        %v2434 = vadd.f32 0.0, %v2433
        %v2435 = vpop.f32.mrb[0].mxu0
        %2436 = vmatprep.mubr.f32.mxu0 0.0
        %2437 = vmatmul.mubr.f32.gmra.mrb[0].mxu0 %v2220
        %v2438 = vpop.f32.mrb[0].mxu0
        %v2439 = vadd.f32 0.0, %v2438
        %v2440 = vpop.f32.mrb[0].mxu0
        %2441 = vmatprep.mubr.f32.mxu0 0.0
        %2442 = vmatmul.mubr.f32.gmra.mrb[0].mxu0 %v2223
        %v2443 = vpop.f32.mrb[0].mxu0
        %v2444 = vadd.f32 0.0, %v2443
        %v2445 = vpop.f32.mrb[0].mxu0
        %2446 = vmatprep.mubr.f32.mxu0 0.0
        %2447 = vmatmul.mubr.f32.gmra.mrb[0].mxu0 %v2226
        %v2448 = vpop.f32.mrb[0].mxu0
        %v2449 = vadd.f32 0.0, %v2448
        %v2450 = vpop.f32.mrb[0].mxu0
        %2451 = vmatprep.mubr.f32.mxu0 0.0
        %2452 = vmatmul.mubr.f32.gmra.mrb[0].mxu0 %v2229
        %v2453 = vpop.f32.mrb[0].mxu0
        %v2454 = vadd.f32 0.0, %v2453
        %v2455 = vpop.f32.mrb[0].mxu0
        %2456 = vmatprep.mubr.f32.mxu0 0.0
        %2457 = vmatmul.mubr.f32.gmra.mrb[0].mxu0 %v2232
        %v2458 = vpop.f32.mrb[0].mxu0
        %v2459 = vadd.f32 0.0, %v2458
        %v2460 = vpop.f32.mrb[0].mxu0
        %2461 = vdwg.mxu0
        %v2462 = vadd.f32 %v2069, %v2304
        %v2463 = vadd.f32 %v2070, %v2309
        %v2464 = vadd.f32 %v2071, %v2314
        %v2465 = vadd.f32 %v2072, %v2319
        %v2466 = vadd.f32 %v2073, %v2324
        %v2467 = vadd.f32 %v2074, %v2329
        %v2468 = vadd.f32 %v2075, %v2334
        %v2469 = vadd.f32 %v2076, %v2339
        %v2470 = vadd.f32 %v2077, %v2344
        %v2471 = vadd.f32 %v2078, %v2349
        %v2472 = vadd.f32 %v2079, %v2354
        %v2473 = vadd.f32 %v2080, %v2359
        %v2474 = vadd.f32 %v2081, %v2364
        %v2475 = vadd.f32 %v2082, %v2369
        %v2476 = vadd.f32 %v2083, %v2374
        %v2477 = vadd.f32 %v2084, %v2379
        %v2478 = vadd.f32 %v2085, %v2384
        %v2479 = vadd.f32 %v2086, %v2389
        %v2480 = vadd.f32 %v2087, %v2394
        %v2481 = vadd.f32 %v2088, %v2399
        %v2482 = vadd.f32 %v2089, %v2404
        %v2483 = vadd.f32 %v2090, %v2409
        %v2484 = vadd.f32 %v2091, %v2414
        %v2485 = vadd.f32 %v2092, %v2419
        %v2486 = vadd.f32 %v2093, %v2424
        %v2487 = vadd.f32 %v2094, %v2429
        %v2488 = vadd.f32 %v2095, %v2434
        %v2489 = vadd.f32 %v2096, %v2439
        %v2490 = vadd.f32 %v2097, %v2444
        %v2491 = vadd.f32 %v2098, %v2449
        %v2492 = vadd.f32 %v2099, %v2454
        %v2493 = vadd.f32 %v2100, %v2459
        %v2494 = vld [vmem:[%s2103 + $0x1] sm:$0xff]
        %v2495 = vld [vmem:[%s2103 + $0x9] sm:$0xff]
        %v2496 = vld [vmem:[%s2103 + $0x11] sm:$0xff]
        %v2497 = vld [vmem:[%s2103 + $0x19] sm:$0xff]
        %v2498 = vld [vmem:[%s2103 + $0x29] sm:$0xff]
        %v2499 = vld [vmem:[%s2103 + $0x31] sm:$0xff]
        %v2500 = vld [vmem:[%s2103 + $0x39] sm:$0xff]
        %v2501 = vld [vmem:[%s2103 + $0x41] sm:$0xff]
        %v2502 = vld [vmem:[%s2103 + $0x51] sm:$0xff]
        %v2503 = vld [vmem:[%s2103 + $0x59] sm:$0xff]
        %v2504 = vld [vmem:[%s2103 + $0x61] sm:$0xff]
        %v2505 = vld [vmem:[%s2103 + $0x69] sm:$0xff]
        %v2506 = vld [vmem:[%s2103 + $0x79] sm:$0xff]
        %v2507 = vld [vmem:[%s2103 + $0x81] sm:$0xff]
        %v2508 = vld [vmem:[%s2103 + $0x89] sm:$0xff]
        %v2509 = vld [vmem:[%s2103 + $0x91] sm:$0xff]
        %v2510 = vld [vmem:[%s2103 + $0xa1] sm:$0xff]
        %v2511 = vld [vmem:[%s2103 + $0xa9] sm:$0xff]
        %v2512 = vld [vmem:[%s2103 + $0xb1] sm:$0xff]
        %v2513 = vld [vmem:[%s2103 + $0xb9] sm:$0xff]
        %v2514 = vld [vmem:[%s2103 + $0xc9] sm:$0xff]
        %v2515 = vld [vmem:[%s2103 + $0xd1] sm:$0xff]
        %v2516 = vld [vmem:[%s2103 + $0xd9] sm:$0xff]
        %v2517 = vld [vmem:[%s2103 + $0xe1] sm:$0xff]
        %v2518 = vld [vmem:[%s2103 + $0xf1] sm:$0xff]
        %v2519 = vld [vmem:[%s2103 + $0xf9] sm:$0xff]
        %v2520 = vld [vmem:[%s2103 + $0x101] sm:$0xff]
        %v2521 = vld [vmem:[%s2103 + $0x109] sm:$0xff]
        %v2522 = vld [vmem:[%s2103 + $0x119] sm:$0xff]
        %v2523 = vld [vmem:[%s2103 + $0x121] sm:$0xff]
        %v2524 = vld [vmem:[%s2103 + $0x129] sm:$0xff]
        %v2525 = vld [vmem:[%s2103 + $0x131] sm:$0xff]
        %s2526 = scalar_lea.vmem %s1, 12
        %v2527 = vld [vmem:[%s2526] sm:$0x3]
        %v2529 = vsel %vm281, %v2494, 0
        %v2532 = vsel %vm281, %v2495, 0
        %v2535 = vsel %vm281, %v2496, 0
        %v2538 = vsel %vm281, %v2497, 0
        %v2541 = vsel %vm281, %v2498, 0
        %v2544 = vsel %vm281, %v2499, 0
        %v2547 = vsel %vm281, %v2500, 0
        %v2550 = vsel %vm281, %v2501, 0
        %v2553 = vsel %vm281, %v2502, 0
        %v2556 = vsel %vm281, %v2503, 0
        %v2559 = vsel %vm281, %v2504, 0
        %v2562 = vsel %vm281, %v2505, 0
        %v2565 = vsel %vm281, %v2506, 0
        %v2568 = vsel %vm281, %v2507, 0
        %v2571 = vsel %vm281, %v2508, 0
        %v2574 = vsel %vm281, %v2509, 0
        %v2577 = vsel %vm281, %v2510, 0
        %v2580 = vsel %vm281, %v2511, 0
        %v2583 = vsel %vm281, %v2512, 0
        %v2586 = vsel %vm281, %v2513, 0
        %v2589 = vsel %vm281, %v2514, 0
        %v2592 = vsel %vm281, %v2515, 0
        %v2595 = vsel %vm281, %v2516, 0
        %v2598 = vsel %vm281, %v2517, 0
        %v2601 = vsel %vm281, %v2518, 0
        %v2604 = vsel %vm281, %v2519, 0
        %v2607 = vsel %vm281, %v2520, 0
        %v2610 = vsel %vm281, %v2521, 0
        %v2613 = vsel %vm281, %v2522, 0
        %v2616 = vsel %vm281, %v2523, 0
        %v2619 = vsel %vm281, %v2524, 0
        %v2622 = vsel %vm281, %v2525, 0
        %v2625 = vsel %vm378, %v2527, 0
        %2627 = vmatprep.subr.mxu0 0.0
        %2628 = vmatpush1.msra.mxu0 %v2625
        %2629 = vmatprep.subr.mxu0 0.0
        %2630 = vmatpush1.msra.mxu0 0.0
        %2631 = vmatprep.subr.mxu0 0.0
        %2632 = vmatpush1.msra.mxu0 0.0
        %2633 = vmatprep.subr.mxu0 0.0
        %2634 = vmatpush1.msra.mxu0 0.0
        %2635 = vmatprep.subr.mxu0 0.0
        %2636 = vmatpush1.msra.mxu0 0.0
        %2637 = vmatprep.subr.mxu0 0.0
        %2638 = vmatpush1.msra.mxu0 0.0
        %2639 = vmatprep.subr.mxu0 0.0
        %2640 = vmatpush1.msra.mxu0 0.0
        %2641 = vmatprep.subr.mxu0 0.0
        %2642 = vmatpush1.msra.mxu0 0.0
        %2643 = vmatprep.subr.mxu0 0.0
        %2644 = vmatpush1.msra.mxu0 0.0
        %2645 = vmatprep.subr.mxu0 0.0
        %2646 = vmatpush1.msra.mxu0 0.0
        %2647 = vmatprep.subr.mxu0 0.0
        %2648 = vmatpush1.msra.mxu0 0.0
        %2649 = vmatprep.subr.mxu0 0.0
        %2650 = vmatpush1.msra.mxu0 0.0
        %2651 = vmatprep.subr.mxu0 0.0
        %2652 = vmatpush1.msra.mxu0 0.0
        %2653 = vmatprep.subr.mxu0 0.0
        %2654 = vmatpush1.msra.mxu0 0.0
        %2655 = vmatprep.subr.mxu0 0.0
        %2656 = vmatpush1.msra.mxu0 0.0
        %2657 = vmatprep.subr.mxu0 0.0
        %2658 = vmatpush1.msra.mxu0 0.0
        %2659 = vmatprep.subr.mxu0 0.0
        %2660 = vmatpush1.msra.mxu0 0.0
        %2661 = vmatprep.subr.mxu0 0.0
        %2662 = vmatpush1.msra.mxu0 0.0
        %2663 = vmatprep.subr.mxu0 0.0
        %2664 = vmatpush1.msra.mxu0 0.0
        %2665 = vmatprep.subr.mxu0 0.0
        %2666 = vmatpush1.msra.mxu0 0.0
        %2667 = vmatprep.subr.mxu0 0.0
        %2668 = vmatpush1.msra.mxu0 0.0
        %2669 = vmatprep.subr.mxu0 0.0
        %2670 = vmatpush1.msra.mxu0 0.0
        %2671 = vmatprep.subr.mxu0 0.0
        %2672 = vmatpush1.msra.mxu0 0.0
        %2673 = vmatprep.subr.mxu0 0.0
        %2674 = vmatpush1.msra.mxu0 0.0
        %2675 = vmatprep.subr.mxu0 0.0
        %2676 = vmatpush1.msra.mxu0 0.0
        %2677 = vmatprep.subr.mxu0 0.0
        %2678 = vmatpush1.msra.mxu0 0.0
        %2679 = vmatprep.subr.mxu0 0.0
        %2680 = vmatpush1.msra.mxu0 0.0
        %2681 = vmatprep.subr.mxu0 0.0
        %2682 = vmatpush1.msra.mxu0 0.0
        %2683 = vmatprep.subr.mxu0 0.0
        %2684 = vmatpush1.msra.mxu0 0.0
        %2685 = vmatprep.subr.mxu0 0.0
        %2686 = vmatpush1.msra.mxu0 0.0
        %2687 = vmatprep.subr.mxu0 0.0
        %2688 = vmatpush1.msra.mxu0 0.0
        %2689 = vmatprep.subr.mxu0 0.0
        %2690 = vmatpush1.msra.mxu0 0.0
        %2691 = vmatprep.mubr.f32.mxu0 0.0
        %2692 = vmatmul.mubr.f32.gmra.mrb[0].mxu0 %v2529
        %v2693 = vpop.f32.mrb[0].mxu0
        %v2694 = vadd.f32 0.0, %v2693
        %v2695 = vpop.f32.mrb[0].mxu0
        %2696 = vmatprep.mubr.f32.mxu0 0.0
        %2697 = vmatmul.mubr.f32.gmra.mrb[0].mxu0 %v2532
        %v2698 = vpop.f32.mrb[0].mxu0
        %v2699 = vadd.f32 0.0, %v2698
        %v2700 = vpop.f32.mrb[0].mxu0
        %2701 = vmatprep.mubr.f32.mxu0 0.0
        %2702 = vmatmul.mubr.f32.gmra.mrb[0].mxu0 %v2535
        %v2703 = vpop.f32.mrb[0].mxu0
        %v2704 = vadd.f32 0.0, %v2703
        %v2705 = vpop.f32.mrb[0].mxu0
        %2706 = vmatprep.mubr.f32.mxu0 0.0
        %2707 = vmatmul.mubr.f32.gmra.mrb[0].mxu0 %v2538
        %v2708 = vpop.f32.mrb[0].mxu0
        %v2709 = vadd.f32 0.0, %v2708
        %v2710 = vpop.f32.mrb[0].mxu0
        %2711 = vmatprep.mubr.f32.mxu0 0.0
        %2712 = vmatmul.mubr.f32.gmra.mrb[0].mxu0 %v2541
        %v2713 = vpop.f32.mrb[0].mxu0
        %v2714 = vadd.f32 0.0, %v2713
        %v2715 = vpop.f32.mrb[0].mxu0
        %2716 = vmatprep.mubr.f32.mxu0 0.0
        %2717 = vmatmul.mubr.f32.gmra.mrb[0].mxu0 %v2544
        %v2718 = vpop.f32.mrb[0].mxu0
        %v2719 = vadd.f32 0.0, %v2718
        %v2720 = vpop.f32.mrb[0].mxu0
        %2721 = vmatprep.mubr.f32.mxu0 0.0
        %2722 = vmatmul.mubr.f32.gmra.mrb[0].mxu0 %v2547
        %v2723 = vpop.f32.mrb[0].mxu0
        %v2724 = vadd.f32 0.0, %v2723
        %v2725 = vpop.f32.mrb[0].mxu0
        %2726 = vmatprep.mubr.f32.mxu0 0.0
        %2727 = vmatmul.mubr.f32.gmra.mrb[0].mxu0 %v2550
        %v2728 = vpop.f32.mrb[0].mxu0
        %v2729 = vadd.f32 0.0, %v2728
        %v2730 = vpop.f32.mrb[0].mxu0
        %2731 = vmatprep.mubr.f32.mxu0 0.0
        %2732 = vmatmul.mubr.f32.gmra.mrb[0].mxu0 %v2553
        %v2733 = vpop.f32.mrb[0].mxu0
        %v2734 = vadd.f32 0.0, %v2733
        %v2735 = vpop.f32.mrb[0].mxu0
        %2736 = vmatprep.mubr.f32.mxu0 0.0
        %2737 = vmatmul.mubr.f32.gmra.mrb[0].mxu0 %v2556
        %v2738 = vpop.f32.mrb[0].mxu0
        %v2739 = vadd.f32 0.0, %v2738
        %v2740 = vpop.f32.mrb[0].mxu0
        %2741 = vmatprep.mubr.f32.mxu0 0.0
        %2742 = vmatmul.mubr.f32.gmra.mrb[0].mxu0 %v2559
        %v2743 = vpop.f32.mrb[0].mxu0
        %v2744 = vadd.f32 0.0, %v2743
        %v2745 = vpop.f32.mrb[0].mxu0
        %2746 = vmatprep.mubr.f32.mxu0 0.0
        %2747 = vmatmul.mubr.f32.gmra.mrb[0].mxu0 %v2562
        %v2748 = vpop.f32.mrb[0].mxu0
        %v2749 = vadd.f32 0.0, %v2748
        %v2750 = vpop.f32.mrb[0].mxu0
        %2751 = vmatprep.mubr.f32.mxu0 0.0
        %2752 = vmatmul.mubr.f32.gmra.mrb[0].mxu0 %v2565
        %v2753 = vpop.f32.mrb[0].mxu0
        %v2754 = vadd.f32 0.0, %v2753
        %v2755 = vpop.f32.mrb[0].mxu0
        %2756 = vmatprep.mubr.f32.mxu0 0.0
        %2757 = vmatmul.mubr.f32.gmra.mrb[0].mxu0 %v2568
        %v2758 = vpop.f32.mrb[0].mxu0
        %v2759 = vadd.f32 0.0, %v2758
        %v2760 = vpop.f32.mrb[0].mxu0
        %2761 = vmatprep.mubr.f32.mxu0 0.0
        %2762 = vmatmul.mubr.f32.gmra.mrb[0].mxu0 %v2571
        %v2763 = vpop.f32.mrb[0].mxu0
        %v2764 = vadd.f32 0.0, %v2763
        %v2765 = vpop.f32.mrb[0].mxu0
        %2766 = vmatprep.mubr.f32.mxu0 0.0
        %2767 = vmatmul.mubr.f32.gmra.mrb[0].mxu0 %v2574
        %v2768 = vpop.f32.mrb[0].mxu0
        %v2769 = vadd.f32 0.0, %v2768
        %v2770 = vpop.f32.mrb[0].mxu0
        %2771 = vmatprep.mubr.f32.mxu0 0.0
        %2772 = vmatmul.mubr.f32.gmra.mrb[0].mxu0 %v2577
        %v2773 = vpop.f32.mrb[0].mxu0
        %v2774 = vadd.f32 0.0, %v2773
        %v2775 = vpop.f32.mrb[0].mxu0
        %2776 = vmatprep.mubr.f32.mxu0 0.0
        %2777 = vmatmul.mubr.f32.gmra.mrb[0].mxu0 %v2580
        %v2778 = vpop.f32.mrb[0].mxu0
        %v2779 = vadd.f32 0.0, %v2778
        %v2780 = vpop.f32.mrb[0].mxu0
        %2781 = vmatprep.mubr.f32.mxu0 0.0
        %2782 = vmatmul.mubr.f32.gmra.mrb[0].mxu0 %v2583
        %v2783 = vpop.f32.mrb[0].mxu0
        %v2784 = vadd.f32 0.0, %v2783
        %v2785 = vpop.f32.mrb[0].mxu0
        %2786 = vmatprep.mubr.f32.mxu0 0.0
        %2787 = vmatmul.mubr.f32.gmra.mrb[0].mxu0 %v2586
        %v2788 = vpop.f32.mrb[0].mxu0
        %v2789 = vadd.f32 0.0, %v2788
        %v2790 = vpop.f32.mrb[0].mxu0
        %2791 = vmatprep.mubr.f32.mxu0 0.0
        %2792 = vmatmul.mubr.f32.gmra.mrb[0].mxu0 %v2589
        %v2793 = vpop.f32.mrb[0].mxu0
        %v2794 = vadd.f32 0.0, %v2793
        %v2795 = vpop.f32.mrb[0].mxu0
        %2796 = vmatprep.mubr.f32.mxu0 0.0
        %2797 = vmatmul.mubr.f32.gmra.mrb[0].mxu0 %v2592
        %v2798 = vpop.f32.mrb[0].mxu0
        %v2799 = vadd.f32 0.0, %v2798
        %v2800 = vpop.f32.mrb[0].mxu0
        %2801 = vmatprep.mubr.f32.mxu0 0.0
        %2802 = vmatmul.mubr.f32.gmra.mrb[0].mxu0 %v2595
        %v2803 = vpop.f32.mrb[0].mxu0
        %v2804 = vadd.f32 0.0, %v2803
        %v2805 = vpop.f32.mrb[0].mxu0
        %2806 = vmatprep.mubr.f32.mxu0 0.0
        %2807 = vmatmul.mubr.f32.gmra.mrb[0].mxu0 %v2598
        %v2808 = vpop.f32.mrb[0].mxu0
        %v2809 = vadd.f32 0.0, %v2808
        %v2810 = vpop.f32.mrb[0].mxu0
        %2811 = vmatprep.mubr.f32.mxu0 0.0
        %2812 = vmatmul.mubr.f32.gmra.mrb[0].mxu0 %v2601
        %v2813 = vpop.f32.mrb[0].mxu0
        %v2814 = vadd.f32 0.0, %v2813
        %v2815 = vpop.f32.mrb[0].mxu0
        %2816 = vmatprep.mubr.f32.mxu0 0.0
        %2817 = vmatmul.mubr.f32.gmra.mrb[0].mxu0 %v2604
        %v2818 = vpop.f32.mrb[0].mxu0
        %v2819 = vadd.f32 0.0, %v2818
        %v2820 = vpop.f32.mrb[0].mxu0
        %2821 = vmatprep.mubr.f32.mxu0 0.0
        %2822 = vmatmul.mubr.f32.gmra.mrb[0].mxu0 %v2607
        %v2823 = vpop.f32.mrb[0].mxu0
        %v2824 = vadd.f32 0.0, %v2823
        %v2825 = vpop.f32.mrb[0].mxu0
        %2826 = vmatprep.mubr.f32.mxu0 0.0
        %2827 = vmatmul.mubr.f32.gmra.mrb[0].mxu0 %v2610
        %v2828 = vpop.f32.mrb[0].mxu0
        %v2829 = vadd.f32 0.0, %v2828
        %v2830 = vpop.f32.mrb[0].mxu0
        %2831 = vmatprep.mubr.f32.mxu0 0.0
        %2832 = vmatmul.mubr.f32.gmra.mrb[0].mxu0 %v2613
        %v2833 = vpop.f32.mrb[0].mxu0
        %v2834 = vadd.f32 0.0, %v2833
        %v2835 = vpop.f32.mrb[0].mxu0
        %2836 = vmatprep.mubr.f32.mxu0 0.0
        %2837 = vmatmul.mubr.f32.gmra.mrb[0].mxu0 %v2616
        %v2838 = vpop.f32.mrb[0].mxu0
        %v2839 = vadd.f32 0.0, %v2838
        %v2840 = vpop.f32.mrb[0].mxu0
        %2841 = vmatprep.mubr.f32.mxu0 0.0
        %2842 = vmatmul.mubr.f32.gmra.mrb[0].mxu0 %v2619
        %v2843 = vpop.f32.mrb[0].mxu0
        %v2844 = vadd.f32 0.0, %v2843
        %v2845 = vpop.f32.mrb[0].mxu0
        %2846 = vmatprep.mubr.f32.mxu0 0.0
        %2847 = vmatmul.mubr.f32.gmra.mrb[0].mxu0 %v2622
        %v2848 = vpop.f32.mrb[0].mxu0
        %v2849 = vadd.f32 0.0, %v2848
        %v2850 = vpop.f32.mrb[0].mxu0
        %2851 = vdwg.mxu0
        %v2852 = vadd.f32 %v2462, %v2694
        %v2853 = vadd.f32 %v2463, %v2699
        %v2854 = vadd.f32 %v2464, %v2704
        %v2855 = vadd.f32 %v2465, %v2709
        %v2856 = vadd.f32 %v2466, %v2714
        %v2857 = vadd.f32 %v2467, %v2719
        %v2858 = vadd.f32 %v2468, %v2724
        %v2859 = vadd.f32 %v2469, %v2729
        %v2860 = vadd.f32 %v2470, %v2734
        %v2861 = vadd.f32 %v2471, %v2739
        %v2862 = vadd.f32 %v2472, %v2744
        %v2863 = vadd.f32 %v2473, %v2749
        %v2864 = vadd.f32 %v2474, %v2754
        %v2865 = vadd.f32 %v2475, %v2759
        %v2866 = vadd.f32 %v2476, %v2764
        %v2867 = vadd.f32 %v2477, %v2769
        %v2868 = vadd.f32 %v2478, %v2774
        %v2869 = vadd.f32 %v2479, %v2779
        %v2870 = vadd.f32 %v2480, %v2784
        %v2871 = vadd.f32 %v2481, %v2789
        %v2872 = vadd.f32 %v2482, %v2794
        %v2873 = vadd.f32 %v2483, %v2799
        %v2874 = vadd.f32 %v2484, %v2804
        %v2875 = vadd.f32 %v2485, %v2809
        %v2876 = vadd.f32 %v2486, %v2814
        %v2877 = vadd.f32 %v2487, %v2819
        %v2878 = vadd.f32 %v2488, %v2824
        %v2879 = vadd.f32 %v2489, %v2829
        %v2880 = vadd.f32 %v2490, %v2834
        %v2881 = vadd.f32 %v2491, %v2839
        %v2882 = vadd.f32 %v2492, %v2844
        %v2883 = vadd.f32 %v2493, %v2849
        %v2884 = vld [vmem:[%s2103 + $0x2] sm:$0xff]
        %v2885 = vld [vmem:[%s2103 + $0xa] sm:$0xff]
        %v2886 = vld [vmem:[%s2103 + $0x12] sm:$0xff]
        %v2887 = vld [vmem:[%s2103 + $0x1a] sm:$0xff]
        %v2888 = vld [vmem:[%s2103 + $0x2a] sm:$0xff]
        %v2889 = vld [vmem:[%s2103 + $0x32] sm:$0xff]
        %v2890 = vld [vmem:[%s2103 + $0x3a] sm:$0xff]
        %v2891 = vld [vmem:[%s2103 + $0x42] sm:$0xff]
        %v2892 = vld [vmem:[%s2103 + $0x52] sm:$0xff]
        %v2893 = vld [vmem:[%s2103 + $0x5a] sm:$0xff]
        %v2894 = vld [vmem:[%s2103 + $0x62] sm:$0xff]
        %v2895 = vld [vmem:[%s2103 + $0x6a] sm:$0xff]
        %v2896 = vld [vmem:[%s2103 + $0x7a] sm:$0xff]
        %v2897 = vld [vmem:[%s2103 + $0x82] sm:$0xff]
        %v2898 = vld [vmem:[%s2103 + $0x8a] sm:$0xff]
        %v2899 = vld [vmem:[%s2103 + $0x92] sm:$0xff]
        %v2900 = vld [vmem:[%s2103 + $0xa2] sm:$0xff]
        %v2901 = vld [vmem:[%s2103 + $0xaa] sm:$0xff]
        %v2902 = vld [vmem:[%s2103 + $0xb2] sm:$0xff]
        %v2903 = vld [vmem:[%s2103 + $0xba] sm:$0xff]
        %v2904 = vld [vmem:[%s2103 + $0xca] sm:$0xff]
        %v2905 = vld [vmem:[%s2103 + $0xd2] sm:$0xff]
        %v2906 = vld [vmem:[%s2103 + $0xda] sm:$0xff]
        %v2907 = vld [vmem:[%s2103 + $0xe2] sm:$0xff]
        %v2908 = vld [vmem:[%s2103 + $0xf2] sm:$0xff]
        %v2909 = vld [vmem:[%s2103 + $0xfa] sm:$0xff]
        %v2910 = vld [vmem:[%s2103 + $0x102] sm:$0xff]
        %v2911 = vld [vmem:[%s2103 + $0x10a] sm:$0xff]
        %v2912 = vld [vmem:[%s2103 + $0x11a] sm:$0xff]
        %v2913 = vld [vmem:[%s2103 + $0x122] sm:$0xff]
        %v2914 = vld [vmem:[%s2103 + $0x12a] sm:$0xff]
        %v2915 = vld [vmem:[%s2103 + $0x132] sm:$0xff]
        %s2916 = scalar_lea.vmem %s1, 14
        %v2917 = vld [vmem:[%s2916] sm:$0x3]
        %v2919 = vsel %vm281, %v2884, 0
        %v2922 = vsel %vm281, %v2885, 0
        %v2925 = vsel %vm281, %v2886, 0
        %v2928 = vsel %vm281, %v2887, 0
        %v2931 = vsel %vm281, %v2888, 0
        %v2934 = vsel %vm281, %v2889, 0
        %v2937 = vsel %vm281, %v2890, 0
        %v2940 = vsel %vm281, %v2891, 0
        %v2943 = vsel %vm281, %v2892, 0
        %v2946 = vsel %vm281, %v2893, 0
        %v2949 = vsel %vm281, %v2894, 0
        %v2952 = vsel %vm281, %v2895, 0
        %v2955 = vsel %vm281, %v2896, 0
        %v2958 = vsel %vm281, %v2897, 0
        %v2961 = vsel %vm281, %v2898, 0
        %v2964 = vsel %vm281, %v2899, 0
        %v2967 = vsel %vm281, %v2900, 0
        %v2970 = vsel %vm281, %v2901, 0
        %v2973 = vsel %vm281, %v2902, 0
        %v2976 = vsel %vm281, %v2903, 0
        %v2979 = vsel %vm281, %v2904, 0
        %v2982 = vsel %vm281, %v2905, 0
        %v2985 = vsel %vm281, %v2906, 0
        %v2988 = vsel %vm281, %v2907, 0
        %v2991 = vsel %vm281, %v2908, 0
        %v2994 = vsel %vm281, %v2909, 0
        %v2997 = vsel %vm281, %v2910, 0
        %v3000 = vsel %vm281, %v2911, 0
        %v3003 = vsel %vm281, %v2912, 0
        %v3006 = vsel %vm281, %v2913, 0
        %v3009 = vsel %vm281, %v2914, 0
        %v3012 = vsel %vm281, %v2915, 0
        %v3015 = vsel %vm378, %v2917, 0
        %3017 = vmatprep.subr.mxu0 0.0
        %3018 = vmatpush1.msra.mxu0 %v3015
        %3019 = vmatprep.subr.mxu0 0.0
        %3020 = vmatpush1.msra.mxu0 0.0
        %3021 = vmatprep.subr.mxu0 0.0
        %3022 = vmatpush1.msra.mxu0 0.0
        %3023 = vmatprep.subr.mxu0 0.0
        %3024 = vmatpush1.msra.mxu0 0.0
        %3025 = vmatprep.subr.mxu0 0.0
        %3026 = vmatpush1.msra.mxu0 0.0
        %3027 = vmatprep.subr.mxu0 0.0
        %3028 = vmatpush1.msra.mxu0 0.0
        %3029 = vmatprep.subr.mxu0 0.0
        %3030 = vmatpush1.msra.mxu0 0.0
        %3031 = vmatprep.subr.mxu0 0.0
        %3032 = vmatpush1.msra.mxu0 0.0
        %3033 = vmatprep.subr.mxu0 0.0
        %3034 = vmatpush1.msra.mxu0 0.0
        %3035 = vmatprep.subr.mxu0 0.0
        %3036 = vmatpush1.msra.mxu0 0.0
        %3037 = vmatprep.subr.mxu0 0.0
        %3038 = vmatpush1.msra.mxu0 0.0
        %3039 = vmatprep.subr.mxu0 0.0
        %3040 = vmatpush1.msra.mxu0 0.0
        %3041 = vmatprep.subr.mxu0 0.0
        %3042 = vmatpush1.msra.mxu0 0.0
        %3043 = vmatprep.subr.mxu0 0.0
        %3044 = vmatpush1.msra.mxu0 0.0
        %3045 = vmatprep.subr.mxu0 0.0
        %3046 = vmatpush1.msra.mxu0 0.0
        %3047 = vmatprep.subr.mxu0 0.0
        %3048 = vmatpush1.msra.mxu0 0.0
        %3049 = vmatprep.subr.mxu0 0.0
        %3050 = vmatpush1.msra.mxu0 0.0
        %3051 = vmatprep.subr.mxu0 0.0
        %3052 = vmatpush1.msra.mxu0 0.0
        %3053 = vmatprep.subr.mxu0 0.0
        %3054 = vmatpush1.msra.mxu0 0.0
        %3055 = vmatprep.subr.mxu0 0.0
        %3056 = vmatpush1.msra.mxu0 0.0
        %3057 = vmatprep.subr.mxu0 0.0
        %3058 = vmatpush1.msra.mxu0 0.0
        %3059 = vmatprep.subr.mxu0 0.0
        %3060 = vmatpush1.msra.mxu0 0.0
        %3061 = vmatprep.subr.mxu0 0.0
        %3062 = vmatpush1.msra.mxu0 0.0
        %3063 = vmatprep.subr.mxu0 0.0
        %3064 = vmatpush1.msra.mxu0 0.0
        %3065 = vmatprep.subr.mxu0 0.0
        %3066 = vmatpush1.msra.mxu0 0.0
        %3067 = vmatprep.subr.mxu0 0.0
        %3068 = vmatpush1.msra.mxu0 0.0
        %3069 = vmatprep.subr.mxu0 0.0
        %3070 = vmatpush1.msra.mxu0 0.0
        %3071 = vmatprep.subr.mxu0 0.0
        %3072 = vmatpush1.msra.mxu0 0.0
        %3073 = vmatprep.subr.mxu0 0.0
        %3074 = vmatpush1.msra.mxu0 0.0
        %3075 = vmatprep.subr.mxu0 0.0
        %3076 = vmatpush1.msra.mxu0 0.0
        %3077 = vmatprep.subr.mxu0 0.0
        %3078 = vmatpush1.msra.mxu0 0.0
        %3079 = vmatprep.subr.mxu0 0.0
        %3080 = vmatpush1.msra.mxu0 0.0
        %3081 = vmatprep.mubr.f32.mxu0 0.0
        %3082 = vmatmul.mubr.f32.gmra.mrb[0].mxu0 %v2919
        %v3083 = vpop.f32.mrb[0].mxu0
        %v3084 = vadd.f32 0.0, %v3083
        %v3085 = vpop.f32.mrb[0].mxu0
        %3086 = vmatprep.mubr.f32.mxu0 0.0
        %3087 = vmatmul.mubr.f32.gmra.mrb[0].mxu0 %v2922
        %v3088 = vpop.f32.mrb[0].mxu0
        %v3089 = vadd.f32 0.0, %v3088
        %v3090 = vpop.f32.mrb[0].mxu0
        %3091 = vmatprep.mubr.f32.mxu0 0.0
        %3092 = vmatmul.mubr.f32.gmra.mrb[0].mxu0 %v2925
        %v3093 = vpop.f32.mrb[0].mxu0
        %v3094 = vadd.f32 0.0, %v3093
        %v3095 = vpop.f32.mrb[0].mxu0
        %3096 = vmatprep.mubr.f32.mxu0 0.0
        %3097 = vmatmul.mubr.f32.gmra.mrb[0].mxu0 %v2928
        %v3098 = vpop.f32.mrb[0].mxu0
        %v3099 = vadd.f32 0.0, %v3098
        %v3100 = vpop.f32.mrb[0].mxu0
        %3101 = vmatprep.mubr.f32.mxu0 0.0
        %3102 = vmatmul.mubr.f32.gmra.mrb[0].mxu0 %v2931
        %v3103 = vpop.f32.mrb[0].mxu0
        %v3104 = vadd.f32 0.0, %v3103
        %v3105 = vpop.f32.mrb[0].mxu0
        %3106 = vmatprep.mubr.f32.mxu0 0.0
        %3107 = vmatmul.mubr.f32.gmra.mrb[0].mxu0 %v2934
        %v3108 = vpop.f32.mrb[0].mxu0
        %v3109 = vadd.f32 0.0, %v3108
        %v3110 = vpop.f32.mrb[0].mxu0
        %3111 = vmatprep.mubr.f32.mxu0 0.0
        %3112 = vmatmul.mubr.f32.gmra.mrb[0].mxu0 %v2937
        %v3113 = vpop.f32.mrb[0].mxu0
        %v3114 = vadd.f32 0.0, %v3113
        %v3115 = vpop.f32.mrb[0].mxu0
        %3116 = vmatprep.mubr.f32.mxu0 0.0
        %3117 = vmatmul.mubr.f32.gmra.mrb[0].mxu0 %v2940
        %v3118 = vpop.f32.mrb[0].mxu0
        %v3119 = vadd.f32 0.0, %v3118
        %v3120 = vpop.f32.mrb[0].mxu0
        %3121 = vmatprep.mubr.f32.mxu0 0.0
        %3122 = vmatmul.mubr.f32.gmra.mrb[0].mxu0 %v2943
        %v3123 = vpop.f32.mrb[0].mxu0
        %v3124 = vadd.f32 0.0, %v3123
        %v3125 = vpop.f32.mrb[0].mxu0
        %3126 = vmatprep.mubr.f32.mxu0 0.0
        %3127 = vmatmul.mubr.f32.gmra.mrb[0].mxu0 %v2946
        %v3128 = vpop.f32.mrb[0].mxu0
        %v3129 = vadd.f32 0.0, %v3128
        %v3130 = vpop.f32.mrb[0].mxu0
        %3131 = vmatprep.mubr.f32.mxu0 0.0
        %3132 = vmatmul.mubr.f32.gmra.mrb[0].mxu0 %v2949
        %v3133 = vpop.f32.mrb[0].mxu0
        %v3134 = vadd.f32 0.0, %v3133
        %v3135 = vpop.f32.mrb[0].mxu0
        %3136 = vmatprep.mubr.f32.mxu0 0.0
        %3137 = vmatmul.mubr.f32.gmra.mrb[0].mxu0 %v2952
        %v3138 = vpop.f32.mrb[0].mxu0
        %v3139 = vadd.f32 0.0, %v3138
        %v3140 = vpop.f32.mrb[0].mxu0
        %3141 = vmatprep.mubr.f32.mxu0 0.0
        %3142 = vmatmul.mubr.f32.gmra.mrb[0].mxu0 %v2955
        %v3143 = vpop.f32.mrb[0].mxu0
        %v3144 = vadd.f32 0.0, %v3143
        %v3145 = vpop.f32.mrb[0].mxu0
        %3146 = vmatprep.mubr.f32.mxu0 0.0
        %3147 = vmatmul.mubr.f32.gmra.mrb[0].mxu0 %v2958
        %v3148 = vpop.f32.mrb[0].mxu0
        %v3149 = vadd.f32 0.0, %v3148
        %v3150 = vpop.f32.mrb[0].mxu0
        %3151 = vmatprep.mubr.f32.mxu0 0.0
        %3152 = vmatmul.mubr.f32.gmra.mrb[0].mxu0 %v2961
        %v3153 = vpop.f32.mrb[0].mxu0
        %v3154 = vadd.f32 0.0, %v3153
        %v3155 = vpop.f32.mrb[0].mxu0
        %3156 = vmatprep.mubr.f32.mxu0 0.0
        %3157 = vmatmul.mubr.f32.gmra.mrb[0].mxu0 %v2964
        %v3158 = vpop.f32.mrb[0].mxu0
        %v3159 = vadd.f32 0.0, %v3158
        %v3160 = vpop.f32.mrb[0].mxu0
        %3161 = vmatprep.mubr.f32.mxu0 0.0
        %3162 = vmatmul.mubr.f32.gmra.mrb[0].mxu0 %v2967
        %v3163 = vpop.f32.mrb[0].mxu0
        %v3164 = vadd.f32 0.0, %v3163
        %v3165 = vpop.f32.mrb[0].mxu0
        %3166 = vmatprep.mubr.f32.mxu0 0.0
        %3167 = vmatmul.mubr.f32.gmra.mrb[0].mxu0 %v2970
        %v3168 = vpop.f32.mrb[0].mxu0
        %v3169 = vadd.f32 0.0, %v3168
        %v3170 = vpop.f32.mrb[0].mxu0
        %3171 = vmatprep.mubr.f32.mxu0 0.0
        %3172 = vmatmul.mubr.f32.gmra.mrb[0].mxu0 %v2973
        %v3173 = vpop.f32.mrb[0].mxu0
        %v3174 = vadd.f32 0.0, %v3173
        %v3175 = vpop.f32.mrb[0].mxu0
        %3176 = vmatprep.mubr.f32.mxu0 0.0
        %3177 = vmatmul.mubr.f32.gmra.mrb[0].mxu0 %v2976
        %v3178 = vpop.f32.mrb[0].mxu0
        %v3179 = vadd.f32 0.0, %v3178
        %v3180 = vpop.f32.mrb[0].mxu0
        %3181 = vmatprep.mubr.f32.mxu0 0.0
        %3182 = vmatmul.mubr.f32.gmra.mrb[0].mxu0 %v2979
        %v3183 = vpop.f32.mrb[0].mxu0
        %v3184 = vadd.f32 0.0, %v3183
        %v3185 = vpop.f32.mrb[0].mxu0
        %3186 = vmatprep.mubr.f32.mxu0 0.0
        %3187 = vmatmul.mubr.f32.gmra.mrb[0].mxu0 %v2982
        %v3188 = vpop.f32.mrb[0].mxu0
        %v3189 = vadd.f32 0.0, %v3188
        %v3190 = vpop.f32.mrb[0].mxu0
        %3191 = vmatprep.mubr.f32.mxu0 0.0
        %3192 = vmatmul.mubr.f32.gmra.mrb[0].mxu0 %v2985
        %v3193 = vpop.f32.mrb[0].mxu0
        %v3194 = vadd.f32 0.0, %v3193
        %v3195 = vpop.f32.mrb[0].mxu0
        %3196 = vmatprep.mubr.f32.mxu0 0.0
        %3197 = vmatmul.mubr.f32.gmra.mrb[0].mxu0 %v2988
        %v3198 = vpop.f32.mrb[0].mxu0
        %v3199 = vadd.f32 0.0, %v3198
        %v3200 = vpop.f32.mrb[0].mxu0
        %3201 = vmatprep.mubr.f32.mxu0 0.0
        %3202 = vmatmul.mubr.f32.gmra.mrb[0].mxu0 %v2991
        %v3203 = vpop.f32.mrb[0].mxu0
        %v3204 = vadd.f32 0.0, %v3203
        %v3205 = vpop.f32.mrb[0].mxu0
        %3206 = vmatprep.mubr.f32.mxu0 0.0
        %3207 = vmatmul.mubr.f32.gmra.mrb[0].mxu0 %v2994
        %v3208 = vpop.f32.mrb[0].mxu0
        %v3209 = vadd.f32 0.0, %v3208
        %v3210 = vpop.f32.mrb[0].mxu0
        %3211 = vmatprep.mubr.f32.mxu0 0.0
        %3212 = vmatmul.mubr.f32.gmra.mrb[0].mxu0 %v2997
        %v3213 = vpop.f32.mrb[0].mxu0
        %v3214 = vadd.f32 0.0, %v3213
        %v3215 = vpop.f32.mrb[0].mxu0
        %3216 = vmatprep.mubr.f32.mxu0 0.0
        %3217 = vmatmul.mubr.f32.gmra.mrb[0].mxu0 %v3000
        %v3218 = vpop.f32.mrb[0].mxu0
        %v3219 = vadd.f32 0.0, %v3218
        %v3220 = vpop.f32.mrb[0].mxu0
        %3221 = vmatprep.mubr.f32.mxu0 0.0
        %3222 = vmatmul.mubr.f32.gmra.mrb[0].mxu0 %v3003
        %v3223 = vpop.f32.mrb[0].mxu0
        %v3224 = vadd.f32 0.0, %v3223
        %v3225 = vpop.f32.mrb[0].mxu0
        %3226 = vmatprep.mubr.f32.mxu0 0.0
        %3227 = vmatmul.mubr.f32.gmra.mrb[0].mxu0 %v3006
        %v3228 = vpop.f32.mrb[0].mxu0
        %v3229 = vadd.f32 0.0, %v3228
        %v3230 = vpop.f32.mrb[0].mxu0
        %3231 = vmatprep.mubr.f32.mxu0 0.0
        %3232 = vmatmul.mubr.f32.gmra.mrb[0].mxu0 %v3009
        %v3233 = vpop.f32.mrb[0].mxu0
        %v3234 = vadd.f32 0.0, %v3233
        %v3235 = vpop.f32.mrb[0].mxu0
        %3236 = vmatprep.mubr.f32.mxu0 0.0
        %3237 = vmatmul.mubr.f32.gmra.mrb[0].mxu0 %v3012
        %v3238 = vpop.f32.mrb[0].mxu0
        %v3239 = vadd.f32 0.0, %v3238
        %v3240 = vpop.f32.mrb[0].mxu0
        %3241 = vdwg.mxu0
        %v3242 = vadd.f32 %v2852, %v3084
        %v3243 = vadd.f32 %v2853, %v3089
        %v3244 = vadd.f32 %v2854, %v3094
        %v3245 = vadd.f32 %v2855, %v3099
        %v3246 = vadd.f32 %v2856, %v3104
        %v3247 = vadd.f32 %v2857, %v3109
        %v3248 = vadd.f32 %v2858, %v3114
        %v3249 = vadd.f32 %v2859, %v3119
        %v3250 = vadd.f32 %v2860, %v3124
        %v3251 = vadd.f32 %v2861, %v3129
        %v3252 = vadd.f32 %v2862, %v3134
        %v3253 = vadd.f32 %v2863, %v3139
        %v3254 = vadd.f32 %v2864, %v3144
        %v3255 = vadd.f32 %v2865, %v3149
        %v3256 = vadd.f32 %v2866, %v3154
        %v3257 = vadd.f32 %v2867, %v3159
        %v3258 = vadd.f32 %v2868, %v3164
        %v3259 = vadd.f32 %v2869, %v3169
        %v3260 = vadd.f32 %v2870, %v3174
        %v3261 = vadd.f32 %v2871, %v3179
        %v3262 = vadd.f32 %v2872, %v3184
        %v3263 = vadd.f32 %v2873, %v3189
        %v3264 = vadd.f32 %v2874, %v3194
        %v3265 = vadd.f32 %v2875, %v3199
        %v3266 = vadd.f32 %v2876, %v3204
        %v3267 = vadd.f32 %v2877, %v3209
        %v3268 = vadd.f32 %v2878, %v3214
        %v3269 = vadd.f32 %v2879, %v3219
        %v3270 = vadd.f32 %v2880, %v3224
        %v3271 = vadd.f32 %v2881, %v3229
        %v3272 = vadd.f32 %v2882, %v3234
        %v3273 = vadd.f32 %v2883, %v3239
        %v3274 = vld [vmem:[%s2103 + $0x3] sm:$0xff]
        %v3275 = vld [vmem:[%s2103 + $0xb] sm:$0xff]
        %v3276 = vld [vmem:[%s2103 + $0x13] sm:$0xff]
        %v3277 = vld [vmem:[%s2103 + $0x1b] sm:$0xff]
        %v3278 = vld [vmem:[%s2103 + $0x2b] sm:$0xff]
        %v3279 = vld [vmem:[%s2103 + $0x33] sm:$0xff]
        %v3280 = vld [vmem:[%s2103 + $0x3b] sm:$0xff]
        %v3281 = vld [vmem:[%s2103 + $0x43] sm:$0xff]
        %v3282 = vld [vmem:[%s2103 + $0x53] sm:$0xff]
        %v3283 = vld [vmem:[%s2103 + $0x5b] sm:$0xff]
        %v3284 = vld [vmem:[%s2103 + $0x63] sm:$0xff]
        %v3285 = vld [vmem:[%s2103 + $0x6b] sm:$0xff]
        %v3286 = vld [vmem:[%s2103 + $0x7b] sm:$0xff]
        %v3287 = vld [vmem:[%s2103 + $0x83] sm:$0xff]
        %v3288 = vld [vmem:[%s2103 + $0x8b] sm:$0xff]
        %v3289 = vld [vmem:[%s2103 + $0x93] sm:$0xff]
        %v3290 = vld [vmem:[%s2103 + $0xa3] sm:$0xff]
        %v3291 = vld [vmem:[%s2103 + $0xab] sm:$0xff]
        %v3292 = vld [vmem:[%s2103 + $0xb3] sm:$0xff]
        %v3293 = vld [vmem:[%s2103 + $0xbb] sm:$0xff]
        %v3294 = vld [vmem:[%s2103 + $0xcb] sm:$0xff]
        %v3295 = vld [vmem:[%s2103 + $0xd3] sm:$0xff]
        %v3296 = vld [vmem:[%s2103 + $0xdb] sm:$0xff]
        %v3297 = vld [vmem:[%s2103 + $0xe3] sm:$0xff]
        %v3298 = vld [vmem:[%s2103 + $0xf3] sm:$0xff]
        %v3299 = vld [vmem:[%s2103 + $0xfb] sm:$0xff]
        %v3300 = vld [vmem:[%s2103 + $0x103] sm:$0xff]
        %v3301 = vld [vmem:[%s2103 + $0x10b] sm:$0xff]
        %v3302 = vld [vmem:[%s2103 + $0x11b] sm:$0xff]
        %v3303 = vld [vmem:[%s2103 + $0x123] sm:$0xff]
        %v3304 = vld [vmem:[%s2103 + $0x12b] sm:$0xff]
        %v3305 = vld [vmem:[%s2103 + $0x133] sm:$0xff]
        %s3306 = scalar_lea.vmem %s1, 16
        %v3307 = vld [vmem:[%s3306] sm:$0x3]
        %v3309 = vsel %vm281, %v3274, 0
        %v3312 = vsel %vm281, %v3275, 0
        %v3315 = vsel %vm281, %v3276, 0
        %v3318 = vsel %vm281, %v3277, 0
        %v3321 = vsel %vm281, %v3278, 0
        %v3324 = vsel %vm281, %v3279, 0
        %v3327 = vsel %vm281, %v3280, 0
        %v3330 = vsel %vm281, %v3281, 0
        %v3333 = vsel %vm281, %v3282, 0
        %v3336 = vsel %vm281, %v3283, 0
        %v3339 = vsel %vm281, %v3284, 0
        %v3342 = vsel %vm281, %v3285, 0
        %v3345 = vsel %vm281, %v3286, 0
        %v3348 = vsel %vm281, %v3287, 0
        %v3351 = vsel %vm281, %v3288, 0
        %v3354 = vsel %vm281, %v3289, 0
        %v3357 = vsel %vm281, %v3290, 0
        %v3360 = vsel %vm281, %v3291, 0
        %v3363 = vsel %vm281, %v3292, 0
        %v3366 = vsel %vm281, %v3293, 0
        %v3369 = vsel %vm281, %v3294, 0
        %v3372 = vsel %vm281, %v3295, 0
        %v3375 = vsel %vm281, %v3296, 0
        %v3378 = vsel %vm281, %v3297, 0
        %v3381 = vsel %vm281, %v3298, 0
        %v3384 = vsel %vm281, %v3299, 0
        %v3387 = vsel %vm281, %v3300, 0
        %v3390 = vsel %vm281, %v3301, 0
        %v3393 = vsel %vm281, %v3302, 0
        %v3396 = vsel %vm281, %v3303, 0
        %v3399 = vsel %vm281, %v3304, 0
        %v3402 = vsel %vm281, %v3305, 0
        %v3405 = vsel %vm378, %v3307, 0
        %3407 = vmatprep.subr.mxu0 0.0
        %3408 = vmatpush1.msra.mxu0 %v3405
        %3409 = vmatprep.subr.mxu0 0.0
        %3410 = vmatpush1.msra.mxu0 0.0
        %3411 = vmatprep.subr.mxu0 0.0
        %3412 = vmatpush1.msra.mxu0 0.0
        %3413 = vmatprep.subr.mxu0 0.0
        %3414 = vmatpush1.msra.mxu0 0.0
        %3415 = vmatprep.subr.mxu0 0.0
        %3416 = vmatpush1.msra.mxu0 0.0
        %3417 = vmatprep.subr.mxu0 0.0
        %3418 = vmatpush1.msra.mxu0 0.0
        %3419 = vmatprep.subr.mxu0 0.0
        %3420 = vmatpush1.msra.mxu0 0.0
        %3421 = vmatprep.subr.mxu0 0.0
        %3422 = vmatpush1.msra.mxu0 0.0
        %3423 = vmatprep.subr.mxu0 0.0
        %3424 = vmatpush1.msra.mxu0 0.0
        %3425 = vmatprep.subr.mxu0 0.0
        %3426 = vmatpush1.msra.mxu0 0.0
        %3427 = vmatprep.subr.mxu0 0.0
        %3428 = vmatpush1.msra.mxu0 0.0
        %3429 = vmatprep.subr.mxu0 0.0
        %3430 = vmatpush1.msra.mxu0 0.0
        %3431 = vmatprep.subr.mxu0 0.0
        %3432 = vmatpush1.msra.mxu0 0.0
        %3433 = vmatprep.subr.mxu0 0.0
        %3434 = vmatpush1.msra.mxu0 0.0
        %3435 = vmatprep.subr.mxu0 0.0
        %3436 = vmatpush1.msra.mxu0 0.0
        %3437 = vmatprep.subr.mxu0 0.0
        %3438 = vmatpush1.msra.mxu0 0.0
        %3439 = vmatprep.subr.mxu0 0.0
        %3440 = vmatpush1.msra.mxu0 0.0
        %3441 = vmatprep.subr.mxu0 0.0
        %3442 = vmatpush1.msra.mxu0 0.0
        %3443 = vmatprep.subr.mxu0 0.0
        %3444 = vmatpush1.msra.mxu0 0.0
        %3445 = vmatprep.subr.mxu0 0.0
        %3446 = vmatpush1.msra.mxu0 0.0
        %3447 = vmatprep.subr.mxu0 0.0
        %3448 = vmatpush1.msra.mxu0 0.0
        %3449 = vmatprep.subr.mxu0 0.0
        %3450 = vmatpush1.msra.mxu0 0.0
        %3451 = vmatprep.subr.mxu0 0.0
        %3452 = vmatpush1.msra.mxu0 0.0
        %3453 = vmatprep.subr.mxu0 0.0
        %3454 = vmatpush1.msra.mxu0 0.0
        %3455 = vmatprep.subr.mxu0 0.0
        %3456 = vmatpush1.msra.mxu0 0.0
        %3457 = vmatprep.subr.mxu0 0.0
        %3458 = vmatpush1.msra.mxu0 0.0
        %3459 = vmatprep.subr.mxu0 0.0
        %3460 = vmatpush1.msra.mxu0 0.0
        %3461 = vmatprep.subr.mxu0 0.0
        %3462 = vmatpush1.msra.mxu0 0.0
        %3463 = vmatprep.subr.mxu0 0.0
        %3464 = vmatpush1.msra.mxu0 0.0
        %3465 = vmatprep.subr.mxu0 0.0
        %3466 = vmatpush1.msra.mxu0 0.0
        %3467 = vmatprep.subr.mxu0 0.0
        %3468 = vmatpush1.msra.mxu0 0.0
        %3469 = vmatprep.subr.mxu0 0.0
        %3470 = vmatpush1.msra.mxu0 0.0
        %3471 = vmatprep.mubr.f32.mxu0 0.0
        %3472 = vmatmul.mubr.f32.gmra.mrb[0].mxu0 %v3309
        %v3473 = vpop.f32.mrb[0].mxu0
        %v3474 = vadd.f32 0.0, %v3473
        %v3475 = vpop.f32.mrb[0].mxu0
        %3476 = vmatprep.mubr.f32.mxu0 0.0
        %3477 = vmatmul.mubr.f32.gmra.mrb[0].mxu0 %v3312
        %v3478 = vpop.f32.mrb[0].mxu0
        %v3479 = vadd.f32 0.0, %v3478
        %v3480 = vpop.f32.mrb[0].mxu0
        %3481 = vmatprep.mubr.f32.mxu0 0.0
        %3482 = vmatmul.mubr.f32.gmra.mrb[0].mxu0 %v3315
        %v3483 = vpop.f32.mrb[0].mxu0
        %v3484 = vadd.f32 0.0, %v3483
        %v3485 = vpop.f32.mrb[0].mxu0
        %3486 = vmatprep.mubr.f32.mxu0 0.0
        %3487 = vmatmul.mubr.f32.gmra.mrb[0].mxu0 %v3318
        %v3488 = vpop.f32.mrb[0].mxu0
        %v3489 = vadd.f32 0.0, %v3488
        %v3490 = vpop.f32.mrb[0].mxu0
        %3491 = vmatprep.mubr.f32.mxu0 0.0
        %3492 = vmatmul.mubr.f32.gmra.mrb[0].mxu0 %v3321
        %v3493 = vpop.f32.mrb[0].mxu0
        %v3494 = vadd.f32 0.0, %v3493
        %v3495 = vpop.f32.mrb[0].mxu0
        %3496 = vmatprep.mubr.f32.mxu0 0.0
        %3497 = vmatmul.mubr.f32.gmra.mrb[0].mxu0 %v3324
        %v3498 = vpop.f32.mrb[0].mxu0
        %v3499 = vadd.f32 0.0, %v3498
        %v3500 = vpop.f32.mrb[0].mxu0
        %3501 = vmatprep.mubr.f32.mxu0 0.0
        %3502 = vmatmul.mubr.f32.gmra.mrb[0].mxu0 %v3327
        %v3503 = vpop.f32.mrb[0].mxu0
        %v3504 = vadd.f32 0.0, %v3503
        %v3505 = vpop.f32.mrb[0].mxu0
        %3506 = vmatprep.mubr.f32.mxu0 0.0
        %3507 = vmatmul.mubr.f32.gmra.mrb[0].mxu0 %v3330
        %v3508 = vpop.f32.mrb[0].mxu0
        %v3509 = vadd.f32 0.0, %v3508
        %v3510 = vpop.f32.mrb[0].mxu0
        %3511 = vmatprep.mubr.f32.mxu0 0.0
        %3512 = vmatmul.mubr.f32.gmra.mrb[0].mxu0 %v3333
        %v3513 = vpop.f32.mrb[0].mxu0
        %v3514 = vadd.f32 0.0, %v3513
        %v3515 = vpop.f32.mrb[0].mxu0
        %3516 = vmatprep.mubr.f32.mxu0 0.0
        %3517 = vmatmul.mubr.f32.gmra.mrb[0].mxu0 %v3336
        %v3518 = vpop.f32.mrb[0].mxu0
        %v3519 = vadd.f32 0.0, %v3518
        %v3520 = vpop.f32.mrb[0].mxu0
        %3521 = vmatprep.mubr.f32.mxu0 0.0
        %3522 = vmatmul.mubr.f32.gmra.mrb[0].mxu0 %v3339
        %v3523 = vpop.f32.mrb[0].mxu0
        %v3524 = vadd.f32 0.0, %v3523
        %v3525 = vpop.f32.mrb[0].mxu0
        %3526 = vmatprep.mubr.f32.mxu0 0.0
        %3527 = vmatmul.mubr.f32.gmra.mrb[0].mxu0 %v3342
        %v3528 = vpop.f32.mrb[0].mxu0
        %v3529 = vadd.f32 0.0, %v3528
        %v3530 = vpop.f32.mrb[0].mxu0
        %3531 = vmatprep.mubr.f32.mxu0 0.0
        %3532 = vmatmul.mubr.f32.gmra.mrb[0].mxu0 %v3345
        %v3533 = vpop.f32.mrb[0].mxu0
        %v3534 = vadd.f32 0.0, %v3533
        %v3535 = vpop.f32.mrb[0].mxu0
        %3536 = vmatprep.mubr.f32.mxu0 0.0
        %3537 = vmatmul.mubr.f32.gmra.mrb[0].mxu0 %v3348
        %v3538 = vpop.f32.mrb[0].mxu0
        %v3539 = vadd.f32 0.0, %v3538
        %v3540 = vpop.f32.mrb[0].mxu0
        %3541 = vmatprep.mubr.f32.mxu0 0.0
        %3542 = vmatmul.mubr.f32.gmra.mrb[0].mxu0 %v3351
        %v3543 = vpop.f32.mrb[0].mxu0
        %v3544 = vadd.f32 0.0, %v3543
        %v3545 = vpop.f32.mrb[0].mxu0
        %3546 = vmatprep.mubr.f32.mxu0 0.0
        %3547 = vmatmul.mubr.f32.gmra.mrb[0].mxu0 %v3354
        %v3548 = vpop.f32.mrb[0].mxu0
        %v3549 = vadd.f32 0.0, %v3548
        %v3550 = vpop.f32.mrb[0].mxu0
        %3551 = vmatprep.mubr.f32.mxu0 0.0
        %3552 = vmatmul.mubr.f32.gmra.mrb[0].mxu0 %v3357
        %v3553 = vpop.f32.mrb[0].mxu0
        %v3554 = vadd.f32 0.0, %v3553
        %v3555 = vpop.f32.mrb[0].mxu0
        %3556 = vmatprep.mubr.f32.mxu0 0.0
        %3557 = vmatmul.mubr.f32.gmra.mrb[0].mxu0 %v3360
        %v3558 = vpop.f32.mrb[0].mxu0
        %v3559 = vadd.f32 0.0, %v3558
        %v3560 = vpop.f32.mrb[0].mxu0
        %3561 = vmatprep.mubr.f32.mxu0 0.0
        %3562 = vmatmul.mubr.f32.gmra.mrb[0].mxu0 %v3363
        %v3563 = vpop.f32.mrb[0].mxu0
        %v3564 = vadd.f32 0.0, %v3563
        %v3565 = vpop.f32.mrb[0].mxu0
        %3566 = vmatprep.mubr.f32.mxu0 0.0
        %3567 = vmatmul.mubr.f32.gmra.mrb[0].mxu0 %v3366
        %v3568 = vpop.f32.mrb[0].mxu0
        %v3569 = vadd.f32 0.0, %v3568
        %v3570 = vpop.f32.mrb[0].mxu0
        %3571 = vmatprep.mubr.f32.mxu0 0.0
        %3572 = vmatmul.mubr.f32.gmra.mrb[0].mxu0 %v3369
        %v3573 = vpop.f32.mrb[0].mxu0
        %v3574 = vadd.f32 0.0, %v3573
        %v3575 = vpop.f32.mrb[0].mxu0
        %3576 = vmatprep.mubr.f32.mxu0 0.0
        %3577 = vmatmul.mubr.f32.gmra.mrb[0].mxu0 %v3372
        %v3578 = vpop.f32.mrb[0].mxu0
        %v3579 = vadd.f32 0.0, %v3578
        %v3580 = vpop.f32.mrb[0].mxu0
        %3581 = vmatprep.mubr.f32.mxu0 0.0
        %3582 = vmatmul.mubr.f32.gmra.mrb[0].mxu0 %v3375
        %v3583 = vpop.f32.mrb[0].mxu0
        %v3584 = vadd.f32 0.0, %v3583
        %v3585 = vpop.f32.mrb[0].mxu0
        %3586 = vmatprep.mubr.f32.mxu0 0.0
        %3587 = vmatmul.mubr.f32.gmra.mrb[0].mxu0 %v3378
        %v3588 = vpop.f32.mrb[0].mxu0
        %v3589 = vadd.f32 0.0, %v3588
        %v3590 = vpop.f32.mrb[0].mxu0
        %3591 = vmatprep.mubr.f32.mxu0 0.0
        %3592 = vmatmul.mubr.f32.gmra.mrb[0].mxu0 %v3381
        %v3593 = vpop.f32.mrb[0].mxu0
        %v3594 = vadd.f32 0.0, %v3593
        %v3595 = vpop.f32.mrb[0].mxu0
        %3596 = vmatprep.mubr.f32.mxu0 0.0
        %3597 = vmatmul.mubr.f32.gmra.mrb[0].mxu0 %v3384
        %v3598 = vpop.f32.mrb[0].mxu0
        %v3599 = vadd.f32 0.0, %v3598
        %v3600 = vpop.f32.mrb[0].mxu0
        %3601 = vmatprep.mubr.f32.mxu0 0.0
        %3602 = vmatmul.mubr.f32.gmra.mrb[0].mxu0 %v3387
        %v3603 = vpop.f32.mrb[0].mxu0
        %v3604 = vadd.f32 0.0, %v3603
        %v3605 = vpop.f32.mrb[0].mxu0
        %3606 = vmatprep.mubr.f32.mxu0 0.0
        %3607 = vmatmul.mubr.f32.gmra.mrb[0].mxu0 %v3390
        %v3608 = vpop.f32.mrb[0].mxu0
        %v3609 = vadd.f32 0.0, %v3608
        %v3610 = vpop.f32.mrb[0].mxu0
        %3611 = vmatprep.mubr.f32.mxu0 0.0
        %3612 = vmatmul.mubr.f32.gmra.mrb[0].mxu0 %v3393
        %v3613 = vpop.f32.mrb[0].mxu0
        %v3614 = vadd.f32 0.0, %v3613
        %v3615 = vpop.f32.mrb[0].mxu0
        %3616 = vmatprep.mubr.f32.mxu0 0.0
        %3617 = vmatmul.mubr.f32.gmra.mrb[0].mxu0 %v3396
        %v3618 = vpop.f32.mrb[0].mxu0
        %v3619 = vadd.f32 0.0, %v3618
        %v3620 = vpop.f32.mrb[0].mxu0
        %3621 = vmatprep.mubr.f32.mxu0 0.0
        %3622 = vmatmul.mubr.f32.gmra.mrb[0].mxu0 %v3399
        %v3623 = vpop.f32.mrb[0].mxu0
        %v3624 = vadd.f32 0.0, %v3623
        %v3625 = vpop.f32.mrb[0].mxu0
        %3626 = vmatprep.mubr.f32.mxu0 0.0
        %3627 = vmatmul.mubr.f32.gmra.mrb[0].mxu0 %v3402
        %v3628 = vpop.f32.mrb[0].mxu0
        %v3629 = vadd.f32 0.0, %v3628
        %v3630 = vpop.f32.mrb[0].mxu0
        %3631 = vdwg.mxu0
        %v3632 = vadd.f32 %v3242, %v3474
        %v3633 = vadd.f32 %v3243, %v3479
        %v3634 = vadd.f32 %v3244, %v3484
        %v3635 = vadd.f32 %v3245, %v3489
        %v3636 = vadd.f32 %v3246, %v3494
        %v3637 = vadd.f32 %v3247, %v3499
        %v3638 = vadd.f32 %v3248, %v3504
        %v3639 = vadd.f32 %v3249, %v3509
        %v3640 = vadd.f32 %v3250, %v3514
        %v3641 = vadd.f32 %v3251, %v3519
        %v3642 = vadd.f32 %v3252, %v3524
        %v3643 = vadd.f32 %v3253, %v3529
        %v3644 = vadd.f32 %v3254, %v3534
        %v3645 = vadd.f32 %v3255, %v3539
        %v3646 = vadd.f32 %v3256, %v3544
        %v3647 = vadd.f32 %v3257, %v3549
        %v3648 = vadd.f32 %v3258, %v3554
        %v3649 = vadd.f32 %v3259, %v3559
        %v3650 = vadd.f32 %v3260, %v3564
        %v3651 = vadd.f32 %v3261, %v3569
        %v3652 = vadd.f32 %v3262, %v3574
        %v3653 = vadd.f32 %v3263, %v3579
        %v3654 = vadd.f32 %v3264, %v3584
        %v3655 = vadd.f32 %v3265, %v3589
        %v3656 = vadd.f32 %v3266, %v3594
        %v3657 = vadd.f32 %v3267, %v3599
        %v3658 = vadd.f32 %v3268, %v3604
        %v3659 = vadd.f32 %v3269, %v3609
        %v3660 = vadd.f32 %v3270, %v3614
        %v3661 = vadd.f32 %v3271, %v3619
        %v3662 = vadd.f32 %v3272, %v3624
        %v3663 = vadd.f32 %v3273, %v3629
        %v3664 = vld [vmem:[%s2103 + $0x4] sm:$0xff]
        %v3665 = vld [vmem:[%s2103 + $0xc] sm:$0xff]
        %v3666 = vld [vmem:[%s2103 + $0x14] sm:$0xff]
        %v3667 = vld [vmem:[%s2103 + $0x1c] sm:$0xff]
        %v3668 = vld [vmem:[%s2103 + $0x2c] sm:$0xff]
        %v3669 = vld [vmem:[%s2103 + $0x34] sm:$0xff]
        %v3670 = vld [vmem:[%s2103 + $0x3c] sm:$0xff]
        %v3671 = vld [vmem:[%s2103 + $0x44] sm:$0xff]
        %v3672 = vld [vmem:[%s2103 + $0x54] sm:$0xff]
        %v3673 = vld [vmem:[%s2103 + $0x5c] sm:$0xff]
        %v3674 = vld [vmem:[%s2103 + $0x64] sm:$0xff]
        %v3675 = vld [vmem:[%s2103 + $0x6c] sm:$0xff]
        %v3676 = vld [vmem:[%s2103 + $0x7c] sm:$0xff]
        %v3677 = vld [vmem:[%s2103 + $0x84] sm:$0xff]
        %v3678 = vld [vmem:[%s2103 + $0x8c] sm:$0xff]
        %v3679 = vld [vmem:[%s2103 + $0x94] sm:$0xff]
        %v3680 = vld [vmem:[%s2103 + $0xa4] sm:$0xff]
        %v3681 = vld [vmem:[%s2103 + $0xac] sm:$0xff]
        %v3682 = vld [vmem:[%s2103 + $0xb4] sm:$0xff]
        %v3683 = vld [vmem:[%s2103 + $0xbc] sm:$0xff]
        %v3684 = vld [vmem:[%s2103 + $0xcc] sm:$0xff]
        %v3685 = vld [vmem:[%s2103 + $0xd4] sm:$0xff]
        %v3686 = vld [vmem:[%s2103 + $0xdc] sm:$0xff]
        %v3687 = vld [vmem:[%s2103 + $0xe4] sm:$0xff]
        %v3688 = vld [vmem:[%s2103 + $0xf4] sm:$0xff]
        %v3689 = vld [vmem:[%s2103 + $0xfc] sm:$0xff]
        %v3690 = vld [vmem:[%s2103 + $0x104] sm:$0xff]
        %v3691 = vld [vmem:[%s2103 + $0x10c] sm:$0xff]
        %v3692 = vld [vmem:[%s2103 + $0x11c] sm:$0xff]
        %v3693 = vld [vmem:[%s2103 + $0x124] sm:$0xff]
        %v3694 = vld [vmem:[%s2103 + $0x12c] sm:$0xff]
        %v3695 = vld [vmem:[%s2103 + $0x134] sm:$0xff]
        %s3696 = scalar_lea.vmem %s1, 18
        %v3697 = vld [vmem:[%s3696] sm:$0x3]
        %v3699 = vsel %vm281, %v3664, 0
        %v3702 = vsel %vm281, %v3665, 0
        %v3705 = vsel %vm281, %v3666, 0
        %v3708 = vsel %vm281, %v3667, 0
        %v3711 = vsel %vm281, %v3668, 0
        %v3714 = vsel %vm281, %v3669, 0
        %v3717 = vsel %vm281, %v3670, 0
        %v3720 = vsel %vm281, %v3671, 0
        %v3723 = vsel %vm281, %v3672, 0
        %v3726 = vsel %vm281, %v3673, 0
        %v3729 = vsel %vm281, %v3674, 0
        %v3732 = vsel %vm281, %v3675, 0
        %v3735 = vsel %vm281, %v3676, 0
        %v3738 = vsel %vm281, %v3677, 0
        %v3741 = vsel %vm281, %v3678, 0
        %v3744 = vsel %vm281, %v3679, 0
        %v3747 = vsel %vm281, %v3680, 0
        %v3750 = vsel %vm281, %v3681, 0
        %v3753 = vsel %vm281, %v3682, 0
        %v3756 = vsel %vm281, %v3683, 0
        %v3759 = vsel %vm281, %v3684, 0
        %v3762 = vsel %vm281, %v3685, 0
        %v3765 = vsel %vm281, %v3686, 0
        %v3768 = vsel %vm281, %v3687, 0
        %v3771 = vsel %vm281, %v3688, 0
        %v3774 = vsel %vm281, %v3689, 0
        %v3777 = vsel %vm281, %v3690, 0
        %v3780 = vsel %vm281, %v3691, 0
        %v3783 = vsel %vm281, %v3692, 0
        %v3786 = vsel %vm281, %v3693, 0
        %v3789 = vsel %vm281, %v3694, 0
        %v3792 = vsel %vm281, %v3695, 0
        %v3795 = vsel %vm378, %v3697, 0
        %3797 = vmatprep.subr.mxu0 0.0
        %3798 = vmatpush1.msra.mxu0 %v3795
        %3799 = vmatprep.subr.mxu0 0.0
        %3800 = vmatpush1.msra.mxu0 0.0
        %3801 = vmatprep.subr.mxu0 0.0
        %3802 = vmatpush1.msra.mxu0 0.0
        %3803 = vmatprep.subr.mxu0 0.0
        %3804 = vmatpush1.msra.mxu0 0.0
        %3805 = vmatprep.subr.mxu0 0.0
        %3806 = vmatpush1.msra.mxu0 0.0
        %3807 = vmatprep.subr.mxu0 0.0
        %3808 = vmatpush1.msra.mxu0 0.0
        %3809 = vmatprep.subr.mxu0 0.0
        %3810 = vmatpush1.msra.mxu0 0.0
        %3811 = vmatprep.subr.mxu0 0.0
        %3812 = vmatpush1.msra.mxu0 0.0
        %3813 = vmatprep.subr.mxu0 0.0
        %3814 = vmatpush1.msra.mxu0 0.0
        %3815 = vmatprep.subr.mxu0 0.0
        %3816 = vmatpush1.msra.mxu0 0.0
        %3817 = vmatprep.subr.mxu0 0.0
        %3818 = vmatpush1.msra.mxu0 0.0
        %3819 = vmatprep.subr.mxu0 0.0
        %3820 = vmatpush1.msra.mxu0 0.0
        %3821 = vmatprep.subr.mxu0 0.0
        %3822 = vmatpush1.msra.mxu0 0.0
        %3823 = vmatprep.subr.mxu0 0.0
        %3824 = vmatpush1.msra.mxu0 0.0
        %3825 = vmatprep.subr.mxu0 0.0
        %3826 = vmatpush1.msra.mxu0 0.0
        %3827 = vmatprep.subr.mxu0 0.0
        %3828 = vmatpush1.msra.mxu0 0.0
        %3829 = vmatprep.subr.mxu0 0.0
        %3830 = vmatpush1.msra.mxu0 0.0
        %3831 = vmatprep.subr.mxu0 0.0
        %3832 = vmatpush1.msra.mxu0 0.0
        %3833 = vmatprep.subr.mxu0 0.0
        %3834 = vmatpush1.msra.mxu0 0.0
        %3835 = vmatprep.subr.mxu0 0.0
        %3836 = vmatpush1.msra.mxu0 0.0
        %3837 = vmatprep.subr.mxu0 0.0
        %3838 = vmatpush1.msra.mxu0 0.0
        %3839 = vmatprep.subr.mxu0 0.0
        %3840 = vmatpush1.msra.mxu0 0.0
        %3841 = vmatprep.subr.mxu0 0.0
        %3842 = vmatpush1.msra.mxu0 0.0
        %3843 = vmatprep.subr.mxu0 0.0
        %3844 = vmatpush1.msra.mxu0 0.0
        %3845 = vmatprep.subr.mxu0 0.0
        %3846 = vmatpush1.msra.mxu0 0.0
        %3847 = vmatprep.subr.mxu0 0.0
        %3848 = vmatpush1.msra.mxu0 0.0
        %3849 = vmatprep.subr.mxu0 0.0
        %3850 = vmatpush1.msra.mxu0 0.0
        %3851 = vmatprep.subr.mxu0 0.0
        %3852 = vmatpush1.msra.mxu0 0.0
        %3853 = vmatprep.subr.mxu0 0.0
        %3854 = vmatpush1.msra.mxu0 0.0
        %3855 = vmatprep.subr.mxu0 0.0
        %3856 = vmatpush1.msra.mxu0 0.0
        %3857 = vmatprep.subr.mxu0 0.0
        %3858 = vmatpush1.msra.mxu0 0.0
        %3859 = vmatprep.subr.mxu0 0.0
        %3860 = vmatpush1.msra.mxu0 0.0
        %3861 = vmatprep.mubr.f32.mxu0 0.0
        %3862 = vmatmul.mubr.f32.gmra.mrb[0].mxu0 %v3699
        %v3863 = vpop.f32.mrb[0].mxu0
        %v3864 = vadd.f32 0.0, %v3863
        %v3865 = vpop.f32.mrb[0].mxu0
        %3866 = vmatprep.mubr.f32.mxu0 0.0
        %3867 = vmatmul.mubr.f32.gmra.mrb[0].mxu0 %v3702
        %v3868 = vpop.f32.mrb[0].mxu0
        %v3869 = vadd.f32 0.0, %v3868
        %v3870 = vpop.f32.mrb[0].mxu0
        %3871 = vmatprep.mubr.f32.mxu0 0.0
        %3872 = vmatmul.mubr.f32.gmra.mrb[0].mxu0 %v3705
        %v3873 = vpop.f32.mrb[0].mxu0
        %v3874 = vadd.f32 0.0, %v3873
        %v3875 = vpop.f32.mrb[0].mxu0
        %3876 = vmatprep.mubr.f32.mxu0 0.0
        %3877 = vmatmul.mubr.f32.gmra.mrb[0].mxu0 %v3708
        %v3878 = vpop.f32.mrb[0].mxu0
        %v3879 = vadd.f32 0.0, %v3878
        %v3880 = vpop.f32.mrb[0].mxu0
        %3881 = vmatprep.mubr.f32.mxu0 0.0
        %3882 = vmatmul.mubr.f32.gmra.mrb[0].mxu0 %v3711
        %v3883 = vpop.f32.mrb[0].mxu0
        %v3884 = vadd.f32 0.0, %v3883
        %v3885 = vpop.f32.mrb[0].mxu0
        %3886 = vmatprep.mubr.f32.mxu0 0.0
        %3887 = vmatmul.mubr.f32.gmra.mrb[0].mxu0 %v3714
        %v3888 = vpop.f32.mrb[0].mxu0
        %v3889 = vadd.f32 0.0, %v3888
        %v3890 = vpop.f32.mrb[0].mxu0
        %3891 = vmatprep.mubr.f32.mxu0 0.0
        %3892 = vmatmul.mubr.f32.gmra.mrb[0].mxu0 %v3717
        %v3893 = vpop.f32.mrb[0].mxu0
        %v3894 = vadd.f32 0.0, %v3893
        %v3895 = vpop.f32.mrb[0].mxu0
        %3896 = vmatprep.mubr.f32.mxu0 0.0
        %3897 = vmatmul.mubr.f32.gmra.mrb[0].mxu0 %v3720
        %v3898 = vpop.f32.mrb[0].mxu0
        %v3899 = vadd.f32 0.0, %v3898
        %v3900 = vpop.f32.mrb[0].mxu0
        %3901 = vmatprep.mubr.f32.mxu0 0.0
        %3902 = vmatmul.mubr.f32.gmra.mrb[0].mxu0 %v3723
        %v3903 = vpop.f32.mrb[0].mxu0
        %v3904 = vadd.f32 0.0, %v3903
        %v3905 = vpop.f32.mrb[0].mxu0
        %3906 = vmatprep.mubr.f32.mxu0 0.0
        %3907 = vmatmul.mubr.f32.gmra.mrb[0].mxu0 %v3726
        %v3908 = vpop.f32.mrb[0].mxu0
        %v3909 = vadd.f32 0.0, %v3908
        %v3910 = vpop.f32.mrb[0].mxu0
        %3911 = vmatprep.mubr.f32.mxu0 0.0
        %3912 = vmatmul.mubr.f32.gmra.mrb[0].mxu0 %v3729
        %v3913 = vpop.f32.mrb[0].mxu0
        %v3914 = vadd.f32 0.0, %v3913
        %v3915 = vpop.f32.mrb[0].mxu0
        %3916 = vmatprep.mubr.f32.mxu0 0.0
        %3917 = vmatmul.mubr.f32.gmra.mrb[0].mxu0 %v3732
        %v3918 = vpop.f32.mrb[0].mxu0
        %v3919 = vadd.f32 0.0, %v3918
        %v3920 = vpop.f32.mrb[0].mxu0
        %3921 = vmatprep.mubr.f32.mxu0 0.0
        %3922 = vmatmul.mubr.f32.gmra.mrb[0].mxu0 %v3735
        %v3923 = vpop.f32.mrb[0].mxu0
        %v3924 = vadd.f32 0.0, %v3923
        %v3925 = vpop.f32.mrb[0].mxu0
        %3926 = vmatprep.mubr.f32.mxu0 0.0
        %3927 = vmatmul.mubr.f32.gmra.mrb[0].mxu0 %v3738
        %v3928 = vpop.f32.mrb[0].mxu0
        %v3929 = vadd.f32 0.0, %v3928
        %v3930 = vpop.f32.mrb[0].mxu0
        %3931 = vmatprep.mubr.f32.mxu0 0.0
        %3932 = vmatmul.mubr.f32.gmra.mrb[0].mxu0 %v3741
        %v3933 = vpop.f32.mrb[0].mxu0
        %v3934 = vadd.f32 0.0, %v3933
        %v3935 = vpop.f32.mrb[0].mxu0
        %3936 = vmatprep.mubr.f32.mxu0 0.0
        %3937 = vmatmul.mubr.f32.gmra.mrb[0].mxu0 %v3744
        %v3938 = vpop.f32.mrb[0].mxu0
        %v3939 = vadd.f32 0.0, %v3938
        %v3940 = vpop.f32.mrb[0].mxu0
        %3941 = vmatprep.mubr.f32.mxu0 0.0
        %3942 = vmatmul.mubr.f32.gmra.mrb[0].mxu0 %v3747
        %v3943 = vpop.f32.mrb[0].mxu0
        %v3944 = vadd.f32 0.0, %v3943
        %v3945 = vpop.f32.mrb[0].mxu0
        %3946 = vmatprep.mubr.f32.mxu0 0.0
        %3947 = vmatmul.mubr.f32.gmra.mrb[0].mxu0 %v3750
        %v3948 = vpop.f32.mrb[0].mxu0
        %v3949 = vadd.f32 0.0, %v3948
        %v3950 = vpop.f32.mrb[0].mxu0
        %3951 = vmatprep.mubr.f32.mxu0 0.0
        %3952 = vmatmul.mubr.f32.gmra.mrb[0].mxu0 %v3753
        %v3953 = vpop.f32.mrb[0].mxu0
        %v3954 = vadd.f32 0.0, %v3953
        %v3955 = vpop.f32.mrb[0].mxu0
        %3956 = vmatprep.mubr.f32.mxu0 0.0
        %3957 = vmatmul.mubr.f32.gmra.mrb[0].mxu0 %v3756
        %v3958 = vpop.f32.mrb[0].mxu0
        %v3959 = vadd.f32 0.0, %v3958
        %v3960 = vpop.f32.mrb[0].mxu0
        %3961 = vmatprep.mubr.f32.mxu0 0.0
        %3962 = vmatmul.mubr.f32.gmra.mrb[0].mxu0 %v3759
        %v3963 = vpop.f32.mrb[0].mxu0
        %v3964 = vadd.f32 0.0, %v3963
        %v3965 = vpop.f32.mrb[0].mxu0
        %3966 = vmatprep.mubr.f32.mxu0 0.0
        %3967 = vmatmul.mubr.f32.gmra.mrb[0].mxu0 %v3762
        %v3968 = vpop.f32.mrb[0].mxu0
        %v3969 = vadd.f32 0.0, %v3968
        %v3970 = vpop.f32.mrb[0].mxu0
        %3971 = vmatprep.mubr.f32.mxu0 0.0
        %3972 = vmatmul.mubr.f32.gmra.mrb[0].mxu0 %v3765
        %v3973 = vpop.f32.mrb[0].mxu0
        %v3974 = vadd.f32 0.0, %v3973
        %v3975 = vpop.f32.mrb[0].mxu0
        %3976 = vmatprep.mubr.f32.mxu0 0.0
        %3977 = vmatmul.mubr.f32.gmra.mrb[0].mxu0 %v3768
        %v3978 = vpop.f32.mrb[0].mxu0
        %v3979 = vadd.f32 0.0, %v3978
        %v3980 = vpop.f32.mrb[0].mxu0
        %3981 = vmatprep.mubr.f32.mxu0 0.0
        %3982 = vmatmul.mubr.f32.gmra.mrb[0].mxu0 %v3771
        %v3983 = vpop.f32.mrb[0].mxu0
        %v3984 = vadd.f32 0.0, %v3983
        %v3985 = vpop.f32.mrb[0].mxu0
        %3986 = vmatprep.mubr.f32.mxu0 0.0
        %3987 = vmatmul.mubr.f32.gmra.mrb[0].mxu0 %v3774
        %v3988 = vpop.f32.mrb[0].mxu0
        %v3989 = vadd.f32 0.0, %v3988
        %v3990 = vpop.f32.mrb[0].mxu0
        %3991 = vmatprep.mubr.f32.mxu0 0.0
        %3992 = vmatmul.mubr.f32.gmra.mrb[0].mxu0 %v3777
        %v3993 = vpop.f32.mrb[0].mxu0
        %v3994 = vadd.f32 0.0, %v3993
        %v3995 = vpop.f32.mrb[0].mxu0
        %3996 = vmatprep.mubr.f32.mxu0 0.0
        %3997 = vmatmul.mubr.f32.gmra.mrb[0].mxu0 %v3780
        %v3998 = vpop.f32.mrb[0].mxu0
        %v3999 = vadd.f32 0.0, %v3998
        %v4000 = vpop.f32.mrb[0].mxu0
        %4001 = vmatprep.mubr.f32.mxu0 0.0
        %4002 = vmatmul.mubr.f32.gmra.mrb[0].mxu0 %v3783
        %v4003 = vpop.f32.mrb[0].mxu0
        %v4004 = vadd.f32 0.0, %v4003
        %v4005 = vpop.f32.mrb[0].mxu0
        %4006 = vmatprep.mubr.f32.mxu0 0.0
        %4007 = vmatmul.mubr.f32.gmra.mrb[0].mxu0 %v3786
        %v4008 = vpop.f32.mrb[0].mxu0
        %v4009 = vadd.f32 0.0, %v4008
        %v4010 = vpop.f32.mrb[0].mxu0
        %4011 = vmatprep.mubr.f32.mxu0 0.0
        %4012 = vmatmul.mubr.f32.gmra.mrb[0].mxu0 %v3789
        %v4013 = vpop.f32.mrb[0].mxu0
        %v4014 = vadd.f32 0.0, %v4013
        %v4015 = vpop.f32.mrb[0].mxu0
        %4016 = vmatprep.mubr.f32.mxu0 0.0
        %4017 = vmatmul.mubr.f32.gmra.mrb[0].mxu0 %v3792
        %v4018 = vpop.f32.mrb[0].mxu0
        %v4019 = vadd.f32 0.0, %v4018
        %v4020 = vpop.f32.mrb[0].mxu0
        %4021 = vdwg.mxu0
        %v4022 = vadd.f32 %v3632, %v3864
        %v4023 = vadd.f32 %v3633, %v3869
        %v4024 = vadd.f32 %v3634, %v3874
        %v4025 = vadd.f32 %v3635, %v3879
        %v4026 = vadd.f32 %v3636, %v3884
        %v4027 = vadd.f32 %v3637, %v3889
        %v4028 = vadd.f32 %v3638, %v3894
        %v4029 = vadd.f32 %v3639, %v3899
        %v4030 = vadd.f32 %v3640, %v3904
        %v4031 = vadd.f32 %v3641, %v3909
        %v4032 = vadd.f32 %v3642, %v3914
        %v4033 = vadd.f32 %v3643, %v3919
        %v4034 = vadd.f32 %v3644, %v3924
        %v4035 = vadd.f32 %v3645, %v3929
        %v4036 = vadd.f32 %v3646, %v3934
        %v4037 = vadd.f32 %v3647, %v3939
        %v4038 = vadd.f32 %v3648, %v3944
        %v4039 = vadd.f32 %v3649, %v3949
        %v4040 = vadd.f32 %v3650, %v3954
        %v4041 = vadd.f32 %v3651, %v3959
        %v4042 = vadd.f32 %v3652, %v3964
        %v4043 = vadd.f32 %v3653, %v3969
        %v4044 = vadd.f32 %v3654, %v3974
        %v4045 = vadd.f32 %v3655, %v3979
        %v4046 = vadd.f32 %v3656, %v3984
        %v4047 = vadd.f32 %v3657, %v3989
        %v4048 = vadd.f32 %v3658, %v3994
        %v4049 = vadd.f32 %v3659, %v3999
        %v4050 = vadd.f32 %v3660, %v4004
        %v4051 = vadd.f32 %v3661, %v4009
        %v4052 = vadd.f32 %v3662, %v4014
        %v4053 = vadd.f32 %v3663, %v4019
        %s4054 = sadd.s32 %s211, 2
        %s4055 = smul.u32 %s4054, 40
        %s4056 = scalar_lea.vmem %s209, %s4055
        %v4057 = vld [vmem:[%s4056] sm:$0xff]
        %v4058 = vld [vmem:[%s4056 + $0x8] sm:$0xff]
        %v4059 = vld [vmem:[%s4056 + $0x10] sm:$0xff]
        %v4060 = vld [vmem:[%s4056 + $0x18] sm:$0xff]
        %v4061 = vld [vmem:[%s4056 + $0x28] sm:$0xff]
        %v4062 = vld [vmem:[%s4056 + $0x30] sm:$0xff]
        %v4063 = vld [vmem:[%s4056 + $0x38] sm:$0xff]
        %v4064 = vld [vmem:[%s4056 + $0x40] sm:$0xff]
        %v4065 = vld [vmem:[%s4056 + $0x50] sm:$0xff]
        %v4066 = vld [vmem:[%s4056 + $0x58] sm:$0xff]
        %v4067 = vld [vmem:[%s4056 + $0x60] sm:$0xff]
        %v4068 = vld [vmem:[%s4056 + $0x68] sm:$0xff]
        %v4069 = vld [vmem:[%s4056 + $0x78] sm:$0xff]
        %v4070 = vld [vmem:[%s4056 + $0x80] sm:$0xff]
        %v4071 = vld [vmem:[%s4056 + $0x88] sm:$0xff]
        %v4072 = vld [vmem:[%s4056 + $0x90] sm:$0xff]
        %v4073 = vld [vmem:[%s4056 + $0xa0] sm:$0xff]
        %v4074 = vld [vmem:[%s4056 + $0xa8] sm:$0xff]
        %v4075 = vld [vmem:[%s4056 + $0xb0] sm:$0xff]
        %v4076 = vld [vmem:[%s4056 + $0xb8] sm:$0xff]
        %v4077 = vld [vmem:[%s4056 + $0xc8] sm:$0xff]
        %v4078 = vld [vmem:[%s4056 + $0xd0] sm:$0xff]
        %v4079 = vld [vmem:[%s4056 + $0xd8] sm:$0xff]
        %v4080 = vld [vmem:[%s4056 + $0xe0] sm:$0xff]
        %v4081 = vld [vmem:[%s4056 + $0xf0] sm:$0xff]
        %v4082 = vld [vmem:[%s4056 + $0xf8] sm:$0xff]
        %v4083 = vld [vmem:[%s4056 + $0x100] sm:$0xff]
        %v4084 = vld [vmem:[%s4056 + $0x108] sm:$0xff]
        %v4085 = vld [vmem:[%s4056 + $0x118] sm:$0xff]
        %v4086 = vld [vmem:[%s4056 + $0x120] sm:$0xff]
        %v4087 = vld [vmem:[%s4056 + $0x128] sm:$0xff]
        %v4088 = vld [vmem:[%s4056 + $0x130] sm:$0xff]
        %s4089 = scalar_lea.vmem %s1, 20
        %v4090 = vld [vmem:[%s4089] sm:$0x3]
        %v4092 = vsel %vm281, %v4057, 0
        %v4095 = vsel %vm281, %v4058, 0
        %v4098 = vsel %vm281, %v4059, 0
        %v4101 = vsel %vm281, %v4060, 0
        %v4104 = vsel %vm281, %v4061, 0
        %v4107 = vsel %vm281, %v4062, 0
        %v4110 = vsel %vm281, %v4063, 0
        %v4113 = vsel %vm281, %v4064, 0
        %v4116 = vsel %vm281, %v4065, 0
        %v4119 = vsel %vm281, %v4066, 0
        %v4122 = vsel %vm281, %v4067, 0
        %v4125 = vsel %vm281, %v4068, 0
        %v4128 = vsel %vm281, %v4069, 0
        %v4131 = vsel %vm281, %v4070, 0
        %v4134 = vsel %vm281, %v4071, 0
        %v4137 = vsel %vm281, %v4072, 0
        %v4140 = vsel %vm281, %v4073, 0
        %v4143 = vsel %vm281, %v4074, 0
        %v4146 = vsel %vm281, %v4075, 0
        %v4149 = vsel %vm281, %v4076, 0
        %v4152 = vsel %vm281, %v4077, 0
        %v4155 = vsel %vm281, %v4078, 0
        %v4158 = vsel %vm281, %v4079, 0
        %v4161 = vsel %vm281, %v4080, 0
        %v4164 = vsel %vm281, %v4081, 0
        %v4167 = vsel %vm281, %v4082, 0
        %v4170 = vsel %vm281, %v4083, 0
        %v4173 = vsel %vm281, %v4084, 0
        %v4176 = vsel %vm281, %v4085, 0
        %v4179 = vsel %vm281, %v4086, 0
        %v4182 = vsel %vm281, %v4087, 0
        %v4185 = vsel %vm281, %v4088, 0
        %v4188 = vsel %vm378, %v4090, 0
        %4190 = vmatprep.subr.mxu0 0.0
        %4191 = vmatpush1.msra.mxu0 %v4188
        %4192 = vmatprep.subr.mxu0 0.0
        %4193 = vmatpush1.msra.mxu0 0.0
        %4194 = vmatprep.subr.mxu0 0.0
        %4195 = vmatpush1.msra.mxu0 0.0
        %4196 = vmatprep.subr.mxu0 0.0
        %4197 = vmatpush1.msra.mxu0 0.0
        %4198 = vmatprep.subr.mxu0 0.0
        %4199 = vmatpush1.msra.mxu0 0.0
        %4200 = vmatprep.subr.mxu0 0.0
        %4201 = vmatpush1.msra.mxu0 0.0
        %4202 = vmatprep.subr.mxu0 0.0
        %4203 = vmatpush1.msra.mxu0 0.0
        %4204 = vmatprep.subr.mxu0 0.0
        %4205 = vmatpush1.msra.mxu0 0.0
        %4206 = vmatprep.subr.mxu0 0.0
        %4207 = vmatpush1.msra.mxu0 0.0
        %4208 = vmatprep.subr.mxu0 0.0
        %4209 = vmatpush1.msra.mxu0 0.0
        %4210 = vmatprep.subr.mxu0 0.0
        %4211 = vmatpush1.msra.mxu0 0.0
        %4212 = vmatprep.subr.mxu0 0.0
        %4213 = vmatpush1.msra.mxu0 0.0
        %4214 = vmatprep.subr.mxu0 0.0
        %4215 = vmatpush1.msra.mxu0 0.0
        %4216 = vmatprep.subr.mxu0 0.0
        %4217 = vmatpush1.msra.mxu0 0.0
        %4218 = vmatprep.subr.mxu0 0.0
        %4219 = vmatpush1.msra.mxu0 0.0
        %4220 = vmatprep.subr.mxu0 0.0
        %4221 = vmatpush1.msra.mxu0 0.0
        %4222 = vmatprep.subr.mxu0 0.0
        %4223 = vmatpush1.msra.mxu0 0.0
        %4224 = vmatprep.subr.mxu0 0.0
        %4225 = vmatpush1.msra.mxu0 0.0
        %4226 = vmatprep.subr.mxu0 0.0
        %4227 = vmatpush1.msra.mxu0 0.0
        %4228 = vmatprep.subr.mxu0 0.0
        %4229 = vmatpush1.msra.mxu0 0.0
        %4230 = vmatprep.subr.mxu0 0.0
        %4231 = vmatpush1.msra.mxu0 0.0
        %4232 = vmatprep.subr.mxu0 0.0
        %4233 = vmatpush1.msra.mxu0 0.0
        %4234 = vmatprep.subr.mxu0 0.0
        %4235 = vmatpush1.msra.mxu0 0.0
        %4236 = vmatprep.subr.mxu0 0.0
        %4237 = vmatpush1.msra.mxu0 0.0
        %4238 = vmatprep.subr.mxu0 0.0
        %4239 = vmatpush1.msra.mxu0 0.0
        %4240 = vmatprep.subr.mxu0 0.0
        %4241 = vmatpush1.msra.mxu0 0.0
        %4242 = vmatprep.subr.mxu0 0.0
        %4243 = vmatpush1.msra.mxu0 0.0
        %4244 = vmatprep.subr.mxu0 0.0
        %4245 = vmatpush1.msra.mxu0 0.0
        %4246 = vmatprep.subr.mxu0 0.0
        %4247 = vmatpush1.msra.mxu0 0.0
        %4248 = vmatprep.subr.mxu0 0.0
        %4249 = vmatpush1.msra.mxu0 0.0
        %4250 = vmatprep.subr.mxu0 0.0
        %4251 = vmatpush1.msra.mxu0 0.0
        %4252 = vmatprep.subr.mxu0 0.0
        %4253 = vmatpush1.msra.mxu0 0.0
        %4254 = vmatprep.mubr.f32.mxu0 0.0
        %4255 = vmatmul.mubr.f32.gmra.mrb[0].mxu0 %v4092
        %v4256 = vpop.f32.mrb[0].mxu0
        %v4257 = vadd.f32 0.0, %v4256
        %v4258 = vpop.f32.mrb[0].mxu0
        %4259 = vmatprep.mubr.f32.mxu0 0.0
        %4260 = vmatmul.mubr.f32.gmra.mrb[0].mxu0 %v4095
        %v4261 = vpop.f32.mrb[0].mxu0
        %v4262 = vadd.f32 0.0, %v4261
        %v4263 = vpop.f32.mrb[0].mxu0
        %4264 = vmatprep.mubr.f32.mxu0 0.0
        %4265 = vmatmul.mubr.f32.gmra.mrb[0].mxu0 %v4098
        %v4266 = vpop.f32.mrb[0].mxu0
        %v4267 = vadd.f32 0.0, %v4266
        %v4268 = vpop.f32.mrb[0].mxu0
        %4269 = vmatprep.mubr.f32.mxu0 0.0
        %4270 = vmatmul.mubr.f32.gmra.mrb[0].mxu0 %v4101
        %v4271 = vpop.f32.mrb[0].mxu0
        %v4272 = vadd.f32 0.0, %v4271
        %v4273 = vpop.f32.mrb[0].mxu0
        %4274 = vmatprep.mubr.f32.mxu0 0.0
        %4275 = vmatmul.mubr.f32.gmra.mrb[0].mxu0 %v4104
        %v4276 = vpop.f32.mrb[0].mxu0
        %v4277 = vadd.f32 0.0, %v4276
        %v4278 = vpop.f32.mrb[0].mxu0
        %4279 = vmatprep.mubr.f32.mxu0 0.0
        %4280 = vmatmul.mubr.f32.gmra.mrb[0].mxu0 %v4107
        %v4281 = vpop.f32.mrb[0].mxu0
        %v4282 = vadd.f32 0.0, %v4281
        %v4283 = vpop.f32.mrb[0].mxu0
        %4284 = vmatprep.mubr.f32.mxu0 0.0
        %4285 = vmatmul.mubr.f32.gmra.mrb[0].mxu0 %v4110
        %v4286 = vpop.f32.mrb[0].mxu0
        %v4287 = vadd.f32 0.0, %v4286
        %v4288 = vpop.f32.mrb[0].mxu0
        %4289 = vmatprep.mubr.f32.mxu0 0.0
        %4290 = vmatmul.mubr.f32.gmra.mrb[0].mxu0 %v4113
        %v4291 = vpop.f32.mrb[0].mxu0
        %v4292 = vadd.f32 0.0, %v4291
        %v4293 = vpop.f32.mrb[0].mxu0
        %4294 = vmatprep.mubr.f32.mxu0 0.0
        %4295 = vmatmul.mubr.f32.gmra.mrb[0].mxu0 %v4116
        %v4296 = vpop.f32.mrb[0].mxu0
        %v4297 = vadd.f32 0.0, %v4296
        %v4298 = vpop.f32.mrb[0].mxu0
        %4299 = vmatprep.mubr.f32.mxu0 0.0
        %4300 = vmatmul.mubr.f32.gmra.mrb[0].mxu0 %v4119
        %v4301 = vpop.f32.mrb[0].mxu0
        %v4302 = vadd.f32 0.0, %v4301
        %v4303 = vpop.f32.mrb[0].mxu0
        %4304 = vmatprep.mubr.f32.mxu0 0.0
        %4305 = vmatmul.mubr.f32.gmra.mrb[0].mxu0 %v4122
        %v4306 = vpop.f32.mrb[0].mxu0
        %v4307 = vadd.f32 0.0, %v4306
        %v4308 = vpop.f32.mrb[0].mxu0
        %4309 = vmatprep.mubr.f32.mxu0 0.0
        %4310 = vmatmul.mubr.f32.gmra.mrb[0].mxu0 %v4125
        %v4311 = vpop.f32.mrb[0].mxu0
        %v4312 = vadd.f32 0.0, %v4311
        %v4313 = vpop.f32.mrb[0].mxu0
        %4314 = vmatprep.mubr.f32.mxu0 0.0
        %4315 = vmatmul.mubr.f32.gmra.mrb[0].mxu0 %v4128
        %v4316 = vpop.f32.mrb[0].mxu0
        %v4317 = vadd.f32 0.0, %v4316
        %v4318 = vpop.f32.mrb[0].mxu0
        %4319 = vmatprep.mubr.f32.mxu0 0.0
        %4320 = vmatmul.mubr.f32.gmra.mrb[0].mxu0 %v4131
        %v4321 = vpop.f32.mrb[0].mxu0
        %v4322 = vadd.f32 0.0, %v4321
        %v4323 = vpop.f32.mrb[0].mxu0
        %4324 = vmatprep.mubr.f32.mxu0 0.0
        %4325 = vmatmul.mubr.f32.gmra.mrb[0].mxu0 %v4134
        %v4326 = vpop.f32.mrb[0].mxu0
        %v4327 = vadd.f32 0.0, %v4326
        %v4328 = vpop.f32.mrb[0].mxu0
        %4329 = vmatprep.mubr.f32.mxu0 0.0
        %4330 = vmatmul.mubr.f32.gmra.mrb[0].mxu0 %v4137
        %v4331 = vpop.f32.mrb[0].mxu0
        %v4332 = vadd.f32 0.0, %v4331
        %v4333 = vpop.f32.mrb[0].mxu0
        %4334 = vmatprep.mubr.f32.mxu0 0.0
        %4335 = vmatmul.mubr.f32.gmra.mrb[0].mxu0 %v4140
        %v4336 = vpop.f32.mrb[0].mxu0
        %v4337 = vadd.f32 0.0, %v4336
        %v4338 = vpop.f32.mrb[0].mxu0
        %4339 = vmatprep.mubr.f32.mxu0 0.0
        %4340 = vmatmul.mubr.f32.gmra.mrb[0].mxu0 %v4143
        %v4341 = vpop.f32.mrb[0].mxu0
        %v4342 = vadd.f32 0.0, %v4341
        %v4343 = vpop.f32.mrb[0].mxu0
        %4344 = vmatprep.mubr.f32.mxu0 0.0
        %4345 = vmatmul.mubr.f32.gmra.mrb[0].mxu0 %v4146
        %v4346 = vpop.f32.mrb[0].mxu0
        %v4347 = vadd.f32 0.0, %v4346
        %v4348 = vpop.f32.mrb[0].mxu0
        %4349 = vmatprep.mubr.f32.mxu0 0.0
        %4350 = vmatmul.mubr.f32.gmra.mrb[0].mxu0 %v4149
        %v4351 = vpop.f32.mrb[0].mxu0
        %v4352 = vadd.f32 0.0, %v4351
        %v4353 = vpop.f32.mrb[0].mxu0
        %4354 = vmatprep.mubr.f32.mxu0 0.0
        %4355 = vmatmul.mubr.f32.gmra.mrb[0].mxu0 %v4152
        %v4356 = vpop.f32.mrb[0].mxu0
        %v4357 = vadd.f32 0.0, %v4356
        %v4358 = vpop.f32.mrb[0].mxu0
        %4359 = vmatprep.mubr.f32.mxu0 0.0
        %4360 = vmatmul.mubr.f32.gmra.mrb[0].mxu0 %v4155
        %v4361 = vpop.f32.mrb[0].mxu0
        %v4362 = vadd.f32 0.0, %v4361
        %v4363 = vpop.f32.mrb[0].mxu0
        %4364 = vmatprep.mubr.f32.mxu0 0.0
        %4365 = vmatmul.mubr.f32.gmra.mrb[0].mxu0 %v4158
        %v4366 = vpop.f32.mrb[0].mxu0
        %v4367 = vadd.f32 0.0, %v4366
        %v4368 = vpop.f32.mrb[0].mxu0
        %4369 = vmatprep.mubr.f32.mxu0 0.0
        %4370 = vmatmul.mubr.f32.gmra.mrb[0].mxu0 %v4161
        %v4371 = vpop.f32.mrb[0].mxu0
        %v4372 = vadd.f32 0.0, %v4371
        %v4373 = vpop.f32.mrb[0].mxu0
        %4374 = vmatprep.mubr.f32.mxu0 0.0
        %4375 = vmatmul.mubr.f32.gmra.mrb[0].mxu0 %v4164
        %v4376 = vpop.f32.mrb[0].mxu0
        %v4377 = vadd.f32 0.0, %v4376
        %v4378 = vpop.f32.mrb[0].mxu0
        %4379 = vmatprep.mubr.f32.mxu0 0.0
        %4380 = vmatmul.mubr.f32.gmra.mrb[0].mxu0 %v4167
        %v4381 = vpop.f32.mrb[0].mxu0
        %v4382 = vadd.f32 0.0, %v4381
        %v4383 = vpop.f32.mrb[0].mxu0
        %4384 = vmatprep.mubr.f32.mxu0 0.0
        %4385 = vmatmul.mubr.f32.gmra.mrb[0].mxu0 %v4170
        %v4386 = vpop.f32.mrb[0].mxu0
        %v4387 = vadd.f32 0.0, %v4386
        %v4388 = vpop.f32.mrb[0].mxu0
        %4389 = vmatprep.mubr.f32.mxu0 0.0
        %4390 = vmatmul.mubr.f32.gmra.mrb[0].mxu0 %v4173
        %v4391 = vpop.f32.mrb[0].mxu0
        %v4392 = vadd.f32 0.0, %v4391
        %v4393 = vpop.f32.mrb[0].mxu0
        %4394 = vmatprep.mubr.f32.mxu0 0.0
        %4395 = vmatmul.mubr.f32.gmra.mrb[0].mxu0 %v4176
        %v4396 = vpop.f32.mrb[0].mxu0
        %v4397 = vadd.f32 0.0, %v4396
        %v4398 = vpop.f32.mrb[0].mxu0
        %4399 = vmatprep.mubr.f32.mxu0 0.0
        %4400 = vmatmul.mubr.f32.gmra.mrb[0].mxu0 %v4179
        %v4401 = vpop.f32.mrb[0].mxu0
        %v4402 = vadd.f32 0.0, %v4401
        %v4403 = vpop.f32.mrb[0].mxu0
        %4404 = vmatprep.mubr.f32.mxu0 0.0
        %4405 = vmatmul.mubr.f32.gmra.mrb[0].mxu0 %v4182
        %v4406 = vpop.f32.mrb[0].mxu0
        %v4407 = vadd.f32 0.0, %v4406
        %v4408 = vpop.f32.mrb[0].mxu0
        %4409 = vmatprep.mubr.f32.mxu0 0.0
        %4410 = vmatmul.mubr.f32.gmra.mrb[0].mxu0 %v4185
        %v4411 = vpop.f32.mrb[0].mxu0
        %v4412 = vadd.f32 0.0, %v4411
        %v4413 = vpop.f32.mrb[0].mxu0
        %4414 = vdwg.mxu0
        %v4415 = vadd.f32 %v4022, %v4257
        %v4416 = vadd.f32 %v4023, %v4262
        %v4417 = vadd.f32 %v4024, %v4267
        %v4418 = vadd.f32 %v4025, %v4272
        %v4419 = vadd.f32 %v4026, %v4277
        %v4420 = vadd.f32 %v4027, %v4282
        %v4421 = vadd.f32 %v4028, %v4287
        %v4422 = vadd.f32 %v4029, %v4292
        %v4423 = vadd.f32 %v4030, %v4297
        %v4424 = vadd.f32 %v4031, %v4302
        %v4425 = vadd.f32 %v4032, %v4307
        %v4426 = vadd.f32 %v4033, %v4312
        %v4427 = vadd.f32 %v4034, %v4317
        %v4428 = vadd.f32 %v4035, %v4322
        %v4429 = vadd.f32 %v4036, %v4327
        %v4430 = vadd.f32 %v4037, %v4332
        %v4431 = vadd.f32 %v4038, %v4337
        %v4432 = vadd.f32 %v4039, %v4342
        %v4433 = vadd.f32 %v4040, %v4347
        %v4434 = vadd.f32 %v4041, %v4352
        %v4435 = vadd.f32 %v4042, %v4357
        %v4436 = vadd.f32 %v4043, %v4362
        %v4437 = vadd.f32 %v4044, %v4367
        %v4438 = vadd.f32 %v4045, %v4372
        %v4439 = vadd.f32 %v4046, %v4377
        %v4440 = vadd.f32 %v4047, %v4382
        %v4441 = vadd.f32 %v4048, %v4387
        %v4442 = vadd.f32 %v4049, %v4392
        %v4443 = vadd.f32 %v4050, %v4397
        %v4444 = vadd.f32 %v4051, %v4402
        %v4445 = vadd.f32 %v4052, %v4407
        %v4446 = vadd.f32 %v4053, %v4412
        %v4447 = vld [vmem:[%s4056 + $0x1] sm:$0xff]
        %v4448 = vld [vmem:[%s4056 + $0x9] sm:$0xff]
        %v4449 = vld [vmem:[%s4056 + $0x11] sm:$0xff]
        %v4450 = vld [vmem:[%s4056 + $0x19] sm:$0xff]
        %v4451 = vld [vmem:[%s4056 + $0x29] sm:$0xff]
        %v4452 = vld [vmem:[%s4056 + $0x31] sm:$0xff]
        %v4453 = vld [vmem:[%s4056 + $0x39] sm:$0xff]
        %v4454 = vld [vmem:[%s4056 + $0x41] sm:$0xff]
        %v4455 = vld [vmem:[%s4056 + $0x51] sm:$0xff]
        %v4456 = vld [vmem:[%s4056 + $0x59] sm:$0xff]
        %v4457 = vld [vmem:[%s4056 + $0x61] sm:$0xff]
        %v4458 = vld [vmem:[%s4056 + $0x69] sm:$0xff]
        %v4459 = vld [vmem:[%s4056 + $0x79] sm:$0xff]
        %v4460 = vld [vmem:[%s4056 + $0x81] sm:$0xff]
        %v4461 = vld [vmem:[%s4056 + $0x89] sm:$0xff]
        %v4462 = vld [vmem:[%s4056 + $0x91] sm:$0xff]
        %v4463 = vld [vmem:[%s4056 + $0xa1] sm:$0xff]
        %v4464 = vld [vmem:[%s4056 + $0xa9] sm:$0xff]
        %v4465 = vld [vmem:[%s4056 + $0xb1] sm:$0xff]
        %v4466 = vld [vmem:[%s4056 + $0xb9] sm:$0xff]
        %v4467 = vld [vmem:[%s4056 + $0xc9] sm:$0xff]
        %v4468 = vld [vmem:[%s4056 + $0xd1] sm:$0xff]
        %v4469 = vld [vmem:[%s4056 + $0xd9] sm:$0xff]
        %v4470 = vld [vmem:[%s4056 + $0xe1] sm:$0xff]
        %v4471 = vld [vmem:[%s4056 + $0xf1] sm:$0xff]
        %v4472 = vld [vmem:[%s4056 + $0xf9] sm:$0xff]
        %v4473 = vld [vmem:[%s4056 + $0x101] sm:$0xff]
        %v4474 = vld [vmem:[%s4056 + $0x109] sm:$0xff]
        %v4475 = vld [vmem:[%s4056 + $0x119] sm:$0xff]
        %v4476 = vld [vmem:[%s4056 + $0x121] sm:$0xff]
        %v4477 = vld [vmem:[%s4056 + $0x129] sm:$0xff]
        %v4478 = vld [vmem:[%s4056 + $0x131] sm:$0xff]
        %s4479 = scalar_lea.vmem %s1, 22
        %v4480 = vld [vmem:[%s4479] sm:$0x3]
        %v4482 = vsel %vm281, %v4447, 0
        %v4485 = vsel %vm281, %v4448, 0
        %v4488 = vsel %vm281, %v4449, 0
        %v4491 = vsel %vm281, %v4450, 0
        %v4494 = vsel %vm281, %v4451, 0
        %v4497 = vsel %vm281, %v4452, 0
        %v4500 = vsel %vm281, %v4453, 0
        %v4503 = vsel %vm281, %v4454, 0
        %v4506 = vsel %vm281, %v4455, 0
        %v4509 = vsel %vm281, %v4456, 0
        %v4512 = vsel %vm281, %v4457, 0
        %v4515 = vsel %vm281, %v4458, 0
        %v4518 = vsel %vm281, %v4459, 0
        %v4521 = vsel %vm281, %v4460, 0
        %v4524 = vsel %vm281, %v4461, 0
        %v4527 = vsel %vm281, %v4462, 0
        %v4530 = vsel %vm281, %v4463, 0
        %v4533 = vsel %vm281, %v4464, 0
        %v4536 = vsel %vm281, %v4465, 0
        %v4539 = vsel %vm281, %v4466, 0
        %v4542 = vsel %vm281, %v4467, 0
        %v4545 = vsel %vm281, %v4468, 0
        %v4548 = vsel %vm281, %v4469, 0
        %v4551 = vsel %vm281, %v4470, 0
        %v4554 = vsel %vm281, %v4471, 0
        %v4557 = vsel %vm281, %v4472, 0
        %v4560 = vsel %vm281, %v4473, 0
        %v4563 = vsel %vm281, %v4474, 0
        %v4566 = vsel %vm281, %v4475, 0
        %v4569 = vsel %vm281, %v4476, 0
        %v4572 = vsel %vm281, %v4477, 0
        %v4575 = vsel %vm281, %v4478, 0
        %v4578 = vsel %vm378, %v4480, 0
        %4580 = vmatprep.subr.mxu0 0.0
        %4581 = vmatpush1.msra.mxu0 %v4578
        %4582 = vmatprep.subr.mxu0 0.0
        %4583 = vmatpush1.msra.mxu0 0.0
        %4584 = vmatprep.subr.mxu0 0.0
        %4585 = vmatpush1.msra.mxu0 0.0
        %4586 = vmatprep.subr.mxu0 0.0
        %4587 = vmatpush1.msra.mxu0 0.0
        %4588 = vmatprep.subr.mxu0 0.0
        %4589 = vmatpush1.msra.mxu0 0.0
        %4590 = vmatprep.subr.mxu0 0.0
        %4591 = vmatpush1.msra.mxu0 0.0
        %4592 = vmatprep.subr.mxu0 0.0
        %4593 = vmatpush1.msra.mxu0 0.0
        %4594 = vmatprep.subr.mxu0 0.0
        %4595 = vmatpush1.msra.mxu0 0.0
        %4596 = vmatprep.subr.mxu0 0.0
        %4597 = vmatpush1.msra.mxu0 0.0
        %4598 = vmatprep.subr.mxu0 0.0
        %4599 = vmatpush1.msra.mxu0 0.0
        %4600 = vmatprep.subr.mxu0 0.0
        %4601 = vmatpush1.msra.mxu0 0.0
        %4602 = vmatprep.subr.mxu0 0.0
        %4603 = vmatpush1.msra.mxu0 0.0
        %4604 = vmatprep.subr.mxu0 0.0
        %4605 = vmatpush1.msra.mxu0 0.0
        %4606 = vmatprep.subr.mxu0 0.0
        %4607 = vmatpush1.msra.mxu0 0.0
        %4608 = vmatprep.subr.mxu0 0.0
        %4609 = vmatpush1.msra.mxu0 0.0
        %4610 = vmatprep.subr.mxu0 0.0
        %4611 = vmatpush1.msra.mxu0 0.0
        %4612 = vmatprep.subr.mxu0 0.0
        %4613 = vmatpush1.msra.mxu0 0.0
        %4614 = vmatprep.subr.mxu0 0.0
        %4615 = vmatpush1.msra.mxu0 0.0
        %4616 = vmatprep.subr.mxu0 0.0
        %4617 = vmatpush1.msra.mxu0 0.0
        %4618 = vmatprep.subr.mxu0 0.0
        %4619 = vmatpush1.msra.mxu0 0.0
        %4620 = vmatprep.subr.mxu0 0.0
        %4621 = vmatpush1.msra.mxu0 0.0
        %4622 = vmatprep.subr.mxu0 0.0
        %4623 = vmatpush1.msra.mxu0 0.0
        %4624 = vmatprep.subr.mxu0 0.0
        %4625 = vmatpush1.msra.mxu0 0.0
        %4626 = vmatprep.subr.mxu0 0.0
        %4627 = vmatpush1.msra.mxu0 0.0
        %4628 = vmatprep.subr.mxu0 0.0
        %4629 = vmatpush1.msra.mxu0 0.0
        %4630 = vmatprep.subr.mxu0 0.0
        %4631 = vmatpush1.msra.mxu0 0.0
        %4632 = vmatprep.subr.mxu0 0.0
        %4633 = vmatpush1.msra.mxu0 0.0
        %4634 = vmatprep.subr.mxu0 0.0
        %4635 = vmatpush1.msra.mxu0 0.0
        %4636 = vmatprep.subr.mxu0 0.0
        %4637 = vmatpush1.msra.mxu0 0.0
        %4638 = vmatprep.subr.mxu0 0.0
        %4639 = vmatpush1.msra.mxu0 0.0
        %4640 = vmatprep.subr.mxu0 0.0
        %4641 = vmatpush1.msra.mxu0 0.0
        %4642 = vmatprep.subr.mxu0 0.0
        %4643 = vmatpush1.msra.mxu0 0.0
        %4644 = vmatprep.mubr.f32.mxu0 0.0
        %4645 = vmatmul.mubr.f32.gmra.mrb[0].mxu0 %v4482
        %v4646 = vpop.f32.mrb[0].mxu0
        %v4647 = vadd.f32 0.0, %v4646
        %v4648 = vpop.f32.mrb[0].mxu0
        %4649 = vmatprep.mubr.f32.mxu0 0.0
        %4650 = vmatmul.mubr.f32.gmra.mrb[0].mxu0 %v4485
        %v4651 = vpop.f32.mrb[0].mxu0
        %v4652 = vadd.f32 0.0, %v4651
        %v4653 = vpop.f32.mrb[0].mxu0
        %4654 = vmatprep.mubr.f32.mxu0 0.0
        %4655 = vmatmul.mubr.f32.gmra.mrb[0].mxu0 %v4488
        %v4656 = vpop.f32.mrb[0].mxu0
        %v4657 = vadd.f32 0.0, %v4656
        %v4658 = vpop.f32.mrb[0].mxu0
        %4659 = vmatprep.mubr.f32.mxu0 0.0
        %4660 = vmatmul.mubr.f32.gmra.mrb[0].mxu0 %v4491
        %v4661 = vpop.f32.mrb[0].mxu0
        %v4662 = vadd.f32 0.0, %v4661
        %v4663 = vpop.f32.mrb[0].mxu0
        %4664 = vmatprep.mubr.f32.mxu0 0.0
        %4665 = vmatmul.mubr.f32.gmra.mrb[0].mxu0 %v4494
        %v4666 = vpop.f32.mrb[0].mxu0
        %v4667 = vadd.f32 0.0, %v4666
        %v4668 = vpop.f32.mrb[0].mxu0
        %4669 = vmatprep.mubr.f32.mxu0 0.0
        %4670 = vmatmul.mubr.f32.gmra.mrb[0].mxu0 %v4497
        %v4671 = vpop.f32.mrb[0].mxu0
        %v4672 = vadd.f32 0.0, %v4671
        %v4673 = vpop.f32.mrb[0].mxu0
        %4674 = vmatprep.mubr.f32.mxu0 0.0
        %4675 = vmatmul.mubr.f32.gmra.mrb[0].mxu0 %v4500
        %v4676 = vpop.f32.mrb[0].mxu0
        %v4677 = vadd.f32 0.0, %v4676
        %v4678 = vpop.f32.mrb[0].mxu0
        %4679 = vmatprep.mubr.f32.mxu0 0.0
        %4680 = vmatmul.mubr.f32.gmra.mrb[0].mxu0 %v4503
        %v4681 = vpop.f32.mrb[0].mxu0
        %v4682 = vadd.f32 0.0, %v4681
        %v4683 = vpop.f32.mrb[0].mxu0
        %4684 = vmatprep.mubr.f32.mxu0 0.0
        %4685 = vmatmul.mubr.f32.gmra.mrb[0].mxu0 %v4506
        %v4686 = vpop.f32.mrb[0].mxu0
        %v4687 = vadd.f32 0.0, %v4686
        %v4688 = vpop.f32.mrb[0].mxu0
        %4689 = vmatprep.mubr.f32.mxu0 0.0
        %4690 = vmatmul.mubr.f32.gmra.mrb[0].mxu0 %v4509
        %v4691 = vpop.f32.mrb[0].mxu0
        %v4692 = vadd.f32 0.0, %v4691
        %v4693 = vpop.f32.mrb[0].mxu0
        %4694 = vmatprep.mubr.f32.mxu0 0.0
        %4695 = vmatmul.mubr.f32.gmra.mrb[0].mxu0 %v4512
        %v4696 = vpop.f32.mrb[0].mxu0
        %v4697 = vadd.f32 0.0, %v4696
        %v4698 = vpop.f32.mrb[0].mxu0
        %4699 = vmatprep.mubr.f32.mxu0 0.0
        %4700 = vmatmul.mubr.f32.gmra.mrb[0].mxu0 %v4515
        %v4701 = vpop.f32.mrb[0].mxu0
        %v4702 = vadd.f32 0.0, %v4701
        %v4703 = vpop.f32.mrb[0].mxu0
        %4704 = vmatprep.mubr.f32.mxu0 0.0
        %4705 = vmatmul.mubr.f32.gmra.mrb[0].mxu0 %v4518
        %v4706 = vpop.f32.mrb[0].mxu0
        %v4707 = vadd.f32 0.0, %v4706
        %v4708 = vpop.f32.mrb[0].mxu0
        %4709 = vmatprep.mubr.f32.mxu0 0.0
        %4710 = vmatmul.mubr.f32.gmra.mrb[0].mxu0 %v4521
        %v4711 = vpop.f32.mrb[0].mxu0
        %v4712 = vadd.f32 0.0, %v4711
        %v4713 = vpop.f32.mrb[0].mxu0
        %4714 = vmatprep.mubr.f32.mxu0 0.0
        %4715 = vmatmul.mubr.f32.gmra.mrb[0].mxu0 %v4524
        %v4716 = vpop.f32.mrb[0].mxu0
        %v4717 = vadd.f32 0.0, %v4716
        %v4718 = vpop.f32.mrb[0].mxu0
        %4719 = vmatprep.mubr.f32.mxu0 0.0
        %4720 = vmatmul.mubr.f32.gmra.mrb[0].mxu0 %v4527
        %v4721 = vpop.f32.mrb[0].mxu0
        %v4722 = vadd.f32 0.0, %v4721
        %v4723 = vpop.f32.mrb[0].mxu0
        %4724 = vmatprep.mubr.f32.mxu0 0.0
        %4725 = vmatmul.mubr.f32.gmra.mrb[0].mxu0 %v4530
        %v4726 = vpop.f32.mrb[0].mxu0
        %v4727 = vadd.f32 0.0, %v4726
        %v4728 = vpop.f32.mrb[0].mxu0
        %4729 = vmatprep.mubr.f32.mxu0 0.0
        %4730 = vmatmul.mubr.f32.gmra.mrb[0].mxu0 %v4533
        %v4731 = vpop.f32.mrb[0].mxu0
        %v4732 = vadd.f32 0.0, %v4731
        %v4733 = vpop.f32.mrb[0].mxu0
        %4734 = vmatprep.mubr.f32.mxu0 0.0
        %4735 = vmatmul.mubr.f32.gmra.mrb[0].mxu0 %v4536
        %v4736 = vpop.f32.mrb[0].mxu0
        %v4737 = vadd.f32 0.0, %v4736
        %v4738 = vpop.f32.mrb[0].mxu0
        %4739 = vmatprep.mubr.f32.mxu0 0.0
        %4740 = vmatmul.mubr.f32.gmra.mrb[0].mxu0 %v4539
        %v4741 = vpop.f32.mrb[0].mxu0
        %v4742 = vadd.f32 0.0, %v4741
        %v4743 = vpop.f32.mrb[0].mxu0
        %4744 = vmatprep.mubr.f32.mxu0 0.0
        %4745 = vmatmul.mubr.f32.gmra.mrb[0].mxu0 %v4542
        %v4746 = vpop.f32.mrb[0].mxu0
        %v4747 = vadd.f32 0.0, %v4746
        %v4748 = vpop.f32.mrb[0].mxu0
        %4749 = vmatprep.mubr.f32.mxu0 0.0
        %4750 = vmatmul.mubr.f32.gmra.mrb[0].mxu0 %v4545
        %v4751 = vpop.f32.mrb[0].mxu0
        %v4752 = vadd.f32 0.0, %v4751
        %v4753 = vpop.f32.mrb[0].mxu0
        %4754 = vmatprep.mubr.f32.mxu0 0.0
        %4755 = vmatmul.mubr.f32.gmra.mrb[0].mxu0 %v4548
        %v4756 = vpop.f32.mrb[0].mxu0
        %v4757 = vadd.f32 0.0, %v4756
        %v4758 = vpop.f32.mrb[0].mxu0
        %4759 = vmatprep.mubr.f32.mxu0 0.0
        %4760 = vmatmul.mubr.f32.gmra.mrb[0].mxu0 %v4551
        %v4761 = vpop.f32.mrb[0].mxu0
        %v4762 = vadd.f32 0.0, %v4761
        %v4763 = vpop.f32.mrb[0].mxu0
        %4764 = vmatprep.mubr.f32.mxu0 0.0
        %4765 = vmatmul.mubr.f32.gmra.mrb[0].mxu0 %v4554
        %v4766 = vpop.f32.mrb[0].mxu0
        %v4767 = vadd.f32 0.0, %v4766
        %v4768 = vpop.f32.mrb[0].mxu0
        %4769 = vmatprep.mubr.f32.mxu0 0.0
        %4770 = vmatmul.mubr.f32.gmra.mrb[0].mxu0 %v4557
        %v4771 = vpop.f32.mrb[0].mxu0
        %v4772 = vadd.f32 0.0, %v4771
        %v4773 = vpop.f32.mrb[0].mxu0
        %4774 = vmatprep.mubr.f32.mxu0 0.0
        %4775 = vmatmul.mubr.f32.gmra.mrb[0].mxu0 %v4560
        %v4776 = vpop.f32.mrb[0].mxu0
        %v4777 = vadd.f32 0.0, %v4776
        %v4778 = vpop.f32.mrb[0].mxu0
        %4779 = vmatprep.mubr.f32.mxu0 0.0
        %4780 = vmatmul.mubr.f32.gmra.mrb[0].mxu0 %v4563
        %v4781 = vpop.f32.mrb[0].mxu0
        %v4782 = vadd.f32 0.0, %v4781
        %v4783 = vpop.f32.mrb[0].mxu0
        %4784 = vmatprep.mubr.f32.mxu0 0.0
        %4785 = vmatmul.mubr.f32.gmra.mrb[0].mxu0 %v4566
        %v4786 = vpop.f32.mrb[0].mxu0
        %v4787 = vadd.f32 0.0, %v4786
        %v4788 = vpop.f32.mrb[0].mxu0
        %4789 = vmatprep.mubr.f32.mxu0 0.0
        %4790 = vmatmul.mubr.f32.gmra.mrb[0].mxu0 %v4569
        %v4791 = vpop.f32.mrb[0].mxu0
        %v4792 = vadd.f32 0.0, %v4791
        %v4793 = vpop.f32.mrb[0].mxu0
        %4794 = vmatprep.mubr.f32.mxu0 0.0
        %4795 = vmatmul.mubr.f32.gmra.mrb[0].mxu0 %v4572
        %v4796 = vpop.f32.mrb[0].mxu0
        %v4797 = vadd.f32 0.0, %v4796
        %v4798 = vpop.f32.mrb[0].mxu0
        %4799 = vmatprep.mubr.f32.mxu0 0.0
        %4800 = vmatmul.mubr.f32.gmra.mrb[0].mxu0 %v4575
        %v4801 = vpop.f32.mrb[0].mxu0
        %v4802 = vadd.f32 0.0, %v4801
        %v4803 = vpop.f32.mrb[0].mxu0
        %4804 = vdwg.mxu0
        %v4805 = vadd.f32 %v4415, %v4647
        %v4806 = vadd.f32 %v4416, %v4652
        %v4807 = vadd.f32 %v4417, %v4657
        %v4808 = vadd.f32 %v4418, %v4662
        %v4809 = vadd.f32 %v4419, %v4667
        %v4810 = vadd.f32 %v4420, %v4672
        %v4811 = vadd.f32 %v4421, %v4677
        %v4812 = vadd.f32 %v4422, %v4682
        %v4813 = vadd.f32 %v4423, %v4687
        %v4814 = vadd.f32 %v4424, %v4692
        %v4815 = vadd.f32 %v4425, %v4697
        %v4816 = vadd.f32 %v4426, %v4702
        %v4817 = vadd.f32 %v4427, %v4707
        %v4818 = vadd.f32 %v4428, %v4712
        %v4819 = vadd.f32 %v4429, %v4717
        %v4820 = vadd.f32 %v4430, %v4722
        %v4821 = vadd.f32 %v4431, %v4727
        %v4822 = vadd.f32 %v4432, %v4732
        %v4823 = vadd.f32 %v4433, %v4737
        %v4824 = vadd.f32 %v4434, %v4742
        %v4825 = vadd.f32 %v4435, %v4747
        %v4826 = vadd.f32 %v4436, %v4752
        %v4827 = vadd.f32 %v4437, %v4757
        %v4828 = vadd.f32 %v4438, %v4762
        %v4829 = vadd.f32 %v4439, %v4767
        %v4830 = vadd.f32 %v4440, %v4772
        %v4831 = vadd.f32 %v4441, %v4777
        %v4832 = vadd.f32 %v4442, %v4782
        %v4833 = vadd.f32 %v4443, %v4787
        %v4834 = vadd.f32 %v4444, %v4792
        %v4835 = vadd.f32 %v4445, %v4797
        %v4836 = vadd.f32 %v4446, %v4802
        %v4837 = vld [vmem:[%s4056 + $0x2] sm:$0xff]
        %v4838 = vld [vmem:[%s4056 + $0xa] sm:$0xff]
        %v4839 = vld [vmem:[%s4056 + $0x12] sm:$0xff]
        %v4840 = vld [vmem:[%s4056 + $0x1a] sm:$0xff]
        %v4841 = vld [vmem:[%s4056 + $0x2a] sm:$0xff]
        %v4842 = vld [vmem:[%s4056 + $0x32] sm:$0xff]
        %v4843 = vld [vmem:[%s4056 + $0x3a] sm:$0xff]
        %v4844 = vld [vmem:[%s4056 + $0x42] sm:$0xff]
        %v4845 = vld [vmem:[%s4056 + $0x52] sm:$0xff]
        %v4846 = vld [vmem:[%s4056 + $0x5a] sm:$0xff]
        %v4847 = vld [vmem:[%s4056 + $0x62] sm:$0xff]
        %v4848 = vld [vmem:[%s4056 + $0x6a] sm:$0xff]
        %v4849 = vld [vmem:[%s4056 + $0x7a] sm:$0xff]
        %v4850 = vld [vmem:[%s4056 + $0x82] sm:$0xff]
        %v4851 = vld [vmem:[%s4056 + $0x8a] sm:$0xff]
        %v4852 = vld [vmem:[%s4056 + $0x92] sm:$0xff]
        %v4853 = vld [vmem:[%s4056 + $0xa2] sm:$0xff]
        %v4854 = vld [vmem:[%s4056 + $0xaa] sm:$0xff]
        %v4855 = vld [vmem:[%s4056 + $0xb2] sm:$0xff]
        %v4856 = vld [vmem:[%s4056 + $0xba] sm:$0xff]
        %v4857 = vld [vmem:[%s4056 + $0xca] sm:$0xff]
        %v4858 = vld [vmem:[%s4056 + $0xd2] sm:$0xff]
        %v4859 = vld [vmem:[%s4056 + $0xda] sm:$0xff]
        %v4860 = vld [vmem:[%s4056 + $0xe2] sm:$0xff]
        %v4861 = vld [vmem:[%s4056 + $0xf2] sm:$0xff]
        %v4862 = vld [vmem:[%s4056 + $0xfa] sm:$0xff]
        %v4863 = vld [vmem:[%s4056 + $0x102] sm:$0xff]
        %v4864 = vld [vmem:[%s4056 + $0x10a] sm:$0xff]
        %v4865 = vld [vmem:[%s4056 + $0x11a] sm:$0xff]
        %v4866 = vld [vmem:[%s4056 + $0x122] sm:$0xff]
        %v4867 = vld [vmem:[%s4056 + $0x12a] sm:$0xff]
        %v4868 = vld [vmem:[%s4056 + $0x132] sm:$0xff]
        %s4869 = scalar_lea.vmem %s1, 24
        %v4870 = vld [vmem:[%s4869] sm:$0x3]
        %v4872 = vsel %vm281, %v4837, 0
        %v4875 = vsel %vm281, %v4838, 0
        %v4878 = vsel %vm281, %v4839, 0
        %v4881 = vsel %vm281, %v4840, 0
        %v4884 = vsel %vm281, %v4841, 0
        %v4887 = vsel %vm281, %v4842, 0
        %v4890 = vsel %vm281, %v4843, 0
        %v4893 = vsel %vm281, %v4844, 0
        %v4896 = vsel %vm281, %v4845, 0
        %v4899 = vsel %vm281, %v4846, 0
        %v4902 = vsel %vm281, %v4847, 0
        %v4905 = vsel %vm281, %v4848, 0
        %v4908 = vsel %vm281, %v4849, 0
        %v4911 = vsel %vm281, %v4850, 0
        %v4914 = vsel %vm281, %v4851, 0
        %v4917 = vsel %vm281, %v4852, 0
        %v4920 = vsel %vm281, %v4853, 0
        %v4923 = vsel %vm281, %v4854, 0
        %v4926 = vsel %vm281, %v4855, 0
        %v4929 = vsel %vm281, %v4856, 0
        %v4932 = vsel %vm281, %v4857, 0
        %v4935 = vsel %vm281, %v4858, 0
        %v4938 = vsel %vm281, %v4859, 0
        %v4941 = vsel %vm281, %v4860, 0
        %v4944 = vsel %vm281, %v4861, 0
        %v4947 = vsel %vm281, %v4862, 0
        %v4950 = vsel %vm281, %v4863, 0
        %v4953 = vsel %vm281, %v4864, 0
        %v4956 = vsel %vm281, %v4865, 0
        %v4959 = vsel %vm281, %v4866, 0
        %v4962 = vsel %vm281, %v4867, 0
        %v4965 = vsel %vm281, %v4868, 0
        %v4968 = vsel %vm378, %v4870, 0
        %4970 = vmatprep.subr.mxu0 0.0
        %4971 = vmatpush1.msra.mxu0 %v4968
        %4972 = vmatprep.subr.mxu0 0.0
        %4973 = vmatpush1.msra.mxu0 0.0
        %4974 = vmatprep.subr.mxu0 0.0
        %4975 = vmatpush1.msra.mxu0 0.0
        %4976 = vmatprep.subr.mxu0 0.0
        %4977 = vmatpush1.msra.mxu0 0.0
        %4978 = vmatprep.subr.mxu0 0.0
        %4979 = vmatpush1.msra.mxu0 0.0
        %4980 = vmatprep.subr.mxu0 0.0
        %4981 = vmatpush1.msra.mxu0 0.0
        %4982 = vmatprep.subr.mxu0 0.0
        %4983 = vmatpush1.msra.mxu0 0.0
        %4984 = vmatprep.subr.mxu0 0.0
        %4985 = vmatpush1.msra.mxu0 0.0
        %4986 = vmatprep.subr.mxu0 0.0
        %4987 = vmatpush1.msra.mxu0 0.0
        %4988 = vmatprep.subr.mxu0 0.0
        %4989 = vmatpush1.msra.mxu0 0.0
        %4990 = vmatprep.subr.mxu0 0.0
        %4991 = vmatpush1.msra.mxu0 0.0
        %4992 = vmatprep.subr.mxu0 0.0
        %4993 = vmatpush1.msra.mxu0 0.0
        %4994 = vmatprep.subr.mxu0 0.0
        %4995 = vmatpush1.msra.mxu0 0.0
        %4996 = vmatprep.subr.mxu0 0.0
        %4997 = vmatpush1.msra.mxu0 0.0
        %4998 = vmatprep.subr.mxu0 0.0
        %4999 = vmatpush1.msra.mxu0 0.0
        %5000 = vmatprep.subr.mxu0 0.0
        %5001 = vmatpush1.msra.mxu0 0.0
        %5002 = vmatprep.subr.mxu0 0.0
        %5003 = vmatpush1.msra.mxu0 0.0
        %5004 = vmatprep.subr.mxu0 0.0
        %5005 = vmatpush1.msra.mxu0 0.0
        %5006 = vmatprep.subr.mxu0 0.0
        %5007 = vmatpush1.msra.mxu0 0.0
        %5008 = vmatprep.subr.mxu0 0.0
        %5009 = vmatpush1.msra.mxu0 0.0
        %5010 = vmatprep.subr.mxu0 0.0
        %5011 = vmatpush1.msra.mxu0 0.0
        %5012 = vmatprep.subr.mxu0 0.0
        %5013 = vmatpush1.msra.mxu0 0.0
        %5014 = vmatprep.subr.mxu0 0.0
        %5015 = vmatpush1.msra.mxu0 0.0
        %5016 = vmatprep.subr.mxu0 0.0
        %5017 = vmatpush1.msra.mxu0 0.0
        %5018 = vmatprep.subr.mxu0 0.0
        %5019 = vmatpush1.msra.mxu0 0.0
        %5020 = vmatprep.subr.mxu0 0.0
        %5021 = vmatpush1.msra.mxu0 0.0
        %5022 = vmatprep.subr.mxu0 0.0
        %5023 = vmatpush1.msra.mxu0 0.0
        %5024 = vmatprep.subr.mxu0 0.0
        %5025 = vmatpush1.msra.mxu0 0.0
        %5026 = vmatprep.subr.mxu0 0.0
        %5027 = vmatpush1.msra.mxu0 0.0
        %5028 = vmatprep.subr.mxu0 0.0
        %5029 = vmatpush1.msra.mxu0 0.0
        %5030 = vmatprep.subr.mxu0 0.0
        %5031 = vmatpush1.msra.mxu0 0.0
        %5032 = vmatprep.subr.mxu0 0.0
        %5033 = vmatpush1.msra.mxu0 0.0
        %5034 = vmatprep.mubr.f32.mxu0 0.0
        %5035 = vmatmul.mubr.f32.gmra.mrb[0].mxu0 %v4872
        %v5036 = vpop.f32.mrb[0].mxu0
        %v5037 = vadd.f32 0.0, %v5036
        %v5038 = vpop.f32.mrb[0].mxu0
        %5039 = vmatprep.mubr.f32.mxu0 0.0
        %5040 = vmatmul.mubr.f32.gmra.mrb[0].mxu0 %v4875
        %v5041 = vpop.f32.mrb[0].mxu0
        %v5042 = vadd.f32 0.0, %v5041
        %v5043 = vpop.f32.mrb[0].mxu0
        %5044 = vmatprep.mubr.f32.mxu0 0.0
        %5045 = vmatmul.mubr.f32.gmra.mrb[0].mxu0 %v4878
        %v5046 = vpop.f32.mrb[0].mxu0
        %v5047 = vadd.f32 0.0, %v5046
        %v5048 = vpop.f32.mrb[0].mxu0
        %5049 = vmatprep.mubr.f32.mxu0 0.0
        %5050 = vmatmul.mubr.f32.gmra.mrb[0].mxu0 %v4881
        %v5051 = vpop.f32.mrb[0].mxu0
        %v5052 = vadd.f32 0.0, %v5051
        %v5053 = vpop.f32.mrb[0].mxu0
        %5054 = vmatprep.mubr.f32.mxu0 0.0
        %5055 = vmatmul.mubr.f32.gmra.mrb[0].mxu0 %v4884
        %v5056 = vpop.f32.mrb[0].mxu0
        %v5057 = vadd.f32 0.0, %v5056
        %v5058 = vpop.f32.mrb[0].mxu0
        %5059 = vmatprep.mubr.f32.mxu0 0.0
        %5060 = vmatmul.mubr.f32.gmra.mrb[0].mxu0 %v4887
        %v5061 = vpop.f32.mrb[0].mxu0
        %v5062 = vadd.f32 0.0, %v5061
        %v5063 = vpop.f32.mrb[0].mxu0
        %5064 = vmatprep.mubr.f32.mxu0 0.0
        %5065 = vmatmul.mubr.f32.gmra.mrb[0].mxu0 %v4890
        %v5066 = vpop.f32.mrb[0].mxu0
        %v5067 = vadd.f32 0.0, %v5066
        %v5068 = vpop.f32.mrb[0].mxu0
        %5069 = vmatprep.mubr.f32.mxu0 0.0
        %5070 = vmatmul.mubr.f32.gmra.mrb[0].mxu0 %v4893
        %v5071 = vpop.f32.mrb[0].mxu0
        %v5072 = vadd.f32 0.0, %v5071
        %v5073 = vpop.f32.mrb[0].mxu0
        %5074 = vmatprep.mubr.f32.mxu0 0.0
        %5075 = vmatmul.mubr.f32.gmra.mrb[0].mxu0 %v4896
        %v5076 = vpop.f32.mrb[0].mxu0
        %v5077 = vadd.f32 0.0, %v5076
        %v5078 = vpop.f32.mrb[0].mxu0
        %5079 = vmatprep.mubr.f32.mxu0 0.0
        %5080 = vmatmul.mubr.f32.gmra.mrb[0].mxu0 %v4899
        %v5081 = vpop.f32.mrb[0].mxu0
        %v5082 = vadd.f32 0.0, %v5081
        %v5083 = vpop.f32.mrb[0].mxu0
        %5084 = vmatprep.mubr.f32.mxu0 0.0
        %5085 = vmatmul.mubr.f32.gmra.mrb[0].mxu0 %v4902
        %v5086 = vpop.f32.mrb[0].mxu0
        %v5087 = vadd.f32 0.0, %v5086
        %v5088 = vpop.f32.mrb[0].mxu0
        %5089 = vmatprep.mubr.f32.mxu0 0.0
        %5090 = vmatmul.mubr.f32.gmra.mrb[0].mxu0 %v4905
        %v5091 = vpop.f32.mrb[0].mxu0
        %v5092 = vadd.f32 0.0, %v5091
        %v5093 = vpop.f32.mrb[0].mxu0
        %5094 = vmatprep.mubr.f32.mxu0 0.0
        %5095 = vmatmul.mubr.f32.gmra.mrb[0].mxu0 %v4908
        %v5096 = vpop.f32.mrb[0].mxu0
        %v5097 = vadd.f32 0.0, %v5096
        %v5098 = vpop.f32.mrb[0].mxu0
        %5099 = vmatprep.mubr.f32.mxu0 0.0
        %5100 = vmatmul.mubr.f32.gmra.mrb[0].mxu0 %v4911
        %v5101 = vpop.f32.mrb[0].mxu0
        %v5102 = vadd.f32 0.0, %v5101
        %v5103 = vpop.f32.mrb[0].mxu0
        %5104 = vmatprep.mubr.f32.mxu0 0.0
        %5105 = vmatmul.mubr.f32.gmra.mrb[0].mxu0 %v4914
        %v5106 = vpop.f32.mrb[0].mxu0
        %v5107 = vadd.f32 0.0, %v5106
        %v5108 = vpop.f32.mrb[0].mxu0
        %5109 = vmatprep.mubr.f32.mxu0 0.0
        %5110 = vmatmul.mubr.f32.gmra.mrb[0].mxu0 %v4917
        %v5111 = vpop.f32.mrb[0].mxu0
        %v5112 = vadd.f32 0.0, %v5111
        %v5113 = vpop.f32.mrb[0].mxu0
        %5114 = vmatprep.mubr.f32.mxu0 0.0
        %5115 = vmatmul.mubr.f32.gmra.mrb[0].mxu0 %v4920
        %v5116 = vpop.f32.mrb[0].mxu0
        %v5117 = vadd.f32 0.0, %v5116
        %v5118 = vpop.f32.mrb[0].mxu0
        %5119 = vmatprep.mubr.f32.mxu0 0.0
        %5120 = vmatmul.mubr.f32.gmra.mrb[0].mxu0 %v4923
        %v5121 = vpop.f32.mrb[0].mxu0
        %v5122 = vadd.f32 0.0, %v5121
        %v5123 = vpop.f32.mrb[0].mxu0
        %5124 = vmatprep.mubr.f32.mxu0 0.0
        %5125 = vmatmul.mubr.f32.gmra.mrb[0].mxu0 %v4926
        %v5126 = vpop.f32.mrb[0].mxu0
        %v5127 = vadd.f32 0.0, %v5126
        %v5128 = vpop.f32.mrb[0].mxu0
        %5129 = vmatprep.mubr.f32.mxu0 0.0
        %5130 = vmatmul.mubr.f32.gmra.mrb[0].mxu0 %v4929
        %v5131 = vpop.f32.mrb[0].mxu0
        %v5132 = vadd.f32 0.0, %v5131
        %v5133 = vpop.f32.mrb[0].mxu0
        %5134 = vmatprep.mubr.f32.mxu0 0.0
        %5135 = vmatmul.mubr.f32.gmra.mrb[0].mxu0 %v4932
        %v5136 = vpop.f32.mrb[0].mxu0
        %v5137 = vadd.f32 0.0, %v5136
        %v5138 = vpop.f32.mrb[0].mxu0
        %5139 = vmatprep.mubr.f32.mxu0 0.0
        %5140 = vmatmul.mubr.f32.gmra.mrb[0].mxu0 %v4935
        %v5141 = vpop.f32.mrb[0].mxu0
        %v5142 = vadd.f32 0.0, %v5141
        %v5143 = vpop.f32.mrb[0].mxu0
        %5144 = vmatprep.mubr.f32.mxu0 0.0
        %5145 = vmatmul.mubr.f32.gmra.mrb[0].mxu0 %v4938
        %v5146 = vpop.f32.mrb[0].mxu0
        %v5147 = vadd.f32 0.0, %v5146
        %v5148 = vpop.f32.mrb[0].mxu0
        %5149 = vmatprep.mubr.f32.mxu0 0.0
        %5150 = vmatmul.mubr.f32.gmra.mrb[0].mxu0 %v4941
        %v5151 = vpop.f32.mrb[0].mxu0
        %v5152 = vadd.f32 0.0, %v5151
        %v5153 = vpop.f32.mrb[0].mxu0
        %5154 = vmatprep.mubr.f32.mxu0 0.0
        %5155 = vmatmul.mubr.f32.gmra.mrb[0].mxu0 %v4944
        %v5156 = vpop.f32.mrb[0].mxu0
        %v5157 = vadd.f32 0.0, %v5156
        %v5158 = vpop.f32.mrb[0].mxu0
        %5159 = vmatprep.mubr.f32.mxu0 0.0
        %5160 = vmatmul.mubr.f32.gmra.mrb[0].mxu0 %v4947
        %v5161 = vpop.f32.mrb[0].mxu0
        %v5162 = vadd.f32 0.0, %v5161
        %v5163 = vpop.f32.mrb[0].mxu0
        %5164 = vmatprep.mubr.f32.mxu0 0.0
        %5165 = vmatmul.mubr.f32.gmra.mrb[0].mxu0 %v4950
        %v5166 = vpop.f32.mrb[0].mxu0
        %v5167 = vadd.f32 0.0, %v5166
        %v5168 = vpop.f32.mrb[0].mxu0
        %5169 = vmatprep.mubr.f32.mxu0 0.0
        %5170 = vmatmul.mubr.f32.gmra.mrb[0].mxu0 %v4953
        %v5171 = vpop.f32.mrb[0].mxu0
        %v5172 = vadd.f32 0.0, %v5171
        %v5173 = vpop.f32.mrb[0].mxu0
        %5174 = vmatprep.mubr.f32.mxu0 0.0
        %5175 = vmatmul.mubr.f32.gmra.mrb[0].mxu0 %v4956
        %v5176 = vpop.f32.mrb[0].mxu0
        %v5177 = vadd.f32 0.0, %v5176
        %v5178 = vpop.f32.mrb[0].mxu0
        %5179 = vmatprep.mubr.f32.mxu0 0.0
        %5180 = vmatmul.mubr.f32.gmra.mrb[0].mxu0 %v4959
        %v5181 = vpop.f32.mrb[0].mxu0
        %v5182 = vadd.f32 0.0, %v5181
        %v5183 = vpop.f32.mrb[0].mxu0
        %5184 = vmatprep.mubr.f32.mxu0 0.0
        %5185 = vmatmul.mubr.f32.gmra.mrb[0].mxu0 %v4962
        %v5186 = vpop.f32.mrb[0].mxu0
        %v5187 = vadd.f32 0.0, %v5186
        %v5188 = vpop.f32.mrb[0].mxu0
        %5189 = vmatprep.mubr.f32.mxu0 0.0
        %5190 = vmatmul.mubr.f32.gmra.mrb[0].mxu0 %v4965
        %v5191 = vpop.f32.mrb[0].mxu0
        %v5192 = vadd.f32 0.0, %v5191
        %v5193 = vpop.f32.mrb[0].mxu0
        %5194 = vdwg.mxu0
        %v5195 = vadd.f32 %v4805, %v5037
        %v5196 = vadd.f32 %v4806, %v5042
        %v5197 = vadd.f32 %v4807, %v5047
        %v5198 = vadd.f32 %v4808, %v5052
        %v5199 = vadd.f32 %v4809, %v5057
        %v5200 = vadd.f32 %v4810, %v5062
        %v5201 = vadd.f32 %v4811, %v5067
        %v5202 = vadd.f32 %v4812, %v5072
        %v5203 = vadd.f32 %v4813, %v5077
        %v5204 = vadd.f32 %v4814, %v5082
        %v5205 = vadd.f32 %v4815, %v5087
        %v5206 = vadd.f32 %v4816, %v5092
        %v5207 = vadd.f32 %v4817, %v5097
        %v5208 = vadd.f32 %v4818, %v5102
        %v5209 = vadd.f32 %v4819, %v5107
        %v5210 = vadd.f32 %v4820, %v5112
        %v5211 = vadd.f32 %v4821, %v5117
        %v5212 = vadd.f32 %v4822, %v5122
        %v5213 = vadd.f32 %v4823, %v5127
        %v5214 = vadd.f32 %v4824, %v5132
        %v5215 = vadd.f32 %v4825, %v5137
        %v5216 = vadd.f32 %v4826, %v5142
        %v5217 = vadd.f32 %v4827, %v5147
        %v5218 = vadd.f32 %v4828, %v5152
        %v5219 = vadd.f32 %v4829, %v5157
        %v5220 = vadd.f32 %v4830, %v5162
        %v5221 = vadd.f32 %v4831, %v5167
        %v5222 = vadd.f32 %v4832, %v5172
        %v5223 = vadd.f32 %v4833, %v5177
        %v5224 = vadd.f32 %v4834, %v5182
        %v5225 = vadd.f32 %v4835, %v5187
        %v5226 = vadd.f32 %v4836, %v5192
        %v5227 = vld [vmem:[%s4056 + $0x3] sm:$0xff]
        %v5228 = vld [vmem:[%s4056 + $0xb] sm:$0xff]
        %v5229 = vld [vmem:[%s4056 + $0x13] sm:$0xff]
        %v5230 = vld [vmem:[%s4056 + $0x1b] sm:$0xff]
        %v5231 = vld [vmem:[%s4056 + $0x2b] sm:$0xff]
        %v5232 = vld [vmem:[%s4056 + $0x33] sm:$0xff]
        %v5233 = vld [vmem:[%s4056 + $0x3b] sm:$0xff]
        %v5234 = vld [vmem:[%s4056 + $0x43] sm:$0xff]
        %v5235 = vld [vmem:[%s4056 + $0x53] sm:$0xff]
        %v5236 = vld [vmem:[%s4056 + $0x5b] sm:$0xff]
        %v5237 = vld [vmem:[%s4056 + $0x63] sm:$0xff]
        %v5238 = vld [vmem:[%s4056 + $0x6b] sm:$0xff]
        %v5239 = vld [vmem:[%s4056 + $0x7b] sm:$0xff]
        %v5240 = vld [vmem:[%s4056 + $0x83] sm:$0xff]
        %v5241 = vld [vmem:[%s4056 + $0x8b] sm:$0xff]
        %v5242 = vld [vmem:[%s4056 + $0x93] sm:$0xff]
        %v5243 = vld [vmem:[%s4056 + $0xa3] sm:$0xff]
        %v5244 = vld [vmem:[%s4056 + $0xab] sm:$0xff]
        %v5245 = vld [vmem:[%s4056 + $0xb3] sm:$0xff]
        %v5246 = vld [vmem:[%s4056 + $0xbb] sm:$0xff]
        %v5247 = vld [vmem:[%s4056 + $0xcb] sm:$0xff]
        %v5248 = vld [vmem:[%s4056 + $0xd3] sm:$0xff]
        %v5249 = vld [vmem:[%s4056 + $0xdb] sm:$0xff]
        %v5250 = vld [vmem:[%s4056 + $0xe3] sm:$0xff]
        %v5251 = vld [vmem:[%s4056 + $0xf3] sm:$0xff]
        %v5252 = vld [vmem:[%s4056 + $0xfb] sm:$0xff]
        %v5253 = vld [vmem:[%s4056 + $0x103] sm:$0xff]
        %v5254 = vld [vmem:[%s4056 + $0x10b] sm:$0xff]
        %v5255 = vld [vmem:[%s4056 + $0x11b] sm:$0xff]
        %v5256 = vld [vmem:[%s4056 + $0x123] sm:$0xff]
        %v5257 = vld [vmem:[%s4056 + $0x12b] sm:$0xff]
        %v5258 = vld [vmem:[%s4056 + $0x133] sm:$0xff]
        %s5259 = scalar_lea.vmem %s1, 26
        %v5260 = vld [vmem:[%s5259] sm:$0x3]
        %v5262 = vsel %vm281, %v5227, 0
        %v5265 = vsel %vm281, %v5228, 0
        %v5268 = vsel %vm281, %v5229, 0
        %v5271 = vsel %vm281, %v5230, 0
        %v5274 = vsel %vm281, %v5231, 0
        %v5277 = vsel %vm281, %v5232, 0
        %v5280 = vsel %vm281, %v5233, 0
        %v5283 = vsel %vm281, %v5234, 0
        %v5286 = vsel %vm281, %v5235, 0
        %v5289 = vsel %vm281, %v5236, 0
        %v5292 = vsel %vm281, %v5237, 0
        %v5295 = vsel %vm281, %v5238, 0
        %v5298 = vsel %vm281, %v5239, 0
        %v5301 = vsel %vm281, %v5240, 0
        %v5304 = vsel %vm281, %v5241, 0
        %v5307 = vsel %vm281, %v5242, 0
        %v5310 = vsel %vm281, %v5243, 0
        %v5313 = vsel %vm281, %v5244, 0
        %v5316 = vsel %vm281, %v5245, 0
        %v5319 = vsel %vm281, %v5246, 0
        %v5322 = vsel %vm281, %v5247, 0
        %v5325 = vsel %vm281, %v5248, 0
        %v5328 = vsel %vm281, %v5249, 0
        %v5331 = vsel %vm281, %v5250, 0
        %v5334 = vsel %vm281, %v5251, 0
        %v5337 = vsel %vm281, %v5252, 0
        %v5340 = vsel %vm281, %v5253, 0
        %v5343 = vsel %vm281, %v5254, 0
        %v5346 = vsel %vm281, %v5255, 0
        %v5349 = vsel %vm281, %v5256, 0
        %v5352 = vsel %vm281, %v5257, 0
        %v5355 = vsel %vm281, %v5258, 0
        %v5358 = vsel %vm378, %v5260, 0
        %5360 = vmatprep.subr.mxu0 0.0
        %5361 = vmatpush1.msra.mxu0 %v5358
        %5362 = vmatprep.subr.mxu0 0.0
        %5363 = vmatpush1.msra.mxu0 0.0
        %5364 = vmatprep.subr.mxu0 0.0
        %5365 = vmatpush1.msra.mxu0 0.0
        %5366 = vmatprep.subr.mxu0 0.0
        %5367 = vmatpush1.msra.mxu0 0.0
        %5368 = vmatprep.subr.mxu0 0.0
        %5369 = vmatpush1.msra.mxu0 0.0
        %5370 = vmatprep.subr.mxu0 0.0
        %5371 = vmatpush1.msra.mxu0 0.0
        %5372 = vmatprep.subr.mxu0 0.0
        %5373 = vmatpush1.msra.mxu0 0.0
        %5374 = vmatprep.subr.mxu0 0.0
        %5375 = vmatpush1.msra.mxu0 0.0
        %5376 = vmatprep.subr.mxu0 0.0
        %5377 = vmatpush1.msra.mxu0 0.0
        %5378 = vmatprep.subr.mxu0 0.0
        %5379 = vmatpush1.msra.mxu0 0.0
        %5380 = vmatprep.subr.mxu0 0.0
        %5381 = vmatpush1.msra.mxu0 0.0
        %5382 = vmatprep.subr.mxu0 0.0
        %5383 = vmatpush1.msra.mxu0 0.0
        %5384 = vmatprep.subr.mxu0 0.0
        %5385 = vmatpush1.msra.mxu0 0.0
        %5386 = vmatprep.subr.mxu0 0.0
        %5387 = vmatpush1.msra.mxu0 0.0
        %5388 = vmatprep.subr.mxu0 0.0
        %5389 = vmatpush1.msra.mxu0 0.0
        %5390 = vmatprep.subr.mxu0 0.0
        %5391 = vmatpush1.msra.mxu0 0.0
        %5392 = vmatprep.subr.mxu0 0.0
        %5393 = vmatpush1.msra.mxu0 0.0
        %5394 = vmatprep.subr.mxu0 0.0
        %5395 = vmatpush1.msra.mxu0 0.0
        %5396 = vmatprep.subr.mxu0 0.0
        %5397 = vmatpush1.msra.mxu0 0.0
        %5398 = vmatprep.subr.mxu0 0.0
        %5399 = vmatpush1.msra.mxu0 0.0
        %5400 = vmatprep.subr.mxu0 0.0
        %5401 = vmatpush1.msra.mxu0 0.0
        %5402 = vmatprep.subr.mxu0 0.0
        %5403 = vmatpush1.msra.mxu0 0.0
        %5404 = vmatprep.subr.mxu0 0.0
        %5405 = vmatpush1.msra.mxu0 0.0
        %5406 = vmatprep.subr.mxu0 0.0
        %5407 = vmatpush1.msra.mxu0 0.0
        %5408 = vmatprep.subr.mxu0 0.0
        %5409 = vmatpush1.msra.mxu0 0.0
        %5410 = vmatprep.subr.mxu0 0.0
        %5411 = vmatpush1.msra.mxu0 0.0
        %5412 = vmatprep.subr.mxu0 0.0
        %5413 = vmatpush1.msra.mxu0 0.0
        %5414 = vmatprep.subr.mxu0 0.0
        %5415 = vmatpush1.msra.mxu0 0.0
        %5416 = vmatprep.subr.mxu0 0.0
        %5417 = vmatpush1.msra.mxu0 0.0
        %5418 = vmatprep.subr.mxu0 0.0
        %5419 = vmatpush1.msra.mxu0 0.0
        %5420 = vmatprep.subr.mxu0 0.0
        %5421 = vmatpush1.msra.mxu0 0.0
        %5422 = vmatprep.subr.mxu0 0.0
        %5423 = vmatpush1.msra.mxu0 0.0
        %5424 = vmatprep.mubr.f32.mxu0 0.0
        %5425 = vmatmul.mubr.f32.gmra.mrb[0].mxu0 %v5262
        %v5426 = vpop.f32.mrb[0].mxu0
        %v5427 = vadd.f32 0.0, %v5426
        %v5428 = vpop.f32.mrb[0].mxu0
        %5429 = vmatprep.mubr.f32.mxu0 0.0
        %5430 = vmatmul.mubr.f32.gmra.mrb[0].mxu0 %v5265
        %v5431 = vpop.f32.mrb[0].mxu0
        %v5432 = vadd.f32 0.0, %v5431
        %v5433 = vpop.f32.mrb[0].mxu0
        %5434 = vmatprep.mubr.f32.mxu0 0.0
        %5435 = vmatmul.mubr.f32.gmra.mrb[0].mxu0 %v5268
        %v5436 = vpop.f32.mrb[0].mxu0
        %v5437 = vadd.f32 0.0, %v5436
        %v5438 = vpop.f32.mrb[0].mxu0
        %5439 = vmatprep.mubr.f32.mxu0 0.0
        %5440 = vmatmul.mubr.f32.gmra.mrb[0].mxu0 %v5271
        %v5441 = vpop.f32.mrb[0].mxu0
        %v5442 = vadd.f32 0.0, %v5441
        %v5443 = vpop.f32.mrb[0].mxu0
        %5444 = vmatprep.mubr.f32.mxu0 0.0
        %5445 = vmatmul.mubr.f32.gmra.mrb[0].mxu0 %v5274
        %v5446 = vpop.f32.mrb[0].mxu0
        %v5447 = vadd.f32 0.0, %v5446
        %v5448 = vpop.f32.mrb[0].mxu0
        %5449 = vmatprep.mubr.f32.mxu0 0.0
        %5450 = vmatmul.mubr.f32.gmra.mrb[0].mxu0 %v5277
        %v5451 = vpop.f32.mrb[0].mxu0
        %v5452 = vadd.f32 0.0, %v5451
        %v5453 = vpop.f32.mrb[0].mxu0
        %5454 = vmatprep.mubr.f32.mxu0 0.0
        %5455 = vmatmul.mubr.f32.gmra.mrb[0].mxu0 %v5280
        %v5456 = vpop.f32.mrb[0].mxu0
        %v5457 = vadd.f32 0.0, %v5456
        %v5458 = vpop.f32.mrb[0].mxu0
        %5459 = vmatprep.mubr.f32.mxu0 0.0
        %5460 = vmatmul.mubr.f32.gmra.mrb[0].mxu0 %v5283
        %v5461 = vpop.f32.mrb[0].mxu0
        %v5462 = vadd.f32 0.0, %v5461
        %v5463 = vpop.f32.mrb[0].mxu0
        %5464 = vmatprep.mubr.f32.mxu0 0.0
        %5465 = vmatmul.mubr.f32.gmra.mrb[0].mxu0 %v5286
        %v5466 = vpop.f32.mrb[0].mxu0
        %v5467 = vadd.f32 0.0, %v5466
        %v5468 = vpop.f32.mrb[0].mxu0
        %5469 = vmatprep.mubr.f32.mxu0 0.0
        %5470 = vmatmul.mubr.f32.gmra.mrb[0].mxu0 %v5289
        %v5471 = vpop.f32.mrb[0].mxu0
        %v5472 = vadd.f32 0.0, %v5471
        %v5473 = vpop.f32.mrb[0].mxu0
        %5474 = vmatprep.mubr.f32.mxu0 0.0
        %5475 = vmatmul.mubr.f32.gmra.mrb[0].mxu0 %v5292
        %v5476 = vpop.f32.mrb[0].mxu0
        %v5477 = vadd.f32 0.0, %v5476
        %v5478 = vpop.f32.mrb[0].mxu0
        %5479 = vmatprep.mubr.f32.mxu0 0.0
        %5480 = vmatmul.mubr.f32.gmra.mrb[0].mxu0 %v5295
        %v5481 = vpop.f32.mrb[0].mxu0
        %v5482 = vadd.f32 0.0, %v5481
        %v5483 = vpop.f32.mrb[0].mxu0
        %5484 = vmatprep.mubr.f32.mxu0 0.0
        %5485 = vmatmul.mubr.f32.gmra.mrb[0].mxu0 %v5298
        %v5486 = vpop.f32.mrb[0].mxu0
        %v5487 = vadd.f32 0.0, %v5486
        %v5488 = vpop.f32.mrb[0].mxu0
        %5489 = vmatprep.mubr.f32.mxu0 0.0
        %5490 = vmatmul.mubr.f32.gmra.mrb[0].mxu0 %v5301
        %v5491 = vpop.f32.mrb[0].mxu0
        %v5492 = vadd.f32 0.0, %v5491
        %v5493 = vpop.f32.mrb[0].mxu0
        %5494 = vmatprep.mubr.f32.mxu0 0.0
        %5495 = vmatmul.mubr.f32.gmra.mrb[0].mxu0 %v5304
        %v5496 = vpop.f32.mrb[0].mxu0
        %v5497 = vadd.f32 0.0, %v5496
        %v5498 = vpop.f32.mrb[0].mxu0
        %5499 = vmatprep.mubr.f32.mxu0 0.0
        %5500 = vmatmul.mubr.f32.gmra.mrb[0].mxu0 %v5307
        %v5501 = vpop.f32.mrb[0].mxu0
        %v5502 = vadd.f32 0.0, %v5501
        %v5503 = vpop.f32.mrb[0].mxu0
        %5504 = vmatprep.mubr.f32.mxu0 0.0
        %5505 = vmatmul.mubr.f32.gmra.mrb[0].mxu0 %v5310
        %v5506 = vpop.f32.mrb[0].mxu0
        %v5507 = vadd.f32 0.0, %v5506
        %v5508 = vpop.f32.mrb[0].mxu0
        %5509 = vmatprep.mubr.f32.mxu0 0.0
        %5510 = vmatmul.mubr.f32.gmra.mrb[0].mxu0 %v5313
        %v5511 = vpop.f32.mrb[0].mxu0
        %v5512 = vadd.f32 0.0, %v5511
        %v5513 = vpop.f32.mrb[0].mxu0
        %5514 = vmatprep.mubr.f32.mxu0 0.0
        %5515 = vmatmul.mubr.f32.gmra.mrb[0].mxu0 %v5316
        %v5516 = vpop.f32.mrb[0].mxu0
        %v5517 = vadd.f32 0.0, %v5516
        %v5518 = vpop.f32.mrb[0].mxu0
        %5519 = vmatprep.mubr.f32.mxu0 0.0
        %5520 = vmatmul.mubr.f32.gmra.mrb[0].mxu0 %v5319
        %v5521 = vpop.f32.mrb[0].mxu0
        %v5522 = vadd.f32 0.0, %v5521
        %v5523 = vpop.f32.mrb[0].mxu0
        %5524 = vmatprep.mubr.f32.mxu0 0.0
        %5525 = vmatmul.mubr.f32.gmra.mrb[0].mxu0 %v5322
        %v5526 = vpop.f32.mrb[0].mxu0
        %v5527 = vadd.f32 0.0, %v5526
        %v5528 = vpop.f32.mrb[0].mxu0
        %5529 = vmatprep.mubr.f32.mxu0 0.0
        %5530 = vmatmul.mubr.f32.gmra.mrb[0].mxu0 %v5325
        %v5531 = vpop.f32.mrb[0].mxu0
        %v5532 = vadd.f32 0.0, %v5531
        %v5533 = vpop.f32.mrb[0].mxu0
        %5534 = vmatprep.mubr.f32.mxu0 0.0
        %5535 = vmatmul.mubr.f32.gmra.mrb[0].mxu0 %v5328
        %v5536 = vpop.f32.mrb[0].mxu0
        %v5537 = vadd.f32 0.0, %v5536
        %v5538 = vpop.f32.mrb[0].mxu0
        %5539 = vmatprep.mubr.f32.mxu0 0.0
        %5540 = vmatmul.mubr.f32.gmra.mrb[0].mxu0 %v5331
        %v5541 = vpop.f32.mrb[0].mxu0
        %v5542 = vadd.f32 0.0, %v5541
        %v5543 = vpop.f32.mrb[0].mxu0
        %5544 = vmatprep.mubr.f32.mxu0 0.0
        %5545 = vmatmul.mubr.f32.gmra.mrb[0].mxu0 %v5334
        %v5546 = vpop.f32.mrb[0].mxu0
        %v5547 = vadd.f32 0.0, %v5546
        %v5548 = vpop.f32.mrb[0].mxu0
        %5549 = vmatprep.mubr.f32.mxu0 0.0
        %5550 = vmatmul.mubr.f32.gmra.mrb[0].mxu0 %v5337
        %v5551 = vpop.f32.mrb[0].mxu0
        %v5552 = vadd.f32 0.0, %v5551
        %v5553 = vpop.f32.mrb[0].mxu0
        %5554 = vmatprep.mubr.f32.mxu0 0.0
        %5555 = vmatmul.mubr.f32.gmra.mrb[0].mxu0 %v5340
        %v5556 = vpop.f32.mrb[0].mxu0
        %v5557 = vadd.f32 0.0, %v5556
        %v5558 = vpop.f32.mrb[0].mxu0
        %5559 = vmatprep.mubr.f32.mxu0 0.0
        %5560 = vmatmul.mubr.f32.gmra.mrb[0].mxu0 %v5343
        %v5561 = vpop.f32.mrb[0].mxu0
        %v5562 = vadd.f32 0.0, %v5561
        %v5563 = vpop.f32.mrb[0].mxu0
        %5564 = vmatprep.mubr.f32.mxu0 0.0
        %5565 = vmatmul.mubr.f32.gmra.mrb[0].mxu0 %v5346
        %v5566 = vpop.f32.mrb[0].mxu0
        %v5567 = vadd.f32 0.0, %v5566
        %v5568 = vpop.f32.mrb[0].mxu0
        %5569 = vmatprep.mubr.f32.mxu0 0.0
        %5570 = vmatmul.mubr.f32.gmra.mrb[0].mxu0 %v5349
        %v5571 = vpop.f32.mrb[0].mxu0
        %v5572 = vadd.f32 0.0, %v5571
        %v5573 = vpop.f32.mrb[0].mxu0
        %5574 = vmatprep.mubr.f32.mxu0 0.0
        %5575 = vmatmul.mubr.f32.gmra.mrb[0].mxu0 %v5352
        %v5576 = vpop.f32.mrb[0].mxu0
        %v5577 = vadd.f32 0.0, %v5576
        %v5578 = vpop.f32.mrb[0].mxu0
        %5579 = vmatprep.mubr.f32.mxu0 0.0
        %5580 = vmatmul.mubr.f32.gmra.mrb[0].mxu0 %v5355
        %v5581 = vpop.f32.mrb[0].mxu0
        %v5582 = vadd.f32 0.0, %v5581
        %v5583 = vpop.f32.mrb[0].mxu0
        %5584 = vdwg.mxu0
        %v5585 = vadd.f32 %v5195, %v5427
        %v5586 = vadd.f32 %v5196, %v5432
        %v5587 = vadd.f32 %v5197, %v5437
        %v5588 = vadd.f32 %v5198, %v5442
        %v5589 = vadd.f32 %v5199, %v5447
        %v5590 = vadd.f32 %v5200, %v5452
        %v5591 = vadd.f32 %v5201, %v5457
        %v5592 = vadd.f32 %v5202, %v5462
        %v5593 = vadd.f32 %v5203, %v5467
        %v5594 = vadd.f32 %v5204, %v5472
        %v5595 = vadd.f32 %v5205, %v5477
        %v5596 = vadd.f32 %v5206, %v5482
        %v5597 = vadd.f32 %v5207, %v5487
        %v5598 = vadd.f32 %v5208, %v5492
        %v5599 = vadd.f32 %v5209, %v5497
        %v5600 = vadd.f32 %v5210, %v5502
        %v5601 = vadd.f32 %v5211, %v5507
        %v5602 = vadd.f32 %v5212, %v5512
        %v5603 = vadd.f32 %v5213, %v5517
        %v5604 = vadd.f32 %v5214, %v5522
        %v5605 = vadd.f32 %v5215, %v5527
        %v5606 = vadd.f32 %v5216, %v5532
        %v5607 = vadd.f32 %v5217, %v5537
        %v5608 = vadd.f32 %v5218, %v5542
        %v5609 = vadd.f32 %v5219, %v5547
        %v5610 = vadd.f32 %v5220, %v5552
        %v5611 = vadd.f32 %v5221, %v5557
        %v5612 = vadd.f32 %v5222, %v5562
        %v5613 = vadd.f32 %v5223, %v5567
        %v5614 = vadd.f32 %v5224, %v5572
        %v5615 = vadd.f32 %v5225, %v5577
        %v5616 = vadd.f32 %v5226, %v5582
        %v5617 = vld [vmem:[%s4056 + $0x4] sm:$0xff]
        %v5618 = vld [vmem:[%s4056 + $0xc] sm:$0xff]
        %v5619 = vld [vmem:[%s4056 + $0x14] sm:$0xff]
        %v5620 = vld [vmem:[%s4056 + $0x1c] sm:$0xff]
        %v5621 = vld [vmem:[%s4056 + $0x2c] sm:$0xff]
        %v5622 = vld [vmem:[%s4056 + $0x34] sm:$0xff]
        %v5623 = vld [vmem:[%s4056 + $0x3c] sm:$0xff]
        %v5624 = vld [vmem:[%s4056 + $0x44] sm:$0xff]
        %v5625 = vld [vmem:[%s4056 + $0x54] sm:$0xff]
        %v5626 = vld [vmem:[%s4056 + $0x5c] sm:$0xff]
        %v5627 = vld [vmem:[%s4056 + $0x64] sm:$0xff]
        %v5628 = vld [vmem:[%s4056 + $0x6c] sm:$0xff]
        %v5629 = vld [vmem:[%s4056 + $0x7c] sm:$0xff]
        %v5630 = vld [vmem:[%s4056 + $0x84] sm:$0xff]
        %v5631 = vld [vmem:[%s4056 + $0x8c] sm:$0xff]
        %v5632 = vld [vmem:[%s4056 + $0x94] sm:$0xff]
        %v5633 = vld [vmem:[%s4056 + $0xa4] sm:$0xff]
        %v5634 = vld [vmem:[%s4056 + $0xac] sm:$0xff]
        %v5635 = vld [vmem:[%s4056 + $0xb4] sm:$0xff]
        %v5636 = vld [vmem:[%s4056 + $0xbc] sm:$0xff]
        %v5637 = vld [vmem:[%s4056 + $0xcc] sm:$0xff]
        %v5638 = vld [vmem:[%s4056 + $0xd4] sm:$0xff]
        %v5639 = vld [vmem:[%s4056 + $0xdc] sm:$0xff]
        %v5640 = vld [vmem:[%s4056 + $0xe4] sm:$0xff]
        %v5641 = vld [vmem:[%s4056 + $0xf4] sm:$0xff]
        %v5642 = vld [vmem:[%s4056 + $0xfc] sm:$0xff]
        %v5643 = vld [vmem:[%s4056 + $0x104] sm:$0xff]
        %v5644 = vld [vmem:[%s4056 + $0x10c] sm:$0xff]
        %v5645 = vld [vmem:[%s4056 + $0x11c] sm:$0xff]
        %v5646 = vld [vmem:[%s4056 + $0x124] sm:$0xff]
        %v5647 = vld [vmem:[%s4056 + $0x12c] sm:$0xff]
        %v5648 = vld [vmem:[%s4056 + $0x134] sm:$0xff]
        %s5649 = scalar_lea.vmem %s1, 28
        %v5650 = vld [vmem:[%s5649] sm:$0x3]
        %v5652 = vsel %vm281, %v5617, 0
        %v5655 = vsel %vm281, %v5618, 0
        %v5658 = vsel %vm281, %v5619, 0
        %v5661 = vsel %vm281, %v5620, 0
        %v5664 = vsel %vm281, %v5621, 0
        %v5667 = vsel %vm281, %v5622, 0
        %v5670 = vsel %vm281, %v5623, 0
        %v5673 = vsel %vm281, %v5624, 0
        %v5676 = vsel %vm281, %v5625, 0
        %v5679 = vsel %vm281, %v5626, 0
        %v5682 = vsel %vm281, %v5627, 0
        %v5685 = vsel %vm281, %v5628, 0
        %v5688 = vsel %vm281, %v5629, 0
        %v5691 = vsel %vm281, %v5630, 0
        %v5694 = vsel %vm281, %v5631, 0
        %v5697 = vsel %vm281, %v5632, 0
        %v5700 = vsel %vm281, %v5633, 0
        %v5703 = vsel %vm281, %v5634, 0
        %v5706 = vsel %vm281, %v5635, 0
        %v5709 = vsel %vm281, %v5636, 0
        %v5712 = vsel %vm281, %v5637, 0
        %v5715 = vsel %vm281, %v5638, 0
        %v5718 = vsel %vm281, %v5639, 0
        %v5721 = vsel %vm281, %v5640, 0
        %v5724 = vsel %vm281, %v5641, 0
        %v5727 = vsel %vm281, %v5642, 0
        %v5730 = vsel %vm281, %v5643, 0
        %v5733 = vsel %vm281, %v5644, 0
        %v5736 = vsel %vm281, %v5645, 0
        %v5739 = vsel %vm281, %v5646, 0
        %v5742 = vsel %vm281, %v5647, 0
        %v5745 = vsel %vm281, %v5648, 0
        %v5748 = vsel %vm378, %v5650, 0
        %5750 = vmatprep.subr.mxu0 0.0
        %5751 = vmatpush1.msra.mxu0 %v5748
        %5752 = vmatprep.subr.mxu0 0.0
        %5753 = vmatpush1.msra.mxu0 0.0
        %5754 = vmatprep.subr.mxu0 0.0
        %5755 = vmatpush1.msra.mxu0 0.0
        %5756 = vmatprep.subr.mxu0 0.0
        %5757 = vmatpush1.msra.mxu0 0.0
        %5758 = vmatprep.subr.mxu0 0.0
        %5759 = vmatpush1.msra.mxu0 0.0
        %5760 = vmatprep.subr.mxu0 0.0
        %5761 = vmatpush1.msra.mxu0 0.0
        %5762 = vmatprep.subr.mxu0 0.0
        %5763 = vmatpush1.msra.mxu0 0.0
        %5764 = vmatprep.subr.mxu0 0.0
        %5765 = vmatpush1.msra.mxu0 0.0
        %5766 = vmatprep.subr.mxu0 0.0
        %5767 = vmatpush1.msra.mxu0 0.0
        %5768 = vmatprep.subr.mxu0 0.0
        %5769 = vmatpush1.msra.mxu0 0.0
        %5770 = vmatprep.subr.mxu0 0.0
        %5771 = vmatpush1.msra.mxu0 0.0
        %5772 = vmatprep.subr.mxu0 0.0
        %5773 = vmatpush1.msra.mxu0 0.0
        %5774 = vmatprep.subr.mxu0 0.0
        %5775 = vmatpush1.msra.mxu0 0.0
        %5776 = vmatprep.subr.mxu0 0.0
        %5777 = vmatpush1.msra.mxu0 0.0
        %5778 = vmatprep.subr.mxu0 0.0
        %5779 = vmatpush1.msra.mxu0 0.0
        %5780 = vmatprep.subr.mxu0 0.0
        %5781 = vmatpush1.msra.mxu0 0.0
        %5782 = vmatprep.subr.mxu0 0.0
        %5783 = vmatpush1.msra.mxu0 0.0
        %5784 = vmatprep.subr.mxu0 0.0
        %5785 = vmatpush1.msra.mxu0 0.0
        %5786 = vmatprep.subr.mxu0 0.0
        %5787 = vmatpush1.msra.mxu0 0.0
        %5788 = vmatprep.subr.mxu0 0.0
        %5789 = vmatpush1.msra.mxu0 0.0
        %5790 = vmatprep.subr.mxu0 0.0
        %5791 = vmatpush1.msra.mxu0 0.0
        %5792 = vmatprep.subr.mxu0 0.0
        %5793 = vmatpush1.msra.mxu0 0.0
        %5794 = vmatprep.subr.mxu0 0.0
        %5795 = vmatpush1.msra.mxu0 0.0
        %5796 = vmatprep.subr.mxu0 0.0
        %5797 = vmatpush1.msra.mxu0 0.0
        %5798 = vmatprep.subr.mxu0 0.0
        %5799 = vmatpush1.msra.mxu0 0.0
        %5800 = vmatprep.subr.mxu0 0.0
        %5801 = vmatpush1.msra.mxu0 0.0
        %5802 = vmatprep.subr.mxu0 0.0
        %5803 = vmatpush1.msra.mxu0 0.0
        %5804 = vmatprep.subr.mxu0 0.0
        %5805 = vmatpush1.msra.mxu0 0.0
        %5806 = vmatprep.subr.mxu0 0.0
        %5807 = vmatpush1.msra.mxu0 0.0
        %5808 = vmatprep.subr.mxu0 0.0
        %5809 = vmatpush1.msra.mxu0 0.0
        %5810 = vmatprep.subr.mxu0 0.0
        %5811 = vmatpush1.msra.mxu0 0.0
        %5812 = vmatprep.subr.mxu0 0.0
        %5813 = vmatpush1.msra.mxu0 0.0
        %5814 = vmatprep.mubr.f32.mxu0 0.0
        %5815 = vmatmul.mubr.f32.gmra.mrb[0].mxu0 %v5652
        %v5816 = vpop.f32.mrb[0].mxu0
        %v5817 = vadd.f32 0.0, %v5816
        %v5818 = vpop.f32.mrb[0].mxu0
        %5819 = vmatprep.mubr.f32.mxu0 0.0
        %5820 = vmatmul.mubr.f32.gmra.mrb[0].mxu0 %v5655
        %v5821 = vpop.f32.mrb[0].mxu0
        %v5822 = vadd.f32 0.0, %v5821
        %v5823 = vpop.f32.mrb[0].mxu0
        %5824 = vmatprep.mubr.f32.mxu0 0.0
        %5825 = vmatmul.mubr.f32.gmra.mrb[0].mxu0 %v5658
        %v5826 = vpop.f32.mrb[0].mxu0
        %v5827 = vadd.f32 0.0, %v5826
        %v5828 = vpop.f32.mrb[0].mxu0
        %5829 = vmatprep.mubr.f32.mxu0 0.0
        %5830 = vmatmul.mubr.f32.gmra.mrb[0].mxu0 %v5661
        %v5831 = vpop.f32.mrb[0].mxu0
        %v5832 = vadd.f32 0.0, %v5831
        %v5833 = vpop.f32.mrb[0].mxu0
        %5834 = vmatprep.mubr.f32.mxu0 0.0
        %5835 = vmatmul.mubr.f32.gmra.mrb[0].mxu0 %v5664
        %v5836 = vpop.f32.mrb[0].mxu0
        %v5837 = vadd.f32 0.0, %v5836
        %v5838 = vpop.f32.mrb[0].mxu0
        %5839 = vmatprep.mubr.f32.mxu0 0.0
        %5840 = vmatmul.mubr.f32.gmra.mrb[0].mxu0 %v5667
        %v5841 = vpop.f32.mrb[0].mxu0
        %v5842 = vadd.f32 0.0, %v5841
        %v5843 = vpop.f32.mrb[0].mxu0
        %5844 = vmatprep.mubr.f32.mxu0 0.0
        %5845 = vmatmul.mubr.f32.gmra.mrb[0].mxu0 %v5670
        %v5846 = vpop.f32.mrb[0].mxu0
        %v5847 = vadd.f32 0.0, %v5846
        %v5848 = vpop.f32.mrb[0].mxu0
        %5849 = vmatprep.mubr.f32.mxu0 0.0
        %5850 = vmatmul.mubr.f32.gmra.mrb[0].mxu0 %v5673
        %v5851 = vpop.f32.mrb[0].mxu0
        %v5852 = vadd.f32 0.0, %v5851
        %v5853 = vpop.f32.mrb[0].mxu0
        %5854 = vmatprep.mubr.f32.mxu0 0.0
        %5855 = vmatmul.mubr.f32.gmra.mrb[0].mxu0 %v5676
        %v5856 = vpop.f32.mrb[0].mxu0
        %v5857 = vadd.f32 0.0, %v5856
        %v5858 = vpop.f32.mrb[0].mxu0
        %5859 = vmatprep.mubr.f32.mxu0 0.0
        %5860 = vmatmul.mubr.f32.gmra.mrb[0].mxu0 %v5679
        %v5861 = vpop.f32.mrb[0].mxu0
        %v5862 = vadd.f32 0.0, %v5861
        %v5863 = vpop.f32.mrb[0].mxu0
        %5864 = vmatprep.mubr.f32.mxu0 0.0
        %5865 = vmatmul.mubr.f32.gmra.mrb[0].mxu0 %v5682
        %v5866 = vpop.f32.mrb[0].mxu0
        %v5867 = vadd.f32 0.0, %v5866
        %v5868 = vpop.f32.mrb[0].mxu0
        %5869 = vmatprep.mubr.f32.mxu0 0.0
        %5870 = vmatmul.mubr.f32.gmra.mrb[0].mxu0 %v5685
        %v5871 = vpop.f32.mrb[0].mxu0
        %v5872 = vadd.f32 0.0, %v5871
        %v5873 = vpop.f32.mrb[0].mxu0
        %5874 = vmatprep.mubr.f32.mxu0 0.0
        %5875 = vmatmul.mubr.f32.gmra.mrb[0].mxu0 %v5688
        %v5876 = vpop.f32.mrb[0].mxu0
        %v5877 = vadd.f32 0.0, %v5876
        %v5878 = vpop.f32.mrb[0].mxu0
        %5879 = vmatprep.mubr.f32.mxu0 0.0
        %5880 = vmatmul.mubr.f32.gmra.mrb[0].mxu0 %v5691
        %v5881 = vpop.f32.mrb[0].mxu0
        %v5882 = vadd.f32 0.0, %v5881
        %v5883 = vpop.f32.mrb[0].mxu0
        %5884 = vmatprep.mubr.f32.mxu0 0.0
        %5885 = vmatmul.mubr.f32.gmra.mrb[0].mxu0 %v5694
        %v5886 = vpop.f32.mrb[0].mxu0
        %v5887 = vadd.f32 0.0, %v5886
        %v5888 = vpop.f32.mrb[0].mxu0
        %5889 = vmatprep.mubr.f32.mxu0 0.0
        %5890 = vmatmul.mubr.f32.gmra.mrb[0].mxu0 %v5697
        %v5891 = vpop.f32.mrb[0].mxu0
        %v5892 = vadd.f32 0.0, %v5891
        %v5893 = vpop.f32.mrb[0].mxu0
        %5894 = vmatprep.mubr.f32.mxu0 0.0
        %5895 = vmatmul.mubr.f32.gmra.mrb[0].mxu0 %v5700
        %v5896 = vpop.f32.mrb[0].mxu0
        %v5897 = vadd.f32 0.0, %v5896
        %v5898 = vpop.f32.mrb[0].mxu0
        %5899 = vmatprep.mubr.f32.mxu0 0.0
        %5900 = vmatmul.mubr.f32.gmra.mrb[0].mxu0 %v5703
        %v5901 = vpop.f32.mrb[0].mxu0
        %v5902 = vadd.f32 0.0, %v5901
        %v5903 = vpop.f32.mrb[0].mxu0
        %5904 = vmatprep.mubr.f32.mxu0 0.0
        %5905 = vmatmul.mubr.f32.gmra.mrb[0].mxu0 %v5706
        %v5906 = vpop.f32.mrb[0].mxu0
        %v5907 = vadd.f32 0.0, %v5906
        %v5908 = vpop.f32.mrb[0].mxu0
        %5909 = vmatprep.mubr.f32.mxu0 0.0
        %5910 = vmatmul.mubr.f32.gmra.mrb[0].mxu0 %v5709
        %v5911 = vpop.f32.mrb[0].mxu0
        %v5912 = vadd.f32 0.0, %v5911
        %v5913 = vpop.f32.mrb[0].mxu0
        %5914 = vmatprep.mubr.f32.mxu0 0.0
        %5915 = vmatmul.mubr.f32.gmra.mrb[0].mxu0 %v5712
        %v5916 = vpop.f32.mrb[0].mxu0
        %v5917 = vadd.f32 0.0, %v5916
        %v5918 = vpop.f32.mrb[0].mxu0
        %5919 = vmatprep.mubr.f32.mxu0 0.0
        %5920 = vmatmul.mubr.f32.gmra.mrb[0].mxu0 %v5715
        %v5921 = vpop.f32.mrb[0].mxu0
        %v5922 = vadd.f32 0.0, %v5921
        %v5923 = vpop.f32.mrb[0].mxu0
        %5924 = vmatprep.mubr.f32.mxu0 0.0
        %5925 = vmatmul.mubr.f32.gmra.mrb[0].mxu0 %v5718
        %v5926 = vpop.f32.mrb[0].mxu0
        %v5927 = vadd.f32 0.0, %v5926
        %v5928 = vpop.f32.mrb[0].mxu0
        %5929 = vmatprep.mubr.f32.mxu0 0.0
        %5930 = vmatmul.mubr.f32.gmra.mrb[0].mxu0 %v5721
        %v5931 = vpop.f32.mrb[0].mxu0
        %v5932 = vadd.f32 0.0, %v5931
        %v5933 = vpop.f32.mrb[0].mxu0
        %5934 = vmatprep.mubr.f32.mxu0 0.0
        %5935 = vmatmul.mubr.f32.gmra.mrb[0].mxu0 %v5724
        %v5936 = vpop.f32.mrb[0].mxu0
        %v5937 = vadd.f32 0.0, %v5936
        %v5938 = vpop.f32.mrb[0].mxu0
        %5939 = vmatprep.mubr.f32.mxu0 0.0
        %5940 = vmatmul.mubr.f32.gmra.mrb[0].mxu0 %v5727
        %v5941 = vpop.f32.mrb[0].mxu0
        %v5942 = vadd.f32 0.0, %v5941
        %v5943 = vpop.f32.mrb[0].mxu0
        %5944 = vmatprep.mubr.f32.mxu0 0.0
        %5945 = vmatmul.mubr.f32.gmra.mrb[0].mxu0 %v5730
        %v5946 = vpop.f32.mrb[0].mxu0
        %v5947 = vadd.f32 0.0, %v5946
        %v5948 = vpop.f32.mrb[0].mxu0
        %5949 = vmatprep.mubr.f32.mxu0 0.0
        %5950 = vmatmul.mubr.f32.gmra.mrb[0].mxu0 %v5733
        %v5951 = vpop.f32.mrb[0].mxu0
        %v5952 = vadd.f32 0.0, %v5951
        %v5953 = vpop.f32.mrb[0].mxu0
        %5954 = vmatprep.mubr.f32.mxu0 0.0
        %5955 = vmatmul.mubr.f32.gmra.mrb[0].mxu0 %v5736
        %v5956 = vpop.f32.mrb[0].mxu0
        %v5957 = vadd.f32 0.0, %v5956
        %v5958 = vpop.f32.mrb[0].mxu0
        %5959 = vmatprep.mubr.f32.mxu0 0.0
        %5960 = vmatmul.mubr.f32.gmra.mrb[0].mxu0 %v5739
        %v5961 = vpop.f32.mrb[0].mxu0
        %v5962 = vadd.f32 0.0, %v5961
        %v5963 = vpop.f32.mrb[0].mxu0
        %5964 = vmatprep.mubr.f32.mxu0 0.0
        %5965 = vmatmul.mubr.f32.gmra.mrb[0].mxu0 %v5742
        %v5966 = vpop.f32.mrb[0].mxu0
        %v5967 = vadd.f32 0.0, %v5966
        %v5968 = vpop.f32.mrb[0].mxu0
        %5969 = vmatprep.mubr.f32.mxu0 0.0
        %5970 = vmatmul.mubr.f32.gmra.mrb[0].mxu0 %v5745
        %v5971 = vpop.f32.mrb[0].mxu0
        %v5972 = vadd.f32 0.0, %v5971
        %v5973 = vpop.f32.mrb[0].mxu0
        %5974 = vdwg.mxu0
        %v5975 = vadd.f32 %v5585, %v5817
        %v5976 = vadd.f32 %v5586, %v5822
        %v5977 = vadd.f32 %v5587, %v5827
        %v5978 = vadd.f32 %v5588, %v5832
        %v5979 = vadd.f32 %v5589, %v5837
        %v5980 = vadd.f32 %v5590, %v5842
        %v5981 = vadd.f32 %v5591, %v5847
        %v5982 = vadd.f32 %v5592, %v5852
        %v5983 = vadd.f32 %v5593, %v5857
        %v5984 = vadd.f32 %v5594, %v5862
        %v5985 = vadd.f32 %v5595, %v5867
        %v5986 = vadd.f32 %v5596, %v5872
        %v5987 = vadd.f32 %v5597, %v5877
        %v5988 = vadd.f32 %v5598, %v5882
        %v5989 = vadd.f32 %v5599, %v5887
        %v5990 = vadd.f32 %v5600, %v5892
        %v5991 = vadd.f32 %v5601, %v5897
        %v5992 = vadd.f32 %v5602, %v5902
        %v5993 = vadd.f32 %v5603, %v5907
        %v5994 = vadd.f32 %v5604, %v5912
        %v5995 = vadd.f32 %v5605, %v5917
        %v5996 = vadd.f32 %v5606, %v5922
        %v5997 = vadd.f32 %v5607, %v5927
        %v5998 = vadd.f32 %v5608, %v5932
        %v5999 = vadd.f32 %v5609, %v5937
        %v6000 = vadd.f32 %v5610, %v5942
        %v6001 = vadd.f32 %v5611, %v5947
        %v6002 = vadd.f32 %v5612, %v5952
        %v6003 = vadd.f32 %v5613, %v5957
        %v6004 = vadd.f32 %v5614, %v5962
        %v6005 = vadd.f32 %v5615, %v5967
        %v6006 = vadd.f32 %v5616, %v5972
        %s6007 = sadd.s32 %s211, 3
        %s6008 = smul.u32 %s6007, 40
        %s6009 = scalar_lea.vmem %s209, %s6008
        %v6010 = vld [vmem:[%s6009] sm:$0xff]
        %v6011 = vld [vmem:[%s6009 + $0x8] sm:$0xff]
        %v6012 = vld [vmem:[%s6009 + $0x10] sm:$0xff]
        %v6013 = vld [vmem:[%s6009 + $0x18] sm:$0xff]
        %v6014 = vld [vmem:[%s6009 + $0x28] sm:$0xff]
        %v6015 = vld [vmem:[%s6009 + $0x30] sm:$0xff]
        %v6016 = vld [vmem:[%s6009 + $0x38] sm:$0xff]
        %v6017 = vld [vmem:[%s6009 + $0x40] sm:$0xff]
        %v6018 = vld [vmem:[%s6009 + $0x50] sm:$0xff]
        %v6019 = vld [vmem:[%s6009 + $0x58] sm:$0xff]
        %v6020 = vld [vmem:[%s6009 + $0x60] sm:$0xff]
        %v6021 = vld [vmem:[%s6009 + $0x68] sm:$0xff]
        %v6022 = vld [vmem:[%s6009 + $0x78] sm:$0xff]
        %v6023 = vld [vmem:[%s6009 + $0x80] sm:$0xff]
        %v6024 = vld [vmem:[%s6009 + $0x88] sm:$0xff]
        %v6025 = vld [vmem:[%s6009 + $0x90] sm:$0xff]
        %v6026 = vld [vmem:[%s6009 + $0xa0] sm:$0xff]
        %v6027 = vld [vmem:[%s6009 + $0xa8] sm:$0xff]
        %v6028 = vld [vmem:[%s6009 + $0xb0] sm:$0xff]
        %v6029 = vld [vmem:[%s6009 + $0xb8] sm:$0xff]
        %v6030 = vld [vmem:[%s6009 + $0xc8] sm:$0xff]
        %v6031 = vld [vmem:[%s6009 + $0xd0] sm:$0xff]
        %v6032 = vld [vmem:[%s6009 + $0xd8] sm:$0xff]
        %v6033 = vld [vmem:[%s6009 + $0xe0] sm:$0xff]
        %v6034 = vld [vmem:[%s6009 + $0xf0] sm:$0xff]
        %v6035 = vld [vmem:[%s6009 + $0xf8] sm:$0xff]
        %v6036 = vld [vmem:[%s6009 + $0x100] sm:$0xff]
        %v6037 = vld [vmem:[%s6009 + $0x108] sm:$0xff]
        %v6038 = vld [vmem:[%s6009 + $0x118] sm:$0xff]
        %v6039 = vld [vmem:[%s6009 + $0x120] sm:$0xff]
        %v6040 = vld [vmem:[%s6009 + $0x128] sm:$0xff]
        %v6041 = vld [vmem:[%s6009 + $0x130] sm:$0xff]
        %s6042 = scalar_lea.vmem %s1, 30
        %v6043 = vld [vmem:[%s6042] sm:$0x3]
        %v6045 = vsel %vm281, %v6010, 0
        %v6048 = vsel %vm281, %v6011, 0
        %v6051 = vsel %vm281, %v6012, 0
        %v6054 = vsel %vm281, %v6013, 0
        %v6057 = vsel %vm281, %v6014, 0
        %v6060 = vsel %vm281, %v6015, 0
        %v6063 = vsel %vm281, %v6016, 0
        %v6066 = vsel %vm281, %v6017, 0
        %v6069 = vsel %vm281, %v6018, 0
        %v6072 = vsel %vm281, %v6019, 0
        %v6075 = vsel %vm281, %v6020, 0
        %v6078 = vsel %vm281, %v6021, 0
        %v6081 = vsel %vm281, %v6022, 0
        %v6084 = vsel %vm281, %v6023, 0
        %v6087 = vsel %vm281, %v6024, 0
        %v6090 = vsel %vm281, %v6025, 0
        %v6093 = vsel %vm281, %v6026, 0
        %v6096 = vsel %vm281, %v6027, 0
        %v6099 = vsel %vm281, %v6028, 0
        %v6102 = vsel %vm281, %v6029, 0
        %v6105 = vsel %vm281, %v6030, 0
        %v6108 = vsel %vm281, %v6031, 0
        %v6111 = vsel %vm281, %v6032, 0
        %v6114 = vsel %vm281, %v6033, 0
        %v6117 = vsel %vm281, %v6034, 0
        %v6120 = vsel %vm281, %v6035, 0
        %v6123 = vsel %vm281, %v6036, 0
        %v6126 = vsel %vm281, %v6037, 0
        %v6129 = vsel %vm281, %v6038, 0
        %v6132 = vsel %vm281, %v6039, 0
        %v6135 = vsel %vm281, %v6040, 0
        %v6138 = vsel %vm281, %v6041, 0
        %v6141 = vsel %vm378, %v6043, 0
        %6143 = vmatprep.subr.mxu0 0.0
        %6144 = vmatpush1.msra.mxu0 %v6141
        %6145 = vmatprep.subr.mxu0 0.0
        %6146 = vmatpush1.msra.mxu0 0.0
        %6147 = vmatprep.subr.mxu0 0.0
        %6148 = vmatpush1.msra.mxu0 0.0
        %6149 = vmatprep.subr.mxu0 0.0
        %6150 = vmatpush1.msra.mxu0 0.0
        %6151 = vmatprep.subr.mxu0 0.0
        %6152 = vmatpush1.msra.mxu0 0.0
        %6153 = vmatprep.subr.mxu0 0.0
        %6154 = vmatpush1.msra.mxu0 0.0
        %6155 = vmatprep.subr.mxu0 0.0
        %6156 = vmatpush1.msra.mxu0 0.0
        %6157 = vmatprep.subr.mxu0 0.0
        %6158 = vmatpush1.msra.mxu0 0.0
        %6159 = vmatprep.subr.mxu0 0.0
        %6160 = vmatpush1.msra.mxu0 0.0
        %6161 = vmatprep.subr.mxu0 0.0
        %6162 = vmatpush1.msra.mxu0 0.0
        %6163 = vmatprep.subr.mxu0 0.0
        %6164 = vmatpush1.msra.mxu0 0.0
        %6165 = vmatprep.subr.mxu0 0.0
        %6166 = vmatpush1.msra.mxu0 0.0
        %6167 = vmatprep.subr.mxu0 0.0
        %6168 = vmatpush1.msra.mxu0 0.0
        %6169 = vmatprep.subr.mxu0 0.0
        %6170 = vmatpush1.msra.mxu0 0.0
        %6171 = vmatprep.subr.mxu0 0.0
        %6172 = vmatpush1.msra.mxu0 0.0
        %6173 = vmatprep.subr.mxu0 0.0
        %6174 = vmatpush1.msra.mxu0 0.0
        %6175 = vmatprep.subr.mxu0 0.0
        %6176 = vmatpush1.msra.mxu0 0.0
        %6177 = vmatprep.subr.mxu0 0.0
        %6178 = vmatpush1.msra.mxu0 0.0
        %6179 = vmatprep.subr.mxu0 0.0
        %6180 = vmatpush1.msra.mxu0 0.0
        %6181 = vmatprep.subr.mxu0 0.0
        %6182 = vmatpush1.msra.mxu0 0.0
        %6183 = vmatprep.subr.mxu0 0.0
        %6184 = vmatpush1.msra.mxu0 0.0
        %6185 = vmatprep.subr.mxu0 0.0
        %6186 = vmatpush1.msra.mxu0 0.0
        %6187 = vmatprep.subr.mxu0 0.0
        %6188 = vmatpush1.msra.mxu0 0.0
        %6189 = vmatprep.subr.mxu0 0.0
        %6190 = vmatpush1.msra.mxu0 0.0
        %6191 = vmatprep.subr.mxu0 0.0
        %6192 = vmatpush1.msra.mxu0 0.0
        %6193 = vmatprep.subr.mxu0 0.0
        %6194 = vmatpush1.msra.mxu0 0.0
        %6195 = vmatprep.subr.mxu0 0.0
        %6196 = vmatpush1.msra.mxu0 0.0
        %6197 = vmatprep.subr.mxu0 0.0
        %6198 = vmatpush1.msra.mxu0 0.0
        %6199 = vmatprep.subr.mxu0 0.0
        %6200 = vmatpush1.msra.mxu0 0.0
        %6201 = vmatprep.subr.mxu0 0.0
        %6202 = vmatpush1.msra.mxu0 0.0
        %6203 = vmatprep.subr.mxu0 0.0
        %6204 = vmatpush1.msra.mxu0 0.0
        %6205 = vmatprep.subr.mxu0 0.0
        %6206 = vmatpush1.msra.mxu0 0.0
        %6207 = vmatprep.mubr.f32.mxu0 0.0
        %6208 = vmatmul.mubr.f32.gmra.mrb[0].mxu0 %v6045
        %v6209 = vpop.f32.mrb[0].mxu0
        %v6210 = vadd.f32 0.0, %v6209
        %v6211 = vpop.f32.mrb[0].mxu0
        %6212 = vmatprep.mubr.f32.mxu0 0.0
        %6213 = vmatmul.mubr.f32.gmra.mrb[0].mxu0 %v6048
        %v6214 = vpop.f32.mrb[0].mxu0
        %v6215 = vadd.f32 0.0, %v6214
        %v6216 = vpop.f32.mrb[0].mxu0
        %6217 = vmatprep.mubr.f32.mxu0 0.0
        %6218 = vmatmul.mubr.f32.gmra.mrb[0].mxu0 %v6051
        %v6219 = vpop.f32.mrb[0].mxu0
        %v6220 = vadd.f32 0.0, %v6219
        %v6221 = vpop.f32.mrb[0].mxu0
        %6222 = vmatprep.mubr.f32.mxu0 0.0
        %6223 = vmatmul.mubr.f32.gmra.mrb[0].mxu0 %v6054
        %v6224 = vpop.f32.mrb[0].mxu0
        %v6225 = vadd.f32 0.0, %v6224
        %v6226 = vpop.f32.mrb[0].mxu0
        %6227 = vmatprep.mubr.f32.mxu0 0.0
        %6228 = vmatmul.mubr.f32.gmra.mrb[0].mxu0 %v6057
        %v6229 = vpop.f32.mrb[0].mxu0
        %v6230 = vadd.f32 0.0, %v6229
        %v6231 = vpop.f32.mrb[0].mxu0
        %6232 = vmatprep.mubr.f32.mxu0 0.0
        %6233 = vmatmul.mubr.f32.gmra.mrb[0].mxu0 %v6060
        %v6234 = vpop.f32.mrb[0].mxu0
        %v6235 = vadd.f32 0.0, %v6234
        %v6236 = vpop.f32.mrb[0].mxu0
        %6237 = vmatprep.mubr.f32.mxu0 0.0
        %6238 = vmatmul.mubr.f32.gmra.mrb[0].mxu0 %v6063
        %v6239 = vpop.f32.mrb[0].mxu0
        %v6240 = vadd.f32 0.0, %v6239
        %v6241 = vpop.f32.mrb[0].mxu0
        %6242 = vmatprep.mubr.f32.mxu0 0.0
        %6243 = vmatmul.mubr.f32.gmra.mrb[0].mxu0 %v6066
        %v6244 = vpop.f32.mrb[0].mxu0
        %v6245 = vadd.f32 0.0, %v6244
        %v6246 = vpop.f32.mrb[0].mxu0
        %6247 = vmatprep.mubr.f32.mxu0 0.0
        %6248 = vmatmul.mubr.f32.gmra.mrb[0].mxu0 %v6069
        %v6249 = vpop.f32.mrb[0].mxu0
        %v6250 = vadd.f32 0.0, %v6249
        %v6251 = vpop.f32.mrb[0].mxu0
        %6252 = vmatprep.mubr.f32.mxu0 0.0
        %6253 = vmatmul.mubr.f32.gmra.mrb[0].mxu0 %v6072
        %v6254 = vpop.f32.mrb[0].mxu0
        %v6255 = vadd.f32 0.0, %v6254
        %v6256 = vpop.f32.mrb[0].mxu0
        %6257 = vmatprep.mubr.f32.mxu0 0.0
        %6258 = vmatmul.mubr.f32.gmra.mrb[0].mxu0 %v6075
        %v6259 = vpop.f32.mrb[0].mxu0
        %v6260 = vadd.f32 0.0, %v6259
        %v6261 = vpop.f32.mrb[0].mxu0
        %6262 = vmatprep.mubr.f32.mxu0 0.0
        %6263 = vmatmul.mubr.f32.gmra.mrb[0].mxu0 %v6078
        %v6264 = vpop.f32.mrb[0].mxu0
        %v6265 = vadd.f32 0.0, %v6264
        %v6266 = vpop.f32.mrb[0].mxu0
        %6267 = vmatprep.mubr.f32.mxu0 0.0
        %6268 = vmatmul.mubr.f32.gmra.mrb[0].mxu0 %v6081
        %v6269 = vpop.f32.mrb[0].mxu0
        %v6270 = vadd.f32 0.0, %v6269
        %v6271 = vpop.f32.mrb[0].mxu0
        %6272 = vmatprep.mubr.f32.mxu0 0.0
        %6273 = vmatmul.mubr.f32.gmra.mrb[0].mxu0 %v6084
        %v6274 = vpop.f32.mrb[0].mxu0
        %v6275 = vadd.f32 0.0, %v6274
        %v6276 = vpop.f32.mrb[0].mxu0
        %6277 = vmatprep.mubr.f32.mxu0 0.0
        %6278 = vmatmul.mubr.f32.gmra.mrb[0].mxu0 %v6087
        %v6279 = vpop.f32.mrb[0].mxu0
        %v6280 = vadd.f32 0.0, %v6279
        %v6281 = vpop.f32.mrb[0].mxu0
        %6282 = vmatprep.mubr.f32.mxu0 0.0
        %6283 = vmatmul.mubr.f32.gmra.mrb[0].mxu0 %v6090
        %v6284 = vpop.f32.mrb[0].mxu0
        %v6285 = vadd.f32 0.0, %v6284
        %v6286 = vpop.f32.mrb[0].mxu0
        %6287 = vmatprep.mubr.f32.mxu0 0.0
        %6288 = vmatmul.mubr.f32.gmra.mrb[0].mxu0 %v6093
        %v6289 = vpop.f32.mrb[0].mxu0
        %v6290 = vadd.f32 0.0, %v6289
        %v6291 = vpop.f32.mrb[0].mxu0
        %6292 = vmatprep.mubr.f32.mxu0 0.0
        %6293 = vmatmul.mubr.f32.gmra.mrb[0].mxu0 %v6096
        %v6294 = vpop.f32.mrb[0].mxu0
        %v6295 = vadd.f32 0.0, %v6294
        %v6296 = vpop.f32.mrb[0].mxu0
        %6297 = vmatprep.mubr.f32.mxu0 0.0
        %6298 = vmatmul.mubr.f32.gmra.mrb[0].mxu0 %v6099
        %v6299 = vpop.f32.mrb[0].mxu0
        %v6300 = vadd.f32 0.0, %v6299
        %v6301 = vpop.f32.mrb[0].mxu0
        %6302 = vmatprep.mubr.f32.mxu0 0.0
        %6303 = vmatmul.mubr.f32.gmra.mrb[0].mxu0 %v6102
        %v6304 = vpop.f32.mrb[0].mxu0
        %v6305 = vadd.f32 0.0, %v6304
        %v6306 = vpop.f32.mrb[0].mxu0
        %6307 = vmatprep.mubr.f32.mxu0 0.0
        %6308 = vmatmul.mubr.f32.gmra.mrb[0].mxu0 %v6105
        %v6309 = vpop.f32.mrb[0].mxu0
        %v6310 = vadd.f32 0.0, %v6309
        %v6311 = vpop.f32.mrb[0].mxu0
        %6312 = vmatprep.mubr.f32.mxu0 0.0
        %6313 = vmatmul.mubr.f32.gmra.mrb[0].mxu0 %v6108
        %v6314 = vpop.f32.mrb[0].mxu0
        %v6315 = vadd.f32 0.0, %v6314
        %v6316 = vpop.f32.mrb[0].mxu0
        %6317 = vmatprep.mubr.f32.mxu0 0.0
        %6318 = vmatmul.mubr.f32.gmra.mrb[0].mxu0 %v6111
        %v6319 = vpop.f32.mrb[0].mxu0
        %v6320 = vadd.f32 0.0, %v6319
        %v6321 = vpop.f32.mrb[0].mxu0
        %6322 = vmatprep.mubr.f32.mxu0 0.0
        %6323 = vmatmul.mubr.f32.gmra.mrb[0].mxu0 %v6114
        %v6324 = vpop.f32.mrb[0].mxu0
        %v6325 = vadd.f32 0.0, %v6324
        %v6326 = vpop.f32.mrb[0].mxu0
        %6327 = vmatprep.mubr.f32.mxu0 0.0
        %6328 = vmatmul.mubr.f32.gmra.mrb[0].mxu0 %v6117
        %v6329 = vpop.f32.mrb[0].mxu0
        %v6330 = vadd.f32 0.0, %v6329
        %v6331 = vpop.f32.mrb[0].mxu0
        %6332 = vmatprep.mubr.f32.mxu0 0.0
        %6333 = vmatmul.mubr.f32.gmra.mrb[0].mxu0 %v6120
        %v6334 = vpop.f32.mrb[0].mxu0
        %v6335 = vadd.f32 0.0, %v6334
        %v6336 = vpop.f32.mrb[0].mxu0
        %6337 = vmatprep.mubr.f32.mxu0 0.0
        %6338 = vmatmul.mubr.f32.gmra.mrb[0].mxu0 %v6123
        %v6339 = vpop.f32.mrb[0].mxu0
        %v6340 = vadd.f32 0.0, %v6339
        %v6341 = vpop.f32.mrb[0].mxu0
        %6342 = vmatprep.mubr.f32.mxu0 0.0
        %6343 = vmatmul.mubr.f32.gmra.mrb[0].mxu0 %v6126
        %v6344 = vpop.f32.mrb[0].mxu0
        %v6345 = vadd.f32 0.0, %v6344
        %v6346 = vpop.f32.mrb[0].mxu0
        %6347 = vmatprep.mubr.f32.mxu0 0.0
        %6348 = vmatmul.mubr.f32.gmra.mrb[0].mxu0 %v6129
        %v6349 = vpop.f32.mrb[0].mxu0
        %v6350 = vadd.f32 0.0, %v6349
        %v6351 = vpop.f32.mrb[0].mxu0
        %6352 = vmatprep.mubr.f32.mxu0 0.0
        %6353 = vmatmul.mubr.f32.gmra.mrb[0].mxu0 %v6132
        %v6354 = vpop.f32.mrb[0].mxu0
        %v6355 = vadd.f32 0.0, %v6354
        %v6356 = vpop.f32.mrb[0].mxu0
        %6357 = vmatprep.mubr.f32.mxu0 0.0
        %6358 = vmatmul.mubr.f32.gmra.mrb[0].mxu0 %v6135
        %v6359 = vpop.f32.mrb[0].mxu0
        %v6360 = vadd.f32 0.0, %v6359
        %v6361 = vpop.f32.mrb[0].mxu0
        %6362 = vmatprep.mubr.f32.mxu0 0.0
        %6363 = vmatmul.mubr.f32.gmra.mrb[0].mxu0 %v6138
        %v6364 = vpop.f32.mrb[0].mxu0
        %v6365 = vadd.f32 0.0, %v6364
        %v6366 = vpop.f32.mrb[0].mxu0
        %6367 = vdwg.mxu0
        %v6368 = vadd.f32 %v5975, %v6210
        %v6369 = vadd.f32 %v5976, %v6215
        %v6370 = vadd.f32 %v5977, %v6220
        %v6371 = vadd.f32 %v5978, %v6225
        %v6372 = vadd.f32 %v5979, %v6230
        %v6373 = vadd.f32 %v5980, %v6235
        %v6374 = vadd.f32 %v5981, %v6240
        %v6375 = vadd.f32 %v5982, %v6245
        %v6376 = vadd.f32 %v5983, %v6250
        %v6377 = vadd.f32 %v5984, %v6255
        %v6378 = vadd.f32 %v5985, %v6260
        %v6379 = vadd.f32 %v5986, %v6265
        %v6380 = vadd.f32 %v5987, %v6270
        %v6381 = vadd.f32 %v5988, %v6275
        %v6382 = vadd.f32 %v5989, %v6280
        %v6383 = vadd.f32 %v5990, %v6285
        %v6384 = vadd.f32 %v5991, %v6290
        %v6385 = vadd.f32 %v5992, %v6295
        %v6386 = vadd.f32 %v5993, %v6300
        %v6387 = vadd.f32 %v5994, %v6305
        %v6388 = vadd.f32 %v5995, %v6310
        %v6389 = vadd.f32 %v5996, %v6315
        %v6390 = vadd.f32 %v5997, %v6320
        %v6391 = vadd.f32 %v5998, %v6325
        %v6392 = vadd.f32 %v5999, %v6330
        %v6393 = vadd.f32 %v6000, %v6335
        %v6394 = vadd.f32 %v6001, %v6340
        %v6395 = vadd.f32 %v6002, %v6345
        %v6396 = vadd.f32 %v6003, %v6350
        %v6397 = vadd.f32 %v6004, %v6355
        %v6398 = vadd.f32 %v6005, %v6360
        %v6399 = vadd.f32 %v6006, %v6365
        %v6400 = vld [vmem:[%s6009 + $0x1] sm:$0xff]
        %v6401 = vld [vmem:[%s6009 + $0x9] sm:$0xff]
        %v6402 = vld [vmem:[%s6009 + $0x11] sm:$0xff]
        %v6403 = vld [vmem:[%s6009 + $0x19] sm:$0xff]
        %v6404 = vld [vmem:[%s6009 + $0x29] sm:$0xff]
        %v6405 = vld [vmem:[%s6009 + $0x31] sm:$0xff]
        %v6406 = vld [vmem:[%s6009 + $0x39] sm:$0xff]
        %v6407 = vld [vmem:[%s6009 + $0x41] sm:$0xff]
        %v6408 = vld [vmem:[%s6009 + $0x51] sm:$0xff]
        %v6409 = vld [vmem:[%s6009 + $0x59] sm:$0xff]
        %v6410 = vld [vmem:[%s6009 + $0x61] sm:$0xff]
        %v6411 = vld [vmem:[%s6009 + $0x69] sm:$0xff]
        %v6412 = vld [vmem:[%s6009 + $0x79] sm:$0xff]
        %v6413 = vld [vmem:[%s6009 + $0x81] sm:$0xff]
        %v6414 = vld [vmem:[%s6009 + $0x89] sm:$0xff]
        %v6415 = vld [vmem:[%s6009 + $0x91] sm:$0xff]
        %v6416 = vld [vmem:[%s6009 + $0xa1] sm:$0xff]
        %v6417 = vld [vmem:[%s6009 + $0xa9] sm:$0xff]
        %v6418 = vld [vmem:[%s6009 + $0xb1] sm:$0xff]
        %v6419 = vld [vmem:[%s6009 + $0xb9] sm:$0xff]
        %v6420 = vld [vmem:[%s6009 + $0xc9] sm:$0xff]
        %v6421 = vld [vmem:[%s6009 + $0xd1] sm:$0xff]
        %v6422 = vld [vmem:[%s6009 + $0xd9] sm:$0xff]
        %v6423 = vld [vmem:[%s6009 + $0xe1] sm:$0xff]
        %v6424 = vld [vmem:[%s6009 + $0xf1] sm:$0xff]
        %v6425 = vld [vmem:[%s6009 + $0xf9] sm:$0xff]
        %v6426 = vld [vmem:[%s6009 + $0x101] sm:$0xff]
        %v6427 = vld [vmem:[%s6009 + $0x109] sm:$0xff]
        %v6428 = vld [vmem:[%s6009 + $0x119] sm:$0xff]
        %v6429 = vld [vmem:[%s6009 + $0x121] sm:$0xff]
        %v6430 = vld [vmem:[%s6009 + $0x129] sm:$0xff]
        %v6431 = vld [vmem:[%s6009 + $0x131] sm:$0xff]
        %s6432 = scalar_lea.vmem %s1, 32
        %v6433 = vld [vmem:[%s6432] sm:$0x3]
        %v6435 = vsel %vm281, %v6400, 0
        %v6438 = vsel %vm281, %v6401, 0
        %v6441 = vsel %vm281, %v6402, 0
        %v6444 = vsel %vm281, %v6403, 0
        %v6447 = vsel %vm281, %v6404, 0
        %v6450 = vsel %vm281, %v6405, 0
        %v6453 = vsel %vm281, %v6406, 0
        %v6456 = vsel %vm281, %v6407, 0
        %v6459 = vsel %vm281, %v6408, 0
        %v6462 = vsel %vm281, %v6409, 0
        %v6465 = vsel %vm281, %v6410, 0
        %v6468 = vsel %vm281, %v6411, 0
        %v6471 = vsel %vm281, %v6412, 0
        %v6474 = vsel %vm281, %v6413, 0
        %v6477 = vsel %vm281, %v6414, 0
        %v6480 = vsel %vm281, %v6415, 0
        %v6483 = vsel %vm281, %v6416, 0
        %v6486 = vsel %vm281, %v6417, 0
        %v6489 = vsel %vm281, %v6418, 0
        %v6492 = vsel %vm281, %v6419, 0
        %v6495 = vsel %vm281, %v6420, 0
        %v6498 = vsel %vm281, %v6421, 0
        %v6501 = vsel %vm281, %v6422, 0
        %v6504 = vsel %vm281, %v6423, 0
        %v6507 = vsel %vm281, %v6424, 0
        %v6510 = vsel %vm281, %v6425, 0
        %v6513 = vsel %vm281, %v6426, 0
        %v6516 = vsel %vm281, %v6427, 0
        %v6519 = vsel %vm281, %v6428, 0
        %v6522 = vsel %vm281, %v6429, 0
        %v6525 = vsel %vm281, %v6430, 0
        %v6528 = vsel %vm281, %v6431, 0
        %v6531 = vsel %vm378, %v6433, 0
        %6533 = vmatprep.subr.mxu0 0.0
        %6534 = vmatpush1.msra.mxu0 %v6531
        %6535 = vmatprep.subr.mxu0 0.0
        %6536 = vmatpush1.msra.mxu0 0.0
        %6537 = vmatprep.subr.mxu0 0.0
        %6538 = vmatpush1.msra.mxu0 0.0
        %6539 = vmatprep.subr.mxu0 0.0
        %6540 = vmatpush1.msra.mxu0 0.0
        %6541 = vmatprep.subr.mxu0 0.0
        %6542 = vmatpush1.msra.mxu0 0.0
        %6543 = vmatprep.subr.mxu0 0.0
        %6544 = vmatpush1.msra.mxu0 0.0
        %6545 = vmatprep.subr.mxu0 0.0
        %6546 = vmatpush1.msra.mxu0 0.0
        %6547 = vmatprep.subr.mxu0 0.0
        %6548 = vmatpush1.msra.mxu0 0.0
        %6549 = vmatprep.subr.mxu0 0.0
        %6550 = vmatpush1.msra.mxu0 0.0
        %6551 = vmatprep.subr.mxu0 0.0
        %6552 = vmatpush1.msra.mxu0 0.0
        %6553 = vmatprep.subr.mxu0 0.0
        %6554 = vmatpush1.msra.mxu0 0.0
        %6555 = vmatprep.subr.mxu0 0.0
        %6556 = vmatpush1.msra.mxu0 0.0
        %6557 = vmatprep.subr.mxu0 0.0
        %6558 = vmatpush1.msra.mxu0 0.0
        %6559 = vmatprep.subr.mxu0 0.0
        %6560 = vmatpush1.msra.mxu0 0.0
        %6561 = vmatprep.subr.mxu0 0.0
        %6562 = vmatpush1.msra.mxu0 0.0
        %6563 = vmatprep.subr.mxu0 0.0
        %6564 = vmatpush1.msra.mxu0 0.0
        %6565 = vmatprep.subr.mxu0 0.0
        %6566 = vmatpush1.msra.mxu0 0.0
        %6567 = vmatprep.subr.mxu0 0.0
        %6568 = vmatpush1.msra.mxu0 0.0
        %6569 = vmatprep.subr.mxu0 0.0
        %6570 = vmatpush1.msra.mxu0 0.0
        %6571 = vmatprep.subr.mxu0 0.0
        %6572 = vmatpush1.msra.mxu0 0.0
        %6573 = vmatprep.subr.mxu0 0.0
        %6574 = vmatpush1.msra.mxu0 0.0
        %6575 = vmatprep.subr.mxu0 0.0
        %6576 = vmatpush1.msra.mxu0 0.0
        %6577 = vmatprep.subr.mxu0 0.0
        %6578 = vmatpush1.msra.mxu0 0.0
        %6579 = vmatprep.subr.mxu0 0.0
        %6580 = vmatpush1.msra.mxu0 0.0
        %6581 = vmatprep.subr.mxu0 0.0
        %6582 = vmatpush1.msra.mxu0 0.0
        %6583 = vmatprep.subr.mxu0 0.0
        %6584 = vmatpush1.msra.mxu0 0.0
        %6585 = vmatprep.subr.mxu0 0.0
        %6586 = vmatpush1.msra.mxu0 0.0
        %6587 = vmatprep.subr.mxu0 0.0
        %6588 = vmatpush1.msra.mxu0 0.0
        %6589 = vmatprep.subr.mxu0 0.0
        %6590 = vmatpush1.msra.mxu0 0.0
        %6591 = vmatprep.subr.mxu0 0.0
        %6592 = vmatpush1.msra.mxu0 0.0
        %6593 = vmatprep.subr.mxu0 0.0
        %6594 = vmatpush1.msra.mxu0 0.0
        %6595 = vmatprep.subr.mxu0 0.0
        %6596 = vmatpush1.msra.mxu0 0.0
        %6597 = vmatprep.mubr.f32.mxu0 0.0
        %6598 = vmatmul.mubr.f32.gmra.mrb[0].mxu0 %v6435
        %v6599 = vpop.f32.mrb[0].mxu0
        %v6600 = vadd.f32 0.0, %v6599
        %v6601 = vpop.f32.mrb[0].mxu0
        %6602 = vmatprep.mubr.f32.mxu0 0.0
        %6603 = vmatmul.mubr.f32.gmra.mrb[0].mxu0 %v6438
        %v6604 = vpop.f32.mrb[0].mxu0
        %v6605 = vadd.f32 0.0, %v6604
        %v6606 = vpop.f32.mrb[0].mxu0
        %6607 = vmatprep.mubr.f32.mxu0 0.0
        %6608 = vmatmul.mubr.f32.gmra.mrb[0].mxu0 %v6441
        %v6609 = vpop.f32.mrb[0].mxu0
        %v6610 = vadd.f32 0.0, %v6609
        %v6611 = vpop.f32.mrb[0].mxu0
        %6612 = vmatprep.mubr.f32.mxu0 0.0
        %6613 = vmatmul.mubr.f32.gmra.mrb[0].mxu0 %v6444
        %v6614 = vpop.f32.mrb[0].mxu0
        %v6615 = vadd.f32 0.0, %v6614
        %v6616 = vpop.f32.mrb[0].mxu0
        %6617 = vmatprep.mubr.f32.mxu0 0.0
        %6618 = vmatmul.mubr.f32.gmra.mrb[0].mxu0 %v6447
        %v6619 = vpop.f32.mrb[0].mxu0
        %v6620 = vadd.f32 0.0, %v6619
        %v6621 = vpop.f32.mrb[0].mxu0
        %6622 = vmatprep.mubr.f32.mxu0 0.0
        %6623 = vmatmul.mubr.f32.gmra.mrb[0].mxu0 %v6450
        %v6624 = vpop.f32.mrb[0].mxu0
        %v6625 = vadd.f32 0.0, %v6624
        %v6626 = vpop.f32.mrb[0].mxu0
        %6627 = vmatprep.mubr.f32.mxu0 0.0
        %6628 = vmatmul.mubr.f32.gmra.mrb[0].mxu0 %v6453
        %v6629 = vpop.f32.mrb[0].mxu0
        %v6630 = vadd.f32 0.0, %v6629
        %v6631 = vpop.f32.mrb[0].mxu0
        %6632 = vmatprep.mubr.f32.mxu0 0.0
        %6633 = vmatmul.mubr.f32.gmra.mrb[0].mxu0 %v6456
        %v6634 = vpop.f32.mrb[0].mxu0
        %v6635 = vadd.f32 0.0, %v6634
        %v6636 = vpop.f32.mrb[0].mxu0
        %6637 = vmatprep.mubr.f32.mxu0 0.0
        %6638 = vmatmul.mubr.f32.gmra.mrb[0].mxu0 %v6459
        %v6639 = vpop.f32.mrb[0].mxu0
        %v6640 = vadd.f32 0.0, %v6639
        %v6641 = vpop.f32.mrb[0].mxu0
        %6642 = vmatprep.mubr.f32.mxu0 0.0
        %6643 = vmatmul.mubr.f32.gmra.mrb[0].mxu0 %v6462
        %v6644 = vpop.f32.mrb[0].mxu0
        %v6645 = vadd.f32 0.0, %v6644
        %v6646 = vpop.f32.mrb[0].mxu0
        %6647 = vmatprep.mubr.f32.mxu0 0.0
        %6648 = vmatmul.mubr.f32.gmra.mrb[0].mxu0 %v6465
        %v6649 = vpop.f32.mrb[0].mxu0
        %v6650 = vadd.f32 0.0, %v6649
        %v6651 = vpop.f32.mrb[0].mxu0
        %6652 = vmatprep.mubr.f32.mxu0 0.0
        %6653 = vmatmul.mubr.f32.gmra.mrb[0].mxu0 %v6468
        %v6654 = vpop.f32.mrb[0].mxu0
        %v6655 = vadd.f32 0.0, %v6654
        %v6656 = vpop.f32.mrb[0].mxu0
        %6657 = vmatprep.mubr.f32.mxu0 0.0
        %6658 = vmatmul.mubr.f32.gmra.mrb[0].mxu0 %v6471
        %v6659 = vpop.f32.mrb[0].mxu0
        %v6660 = vadd.f32 0.0, %v6659
        %v6661 = vpop.f32.mrb[0].mxu0
        %6662 = vmatprep.mubr.f32.mxu0 0.0
        %6663 = vmatmul.mubr.f32.gmra.mrb[0].mxu0 %v6474
        %v6664 = vpop.f32.mrb[0].mxu0
        %v6665 = vadd.f32 0.0, %v6664
        %v6666 = vpop.f32.mrb[0].mxu0
        %6667 = vmatprep.mubr.f32.mxu0 0.0
        %6668 = vmatmul.mubr.f32.gmra.mrb[0].mxu0 %v6477
        %v6669 = vpop.f32.mrb[0].mxu0
        %v6670 = vadd.f32 0.0, %v6669
        %v6671 = vpop.f32.mrb[0].mxu0
        %6672 = vmatprep.mubr.f32.mxu0 0.0
        %6673 = vmatmul.mubr.f32.gmra.mrb[0].mxu0 %v6480
        %v6674 = vpop.f32.mrb[0].mxu0
        %v6675 = vadd.f32 0.0, %v6674
        %v6676 = vpop.f32.mrb[0].mxu0
        %6677 = vmatprep.mubr.f32.mxu0 0.0
        %6678 = vmatmul.mubr.f32.gmra.mrb[0].mxu0 %v6483
        %v6679 = vpop.f32.mrb[0].mxu0
        %v6680 = vadd.f32 0.0, %v6679
        %v6681 = vpop.f32.mrb[0].mxu0
        %6682 = vmatprep.mubr.f32.mxu0 0.0
        %6683 = vmatmul.mubr.f32.gmra.mrb[0].mxu0 %v6486
        %v6684 = vpop.f32.mrb[0].mxu0
        %v6685 = vadd.f32 0.0, %v6684
        %v6686 = vpop.f32.mrb[0].mxu0
        %6687 = vmatprep.mubr.f32.mxu0 0.0
        %6688 = vmatmul.mubr.f32.gmra.mrb[0].mxu0 %v6489
        %v6689 = vpop.f32.mrb[0].mxu0
        %v6690 = vadd.f32 0.0, %v6689
        %v6691 = vpop.f32.mrb[0].mxu0
        %6692 = vmatprep.mubr.f32.mxu0 0.0
        %6693 = vmatmul.mubr.f32.gmra.mrb[0].mxu0 %v6492
        %v6694 = vpop.f32.mrb[0].mxu0
        %v6695 = vadd.f32 0.0, %v6694
        %v6696 = vpop.f32.mrb[0].mxu0
        %6697 = vmatprep.mubr.f32.mxu0 0.0
        %6698 = vmatmul.mubr.f32.gmra.mrb[0].mxu0 %v6495
        %v6699 = vpop.f32.mrb[0].mxu0
        %v6700 = vadd.f32 0.0, %v6699
        %v6701 = vpop.f32.mrb[0].mxu0
        %6702 = vmatprep.mubr.f32.mxu0 0.0
        %6703 = vmatmul.mubr.f32.gmra.mrb[0].mxu0 %v6498
        %v6704 = vpop.f32.mrb[0].mxu0
        %v6705 = vadd.f32 0.0, %v6704
        %v6706 = vpop.f32.mrb[0].mxu0
        %6707 = vmatprep.mubr.f32.mxu0 0.0
        %6708 = vmatmul.mubr.f32.gmra.mrb[0].mxu0 %v6501
        %v6709 = vpop.f32.mrb[0].mxu0
        %v6710 = vadd.f32 0.0, %v6709
        %v6711 = vpop.f32.mrb[0].mxu0
        %6712 = vmatprep.mubr.f32.mxu0 0.0
        %6713 = vmatmul.mubr.f32.gmra.mrb[0].mxu0 %v6504
        %v6714 = vpop.f32.mrb[0].mxu0
        %v6715 = vadd.f32 0.0, %v6714
        %v6716 = vpop.f32.mrb[0].mxu0
        %6717 = vmatprep.mubr.f32.mxu0 0.0
        %6718 = vmatmul.mubr.f32.gmra.mrb[0].mxu0 %v6507
        %v6719 = vpop.f32.mrb[0].mxu0
        %v6720 = vadd.f32 0.0, %v6719
        %v6721 = vpop.f32.mrb[0].mxu0
        %6722 = vmatprep.mubr.f32.mxu0 0.0
        %6723 = vmatmul.mubr.f32.gmra.mrb[0].mxu0 %v6510
        %v6724 = vpop.f32.mrb[0].mxu0
        %v6725 = vadd.f32 0.0, %v6724
        %v6726 = vpop.f32.mrb[0].mxu0
        %6727 = vmatprep.mubr.f32.mxu0 0.0
        %6728 = vmatmul.mubr.f32.gmra.mrb[0].mxu0 %v6513
        %v6729 = vpop.f32.mrb[0].mxu0
        %v6730 = vadd.f32 0.0, %v6729
        %v6731 = vpop.f32.mrb[0].mxu0
        %6732 = vmatprep.mubr.f32.mxu0 0.0
        %6733 = vmatmul.mubr.f32.gmra.mrb[0].mxu0 %v6516
        %v6734 = vpop.f32.mrb[0].mxu0
        %v6735 = vadd.f32 0.0, %v6734
        %v6736 = vpop.f32.mrb[0].mxu0
        %6737 = vmatprep.mubr.f32.mxu0 0.0
        %6738 = vmatmul.mubr.f32.gmra.mrb[0].mxu0 %v6519
        %v6739 = vpop.f32.mrb[0].mxu0
        %v6740 = vadd.f32 0.0, %v6739
        %v6741 = vpop.f32.mrb[0].mxu0
        %6742 = vmatprep.mubr.f32.mxu0 0.0
        %6743 = vmatmul.mubr.f32.gmra.mrb[0].mxu0 %v6522
        %v6744 = vpop.f32.mrb[0].mxu0
        %v6745 = vadd.f32 0.0, %v6744
        %v6746 = vpop.f32.mrb[0].mxu0
        %6747 = vmatprep.mubr.f32.mxu0 0.0
        %6748 = vmatmul.mubr.f32.gmra.mrb[0].mxu0 %v6525
        %v6749 = vpop.f32.mrb[0].mxu0
        %v6750 = vadd.f32 0.0, %v6749
        %v6751 = vpop.f32.mrb[0].mxu0
        %6752 = vmatprep.mubr.f32.mxu0 0.0
        %6753 = vmatmul.mubr.f32.gmra.mrb[0].mxu0 %v6528
        %v6754 = vpop.f32.mrb[0].mxu0
        %v6755 = vadd.f32 0.0, %v6754
        %v6756 = vpop.f32.mrb[0].mxu0
        %6757 = vdwg.mxu0
        %v6758 = vadd.f32 %v6368, %v6600
        %v6759 = vadd.f32 %v6369, %v6605
        %v6760 = vadd.f32 %v6370, %v6610
        %v6761 = vadd.f32 %v6371, %v6615
        %v6762 = vadd.f32 %v6372, %v6620
        %v6763 = vadd.f32 %v6373, %v6625
        %v6764 = vadd.f32 %v6374, %v6630
        %v6765 = vadd.f32 %v6375, %v6635
        %v6766 = vadd.f32 %v6376, %v6640
        %v6767 = vadd.f32 %v6377, %v6645
        %v6768 = vadd.f32 %v6378, %v6650
        %v6769 = vadd.f32 %v6379, %v6655
        %v6770 = vadd.f32 %v6380, %v6660
        %v6771 = vadd.f32 %v6381, %v6665
        %v6772 = vadd.f32 %v6382, %v6670
        %v6773 = vadd.f32 %v6383, %v6675
        %v6774 = vadd.f32 %v6384, %v6680
        %v6775 = vadd.f32 %v6385, %v6685
        %v6776 = vadd.f32 %v6386, %v6690
        %v6777 = vadd.f32 %v6387, %v6695
        %v6778 = vadd.f32 %v6388, %v6700
        %v6779 = vadd.f32 %v6389, %v6705
        %v6780 = vadd.f32 %v6390, %v6710
        %v6781 = vadd.f32 %v6391, %v6715
        %v6782 = vadd.f32 %v6392, %v6720
        %v6783 = vadd.f32 %v6393, %v6725
        %v6784 = vadd.f32 %v6394, %v6730
        %v6785 = vadd.f32 %v6395, %v6735
        %v6786 = vadd.f32 %v6396, %v6740
        %v6787 = vadd.f32 %v6397, %v6745
        %v6788 = vadd.f32 %v6398, %v6750
        %v6789 = vadd.f32 %v6399, %v6755
        %v6790 = vld [vmem:[%s6009 + $0x2] sm:$0xff]
        %v6791 = vld [vmem:[%s6009 + $0xa] sm:$0xff]
        %v6792 = vld [vmem:[%s6009 + $0x12] sm:$0xff]
        %v6793 = vld [vmem:[%s6009 + $0x1a] sm:$0xff]
        %v6794 = vld [vmem:[%s6009 + $0x2a] sm:$0xff]
        %v6795 = vld [vmem:[%s6009 + $0x32] sm:$0xff]
        %v6796 = vld [vmem:[%s6009 + $0x3a] sm:$0xff]
        %v6797 = vld [vmem:[%s6009 + $0x42] sm:$0xff]
        %v6798 = vld [vmem:[%s6009 + $0x52] sm:$0xff]
        %v6799 = vld [vmem:[%s6009 + $0x5a] sm:$0xff]
        %v6800 = vld [vmem:[%s6009 + $0x62] sm:$0xff]
        %v6801 = vld [vmem:[%s6009 + $0x6a] sm:$0xff]
        %v6802 = vld [vmem:[%s6009 + $0x7a] sm:$0xff]
        %v6803 = vld [vmem:[%s6009 + $0x82] sm:$0xff]
        %v6804 = vld [vmem:[%s6009 + $0x8a] sm:$0xff]
        %v6805 = vld [vmem:[%s6009 + $0x92] sm:$0xff]
        %v6806 = vld [vmem:[%s6009 + $0xa2] sm:$0xff]
        %v6807 = vld [vmem:[%s6009 + $0xaa] sm:$0xff]
        %v6808 = vld [vmem:[%s6009 + $0xb2] sm:$0xff]
        %v6809 = vld [vmem:[%s6009 + $0xba] sm:$0xff]
        %v6810 = vld [vmem:[%s6009 + $0xca] sm:$0xff]
        %v6811 = vld [vmem:[%s6009 + $0xd2] sm:$0xff]
        %v6812 = vld [vmem:[%s6009 + $0xda] sm:$0xff]
        %v6813 = vld [vmem:[%s6009 + $0xe2] sm:$0xff]
        %v6814 = vld [vmem:[%s6009 + $0xf2] sm:$0xff]
        %v6815 = vld [vmem:[%s6009 + $0xfa] sm:$0xff]
        %v6816 = vld [vmem:[%s6009 + $0x102] sm:$0xff]
        %v6817 = vld [vmem:[%s6009 + $0x10a] sm:$0xff]
        %v6818 = vld [vmem:[%s6009 + $0x11a] sm:$0xff]
        %v6819 = vld [vmem:[%s6009 + $0x122] sm:$0xff]
        %v6820 = vld [vmem:[%s6009 + $0x12a] sm:$0xff]
        %v6821 = vld [vmem:[%s6009 + $0x132] sm:$0xff]
        %s6822 = scalar_lea.vmem %s1, 34
        %v6823 = vld [vmem:[%s6822] sm:$0x3]
        %v6825 = vsel %vm281, %v6790, 0
        %v6828 = vsel %vm281, %v6791, 0
        %v6831 = vsel %vm281, %v6792, 0
        %v6834 = vsel %vm281, %v6793, 0
        %v6837 = vsel %vm281, %v6794, 0
        %v6840 = vsel %vm281, %v6795, 0
        %v6843 = vsel %vm281, %v6796, 0
        %v6846 = vsel %vm281, %v6797, 0
        %v6849 = vsel %vm281, %v6798, 0
        %v6852 = vsel %vm281, %v6799, 0
        %v6855 = vsel %vm281, %v6800, 0
        %v6858 = vsel %vm281, %v6801, 0
        %v6861 = vsel %vm281, %v6802, 0
        %v6864 = vsel %vm281, %v6803, 0
        %v6867 = vsel %vm281, %v6804, 0
        %v6870 = vsel %vm281, %v6805, 0
        %v6873 = vsel %vm281, %v6806, 0
        %v6876 = vsel %vm281, %v6807, 0
        %v6879 = vsel %vm281, %v6808, 0
        %v6882 = vsel %vm281, %v6809, 0
        %v6885 = vsel %vm281, %v6810, 0
        %v6888 = vsel %vm281, %v6811, 0
        %v6891 = vsel %vm281, %v6812, 0
        %v6894 = vsel %vm281, %v6813, 0
        %v6897 = vsel %vm281, %v6814, 0
        %v6900 = vsel %vm281, %v6815, 0
        %v6903 = vsel %vm281, %v6816, 0
        %v6906 = vsel %vm281, %v6817, 0
        %v6909 = vsel %vm281, %v6818, 0
        %v6912 = vsel %vm281, %v6819, 0
        %v6915 = vsel %vm281, %v6820, 0
        %v6918 = vsel %vm281, %v6821, 0
        %v6921 = vsel %vm378, %v6823, 0
        %6923 = vmatprep.subr.mxu0 0.0
        %6924 = vmatpush1.msra.mxu0 %v6921
        %6925 = vmatprep.subr.mxu0 0.0
        %6926 = vmatpush1.msra.mxu0 0.0
        %6927 = vmatprep.subr.mxu0 0.0
        %6928 = vmatpush1.msra.mxu0 0.0
        %6929 = vmatprep.subr.mxu0 0.0
        %6930 = vmatpush1.msra.mxu0 0.0
        %6931 = vmatprep.subr.mxu0 0.0
        %6932 = vmatpush1.msra.mxu0 0.0
        %6933 = vmatprep.subr.mxu0 0.0
        %6934 = vmatpush1.msra.mxu0 0.0
        %6935 = vmatprep.subr.mxu0 0.0
        %6936 = vmatpush1.msra.mxu0 0.0
        %6937 = vmatprep.subr.mxu0 0.0
        %6938 = vmatpush1.msra.mxu0 0.0
        %6939 = vmatprep.subr.mxu0 0.0
        %6940 = vmatpush1.msra.mxu0 0.0
        %6941 = vmatprep.subr.mxu0 0.0
        %6942 = vmatpush1.msra.mxu0 0.0
        %6943 = vmatprep.subr.mxu0 0.0
        %6944 = vmatpush1.msra.mxu0 0.0
        %6945 = vmatprep.subr.mxu0 0.0
        %6946 = vmatpush1.msra.mxu0 0.0
        %6947 = vmatprep.subr.mxu0 0.0
        %6948 = vmatpush1.msra.mxu0 0.0
        %6949 = vmatprep.subr.mxu0 0.0
        %6950 = vmatpush1.msra.mxu0 0.0
        %6951 = vmatprep.subr.mxu0 0.0
        %6952 = vmatpush1.msra.mxu0 0.0
        %6953 = vmatprep.subr.mxu0 0.0
        %6954 = vmatpush1.msra.mxu0 0.0
        %6955 = vmatprep.subr.mxu0 0.0
        %6956 = vmatpush1.msra.mxu0 0.0
        %6957 = vmatprep.subr.mxu0 0.0
        %6958 = vmatpush1.msra.mxu0 0.0
        %6959 = vmatprep.subr.mxu0 0.0
        %6960 = vmatpush1.msra.mxu0 0.0
        %6961 = vmatprep.subr.mxu0 0.0
        %6962 = vmatpush1.msra.mxu0 0.0
        %6963 = vmatprep.subr.mxu0 0.0
        %6964 = vmatpush1.msra.mxu0 0.0
        %6965 = vmatprep.subr.mxu0 0.0
        %6966 = vmatpush1.msra.mxu0 0.0
        %6967 = vmatprep.subr.mxu0 0.0
        %6968 = vmatpush1.msra.mxu0 0.0
        %6969 = vmatprep.subr.mxu0 0.0
        %6970 = vmatpush1.msra.mxu0 0.0
        %6971 = vmatprep.subr.mxu0 0.0
        %6972 = vmatpush1.msra.mxu0 0.0
        %6973 = vmatprep.subr.mxu0 0.0
        %6974 = vmatpush1.msra.mxu0 0.0
        %6975 = vmatprep.subr.mxu0 0.0
        %6976 = vmatpush1.msra.mxu0 0.0
        %6977 = vmatprep.subr.mxu0 0.0
        %6978 = vmatpush1.msra.mxu0 0.0
        %6979 = vmatprep.subr.mxu0 0.0
        %6980 = vmatpush1.msra.mxu0 0.0
        %6981 = vmatprep.subr.mxu0 0.0
        %6982 = vmatpush1.msra.mxu0 0.0
        %6983 = vmatprep.subr.mxu0 0.0
        %6984 = vmatpush1.msra.mxu0 0.0
        %6985 = vmatprep.subr.mxu0 0.0
        %6986 = vmatpush1.msra.mxu0 0.0
        %6987 = vmatprep.mubr.f32.mxu0 0.0
        %6988 = vmatmul.mubr.f32.gmra.mrb[0].mxu0 %v6825
        %v6989 = vpop.f32.mrb[0].mxu0
        %v6990 = vadd.f32 0.0, %v6989
        %v6991 = vpop.f32.mrb[0].mxu0
        %6992 = vmatprep.mubr.f32.mxu0 0.0
        %6993 = vmatmul.mubr.f32.gmra.mrb[0].mxu0 %v6828
        %v6994 = vpop.f32.mrb[0].mxu0
        %v6995 = vadd.f32 0.0, %v6994
        %v6996 = vpop.f32.mrb[0].mxu0
        %6997 = vmatprep.mubr.f32.mxu0 0.0
        %6998 = vmatmul.mubr.f32.gmra.mrb[0].mxu0 %v6831
        %v6999 = vpop.f32.mrb[0].mxu0
        %v7000 = vadd.f32 0.0, %v6999
        %v7001 = vpop.f32.mrb[0].mxu0
        %7002 = vmatprep.mubr.f32.mxu0 0.0
        %7003 = vmatmul.mubr.f32.gmra.mrb[0].mxu0 %v6834
        %v7004 = vpop.f32.mrb[0].mxu0
        %v7005 = vadd.f32 0.0, %v7004
        %v7006 = vpop.f32.mrb[0].mxu0
        %7007 = vmatprep.mubr.f32.mxu0 0.0
        %7008 = vmatmul.mubr.f32.gmra.mrb[0].mxu0 %v6837
        %v7009 = vpop.f32.mrb[0].mxu0
        %v7010 = vadd.f32 0.0, %v7009
        %v7011 = vpop.f32.mrb[0].mxu0
        %7012 = vmatprep.mubr.f32.mxu0 0.0
        %7013 = vmatmul.mubr.f32.gmra.mrb[0].mxu0 %v6840
        %v7014 = vpop.f32.mrb[0].mxu0
        %v7015 = vadd.f32 0.0, %v7014
        %v7016 = vpop.f32.mrb[0].mxu0
        %7017 = vmatprep.mubr.f32.mxu0 0.0
        %7018 = vmatmul.mubr.f32.gmra.mrb[0].mxu0 %v6843
        %v7019 = vpop.f32.mrb[0].mxu0
        %v7020 = vadd.f32 0.0, %v7019
        %v7021 = vpop.f32.mrb[0].mxu0
        %7022 = vmatprep.mubr.f32.mxu0 0.0
        %7023 = vmatmul.mubr.f32.gmra.mrb[0].mxu0 %v6846
        %v7024 = vpop.f32.mrb[0].mxu0
        %v7025 = vadd.f32 0.0, %v7024
        %v7026 = vpop.f32.mrb[0].mxu0
        %7027 = vmatprep.mubr.f32.mxu0 0.0
        %7028 = vmatmul.mubr.f32.gmra.mrb[0].mxu0 %v6849
        %v7029 = vpop.f32.mrb[0].mxu0
        %v7030 = vadd.f32 0.0, %v7029
        %v7031 = vpop.f32.mrb[0].mxu0
        %7032 = vmatprep.mubr.f32.mxu0 0.0
        %7033 = vmatmul.mubr.f32.gmra.mrb[0].mxu0 %v6852
        %v7034 = vpop.f32.mrb[0].mxu0
        %v7035 = vadd.f32 0.0, %v7034
        %v7036 = vpop.f32.mrb[0].mxu0
        %7037 = vmatprep.mubr.f32.mxu0 0.0
        %7038 = vmatmul.mubr.f32.gmra.mrb[0].mxu0 %v6855
        %v7039 = vpop.f32.mrb[0].mxu0
        %v7040 = vadd.f32 0.0, %v7039
        %v7041 = vpop.f32.mrb[0].mxu0
        %7042 = vmatprep.mubr.f32.mxu0 0.0
        %7043 = vmatmul.mubr.f32.gmra.mrb[0].mxu0 %v6858
        %v7044 = vpop.f32.mrb[0].mxu0
        %v7045 = vadd.f32 0.0, %v7044
        %v7046 = vpop.f32.mrb[0].mxu0
        %7047 = vmatprep.mubr.f32.mxu0 0.0
        %7048 = vmatmul.mubr.f32.gmra.mrb[0].mxu0 %v6861
        %v7049 = vpop.f32.mrb[0].mxu0
        %v7050 = vadd.f32 0.0, %v7049
        %v7051 = vpop.f32.mrb[0].mxu0
        %7052 = vmatprep.mubr.f32.mxu0 0.0
        %7053 = vmatmul.mubr.f32.gmra.mrb[0].mxu0 %v6864
        %v7054 = vpop.f32.mrb[0].mxu0
        %v7055 = vadd.f32 0.0, %v7054
        %v7056 = vpop.f32.mrb[0].mxu0
        %7057 = vmatprep.mubr.f32.mxu0 0.0
        %7058 = vmatmul.mubr.f32.gmra.mrb[0].mxu0 %v6867
        %v7059 = vpop.f32.mrb[0].mxu0
        %v7060 = vadd.f32 0.0, %v7059
        %v7061 = vpop.f32.mrb[0].mxu0
        %7062 = vmatprep.mubr.f32.mxu0 0.0
        %7063 = vmatmul.mubr.f32.gmra.mrb[0].mxu0 %v6870
        %v7064 = vpop.f32.mrb[0].mxu0
        %v7065 = vadd.f32 0.0, %v7064
        %v7066 = vpop.f32.mrb[0].mxu0
        %7067 = vmatprep.mubr.f32.mxu0 0.0
        %7068 = vmatmul.mubr.f32.gmra.mrb[0].mxu0 %v6873
        %v7069 = vpop.f32.mrb[0].mxu0
        %v7070 = vadd.f32 0.0, %v7069
        %v7071 = vpop.f32.mrb[0].mxu0
        %7072 = vmatprep.mubr.f32.mxu0 0.0
        %7073 = vmatmul.mubr.f32.gmra.mrb[0].mxu0 %v6876
        %v7074 = vpop.f32.mrb[0].mxu0
        %v7075 = vadd.f32 0.0, %v7074
        %v7076 = vpop.f32.mrb[0].mxu0
        %7077 = vmatprep.mubr.f32.mxu0 0.0
        %7078 = vmatmul.mubr.f32.gmra.mrb[0].mxu0 %v6879
        %v7079 = vpop.f32.mrb[0].mxu0
        %v7080 = vadd.f32 0.0, %v7079
        %v7081 = vpop.f32.mrb[0].mxu0
        %7082 = vmatprep.mubr.f32.mxu0 0.0
        %7083 = vmatmul.mubr.f32.gmra.mrb[0].mxu0 %v6882
        %v7084 = vpop.f32.mrb[0].mxu0
        %v7085 = vadd.f32 0.0, %v7084
        %v7086 = vpop.f32.mrb[0].mxu0
        %7087 = vmatprep.mubr.f32.mxu0 0.0
        %7088 = vmatmul.mubr.f32.gmra.mrb[0].mxu0 %v6885
        %v7089 = vpop.f32.mrb[0].mxu0
        %v7090 = vadd.f32 0.0, %v7089
        %v7091 = vpop.f32.mrb[0].mxu0
        %7092 = vmatprep.mubr.f32.mxu0 0.0
        %7093 = vmatmul.mubr.f32.gmra.mrb[0].mxu0 %v6888
        %v7094 = vpop.f32.mrb[0].mxu0
        %v7095 = vadd.f32 0.0, %v7094
        %v7096 = vpop.f32.mrb[0].mxu0
        %7097 = vmatprep.mubr.f32.mxu0 0.0
        %7098 = vmatmul.mubr.f32.gmra.mrb[0].mxu0 %v6891
        %v7099 = vpop.f32.mrb[0].mxu0
        %v7100 = vadd.f32 0.0, %v7099
        %v7101 = vpop.f32.mrb[0].mxu0
        %7102 = vmatprep.mubr.f32.mxu0 0.0
        %7103 = vmatmul.mubr.f32.gmra.mrb[0].mxu0 %v6894
        %v7104 = vpop.f32.mrb[0].mxu0
        %v7105 = vadd.f32 0.0, %v7104
        %v7106 = vpop.f32.mrb[0].mxu0
        %7107 = vmatprep.mubr.f32.mxu0 0.0
        %7108 = vmatmul.mubr.f32.gmra.mrb[0].mxu0 %v6897
        %v7109 = vpop.f32.mrb[0].mxu0
        %v7110 = vadd.f32 0.0, %v7109
        %v7111 = vpop.f32.mrb[0].mxu0
        %7112 = vmatprep.mubr.f32.mxu0 0.0
        %7113 = vmatmul.mubr.f32.gmra.mrb[0].mxu0 %v6900
        %v7114 = vpop.f32.mrb[0].mxu0
        %v7115 = vadd.f32 0.0, %v7114
        %v7116 = vpop.f32.mrb[0].mxu0
        %7117 = vmatprep.mubr.f32.mxu0 0.0
        %7118 = vmatmul.mubr.f32.gmra.mrb[0].mxu0 %v6903
        %v7119 = vpop.f32.mrb[0].mxu0
        %v7120 = vadd.f32 0.0, %v7119
        %v7121 = vpop.f32.mrb[0].mxu0
        %7122 = vmatprep.mubr.f32.mxu0 0.0
        %7123 = vmatmul.mubr.f32.gmra.mrb[0].mxu0 %v6906
        %v7124 = vpop.f32.mrb[0].mxu0
        %v7125 = vadd.f32 0.0, %v7124
        %v7126 = vpop.f32.mrb[0].mxu0
        %7127 = vmatprep.mubr.f32.mxu0 0.0
        %7128 = vmatmul.mubr.f32.gmra.mrb[0].mxu0 %v6909
        %v7129 = vpop.f32.mrb[0].mxu0
        %v7130 = vadd.f32 0.0, %v7129
        %v7131 = vpop.f32.mrb[0].mxu0
        %7132 = vmatprep.mubr.f32.mxu0 0.0
        %7133 = vmatmul.mubr.f32.gmra.mrb[0].mxu0 %v6912
        %v7134 = vpop.f32.mrb[0].mxu0
        %v7135 = vadd.f32 0.0, %v7134
        %v7136 = vpop.f32.mrb[0].mxu0
        %7137 = vmatprep.mubr.f32.mxu0 0.0
        %7138 = vmatmul.mubr.f32.gmra.mrb[0].mxu0 %v6915
        %v7139 = vpop.f32.mrb[0].mxu0
        %v7140 = vadd.f32 0.0, %v7139
        %v7141 = vpop.f32.mrb[0].mxu0
        %7142 = vmatprep.mubr.f32.mxu0 0.0
        %7143 = vmatmul.mubr.f32.gmra.mrb[0].mxu0 %v6918
        %v7144 = vpop.f32.mrb[0].mxu0
        %v7145 = vadd.f32 0.0, %v7144
        %v7146 = vpop.f32.mrb[0].mxu0
        %7147 = vdwg.mxu0
        %v7148 = vadd.f32 %v6758, %v6990
        %v7149 = vadd.f32 %v6759, %v6995
        %v7150 = vadd.f32 %v6760, %v7000
        %v7151 = vadd.f32 %v6761, %v7005
        %v7152 = vadd.f32 %v6762, %v7010
        %v7153 = vadd.f32 %v6763, %v7015
        %v7154 = vadd.f32 %v6764, %v7020
        %v7155 = vadd.f32 %v6765, %v7025
        %v7156 = vadd.f32 %v6766, %v7030
        %v7157 = vadd.f32 %v6767, %v7035
        %v7158 = vadd.f32 %v6768, %v7040
        %v7159 = vadd.f32 %v6769, %v7045
        %v7160 = vadd.f32 %v6770, %v7050
        %v7161 = vadd.f32 %v6771, %v7055
        %v7162 = vadd.f32 %v6772, %v7060
        %v7163 = vadd.f32 %v6773, %v7065
        %v7164 = vadd.f32 %v6774, %v7070
        %v7165 = vadd.f32 %v6775, %v7075
        %v7166 = vadd.f32 %v6776, %v7080
        %v7167 = vadd.f32 %v6777, %v7085
        %v7168 = vadd.f32 %v6778, %v7090
        %v7169 = vadd.f32 %v6779, %v7095
        %v7170 = vadd.f32 %v6780, %v7100
        %v7171 = vadd.f32 %v6781, %v7105
        %v7172 = vadd.f32 %v6782, %v7110
        %v7173 = vadd.f32 %v6783, %v7115
        %v7174 = vadd.f32 %v6784, %v7120
        %v7175 = vadd.f32 %v6785, %v7125
        %v7176 = vadd.f32 %v6786, %v7130
        %v7177 = vadd.f32 %v6787, %v7135
        %v7178 = vadd.f32 %v6788, %v7140
        %v7179 = vadd.f32 %v6789, %v7145
        %v7180 = vld [vmem:[%s6009 + $0x3] sm:$0xff]
        %v7181 = vld [vmem:[%s6009 + $0xb] sm:$0xff]
        %v7182 = vld [vmem:[%s6009 + $0x13] sm:$0xff]
        %v7183 = vld [vmem:[%s6009 + $0x1b] sm:$0xff]
        %v7184 = vld [vmem:[%s6009 + $0x2b] sm:$0xff]
        %v7185 = vld [vmem:[%s6009 + $0x33] sm:$0xff]
        %v7186 = vld [vmem:[%s6009 + $0x3b] sm:$0xff]
        %v7187 = vld [vmem:[%s6009 + $0x43] sm:$0xff]
        %v7188 = vld [vmem:[%s6009 + $0x53] sm:$0xff]
        %v7189 = vld [vmem:[%s6009 + $0x5b] sm:$0xff]
        %v7190 = vld [vmem:[%s6009 + $0x63] sm:$0xff]
        %v7191 = vld [vmem:[%s6009 + $0x6b] sm:$0xff]
        %v7192 = vld [vmem:[%s6009 + $0x7b] sm:$0xff]
        %v7193 = vld [vmem:[%s6009 + $0x83] sm:$0xff]
        %v7194 = vld [vmem:[%s6009 + $0x8b] sm:$0xff]
        %v7195 = vld [vmem:[%s6009 + $0x93] sm:$0xff]
        %v7196 = vld [vmem:[%s6009 + $0xa3] sm:$0xff]
        %v7197 = vld [vmem:[%s6009 + $0xab] sm:$0xff]
        %v7198 = vld [vmem:[%s6009 + $0xb3] sm:$0xff]
        %v7199 = vld [vmem:[%s6009 + $0xbb] sm:$0xff]
        %v7200 = vld [vmem:[%s6009 + $0xcb] sm:$0xff]
        %v7201 = vld [vmem:[%s6009 + $0xd3] sm:$0xff]
        %v7202 = vld [vmem:[%s6009 + $0xdb] sm:$0xff]
        %v7203 = vld [vmem:[%s6009 + $0xe3] sm:$0xff]
        %v7204 = vld [vmem:[%s6009 + $0xf3] sm:$0xff]
        %v7205 = vld [vmem:[%s6009 + $0xfb] sm:$0xff]
        %v7206 = vld [vmem:[%s6009 + $0x103] sm:$0xff]
        %v7207 = vld [vmem:[%s6009 + $0x10b] sm:$0xff]
        %v7208 = vld [vmem:[%s6009 + $0x11b] sm:$0xff]
        %v7209 = vld [vmem:[%s6009 + $0x123] sm:$0xff]
        %v7210 = vld [vmem:[%s6009 + $0x12b] sm:$0xff]
        %v7211 = vld [vmem:[%s6009 + $0x133] sm:$0xff]
        %s7212 = scalar_lea.vmem %s1, 36
        %v7213 = vld [vmem:[%s7212] sm:$0x3]
        %v7215 = vsel %vm281, %v7180, 0
        %v7218 = vsel %vm281, %v7181, 0
        %v7221 = vsel %vm281, %v7182, 0
        %v7224 = vsel %vm281, %v7183, 0
        %v7227 = vsel %vm281, %v7184, 0
        %v7230 = vsel %vm281, %v7185, 0
        %v7233 = vsel %vm281, %v7186, 0
        %v7236 = vsel %vm281, %v7187, 0
        %v7239 = vsel %vm281, %v7188, 0
        %v7242 = vsel %vm281, %v7189, 0
        %v7245 = vsel %vm281, %v7190, 0
        %v7248 = vsel %vm281, %v7191, 0
        %v7251 = vsel %vm281, %v7192, 0
        %v7254 = vsel %vm281, %v7193, 0
        %v7257 = vsel %vm281, %v7194, 0
        %v7260 = vsel %vm281, %v7195, 0
        %v7263 = vsel %vm281, %v7196, 0
        %v7266 = vsel %vm281, %v7197, 0
        %v7269 = vsel %vm281, %v7198, 0
        %v7272 = vsel %vm281, %v7199, 0
        %v7275 = vsel %vm281, %v7200, 0
        %v7278 = vsel %vm281, %v7201, 0
        %v7281 = vsel %vm281, %v7202, 0
        %v7284 = vsel %vm281, %v7203, 0
        %v7287 = vsel %vm281, %v7204, 0
        %v7290 = vsel %vm281, %v7205, 0
        %v7293 = vsel %vm281, %v7206, 0
        %v7296 = vsel %vm281, %v7207, 0
        %v7299 = vsel %vm281, %v7208, 0
        %v7302 = vsel %vm281, %v7209, 0
        %v7305 = vsel %vm281, %v7210, 0
        %v7308 = vsel %vm281, %v7211, 0
        %v7311 = vsel %vm378, %v7213, 0
        %7313 = vmatprep.subr.mxu0 0.0
        %7314 = vmatpush1.msra.mxu0 %v7311
        %7315 = vmatprep.subr.mxu0 0.0
        %7316 = vmatpush1.msra.mxu0 0.0
        %7317 = vmatprep.subr.mxu0 0.0
        %7318 = vmatpush1.msra.mxu0 0.0
        %7319 = vmatprep.subr.mxu0 0.0
        %7320 = vmatpush1.msra.mxu0 0.0
        %7321 = vmatprep.subr.mxu0 0.0
        %7322 = vmatpush1.msra.mxu0 0.0
        %7323 = vmatprep.subr.mxu0 0.0
        %7324 = vmatpush1.msra.mxu0 0.0
        %7325 = vmatprep.subr.mxu0 0.0
        %7326 = vmatpush1.msra.mxu0 0.0
        %7327 = vmatprep.subr.mxu0 0.0
        %7328 = vmatpush1.msra.mxu0 0.0
        %7329 = vmatprep.subr.mxu0 0.0
        %7330 = vmatpush1.msra.mxu0 0.0
        %7331 = vmatprep.subr.mxu0 0.0
        %7332 = vmatpush1.msra.mxu0 0.0
        %7333 = vmatprep.subr.mxu0 0.0
        %7334 = vmatpush1.msra.mxu0 0.0
        %7335 = vmatprep.subr.mxu0 0.0
        %7336 = vmatpush1.msra.mxu0 0.0
        %7337 = vmatprep.subr.mxu0 0.0
        %7338 = vmatpush1.msra.mxu0 0.0
        %7339 = vmatprep.subr.mxu0 0.0
        %7340 = vmatpush1.msra.mxu0 0.0
        %7341 = vmatprep.subr.mxu0 0.0
        %7342 = vmatpush1.msra.mxu0 0.0
        %7343 = vmatprep.subr.mxu0 0.0
        %7344 = vmatpush1.msra.mxu0 0.0
        %7345 = vmatprep.subr.mxu0 0.0
        %7346 = vmatpush1.msra.mxu0 0.0
        %7347 = vmatprep.subr.mxu0 0.0
        %7348 = vmatpush1.msra.mxu0 0.0
        %7349 = vmatprep.subr.mxu0 0.0
        %7350 = vmatpush1.msra.mxu0 0.0
        %7351 = vmatprep.subr.mxu0 0.0
        %7352 = vmatpush1.msra.mxu0 0.0
        %7353 = vmatprep.subr.mxu0 0.0
        %7354 = vmatpush1.msra.mxu0 0.0
        %7355 = vmatprep.subr.mxu0 0.0
        %7356 = vmatpush1.msra.mxu0 0.0
        %7357 = vmatprep.subr.mxu0 0.0
        %7358 = vmatpush1.msra.mxu0 0.0
        %7359 = vmatprep.subr.mxu0 0.0
        %7360 = vmatpush1.msra.mxu0 0.0
        %7361 = vmatprep.subr.mxu0 0.0
        %7362 = vmatpush1.msra.mxu0 0.0
        %7363 = vmatprep.subr.mxu0 0.0
        %7364 = vmatpush1.msra.mxu0 0.0
        %7365 = vmatprep.subr.mxu0 0.0
        %7366 = vmatpush1.msra.mxu0 0.0
        %7367 = vmatprep.subr.mxu0 0.0
        %7368 = vmatpush1.msra.mxu0 0.0
        %7369 = vmatprep.subr.mxu0 0.0
        %7370 = vmatpush1.msra.mxu0 0.0
        %7371 = vmatprep.subr.mxu0 0.0
        %7372 = vmatpush1.msra.mxu0 0.0
        %7373 = vmatprep.subr.mxu0 0.0
        %7374 = vmatpush1.msra.mxu0 0.0
        %7375 = vmatprep.subr.mxu0 0.0
        %7376 = vmatpush1.msra.mxu0 0.0
        %7377 = vmatprep.mubr.f32.mxu0 0.0
        %7378 = vmatmul.mubr.f32.gmra.mrb[0].mxu0 %v7215
        %v7379 = vpop.f32.mrb[0].mxu0
        %v7380 = vadd.f32 0.0, %v7379
        %v7381 = vpop.f32.mrb[0].mxu0
        %7382 = vmatprep.mubr.f32.mxu0 0.0
        %7383 = vmatmul.mubr.f32.gmra.mrb[0].mxu0 %v7218
        %v7384 = vpop.f32.mrb[0].mxu0
        %v7385 = vadd.f32 0.0, %v7384
        %v7386 = vpop.f32.mrb[0].mxu0
        %7387 = vmatprep.mubr.f32.mxu0 0.0
        %7388 = vmatmul.mubr.f32.gmra.mrb[0].mxu0 %v7221
        %v7389 = vpop.f32.mrb[0].mxu0
        %v7390 = vadd.f32 0.0, %v7389
        %v7391 = vpop.f32.mrb[0].mxu0
        %7392 = vmatprep.mubr.f32.mxu0 0.0
        %7393 = vmatmul.mubr.f32.gmra.mrb[0].mxu0 %v7224
        %v7394 = vpop.f32.mrb[0].mxu0
        %v7395 = vadd.f32 0.0, %v7394
        %v7396 = vpop.f32.mrb[0].mxu0
        %7397 = vmatprep.mubr.f32.mxu0 0.0
        %7398 = vmatmul.mubr.f32.gmra.mrb[0].mxu0 %v7227
        %v7399 = vpop.f32.mrb[0].mxu0
        %v7400 = vadd.f32 0.0, %v7399
        %v7401 = vpop.f32.mrb[0].mxu0
        %7402 = vmatprep.mubr.f32.mxu0 0.0
        %7403 = vmatmul.mubr.f32.gmra.mrb[0].mxu0 %v7230
        %v7404 = vpop.f32.mrb[0].mxu0
        %v7405 = vadd.f32 0.0, %v7404
        %v7406 = vpop.f32.mrb[0].mxu0
        %7407 = vmatprep.mubr.f32.mxu0 0.0
        %7408 = vmatmul.mubr.f32.gmra.mrb[0].mxu0 %v7233
        %v7409 = vpop.f32.mrb[0].mxu0
        %v7410 = vadd.f32 0.0, %v7409
        %v7411 = vpop.f32.mrb[0].mxu0
        %7412 = vmatprep.mubr.f32.mxu0 0.0
        %7413 = vmatmul.mubr.f32.gmra.mrb[0].mxu0 %v7236
        %v7414 = vpop.f32.mrb[0].mxu0
        %v7415 = vadd.f32 0.0, %v7414
        %v7416 = vpop.f32.mrb[0].mxu0
        %7417 = vmatprep.mubr.f32.mxu0 0.0
        %7418 = vmatmul.mubr.f32.gmra.mrb[0].mxu0 %v7239
        %v7419 = vpop.f32.mrb[0].mxu0
        %v7420 = vadd.f32 0.0, %v7419
        %v7421 = vpop.f32.mrb[0].mxu0
        %7422 = vmatprep.mubr.f32.mxu0 0.0
        %7423 = vmatmul.mubr.f32.gmra.mrb[0].mxu0 %v7242
        %v7424 = vpop.f32.mrb[0].mxu0
        %v7425 = vadd.f32 0.0, %v7424
        %v7426 = vpop.f32.mrb[0].mxu0
        %7427 = vmatprep.mubr.f32.mxu0 0.0
        %7428 = vmatmul.mubr.f32.gmra.mrb[0].mxu0 %v7245
        %v7429 = vpop.f32.mrb[0].mxu0
        %v7430 = vadd.f32 0.0, %v7429
        %v7431 = vpop.f32.mrb[0].mxu0
        %7432 = vmatprep.mubr.f32.mxu0 0.0
        %7433 = vmatmul.mubr.f32.gmra.mrb[0].mxu0 %v7248
        %v7434 = vpop.f32.mrb[0].mxu0
        %v7435 = vadd.f32 0.0, %v7434
        %v7436 = vpop.f32.mrb[0].mxu0
        %7437 = vmatprep.mubr.f32.mxu0 0.0
        %7438 = vmatmul.mubr.f32.gmra.mrb[0].mxu0 %v7251
        %v7439 = vpop.f32.mrb[0].mxu0
        %v7440 = vadd.f32 0.0, %v7439
        %v7441 = vpop.f32.mrb[0].mxu0
        %7442 = vmatprep.mubr.f32.mxu0 0.0
        %7443 = vmatmul.mubr.f32.gmra.mrb[0].mxu0 %v7254
        %v7444 = vpop.f32.mrb[0].mxu0
        %v7445 = vadd.f32 0.0, %v7444
        %v7446 = vpop.f32.mrb[0].mxu0
        %7447 = vmatprep.mubr.f32.mxu0 0.0
        %7448 = vmatmul.mubr.f32.gmra.mrb[0].mxu0 %v7257
        %v7449 = vpop.f32.mrb[0].mxu0
        %v7450 = vadd.f32 0.0, %v7449
        %v7451 = vpop.f32.mrb[0].mxu0
        %7452 = vmatprep.mubr.f32.mxu0 0.0
        %7453 = vmatmul.mubr.f32.gmra.mrb[0].mxu0 %v7260
        %v7454 = vpop.f32.mrb[0].mxu0
        %v7455 = vadd.f32 0.0, %v7454
        %v7456 = vpop.f32.mrb[0].mxu0
        %7457 = vmatprep.mubr.f32.mxu0 0.0
        %7458 = vmatmul.mubr.f32.gmra.mrb[0].mxu0 %v7263
        %v7459 = vpop.f32.mrb[0].mxu0
        %v7460 = vadd.f32 0.0, %v7459
        %v7461 = vpop.f32.mrb[0].mxu0
        %7462 = vmatprep.mubr.f32.mxu0 0.0
        %7463 = vmatmul.mubr.f32.gmra.mrb[0].mxu0 %v7266
        %v7464 = vpop.f32.mrb[0].mxu0
        %v7465 = vadd.f32 0.0, %v7464
        %v7466 = vpop.f32.mrb[0].mxu0
        %7467 = vmatprep.mubr.f32.mxu0 0.0
        %7468 = vmatmul.mubr.f32.gmra.mrb[0].mxu0 %v7269
        %v7469 = vpop.f32.mrb[0].mxu0
        %v7470 = vadd.f32 0.0, %v7469
        %v7471 = vpop.f32.mrb[0].mxu0
        %7472 = vmatprep.mubr.f32.mxu0 0.0
        %7473 = vmatmul.mubr.f32.gmra.mrb[0].mxu0 %v7272
        %v7474 = vpop.f32.mrb[0].mxu0
        %v7475 = vadd.f32 0.0, %v7474
        %v7476 = vpop.f32.mrb[0].mxu0
        %7477 = vmatprep.mubr.f32.mxu0 0.0
        %7478 = vmatmul.mubr.f32.gmra.mrb[0].mxu0 %v7275
        %v7479 = vpop.f32.mrb[0].mxu0
        %v7480 = vadd.f32 0.0, %v7479
        %v7481 = vpop.f32.mrb[0].mxu0
        %7482 = vmatprep.mubr.f32.mxu0 0.0
        %7483 = vmatmul.mubr.f32.gmra.mrb[0].mxu0 %v7278
        %v7484 = vpop.f32.mrb[0].mxu0
        %v7485 = vadd.f32 0.0, %v7484
        %v7486 = vpop.f32.mrb[0].mxu0
        %7487 = vmatprep.mubr.f32.mxu0 0.0
        %7488 = vmatmul.mubr.f32.gmra.mrb[0].mxu0 %v7281
        %v7489 = vpop.f32.mrb[0].mxu0
        %v7490 = vadd.f32 0.0, %v7489
        %v7491 = vpop.f32.mrb[0].mxu0
        %7492 = vmatprep.mubr.f32.mxu0 0.0
        %7493 = vmatmul.mubr.f32.gmra.mrb[0].mxu0 %v7284
        %v7494 = vpop.f32.mrb[0].mxu0
        %v7495 = vadd.f32 0.0, %v7494
        %v7496 = vpop.f32.mrb[0].mxu0
        %7497 = vmatprep.mubr.f32.mxu0 0.0
        %7498 = vmatmul.mubr.f32.gmra.mrb[0].mxu0 %v7287
        %v7499 = vpop.f32.mrb[0].mxu0
        %v7500 = vadd.f32 0.0, %v7499
        %v7501 = vpop.f32.mrb[0].mxu0
        %7502 = vmatprep.mubr.f32.mxu0 0.0
        %7503 = vmatmul.mubr.f32.gmra.mrb[0].mxu0 %v7290
        %v7504 = vpop.f32.mrb[0].mxu0
        %v7505 = vadd.f32 0.0, %v7504
        %v7506 = vpop.f32.mrb[0].mxu0
        %7507 = vmatprep.mubr.f32.mxu0 0.0
        %7508 = vmatmul.mubr.f32.gmra.mrb[0].mxu0 %v7293
        %v7509 = vpop.f32.mrb[0].mxu0
        %v7510 = vadd.f32 0.0, %v7509
        %v7511 = vpop.f32.mrb[0].mxu0
        %7512 = vmatprep.mubr.f32.mxu0 0.0
        %7513 = vmatmul.mubr.f32.gmra.mrb[0].mxu0 %v7296
        %v7514 = vpop.f32.mrb[0].mxu0
        %v7515 = vadd.f32 0.0, %v7514
        %v7516 = vpop.f32.mrb[0].mxu0
        %7517 = vmatprep.mubr.f32.mxu0 0.0
        %7518 = vmatmul.mubr.f32.gmra.mrb[0].mxu0 %v7299
        %v7519 = vpop.f32.mrb[0].mxu0
        %v7520 = vadd.f32 0.0, %v7519
        %v7521 = vpop.f32.mrb[0].mxu0
        %7522 = vmatprep.mubr.f32.mxu0 0.0
        %7523 = vmatmul.mubr.f32.gmra.mrb[0].mxu0 %v7302
        %v7524 = vpop.f32.mrb[0].mxu0
        %v7525 = vadd.f32 0.0, %v7524
        %v7526 = vpop.f32.mrb[0].mxu0
        %7527 = vmatprep.mubr.f32.mxu0 0.0
        %7528 = vmatmul.mubr.f32.gmra.mrb[0].mxu0 %v7305
        %v7529 = vpop.f32.mrb[0].mxu0
        %v7530 = vadd.f32 0.0, %v7529
        %v7531 = vpop.f32.mrb[0].mxu0
        %7532 = vmatprep.mubr.f32.mxu0 0.0
        %7533 = vmatmul.mubr.f32.gmra.mrb[0].mxu0 %v7308
        %v7534 = vpop.f32.mrb[0].mxu0
        %v7535 = vadd.f32 0.0, %v7534
        %v7536 = vpop.f32.mrb[0].mxu0
        %7537 = vdwg.mxu0
        %v7538 = vadd.f32 %v7148, %v7380
        %v7539 = vadd.f32 %v7149, %v7385
        %v7540 = vadd.f32 %v7150, %v7390
        %v7541 = vadd.f32 %v7151, %v7395
        %v7542 = vadd.f32 %v7152, %v7400
        %v7543 = vadd.f32 %v7153, %v7405
        %v7544 = vadd.f32 %v7154, %v7410
        %v7545 = vadd.f32 %v7155, %v7415
        %v7546 = vadd.f32 %v7156, %v7420
        %v7547 = vadd.f32 %v7157, %v7425
        %v7548 = vadd.f32 %v7158, %v7430
        %v7549 = vadd.f32 %v7159, %v7435
        %v7550 = vadd.f32 %v7160, %v7440
        %v7551 = vadd.f32 %v7161, %v7445
        %v7552 = vadd.f32 %v7162, %v7450
        %v7553 = vadd.f32 %v7163, %v7455
        %v7554 = vadd.f32 %v7164, %v7460
        %v7555 = vadd.f32 %v7165, %v7465
        %v7556 = vadd.f32 %v7166, %v7470
        %v7557 = vadd.f32 %v7167, %v7475
        %v7558 = vadd.f32 %v7168, %v7480
        %v7559 = vadd.f32 %v7169, %v7485
        %v7560 = vadd.f32 %v7170, %v7490
        %v7561 = vadd.f32 %v7171, %v7495
        %v7562 = vadd.f32 %v7172, %v7500
        %v7563 = vadd.f32 %v7173, %v7505
        %v7564 = vadd.f32 %v7174, %v7510
        %v7565 = vadd.f32 %v7175, %v7515
        %v7566 = vadd.f32 %v7176, %v7520
        %v7567 = vadd.f32 %v7177, %v7525
        %v7568 = vadd.f32 %v7178, %v7530
        %v7569 = vadd.f32 %v7179, %v7535
        %v7570 = vld [vmem:[%s6009 + $0x4] sm:$0xff]
        %v7571 = vld [vmem:[%s6009 + $0xc] sm:$0xff]
        %v7572 = vld [vmem:[%s6009 + $0x14] sm:$0xff]
        %v7573 = vld [vmem:[%s6009 + $0x1c] sm:$0xff]
        %v7574 = vld [vmem:[%s6009 + $0x2c] sm:$0xff]
        %v7575 = vld [vmem:[%s6009 + $0x34] sm:$0xff]
        %v7576 = vld [vmem:[%s6009 + $0x3c] sm:$0xff]
        %v7577 = vld [vmem:[%s6009 + $0x44] sm:$0xff]
        %v7578 = vld [vmem:[%s6009 + $0x54] sm:$0xff]
        %v7579 = vld [vmem:[%s6009 + $0x5c] sm:$0xff]
        %v7580 = vld [vmem:[%s6009 + $0x64] sm:$0xff]
        %v7581 = vld [vmem:[%s6009 + $0x6c] sm:$0xff]
        %v7582 = vld [vmem:[%s6009 + $0x7c] sm:$0xff]
        %v7583 = vld [vmem:[%s6009 + $0x84] sm:$0xff]
        %v7584 = vld [vmem:[%s6009 + $0x8c] sm:$0xff]
        %v7585 = vld [vmem:[%s6009 + $0x94] sm:$0xff]
        %v7586 = vld [vmem:[%s6009 + $0xa4] sm:$0xff]
        %v7587 = vld [vmem:[%s6009 + $0xac] sm:$0xff]
        %v7588 = vld [vmem:[%s6009 + $0xb4] sm:$0xff]
        %v7589 = vld [vmem:[%s6009 + $0xbc] sm:$0xff]
        %v7590 = vld [vmem:[%s6009 + $0xcc] sm:$0xff]
        %v7591 = vld [vmem:[%s6009 + $0xd4] sm:$0xff]
        %v7592 = vld [vmem:[%s6009 + $0xdc] sm:$0xff]
        %v7593 = vld [vmem:[%s6009 + $0xe4] sm:$0xff]
        %v7594 = vld [vmem:[%s6009 + $0xf4] sm:$0xff]
        %v7595 = vld [vmem:[%s6009 + $0xfc] sm:$0xff]
        %v7596 = vld [vmem:[%s6009 + $0x104] sm:$0xff]
        %v7597 = vld [vmem:[%s6009 + $0x10c] sm:$0xff]
        %v7598 = vld [vmem:[%s6009 + $0x11c] sm:$0xff]
        %v7599 = vld [vmem:[%s6009 + $0x124] sm:$0xff]
        %v7600 = vld [vmem:[%s6009 + $0x12c] sm:$0xff]
        %v7601 = vld [vmem:[%s6009 + $0x134] sm:$0xff]
        %s7602 = scalar_lea.vmem %s1, 38
        %v7603 = vld [vmem:[%s7602] sm:$0x3]
        %v7605 = vsel %vm281, %v7570, 0
        %v7608 = vsel %vm281, %v7571, 0
        %v7611 = vsel %vm281, %v7572, 0
        %v7614 = vsel %vm281, %v7573, 0
        %v7617 = vsel %vm281, %v7574, 0
        %v7620 = vsel %vm281, %v7575, 0
        %v7623 = vsel %vm281, %v7576, 0
        %v7626 = vsel %vm281, %v7577, 0
        %v7629 = vsel %vm281, %v7578, 0
        %v7632 = vsel %vm281, %v7579, 0
        %v7635 = vsel %vm281, %v7580, 0
        %v7638 = vsel %vm281, %v7581, 0
        %v7641 = vsel %vm281, %v7582, 0
        %v7644 = vsel %vm281, %v7583, 0
        %v7647 = vsel %vm281, %v7584, 0
        %v7650 = vsel %vm281, %v7585, 0
        %v7653 = vsel %vm281, %v7586, 0
        %v7656 = vsel %vm281, %v7587, 0
        %v7659 = vsel %vm281, %v7588, 0
        %v7662 = vsel %vm281, %v7589, 0
        %v7665 = vsel %vm281, %v7590, 0
        %v7668 = vsel %vm281, %v7591, 0
        %v7671 = vsel %vm281, %v7592, 0
        %v7674 = vsel %vm281, %v7593, 0
        %v7677 = vsel %vm281, %v7594, 0
        %v7680 = vsel %vm281, %v7595, 0
        %v7683 = vsel %vm281, %v7596, 0
        %v7686 = vsel %vm281, %v7597, 0
        %v7689 = vsel %vm281, %v7598, 0
        %v7692 = vsel %vm281, %v7599, 0
        %v7695 = vsel %vm281, %v7600, 0
        %v7698 = vsel %vm281, %v7601, 0
        %v7701 = vsel %vm378, %v7603, 0
        %7703 = vmatprep.subr.mxu0 0.0
        %7704 = vmatpush1.msra.mxu0 %v7701
        %7705 = vmatprep.subr.mxu0 0.0
        %7706 = vmatpush1.msra.mxu0 0.0
        %7707 = vmatprep.subr.mxu0 0.0
        %7708 = vmatpush1.msra.mxu0 0.0
        %7709 = vmatprep.subr.mxu0 0.0
        %7710 = vmatpush1.msra.mxu0 0.0
        %7711 = vmatprep.subr.mxu0 0.0
        %7712 = vmatpush1.msra.mxu0 0.0
        %7713 = vmatprep.subr.mxu0 0.0
        %7714 = vmatpush1.msra.mxu0 0.0
        %7715 = vmatprep.subr.mxu0 0.0
        %7716 = vmatpush1.msra.mxu0 0.0
        %7717 = vmatprep.subr.mxu0 0.0
        %7718 = vmatpush1.msra.mxu0 0.0
        %7719 = vmatprep.subr.mxu0 0.0
        %7720 = vmatpush1.msra.mxu0 0.0
        %7721 = vmatprep.subr.mxu0 0.0
        %7722 = vmatpush1.msra.mxu0 0.0
        %7723 = vmatprep.subr.mxu0 0.0
        %7724 = vmatpush1.msra.mxu0 0.0
        %7725 = vmatprep.subr.mxu0 0.0
        %7726 = vmatpush1.msra.mxu0 0.0
        %7727 = vmatprep.subr.mxu0 0.0
        %7728 = vmatpush1.msra.mxu0 0.0
        %7729 = vmatprep.subr.mxu0 0.0
        %7730 = vmatpush1.msra.mxu0 0.0
        %7731 = vmatprep.subr.mxu0 0.0
        %7732 = vmatpush1.msra.mxu0 0.0
        %7733 = vmatprep.subr.mxu0 0.0
        %7734 = vmatpush1.msra.mxu0 0.0
        %7735 = vmatprep.subr.mxu0 0.0
        %7736 = vmatpush1.msra.mxu0 0.0
        %7737 = vmatprep.subr.mxu0 0.0
        %7738 = vmatpush1.msra.mxu0 0.0
        %7739 = vmatprep.subr.mxu0 0.0
        %7740 = vmatpush1.msra.mxu0 0.0
        %7741 = vmatprep.subr.mxu0 0.0
        %7742 = vmatpush1.msra.mxu0 0.0
        %7743 = vmatprep.subr.mxu0 0.0
        %7744 = vmatpush1.msra.mxu0 0.0
        %7745 = vmatprep.subr.mxu0 0.0
        %7746 = vmatpush1.msra.mxu0 0.0
        %7747 = vmatprep.subr.mxu0 0.0
        %7748 = vmatpush1.msra.mxu0 0.0
        %7749 = vmatprep.subr.mxu0 0.0
        %7750 = vmatpush1.msra.mxu0 0.0
        %7751 = vmatprep.subr.mxu0 0.0
        %7752 = vmatpush1.msra.mxu0 0.0
        %7753 = vmatprep.subr.mxu0 0.0
        %7754 = vmatpush1.msra.mxu0 0.0
        %7755 = vmatprep.subr.mxu0 0.0
        %7756 = vmatpush1.msra.mxu0 0.0
        %7757 = vmatprep.subr.mxu0 0.0
        %7758 = vmatpush1.msra.mxu0 0.0
        %7759 = vmatprep.subr.mxu0 0.0
        %7760 = vmatpush1.msra.mxu0 0.0
        %7761 = vmatprep.subr.mxu0 0.0
        %7762 = vmatpush1.msra.mxu0 0.0
        %7763 = vmatprep.subr.mxu0 0.0
        %7764 = vmatpush1.msra.mxu0 0.0
        %7765 = vmatprep.subr.mxu0 0.0
        %7766 = vmatpush1.msra.mxu0 0.0
        %7767 = vmatprep.mubr.f32.mxu0 0.0
        %7768 = vmatmul.mubr.f32.gmra.mrb[0].mxu0 %v7605
        %v7769 = vpop.f32.mrb[0].mxu0
        %v7770 = vadd.f32 0.0, %v7769
        %v7771 = vpop.f32.mrb[0].mxu0
        %7772 = vmatprep.mubr.f32.mxu0 0.0
        %7773 = vmatmul.mubr.f32.gmra.mrb[0].mxu0 %v7608
        %v7774 = vpop.f32.mrb[0].mxu0
        %v7775 = vadd.f32 0.0, %v7774
        %v7776 = vpop.f32.mrb[0].mxu0
        %7777 = vmatprep.mubr.f32.mxu0 0.0
        %7778 = vmatmul.mubr.f32.gmra.mrb[0].mxu0 %v7611
        %v7779 = vpop.f32.mrb[0].mxu0
        %v7780 = vadd.f32 0.0, %v7779
        %v7781 = vpop.f32.mrb[0].mxu0
        %7782 = vmatprep.mubr.f32.mxu0 0.0
        %7783 = vmatmul.mubr.f32.gmra.mrb[0].mxu0 %v7614
        %v7784 = vpop.f32.mrb[0].mxu0
        %v7785 = vadd.f32 0.0, %v7784
        %v7786 = vpop.f32.mrb[0].mxu0
        %7787 = vmatprep.mubr.f32.mxu0 0.0
        %7788 = vmatmul.mubr.f32.gmra.mrb[0].mxu0 %v7617
        %v7789 = vpop.f32.mrb[0].mxu0
        %v7790 = vadd.f32 0.0, %v7789
        %v7791 = vpop.f32.mrb[0].mxu0
        %7792 = vmatprep.mubr.f32.mxu0 0.0
        %7793 = vmatmul.mubr.f32.gmra.mrb[0].mxu0 %v7620
        %v7794 = vpop.f32.mrb[0].mxu0
        %v7795 = vadd.f32 0.0, %v7794
        %v7796 = vpop.f32.mrb[0].mxu0
        %7797 = vmatprep.mubr.f32.mxu0 0.0
        %7798 = vmatmul.mubr.f32.gmra.mrb[0].mxu0 %v7623
        %v7799 = vpop.f32.mrb[0].mxu0
        %v7800 = vadd.f32 0.0, %v7799
        %v7801 = vpop.f32.mrb[0].mxu0
        %7802 = vmatprep.mubr.f32.mxu0 0.0
        %7803 = vmatmul.mubr.f32.gmra.mrb[0].mxu0 %v7626
        %v7804 = vpop.f32.mrb[0].mxu0
        %v7805 = vadd.f32 0.0, %v7804
        %v7806 = vpop.f32.mrb[0].mxu0
        %7807 = vmatprep.mubr.f32.mxu0 0.0
        %7808 = vmatmul.mubr.f32.gmra.mrb[0].mxu0 %v7629
        %v7809 = vpop.f32.mrb[0].mxu0
        %v7810 = vadd.f32 0.0, %v7809
        %v7811 = vpop.f32.mrb[0].mxu0
        %7812 = vmatprep.mubr.f32.mxu0 0.0
        %7813 = vmatmul.mubr.f32.gmra.mrb[0].mxu0 %v7632
        %v7814 = vpop.f32.mrb[0].mxu0
        %v7815 = vadd.f32 0.0, %v7814
        %v7816 = vpop.f32.mrb[0].mxu0
        %7817 = vmatprep.mubr.f32.mxu0 0.0
        %7818 = vmatmul.mubr.f32.gmra.mrb[0].mxu0 %v7635
        %v7819 = vpop.f32.mrb[0].mxu0
        %v7820 = vadd.f32 0.0, %v7819
        %v7821 = vpop.f32.mrb[0].mxu0
        %7822 = vmatprep.mubr.f32.mxu0 0.0
        %7823 = vmatmul.mubr.f32.gmra.mrb[0].mxu0 %v7638
        %v7824 = vpop.f32.mrb[0].mxu0
        %v7825 = vadd.f32 0.0, %v7824
        %v7826 = vpop.f32.mrb[0].mxu0
        %7827 = vmatprep.mubr.f32.mxu0 0.0
        %7828 = vmatmul.mubr.f32.gmra.mrb[0].mxu0 %v7641
        %v7829 = vpop.f32.mrb[0].mxu0
        %v7830 = vadd.f32 0.0, %v7829
        %v7831 = vpop.f32.mrb[0].mxu0
        %7832 = vmatprep.mubr.f32.mxu0 0.0
        %7833 = vmatmul.mubr.f32.gmra.mrb[0].mxu0 %v7644
        %v7834 = vpop.f32.mrb[0].mxu0
        %v7835 = vadd.f32 0.0, %v7834
        %v7836 = vpop.f32.mrb[0].mxu0
        %7837 = vmatprep.mubr.f32.mxu0 0.0
        %7838 = vmatmul.mubr.f32.gmra.mrb[0].mxu0 %v7647
        %v7839 = vpop.f32.mrb[0].mxu0
        %v7840 = vadd.f32 0.0, %v7839
        %v7841 = vpop.f32.mrb[0].mxu0
        %7842 = vmatprep.mubr.f32.mxu0 0.0
        %7843 = vmatmul.mubr.f32.gmra.mrb[0].mxu0 %v7650
        %v7844 = vpop.f32.mrb[0].mxu0
        %v7845 = vadd.f32 0.0, %v7844
        %v7846 = vpop.f32.mrb[0].mxu0
        %7847 = vmatprep.mubr.f32.mxu0 0.0
        %7848 = vmatmul.mubr.f32.gmra.mrb[0].mxu0 %v7653
        %v7849 = vpop.f32.mrb[0].mxu0
        %v7850 = vadd.f32 0.0, %v7849
        %v7851 = vpop.f32.mrb[0].mxu0
        %7852 = vmatprep.mubr.f32.mxu0 0.0
        %7853 = vmatmul.mubr.f32.gmra.mrb[0].mxu0 %v7656
        %v7854 = vpop.f32.mrb[0].mxu0
        %v7855 = vadd.f32 0.0, %v7854
        %v7856 = vpop.f32.mrb[0].mxu0
        %7857 = vmatprep.mubr.f32.mxu0 0.0
        %7858 = vmatmul.mubr.f32.gmra.mrb[0].mxu0 %v7659
        %v7859 = vpop.f32.mrb[0].mxu0
        %v7860 = vadd.f32 0.0, %v7859
        %v7861 = vpop.f32.mrb[0].mxu0
        %7862 = vmatprep.mubr.f32.mxu0 0.0
        %7863 = vmatmul.mubr.f32.gmra.mrb[0].mxu0 %v7662
        %v7864 = vpop.f32.mrb[0].mxu0
        %v7865 = vadd.f32 0.0, %v7864
        %v7866 = vpop.f32.mrb[0].mxu0
        %7867 = vmatprep.mubr.f32.mxu0 0.0
        %7868 = vmatmul.mubr.f32.gmra.mrb[0].mxu0 %v7665
        %v7869 = vpop.f32.mrb[0].mxu0
        %v7870 = vadd.f32 0.0, %v7869
        %v7871 = vpop.f32.mrb[0].mxu0
        %7872 = vmatprep.mubr.f32.mxu0 0.0
        %7873 = vmatmul.mubr.f32.gmra.mrb[0].mxu0 %v7668
        %v7874 = vpop.f32.mrb[0].mxu0
        %v7875 = vadd.f32 0.0, %v7874
        %v7876 = vpop.f32.mrb[0].mxu0
        %7877 = vmatprep.mubr.f32.mxu0 0.0
        %7878 = vmatmul.mubr.f32.gmra.mrb[0].mxu0 %v7671
        %v7879 = vpop.f32.mrb[0].mxu0
        %v7880 = vadd.f32 0.0, %v7879
        %v7881 = vpop.f32.mrb[0].mxu0
        %7882 = vmatprep.mubr.f32.mxu0 0.0
        %7883 = vmatmul.mubr.f32.gmra.mrb[0].mxu0 %v7674
        %v7884 = vpop.f32.mrb[0].mxu0
        %v7885 = vadd.f32 0.0, %v7884
        %v7886 = vpop.f32.mrb[0].mxu0
        %7887 = vmatprep.mubr.f32.mxu0 0.0
        %7888 = vmatmul.mubr.f32.gmra.mrb[0].mxu0 %v7677
        %v7889 = vpop.f32.mrb[0].mxu0
        %v7890 = vadd.f32 0.0, %v7889
        %v7891 = vpop.f32.mrb[0].mxu0
        %7892 = vmatprep.mubr.f32.mxu0 0.0
        %7893 = vmatmul.mubr.f32.gmra.mrb[0].mxu0 %v7680
        %v7894 = vpop.f32.mrb[0].mxu0
        %v7895 = vadd.f32 0.0, %v7894
        %v7896 = vpop.f32.mrb[0].mxu0
        %7897 = vmatprep.mubr.f32.mxu0 0.0
        %7898 = vmatmul.mubr.f32.gmra.mrb[0].mxu0 %v7683
        %v7899 = vpop.f32.mrb[0].mxu0
        %v7900 = vadd.f32 0.0, %v7899
        %v7901 = vpop.f32.mrb[0].mxu0
        %7902 = vmatprep.mubr.f32.mxu0 0.0
        %7903 = vmatmul.mubr.f32.gmra.mrb[0].mxu0 %v7686
        %v7904 = vpop.f32.mrb[0].mxu0
        %v7905 = vadd.f32 0.0, %v7904
        %v7906 = vpop.f32.mrb[0].mxu0
        %7907 = vmatprep.mubr.f32.mxu0 0.0
        %7908 = vmatmul.mubr.f32.gmra.mrb[0].mxu0 %v7689
        %v7909 = vpop.f32.mrb[0].mxu0
        %v7910 = vadd.f32 0.0, %v7909
        %v7911 = vpop.f32.mrb[0].mxu0
        %7912 = vmatprep.mubr.f32.mxu0 0.0
        %7913 = vmatmul.mubr.f32.gmra.mrb[0].mxu0 %v7692
        %v7914 = vpop.f32.mrb[0].mxu0
        %v7915 = vadd.f32 0.0, %v7914
        %v7916 = vpop.f32.mrb[0].mxu0
        %7917 = vmatprep.mubr.f32.mxu0 0.0
        %7918 = vmatmul.mubr.f32.gmra.mrb[0].mxu0 %v7695
        %v7919 = vpop.f32.mrb[0].mxu0
        %v7920 = vadd.f32 0.0, %v7919
        %v7921 = vpop.f32.mrb[0].mxu0
        %7922 = vmatprep.mubr.f32.mxu0 0.0
        %7923 = vmatmul.mubr.f32.gmra.mrb[0].mxu0 %v7698
        %v7924 = vpop.f32.mrb[0].mxu0
        %v7925 = vadd.f32 0.0, %v7924
        %v7926 = vpop.f32.mrb[0].mxu0
        %7927 = vdwg.mxu0
        %v7928 = vadd.f32 %v7538, %v7770
        %v7929 = vadd.f32 %v7539, %v7775
        %v7930 = vadd.f32 %v7540, %v7780
        %v7931 = vadd.f32 %v7541, %v7785
        %v7932 = vadd.f32 %v7542, %v7790
        %v7933 = vadd.f32 %v7543, %v7795
        %v7934 = vadd.f32 %v7544, %v7800
        %v7935 = vadd.f32 %v7545, %v7805
        %v7936 = vadd.f32 %v7546, %v7810
        %v7937 = vadd.f32 %v7547, %v7815
        %v7938 = vadd.f32 %v7548, %v7820
        %v7939 = vadd.f32 %v7549, %v7825
        %v7940 = vadd.f32 %v7550, %v7830
        %v7941 = vadd.f32 %v7551, %v7835
        %v7942 = vadd.f32 %v7552, %v7840
        %v7943 = vadd.f32 %v7553, %v7845
        %v7944 = vadd.f32 %v7554, %v7850
        %v7945 = vadd.f32 %v7555, %v7855
        %v7946 = vadd.f32 %v7556, %v7860
        %v7947 = vadd.f32 %v7557, %v7865
        %v7948 = vadd.f32 %v7558, %v7870
        %v7949 = vadd.f32 %v7559, %v7875
        %v7950 = vadd.f32 %v7560, %v7880
        %v7951 = vadd.f32 %v7561, %v7885
        %v7952 = vadd.f32 %v7562, %v7890
        %v7953 = vadd.f32 %v7563, %v7895
        %v7954 = vadd.f32 %v7564, %v7900
        %v7955 = vadd.f32 %v7565, %v7905
        %v7956 = vadd.f32 %v7566, %v7910
        %v7957 = vadd.f32 %v7567, %v7915
        %v7958 = vadd.f32 %v7568, %v7920
        %v7959 = vadd.f32 %v7569, %v7925
        %s7960 = sadd.s32 %s211, 4
        %s7961 = smul.u32 %s7960, 40
        %s7962 = scalar_lea.vmem %s209, %s7961
        %v7963 = vld [vmem:[%s7962] sm:$0xff]
        %v7964 = vld [vmem:[%s7962 + $0x8] sm:$0xff]
        %v7965 = vld [vmem:[%s7962 + $0x10] sm:$0xff]
        %v7966 = vld [vmem:[%s7962 + $0x18] sm:$0xff]
        %v7967 = vld [vmem:[%s7962 + $0x28] sm:$0xff]
        %v7968 = vld [vmem:[%s7962 + $0x30] sm:$0xff]
        %v7969 = vld [vmem:[%s7962 + $0x38] sm:$0xff]
        %v7970 = vld [vmem:[%s7962 + $0x40] sm:$0xff]
        %v7971 = vld [vmem:[%s7962 + $0x50] sm:$0xff]
        %v7972 = vld [vmem:[%s7962 + $0x58] sm:$0xff]
        %v7973 = vld [vmem:[%s7962 + $0x60] sm:$0xff]
        %v7974 = vld [vmem:[%s7962 + $0x68] sm:$0xff]
        %v7975 = vld [vmem:[%s7962 + $0x78] sm:$0xff]
        %v7976 = vld [vmem:[%s7962 + $0x80] sm:$0xff]
        %v7977 = vld [vmem:[%s7962 + $0x88] sm:$0xff]
        %v7978 = vld [vmem:[%s7962 + $0x90] sm:$0xff]
        %v7979 = vld [vmem:[%s7962 + $0xa0] sm:$0xff]
        %v7980 = vld [vmem:[%s7962 + $0xa8] sm:$0xff]
        %v7981 = vld [vmem:[%s7962 + $0xb0] sm:$0xff]
        %v7982 = vld [vmem:[%s7962 + $0xb8] sm:$0xff]
        %v7983 = vld [vmem:[%s7962 + $0xc8] sm:$0xff]
        %v7984 = vld [vmem:[%s7962 + $0xd0] sm:$0xff]
        %v7985 = vld [vmem:[%s7962 + $0xd8] sm:$0xff]
        %v7986 = vld [vmem:[%s7962 + $0xe0] sm:$0xff]
        %v7987 = vld [vmem:[%s7962 + $0xf0] sm:$0xff]
        %v7988 = vld [vmem:[%s7962 + $0xf8] sm:$0xff]
        %v7989 = vld [vmem:[%s7962 + $0x100] sm:$0xff]
        %v7990 = vld [vmem:[%s7962 + $0x108] sm:$0xff]
        %v7991 = vld [vmem:[%s7962 + $0x118] sm:$0xff]
        %v7992 = vld [vmem:[%s7962 + $0x120] sm:$0xff]
        %v7993 = vld [vmem:[%s7962 + $0x128] sm:$0xff]
        %v7994 = vld [vmem:[%s7962 + $0x130] sm:$0xff]
        %s7995 = scalar_lea.vmem %s1, 40
        %v7996 = vld [vmem:[%s7995] sm:$0x3]
        %v7998 = vsel %vm281, %v7963, 0
        %v8001 = vsel %vm281, %v7964, 0
        %v8004 = vsel %vm281, %v7965, 0
        %v8007 = vsel %vm281, %v7966, 0
        %v8010 = vsel %vm281, %v7967, 0
        %v8013 = vsel %vm281, %v7968, 0
        %v8016 = vsel %vm281, %v7969, 0
        %v8019 = vsel %vm281, %v7970, 0
        %v8022 = vsel %vm281, %v7971, 0
        %v8025 = vsel %vm281, %v7972, 0
        %v8028 = vsel %vm281, %v7973, 0
        %v8031 = vsel %vm281, %v7974, 0
        %v8034 = vsel %vm281, %v7975, 0
        %v8037 = vsel %vm281, %v7976, 0
        %v8040 = vsel %vm281, %v7977, 0
        %v8043 = vsel %vm281, %v7978, 0
        %v8046 = vsel %vm281, %v7979, 0
        %v8049 = vsel %vm281, %v7980, 0
        %v8052 = vsel %vm281, %v7981, 0
        %v8055 = vsel %vm281, %v7982, 0
        %v8058 = vsel %vm281, %v7983, 0
        %v8061 = vsel %vm281, %v7984, 0
        %v8064 = vsel %vm281, %v7985, 0
        %v8067 = vsel %vm281, %v7986, 0
        %v8070 = vsel %vm281, %v7987, 0
        %v8073 = vsel %vm281, %v7988, 0
        %v8076 = vsel %vm281, %v7989, 0
        %v8079 = vsel %vm281, %v7990, 0
        %v8082 = vsel %vm281, %v7991, 0
        %v8085 = vsel %vm281, %v7992, 0
        %v8088 = vsel %vm281, %v7993, 0
        %v8091 = vsel %vm281, %v7994, 0
        %v8094 = vsel %vm378, %v7996, 0
        %8096 = vmatprep.subr.mxu0 0.0
        %8097 = vmatpush1.msra.mxu0 %v8094
        %8098 = vmatprep.subr.mxu0 0.0
        %8099 = vmatpush1.msra.mxu0 0.0
        %8100 = vmatprep.subr.mxu0 0.0
        %8101 = vmatpush1.msra.mxu0 0.0
        %8102 = vmatprep.subr.mxu0 0.0
        %8103 = vmatpush1.msra.mxu0 0.0
        %8104 = vmatprep.subr.mxu0 0.0
        %8105 = vmatpush1.msra.mxu0 0.0
        %8106 = vmatprep.subr.mxu0 0.0
        %8107 = vmatpush1.msra.mxu0 0.0
        %8108 = vmatprep.subr.mxu0 0.0
        %8109 = vmatpush1.msra.mxu0 0.0
        %8110 = vmatprep.subr.mxu0 0.0
        %8111 = vmatpush1.msra.mxu0 0.0
        %8112 = vmatprep.subr.mxu0 0.0
        %8113 = vmatpush1.msra.mxu0 0.0
        %8114 = vmatprep.subr.mxu0 0.0
        %8115 = vmatpush1.msra.mxu0 0.0
        %8116 = vmatprep.subr.mxu0 0.0
        %8117 = vmatpush1.msra.mxu0 0.0
        %8118 = vmatprep.subr.mxu0 0.0
        %8119 = vmatpush1.msra.mxu0 0.0
        %8120 = vmatprep.subr.mxu0 0.0
        %8121 = vmatpush1.msra.mxu0 0.0
        %8122 = vmatprep.subr.mxu0 0.0
        %8123 = vmatpush1.msra.mxu0 0.0
        %8124 = vmatprep.subr.mxu0 0.0
        %8125 = vmatpush1.msra.mxu0 0.0
        %8126 = vmatprep.subr.mxu0 0.0
        %8127 = vmatpush1.msra.mxu0 0.0
        %8128 = vmatprep.subr.mxu0 0.0
        %8129 = vmatpush1.msra.mxu0 0.0
        %8130 = vmatprep.subr.mxu0 0.0
        %8131 = vmatpush1.msra.mxu0 0.0
        %8132 = vmatprep.subr.mxu0 0.0
        %8133 = vmatpush1.msra.mxu0 0.0
        %8134 = vmatprep.subr.mxu0 0.0
        %8135 = vmatpush1.msra.mxu0 0.0
        %8136 = vmatprep.subr.mxu0 0.0
        %8137 = vmatpush1.msra.mxu0 0.0
        %8138 = vmatprep.subr.mxu0 0.0
        %8139 = vmatpush1.msra.mxu0 0.0
        %8140 = vmatprep.subr.mxu0 0.0
        %8141 = vmatpush1.msra.mxu0 0.0
        %8142 = vmatprep.subr.mxu0 0.0
        %8143 = vmatpush1.msra.mxu0 0.0
        %8144 = vmatprep.subr.mxu0 0.0
        %8145 = vmatpush1.msra.mxu0 0.0
        %8146 = vmatprep.subr.mxu0 0.0
        %8147 = vmatpush1.msra.mxu0 0.0
        %8148 = vmatprep.subr.mxu0 0.0
        %8149 = vmatpush1.msra.mxu0 0.0
        %8150 = vmatprep.subr.mxu0 0.0
        %8151 = vmatpush1.msra.mxu0 0.0
        %8152 = vmatprep.subr.mxu0 0.0
        %8153 = vmatpush1.msra.mxu0 0.0
        %8154 = vmatprep.subr.mxu0 0.0
        %8155 = vmatpush1.msra.mxu0 0.0
        %8156 = vmatprep.subr.mxu0 0.0
        %8157 = vmatpush1.msra.mxu0 0.0
        %8158 = vmatprep.subr.mxu0 0.0
        %8159 = vmatpush1.msra.mxu0 0.0
        %8160 = vmatprep.mubr.f32.mxu0 0.0
        %8161 = vmatmul.mubr.f32.gmra.mrb[0].mxu0 %v7998
        %v8162 = vpop.f32.mrb[0].mxu0
        %v8163 = vadd.f32 0.0, %v8162
        %v8164 = vpop.f32.mrb[0].mxu0
        %8165 = vmatprep.mubr.f32.mxu0 0.0
        %8166 = vmatmul.mubr.f32.gmra.mrb[0].mxu0 %v8001
        %v8167 = vpop.f32.mrb[0].mxu0
        %v8168 = vadd.f32 0.0, %v8167
        %v8169 = vpop.f32.mrb[0].mxu0
        %8170 = vmatprep.mubr.f32.mxu0 0.0
        %8171 = vmatmul.mubr.f32.gmra.mrb[0].mxu0 %v8004
        %v8172 = vpop.f32.mrb[0].mxu0
        %v8173 = vadd.f32 0.0, %v8172
        %v8174 = vpop.f32.mrb[0].mxu0
        %8175 = vmatprep.mubr.f32.mxu0 0.0
        %8176 = vmatmul.mubr.f32.gmra.mrb[0].mxu0 %v8007
        %v8177 = vpop.f32.mrb[0].mxu0
        %v8178 = vadd.f32 0.0, %v8177
        %v8179 = vpop.f32.mrb[0].mxu0
        %8180 = vmatprep.mubr.f32.mxu0 0.0
        %8181 = vmatmul.mubr.f32.gmra.mrb[0].mxu0 %v8010
        %v8182 = vpop.f32.mrb[0].mxu0
        %v8183 = vadd.f32 0.0, %v8182
        %v8184 = vpop.f32.mrb[0].mxu0
        %8185 = vmatprep.mubr.f32.mxu0 0.0
        %8186 = vmatmul.mubr.f32.gmra.mrb[0].mxu0 %v8013
        %v8187 = vpop.f32.mrb[0].mxu0
        %v8188 = vadd.f32 0.0, %v8187
        %v8189 = vpop.f32.mrb[0].mxu0
        %8190 = vmatprep.mubr.f32.mxu0 0.0
        %8191 = vmatmul.mubr.f32.gmra.mrb[0].mxu0 %v8016
        %v8192 = vpop.f32.mrb[0].mxu0
        %v8193 = vadd.f32 0.0, %v8192
        %v8194 = vpop.f32.mrb[0].mxu0
        %8195 = vmatprep.mubr.f32.mxu0 0.0
        %8196 = vmatmul.mubr.f32.gmra.mrb[0].mxu0 %v8019
        %v8197 = vpop.f32.mrb[0].mxu0
        %v8198 = vadd.f32 0.0, %v8197
        %v8199 = vpop.f32.mrb[0].mxu0
        %8200 = vmatprep.mubr.f32.mxu0 0.0
        %8201 = vmatmul.mubr.f32.gmra.mrb[0].mxu0 %v8022
        %v8202 = vpop.f32.mrb[0].mxu0
        %v8203 = vadd.f32 0.0, %v8202
        %v8204 = vpop.f32.mrb[0].mxu0
        %8205 = vmatprep.mubr.f32.mxu0 0.0
        %8206 = vmatmul.mubr.f32.gmra.mrb[0].mxu0 %v8025
        %v8207 = vpop.f32.mrb[0].mxu0
        %v8208 = vadd.f32 0.0, %v8207
        %v8209 = vpop.f32.mrb[0].mxu0
        %8210 = vmatprep.mubr.f32.mxu0 0.0
        %8211 = vmatmul.mubr.f32.gmra.mrb[0].mxu0 %v8028
        %v8212 = vpop.f32.mrb[0].mxu0
        %v8213 = vadd.f32 0.0, %v8212
        %v8214 = vpop.f32.mrb[0].mxu0
        %8215 = vmatprep.mubr.f32.mxu0 0.0
        %8216 = vmatmul.mubr.f32.gmra.mrb[0].mxu0 %v8031
        %v8217 = vpop.f32.mrb[0].mxu0
        %v8218 = vadd.f32 0.0, %v8217
        %v8219 = vpop.f32.mrb[0].mxu0
        %8220 = vmatprep.mubr.f32.mxu0 0.0
        %8221 = vmatmul.mubr.f32.gmra.mrb[0].mxu0 %v8034
        %v8222 = vpop.f32.mrb[0].mxu0
        %v8223 = vadd.f32 0.0, %v8222
        %v8224 = vpop.f32.mrb[0].mxu0
        %8225 = vmatprep.mubr.f32.mxu0 0.0
        %8226 = vmatmul.mubr.f32.gmra.mrb[0].mxu0 %v8037
        %v8227 = vpop.f32.mrb[0].mxu0
        %v8228 = vadd.f32 0.0, %v8227
        %v8229 = vpop.f32.mrb[0].mxu0
        %8230 = vmatprep.mubr.f32.mxu0 0.0
        %8231 = vmatmul.mubr.f32.gmra.mrb[0].mxu0 %v8040
        %v8232 = vpop.f32.mrb[0].mxu0
        %v8233 = vadd.f32 0.0, %v8232
        %v8234 = vpop.f32.mrb[0].mxu0
        %8235 = vmatprep.mubr.f32.mxu0 0.0
        %8236 = vmatmul.mubr.f32.gmra.mrb[0].mxu0 %v8043
        %v8237 = vpop.f32.mrb[0].mxu0
        %v8238 = vadd.f32 0.0, %v8237
        %v8239 = vpop.f32.mrb[0].mxu0
        %8240 = vmatprep.mubr.f32.mxu0 0.0
        %8241 = vmatmul.mubr.f32.gmra.mrb[0].mxu0 %v8046
        %v8242 = vpop.f32.mrb[0].mxu0
        %v8243 = vadd.f32 0.0, %v8242
        %v8244 = vpop.f32.mrb[0].mxu0
        %8245 = vmatprep.mubr.f32.mxu0 0.0
        %8246 = vmatmul.mubr.f32.gmra.mrb[0].mxu0 %v8049
        %v8247 = vpop.f32.mrb[0].mxu0
        %v8248 = vadd.f32 0.0, %v8247
        %v8249 = vpop.f32.mrb[0].mxu0
        %8250 = vmatprep.mubr.f32.mxu0 0.0
        %8251 = vmatmul.mubr.f32.gmra.mrb[0].mxu0 %v8052
        %v8252 = vpop.f32.mrb[0].mxu0
        %v8253 = vadd.f32 0.0, %v8252
        %v8254 = vpop.f32.mrb[0].mxu0
        %8255 = vmatprep.mubr.f32.mxu0 0.0
        %8256 = vmatmul.mubr.f32.gmra.mrb[0].mxu0 %v8055
        %v8257 = vpop.f32.mrb[0].mxu0
        %v8258 = vadd.f32 0.0, %v8257
        %v8259 = vpop.f32.mrb[0].mxu0
        %8260 = vmatprep.mubr.f32.mxu0 0.0
        %8261 = vmatmul.mubr.f32.gmra.mrb[0].mxu0 %v8058
        %v8262 = vpop.f32.mrb[0].mxu0
        %v8263 = vadd.f32 0.0, %v8262
        %v8264 = vpop.f32.mrb[0].mxu0
        %8265 = vmatprep.mubr.f32.mxu0 0.0
        %8266 = vmatmul.mubr.f32.gmra.mrb[0].mxu0 %v8061
        %v8267 = vpop.f32.mrb[0].mxu0
        %v8268 = vadd.f32 0.0, %v8267
        %v8269 = vpop.f32.mrb[0].mxu0
        %8270 = vmatprep.mubr.f32.mxu0 0.0
        %8271 = vmatmul.mubr.f32.gmra.mrb[0].mxu0 %v8064
        %v8272 = vpop.f32.mrb[0].mxu0
        %v8273 = vadd.f32 0.0, %v8272
        %v8274 = vpop.f32.mrb[0].mxu0
        %8275 = vmatprep.mubr.f32.mxu0 0.0
        %8276 = vmatmul.mubr.f32.gmra.mrb[0].mxu0 %v8067
        %v8277 = vpop.f32.mrb[0].mxu0
        %v8278 = vadd.f32 0.0, %v8277
        %v8279 = vpop.f32.mrb[0].mxu0
        %8280 = vmatprep.mubr.f32.mxu0 0.0
        %8281 = vmatmul.mubr.f32.gmra.mrb[0].mxu0 %v8070
        %v8282 = vpop.f32.mrb[0].mxu0
        %v8283 = vadd.f32 0.0, %v8282
        %v8284 = vpop.f32.mrb[0].mxu0
        %8285 = vmatprep.mubr.f32.mxu0 0.0
        %8286 = vmatmul.mubr.f32.gmra.mrb[0].mxu0 %v8073
        %v8287 = vpop.f32.mrb[0].mxu0
        %v8288 = vadd.f32 0.0, %v8287
        %v8289 = vpop.f32.mrb[0].mxu0
        %8290 = vmatprep.mubr.f32.mxu0 0.0
        %8291 = vmatmul.mubr.f32.gmra.mrb[0].mxu0 %v8076
        %v8292 = vpop.f32.mrb[0].mxu0
        %v8293 = vadd.f32 0.0, %v8292
        %v8294 = vpop.f32.mrb[0].mxu0
        %8295 = vmatprep.mubr.f32.mxu0 0.0
        %8296 = vmatmul.mubr.f32.gmra.mrb[0].mxu0 %v8079
        %v8297 = vpop.f32.mrb[0].mxu0
        %v8298 = vadd.f32 0.0, %v8297
        %v8299 = vpop.f32.mrb[0].mxu0
        %8300 = vmatprep.mubr.f32.mxu0 0.0
        %8301 = vmatmul.mubr.f32.gmra.mrb[0].mxu0 %v8082
        %v8302 = vpop.f32.mrb[0].mxu0
        %v8303 = vadd.f32 0.0, %v8302
        %v8304 = vpop.f32.mrb[0].mxu0
        %8305 = vmatprep.mubr.f32.mxu0 0.0
        %8306 = vmatmul.mubr.f32.gmra.mrb[0].mxu0 %v8085
        %v8307 = vpop.f32.mrb[0].mxu0
        %v8308 = vadd.f32 0.0, %v8307
        %v8309 = vpop.f32.mrb[0].mxu0
        %8310 = vmatprep.mubr.f32.mxu0 0.0
        %8311 = vmatmul.mubr.f32.gmra.mrb[0].mxu0 %v8088
        %v8312 = vpop.f32.mrb[0].mxu0
        %v8313 = vadd.f32 0.0, %v8312
        %v8314 = vpop.f32.mrb[0].mxu0
        %8315 = vmatprep.mubr.f32.mxu0 0.0
        %8316 = vmatmul.mubr.f32.gmra.mrb[0].mxu0 %v8091
        %v8317 = vpop.f32.mrb[0].mxu0
        %v8318 = vadd.f32 0.0, %v8317
        %v8319 = vpop.f32.mrb[0].mxu0
        %8320 = vdwg.mxu0
        %v8321 = vadd.f32 %v7928, %v8163
        %v8322 = vadd.f32 %v7929, %v8168
        %v8323 = vadd.f32 %v7930, %v8173
        %v8324 = vadd.f32 %v7931, %v8178
        %v8325 = vadd.f32 %v7932, %v8183
        %v8326 = vadd.f32 %v7933, %v8188
        %v8327 = vadd.f32 %v7934, %v8193
        %v8328 = vadd.f32 %v7935, %v8198
        %v8329 = vadd.f32 %v7936, %v8203
        %v8330 = vadd.f32 %v7937, %v8208
        %v8331 = vadd.f32 %v7938, %v8213
        %v8332 = vadd.f32 %v7939, %v8218
        %v8333 = vadd.f32 %v7940, %v8223
        %v8334 = vadd.f32 %v7941, %v8228
        %v8335 = vadd.f32 %v7942, %v8233
        %v8336 = vadd.f32 %v7943, %v8238
        %v8337 = vadd.f32 %v7944, %v8243
        %v8338 = vadd.f32 %v7945, %v8248
        %v8339 = vadd.f32 %v7946, %v8253
        %v8340 = vadd.f32 %v7947, %v8258
        %v8341 = vadd.f32 %v7948, %v8263
        %v8342 = vadd.f32 %v7949, %v8268
        %v8343 = vadd.f32 %v7950, %v8273
        %v8344 = vadd.f32 %v7951, %v8278
        %v8345 = vadd.f32 %v7952, %v8283
        %v8346 = vadd.f32 %v7953, %v8288
        %v8347 = vadd.f32 %v7954, %v8293
        %v8348 = vadd.f32 %v7955, %v8298
        %v8349 = vadd.f32 %v7956, %v8303
        %v8350 = vadd.f32 %v7957, %v8308
        %v8351 = vadd.f32 %v7958, %v8313
        %v8352 = vadd.f32 %v7959, %v8318
        %v8353 = vld [vmem:[%s7962 + $0x1] sm:$0xff]
        %v8354 = vld [vmem:[%s7962 + $0x9] sm:$0xff]
        %v8355 = vld [vmem:[%s7962 + $0x11] sm:$0xff]
        %v8356 = vld [vmem:[%s7962 + $0x19] sm:$0xff]
        %v8357 = vld [vmem:[%s7962 + $0x29] sm:$0xff]
        %v8358 = vld [vmem:[%s7962 + $0x31] sm:$0xff]
        %v8359 = vld [vmem:[%s7962 + $0x39] sm:$0xff]
        %v8360 = vld [vmem:[%s7962 + $0x41] sm:$0xff]
        %v8361 = vld [vmem:[%s7962 + $0x51] sm:$0xff]
        %v8362 = vld [vmem:[%s7962 + $0x59] sm:$0xff]
        %v8363 = vld [vmem:[%s7962 + $0x61] sm:$0xff]
        %v8364 = vld [vmem:[%s7962 + $0x69] sm:$0xff]
        %v8365 = vld [vmem:[%s7962 + $0x79] sm:$0xff]
        %v8366 = vld [vmem:[%s7962 + $0x81] sm:$0xff]
        %v8367 = vld [vmem:[%s7962 + $0x89] sm:$0xff]
        %v8368 = vld [vmem:[%s7962 + $0x91] sm:$0xff]
        %v8369 = vld [vmem:[%s7962 + $0xa1] sm:$0xff]
        %v8370 = vld [vmem:[%s7962 + $0xa9] sm:$0xff]
        %v8371 = vld [vmem:[%s7962 + $0xb1] sm:$0xff]
        %v8372 = vld [vmem:[%s7962 + $0xb9] sm:$0xff]
        %v8373 = vld [vmem:[%s7962 + $0xc9] sm:$0xff]
        %v8374 = vld [vmem:[%s7962 + $0xd1] sm:$0xff]
        %v8375 = vld [vmem:[%s7962 + $0xd9] sm:$0xff]
        %v8376 = vld [vmem:[%s7962 + $0xe1] sm:$0xff]
        %v8377 = vld [vmem:[%s7962 + $0xf1] sm:$0xff]
        %v8378 = vld [vmem:[%s7962 + $0xf9] sm:$0xff]
        %v8379 = vld [vmem:[%s7962 + $0x101] sm:$0xff]
        %v8380 = vld [vmem:[%s7962 + $0x109] sm:$0xff]
        %v8381 = vld [vmem:[%s7962 + $0x119] sm:$0xff]
        %v8382 = vld [vmem:[%s7962 + $0x121] sm:$0xff]
        %v8383 = vld [vmem:[%s7962 + $0x129] sm:$0xff]
        %v8384 = vld [vmem:[%s7962 + $0x131] sm:$0xff]
        %s8385 = scalar_lea.vmem %s1, 42
        %v8386 = vld [vmem:[%s8385] sm:$0x3]
        %v8388 = vsel %vm281, %v8353, 0
        %v8391 = vsel %vm281, %v8354, 0
        %v8394 = vsel %vm281, %v8355, 0
        %v8397 = vsel %vm281, %v8356, 0
        %v8400 = vsel %vm281, %v8357, 0
        %v8403 = vsel %vm281, %v8358, 0
        %v8406 = vsel %vm281, %v8359, 0
        %v8409 = vsel %vm281, %v8360, 0
        %v8412 = vsel %vm281, %v8361, 0
        %v8415 = vsel %vm281, %v8362, 0
        %v8418 = vsel %vm281, %v8363, 0
        %v8421 = vsel %vm281, %v8364, 0
        %v8424 = vsel %vm281, %v8365, 0
        %v8427 = vsel %vm281, %v8366, 0
        %v8430 = vsel %vm281, %v8367, 0
        %v8433 = vsel %vm281, %v8368, 0
        %v8436 = vsel %vm281, %v8369, 0
        %v8439 = vsel %vm281, %v8370, 0
        %v8442 = vsel %vm281, %v8371, 0
        %v8445 = vsel %vm281, %v8372, 0
        %v8448 = vsel %vm281, %v8373, 0
        %v8451 = vsel %vm281, %v8374, 0
        %v8454 = vsel %vm281, %v8375, 0
        %v8457 = vsel %vm281, %v8376, 0
        %v8460 = vsel %vm281, %v8377, 0
        %v8463 = vsel %vm281, %v8378, 0
        %v8466 = vsel %vm281, %v8379, 0
        %v8469 = vsel %vm281, %v8380, 0
        %v8472 = vsel %vm281, %v8381, 0
        %v8475 = vsel %vm281, %v8382, 0
        %v8478 = vsel %vm281, %v8383, 0
        %v8481 = vsel %vm281, %v8384, 0
        %v8484 = vsel %vm378, %v8386, 0
        %8486 = vmatprep.subr.mxu0 0.0
        %8487 = vmatpush1.msra.mxu0 %v8484
        %8488 = vmatprep.subr.mxu0 0.0
        %8489 = vmatpush1.msra.mxu0 0.0
        %8490 = vmatprep.subr.mxu0 0.0
        %8491 = vmatpush1.msra.mxu0 0.0
        %8492 = vmatprep.subr.mxu0 0.0
        %8493 = vmatpush1.msra.mxu0 0.0
        %8494 = vmatprep.subr.mxu0 0.0
        %8495 = vmatpush1.msra.mxu0 0.0
        %8496 = vmatprep.subr.mxu0 0.0
        %8497 = vmatpush1.msra.mxu0 0.0
        %8498 = vmatprep.subr.mxu0 0.0
        %8499 = vmatpush1.msra.mxu0 0.0
        %8500 = vmatprep.subr.mxu0 0.0
        %8501 = vmatpush1.msra.mxu0 0.0
        %8502 = vmatprep.subr.mxu0 0.0
        %8503 = vmatpush1.msra.mxu0 0.0
        %8504 = vmatprep.subr.mxu0 0.0
        %8505 = vmatpush1.msra.mxu0 0.0
        %8506 = vmatprep.subr.mxu0 0.0
        %8507 = vmatpush1.msra.mxu0 0.0
        %8508 = vmatprep.subr.mxu0 0.0
        %8509 = vmatpush1.msra.mxu0 0.0
        %8510 = vmatprep.subr.mxu0 0.0
        %8511 = vmatpush1.msra.mxu0 0.0
        %8512 = vmatprep.subr.mxu0 0.0
        %8513 = vmatpush1.msra.mxu0 0.0
        %8514 = vmatprep.subr.mxu0 0.0
        %8515 = vmatpush1.msra.mxu0 0.0
        %8516 = vmatprep.subr.mxu0 0.0
        %8517 = vmatpush1.msra.mxu0 0.0
        %8518 = vmatprep.subr.mxu0 0.0
        %8519 = vmatpush1.msra.mxu0 0.0
        %8520 = vmatprep.subr.mxu0 0.0
        %8521 = vmatpush1.msra.mxu0 0.0
        %8522 = vmatprep.subr.mxu0 0.0
        %8523 = vmatpush1.msra.mxu0 0.0
        %8524 = vmatprep.subr.mxu0 0.0
        %8525 = vmatpush1.msra.mxu0 0.0
        %8526 = vmatprep.subr.mxu0 0.0
        %8527 = vmatpush1.msra.mxu0 0.0
        %8528 = vmatprep.subr.mxu0 0.0
        %8529 = vmatpush1.msra.mxu0 0.0
        %8530 = vmatprep.subr.mxu0 0.0
        %8531 = vmatpush1.msra.mxu0 0.0
        %8532 = vmatprep.subr.mxu0 0.0
        %8533 = vmatpush1.msra.mxu0 0.0
        %8534 = vmatprep.subr.mxu0 0.0
        %8535 = vmatpush1.msra.mxu0 0.0
        %8536 = vmatprep.subr.mxu0 0.0
        %8537 = vmatpush1.msra.mxu0 0.0
        %8538 = vmatprep.subr.mxu0 0.0
        %8539 = vmatpush1.msra.mxu0 0.0
        %8540 = vmatprep.subr.mxu0 0.0
        %8541 = vmatpush1.msra.mxu0 0.0
        %8542 = vmatprep.subr.mxu0 0.0
        %8543 = vmatpush1.msra.mxu0 0.0
        %8544 = vmatprep.subr.mxu0 0.0
        %8545 = vmatpush1.msra.mxu0 0.0
        %8546 = vmatprep.subr.mxu0 0.0
        %8547 = vmatpush1.msra.mxu0 0.0
        %8548 = vmatprep.subr.mxu0 0.0
        %8549 = vmatpush1.msra.mxu0 0.0
        %8550 = vmatprep.mubr.f32.mxu0 0.0
        %8551 = vmatmul.mubr.f32.gmra.mrb[0].mxu0 %v8388
        %v8552 = vpop.f32.mrb[0].mxu0
        %v8553 = vadd.f32 0.0, %v8552
        %v8554 = vpop.f32.mrb[0].mxu0
        %8555 = vmatprep.mubr.f32.mxu0 0.0
        %8556 = vmatmul.mubr.f32.gmra.mrb[0].mxu0 %v8391
        %v8557 = vpop.f32.mrb[0].mxu0
        %v8558 = vadd.f32 0.0, %v8557
        %v8559 = vpop.f32.mrb[0].mxu0
        %8560 = vmatprep.mubr.f32.mxu0 0.0
        %8561 = vmatmul.mubr.f32.gmra.mrb[0].mxu0 %v8394
        %v8562 = vpop.f32.mrb[0].mxu0
        %v8563 = vadd.f32 0.0, %v8562
        %v8564 = vpop.f32.mrb[0].mxu0
        %8565 = vmatprep.mubr.f32.mxu0 0.0
        %8566 = vmatmul.mubr.f32.gmra.mrb[0].mxu0 %v8397
        %v8567 = vpop.f32.mrb[0].mxu0
        %v8568 = vadd.f32 0.0, %v8567
        %v8569 = vpop.f32.mrb[0].mxu0
        %8570 = vmatprep.mubr.f32.mxu0 0.0
        %8571 = vmatmul.mubr.f32.gmra.mrb[0].mxu0 %v8400
        %v8572 = vpop.f32.mrb[0].mxu0
        %v8573 = vadd.f32 0.0, %v8572
        %v8574 = vpop.f32.mrb[0].mxu0
        %8575 = vmatprep.mubr.f32.mxu0 0.0
        %8576 = vmatmul.mubr.f32.gmra.mrb[0].mxu0 %v8403
        %v8577 = vpop.f32.mrb[0].mxu0
        %v8578 = vadd.f32 0.0, %v8577
        %v8579 = vpop.f32.mrb[0].mxu0
        %8580 = vmatprep.mubr.f32.mxu0 0.0
        %8581 = vmatmul.mubr.f32.gmra.mrb[0].mxu0 %v8406
        %v8582 = vpop.f32.mrb[0].mxu0
        %v8583 = vadd.f32 0.0, %v8582
        %v8584 = vpop.f32.mrb[0].mxu0
        %8585 = vmatprep.mubr.f32.mxu0 0.0
        %8586 = vmatmul.mubr.f32.gmra.mrb[0].mxu0 %v8409
        %v8587 = vpop.f32.mrb[0].mxu0
        %v8588 = vadd.f32 0.0, %v8587
        %v8589 = vpop.f32.mrb[0].mxu0
        %8590 = vmatprep.mubr.f32.mxu0 0.0
        %8591 = vmatmul.mubr.f32.gmra.mrb[0].mxu0 %v8412
        %v8592 = vpop.f32.mrb[0].mxu0
        %v8593 = vadd.f32 0.0, %v8592
        %v8594 = vpop.f32.mrb[0].mxu0
        %8595 = vmatprep.mubr.f32.mxu0 0.0
        %8596 = vmatmul.mubr.f32.gmra.mrb[0].mxu0 %v8415
        %v8597 = vpop.f32.mrb[0].mxu0
        %v8598 = vadd.f32 0.0, %v8597
        %v8599 = vpop.f32.mrb[0].mxu0
        %8600 = vmatprep.mubr.f32.mxu0 0.0
        %8601 = vmatmul.mubr.f32.gmra.mrb[0].mxu0 %v8418
        %v8602 = vpop.f32.mrb[0].mxu0
        %v8603 = vadd.f32 0.0, %v8602
        %v8604 = vpop.f32.mrb[0].mxu0
        %8605 = vmatprep.mubr.f32.mxu0 0.0
        %8606 = vmatmul.mubr.f32.gmra.mrb[0].mxu0 %v8421
        %v8607 = vpop.f32.mrb[0].mxu0
        %v8608 = vadd.f32 0.0, %v8607
        %v8609 = vpop.f32.mrb[0].mxu0
        %8610 = vmatprep.mubr.f32.mxu0 0.0
        %8611 = vmatmul.mubr.f32.gmra.mrb[0].mxu0 %v8424
        %v8612 = vpop.f32.mrb[0].mxu0
        %v8613 = vadd.f32 0.0, %v8612
        %v8614 = vpop.f32.mrb[0].mxu0
        %8615 = vmatprep.mubr.f32.mxu0 0.0
        %8616 = vmatmul.mubr.f32.gmra.mrb[0].mxu0 %v8427
        %v8617 = vpop.f32.mrb[0].mxu0
        %v8618 = vadd.f32 0.0, %v8617
        %v8619 = vpop.f32.mrb[0].mxu0
        %8620 = vmatprep.mubr.f32.mxu0 0.0
        %8621 = vmatmul.mubr.f32.gmra.mrb[0].mxu0 %v8430
        %v8622 = vpop.f32.mrb[0].mxu0
        %v8623 = vadd.f32 0.0, %v8622
        %v8624 = vpop.f32.mrb[0].mxu0
        %8625 = vmatprep.mubr.f32.mxu0 0.0
        %8626 = vmatmul.mubr.f32.gmra.mrb[0].mxu0 %v8433
        %v8627 = vpop.f32.mrb[0].mxu0
        %v8628 = vadd.f32 0.0, %v8627
        %v8629 = vpop.f32.mrb[0].mxu0
        %8630 = vmatprep.mubr.f32.mxu0 0.0
        %8631 = vmatmul.mubr.f32.gmra.mrb[0].mxu0 %v8436
        %v8632 = vpop.f32.mrb[0].mxu0
        %v8633 = vadd.f32 0.0, %v8632
        %v8634 = vpop.f32.mrb[0].mxu0
        %8635 = vmatprep.mubr.f32.mxu0 0.0
        %8636 = vmatmul.mubr.f32.gmra.mrb[0].mxu0 %v8439
        %v8637 = vpop.f32.mrb[0].mxu0
        %v8638 = vadd.f32 0.0, %v8637
        %v8639 = vpop.f32.mrb[0].mxu0
        %8640 = vmatprep.mubr.f32.mxu0 0.0
        %8641 = vmatmul.mubr.f32.gmra.mrb[0].mxu0 %v8442
        %v8642 = vpop.f32.mrb[0].mxu0
        %v8643 = vadd.f32 0.0, %v8642
        %v8644 = vpop.f32.mrb[0].mxu0
        %8645 = vmatprep.mubr.f32.mxu0 0.0
        %8646 = vmatmul.mubr.f32.gmra.mrb[0].mxu0 %v8445
        %v8647 = vpop.f32.mrb[0].mxu0
        %v8648 = vadd.f32 0.0, %v8647
        %v8649 = vpop.f32.mrb[0].mxu0
        %8650 = vmatprep.mubr.f32.mxu0 0.0
        %8651 = vmatmul.mubr.f32.gmra.mrb[0].mxu0 %v8448
        %v8652 = vpop.f32.mrb[0].mxu0
        %v8653 = vadd.f32 0.0, %v8652
        %v8654 = vpop.f32.mrb[0].mxu0
        %8655 = vmatprep.mubr.f32.mxu0 0.0
        %8656 = vmatmul.mubr.f32.gmra.mrb[0].mxu0 %v8451
        %v8657 = vpop.f32.mrb[0].mxu0
        %v8658 = vadd.f32 0.0, %v8657
        %v8659 = vpop.f32.mrb[0].mxu0
        %8660 = vmatprep.mubr.f32.mxu0 0.0
        %8661 = vmatmul.mubr.f32.gmra.mrb[0].mxu0 %v8454
        %v8662 = vpop.f32.mrb[0].mxu0
        %v8663 = vadd.f32 0.0, %v8662
        %v8664 = vpop.f32.mrb[0].mxu0
        %8665 = vmatprep.mubr.f32.mxu0 0.0
        %8666 = vmatmul.mubr.f32.gmra.mrb[0].mxu0 %v8457
        %v8667 = vpop.f32.mrb[0].mxu0
        %v8668 = vadd.f32 0.0, %v8667
        %v8669 = vpop.f32.mrb[0].mxu0
        %8670 = vmatprep.mubr.f32.mxu0 0.0
        %8671 = vmatmul.mubr.f32.gmra.mrb[0].mxu0 %v8460
        %v8672 = vpop.f32.mrb[0].mxu0
        %v8673 = vadd.f32 0.0, %v8672
        %v8674 = vpop.f32.mrb[0].mxu0
        %8675 = vmatprep.mubr.f32.mxu0 0.0
        %8676 = vmatmul.mubr.f32.gmra.mrb[0].mxu0 %v8463
        %v8677 = vpop.f32.mrb[0].mxu0
        %v8678 = vadd.f32 0.0, %v8677
        %v8679 = vpop.f32.mrb[0].mxu0
        %8680 = vmatprep.mubr.f32.mxu0 0.0
        %8681 = vmatmul.mubr.f32.gmra.mrb[0].mxu0 %v8466
        %v8682 = vpop.f32.mrb[0].mxu0
        %v8683 = vadd.f32 0.0, %v8682
        %v8684 = vpop.f32.mrb[0].mxu0
        %8685 = vmatprep.mubr.f32.mxu0 0.0
        %8686 = vmatmul.mubr.f32.gmra.mrb[0].mxu0 %v8469
        %v8687 = vpop.f32.mrb[0].mxu0
        %v8688 = vadd.f32 0.0, %v8687
        %v8689 = vpop.f32.mrb[0].mxu0
        %8690 = vmatprep.mubr.f32.mxu0 0.0
        %8691 = vmatmul.mubr.f32.gmra.mrb[0].mxu0 %v8472
        %v8692 = vpop.f32.mrb[0].mxu0
        %v8693 = vadd.f32 0.0, %v8692
        %v8694 = vpop.f32.mrb[0].mxu0
        %8695 = vmatprep.mubr.f32.mxu0 0.0
        %8696 = vmatmul.mubr.f32.gmra.mrb[0].mxu0 %v8475
        %v8697 = vpop.f32.mrb[0].mxu0
        %v8698 = vadd.f32 0.0, %v8697
        %v8699 = vpop.f32.mrb[0].mxu0
        %8700 = vmatprep.mubr.f32.mxu0 0.0
        %8701 = vmatmul.mubr.f32.gmra.mrb[0].mxu0 %v8478
        %v8702 = vpop.f32.mrb[0].mxu0
        %v8703 = vadd.f32 0.0, %v8702
        %v8704 = vpop.f32.mrb[0].mxu0
        %8705 = vmatprep.mubr.f32.mxu0 0.0
        %8706 = vmatmul.mubr.f32.gmra.mrb[0].mxu0 %v8481
        %v8707 = vpop.f32.mrb[0].mxu0
        %v8708 = vadd.f32 0.0, %v8707
        %v8709 = vpop.f32.mrb[0].mxu0
        %8710 = vdwg.mxu0
        %v8711 = vadd.f32 %v8321, %v8553
        %v8712 = vadd.f32 %v8322, %v8558
        %v8713 = vadd.f32 %v8323, %v8563
        %v8714 = vadd.f32 %v8324, %v8568
        %v8715 = vadd.f32 %v8325, %v8573
        %v8716 = vadd.f32 %v8326, %v8578
        %v8717 = vadd.f32 %v8327, %v8583
        %v8718 = vadd.f32 %v8328, %v8588
        %v8719 = vadd.f32 %v8329, %v8593
        %v8720 = vadd.f32 %v8330, %v8598
        %v8721 = vadd.f32 %v8331, %v8603
        %v8722 = vadd.f32 %v8332, %v8608
        %v8723 = vadd.f32 %v8333, %v8613
        %v8724 = vadd.f32 %v8334, %v8618
        %v8725 = vadd.f32 %v8335, %v8623
        %v8726 = vadd.f32 %v8336, %v8628
        %v8727 = vadd.f32 %v8337, %v8633
        %v8728 = vadd.f32 %v8338, %v8638
        %v8729 = vadd.f32 %v8339, %v8643
        %v8730 = vadd.f32 %v8340, %v8648
        %v8731 = vadd.f32 %v8341, %v8653
        %v8732 = vadd.f32 %v8342, %v8658
        %v8733 = vadd.f32 %v8343, %v8663
        %v8734 = vadd.f32 %v8344, %v8668
        %v8735 = vadd.f32 %v8345, %v8673
        %v8736 = vadd.f32 %v8346, %v8678
        %v8737 = vadd.f32 %v8347, %v8683
        %v8738 = vadd.f32 %v8348, %v8688
        %v8739 = vadd.f32 %v8349, %v8693
        %v8740 = vadd.f32 %v8350, %v8698
        %v8741 = vadd.f32 %v8351, %v8703
        %v8742 = vadd.f32 %v8352, %v8708
        %v8743 = vld [vmem:[%s7962 + $0x2] sm:$0xff]
        %v8744 = vld [vmem:[%s7962 + $0xa] sm:$0xff]
        %v8745 = vld [vmem:[%s7962 + $0x12] sm:$0xff]
        %v8746 = vld [vmem:[%s7962 + $0x1a] sm:$0xff]
        %v8747 = vld [vmem:[%s7962 + $0x2a] sm:$0xff]
        %v8748 = vld [vmem:[%s7962 + $0x32] sm:$0xff]
        %v8749 = vld [vmem:[%s7962 + $0x3a] sm:$0xff]
        %v8750 = vld [vmem:[%s7962 + $0x42] sm:$0xff]
        %v8751 = vld [vmem:[%s7962 + $0x52] sm:$0xff]
        %v8752 = vld [vmem:[%s7962 + $0x5a] sm:$0xff]
        %v8753 = vld [vmem:[%s7962 + $0x62] sm:$0xff]
        %v8754 = vld [vmem:[%s7962 + $0x6a] sm:$0xff]
        %v8755 = vld [vmem:[%s7962 + $0x7a] sm:$0xff]
        %v8756 = vld [vmem:[%s7962 + $0x82] sm:$0xff]
        %v8757 = vld [vmem:[%s7962 + $0x8a] sm:$0xff]
        %v8758 = vld [vmem:[%s7962 + $0x92] sm:$0xff]
        %v8759 = vld [vmem:[%s7962 + $0xa2] sm:$0xff]
        %v8760 = vld [vmem:[%s7962 + $0xaa] sm:$0xff]
        %v8761 = vld [vmem:[%s7962 + $0xb2] sm:$0xff]
        %v8762 = vld [vmem:[%s7962 + $0xba] sm:$0xff]
        %v8763 = vld [vmem:[%s7962 + $0xca] sm:$0xff]
        %v8764 = vld [vmem:[%s7962 + $0xd2] sm:$0xff]
        %v8765 = vld [vmem:[%s7962 + $0xda] sm:$0xff]
        %v8766 = vld [vmem:[%s7962 + $0xe2] sm:$0xff]
        %v8767 = vld [vmem:[%s7962 + $0xf2] sm:$0xff]
        %v8768 = vld [vmem:[%s7962 + $0xfa] sm:$0xff]
        %v8769 = vld [vmem:[%s7962 + $0x102] sm:$0xff]
        %v8770 = vld [vmem:[%s7962 + $0x10a] sm:$0xff]
        %v8771 = vld [vmem:[%s7962 + $0x11a] sm:$0xff]
        %v8772 = vld [vmem:[%s7962 + $0x122] sm:$0xff]
        %v8773 = vld [vmem:[%s7962 + $0x12a] sm:$0xff]
        %v8774 = vld [vmem:[%s7962 + $0x132] sm:$0xff]
        %s8775 = scalar_lea.vmem %s1, 44
        %v8776 = vld [vmem:[%s8775] sm:$0x3]
        %v8778 = vsel %vm281, %v8743, 0
        %v8781 = vsel %vm281, %v8744, 0
        %v8784 = vsel %vm281, %v8745, 0
        %v8787 = vsel %vm281, %v8746, 0
        %v8790 = vsel %vm281, %v8747, 0
        %v8793 = vsel %vm281, %v8748, 0
        %v8796 = vsel %vm281, %v8749, 0
        %v8799 = vsel %vm281, %v8750, 0
        %v8802 = vsel %vm281, %v8751, 0
        %v8805 = vsel %vm281, %v8752, 0
        %v8808 = vsel %vm281, %v8753, 0
        %v8811 = vsel %vm281, %v8754, 0
        %v8814 = vsel %vm281, %v8755, 0
        %v8817 = vsel %vm281, %v8756, 0
        %v8820 = vsel %vm281, %v8757, 0
        %v8823 = vsel %vm281, %v8758, 0
        %v8826 = vsel %vm281, %v8759, 0
        %v8829 = vsel %vm281, %v8760, 0
        %v8832 = vsel %vm281, %v8761, 0
        %v8835 = vsel %vm281, %v8762, 0
        %v8838 = vsel %vm281, %v8763, 0
        %v8841 = vsel %vm281, %v8764, 0
        %v8844 = vsel %vm281, %v8765, 0
        %v8847 = vsel %vm281, %v8766, 0
        %v8850 = vsel %vm281, %v8767, 0
        %v8853 = vsel %vm281, %v8768, 0
        %v8856 = vsel %vm281, %v8769, 0
        %v8859 = vsel %vm281, %v8770, 0
        %v8862 = vsel %vm281, %v8771, 0
        %v8865 = vsel %vm281, %v8772, 0
        %v8868 = vsel %vm281, %v8773, 0
        %v8871 = vsel %vm281, %v8774, 0
        %v8874 = vsel %vm378, %v8776, 0
        %8876 = vmatprep.subr.mxu0 0.0
        %8877 = vmatpush1.msra.mxu0 %v8874
        %8878 = vmatprep.subr.mxu0 0.0
        %8879 = vmatpush1.msra.mxu0 0.0
        %8880 = vmatprep.subr.mxu0 0.0
        %8881 = vmatpush1.msra.mxu0 0.0
        %8882 = vmatprep.subr.mxu0 0.0
        %8883 = vmatpush1.msra.mxu0 0.0
        %8884 = vmatprep.subr.mxu0 0.0
        %8885 = vmatpush1.msra.mxu0 0.0
        %8886 = vmatprep.subr.mxu0 0.0
        %8887 = vmatpush1.msra.mxu0 0.0
        %8888 = vmatprep.subr.mxu0 0.0
        %8889 = vmatpush1.msra.mxu0 0.0
        %8890 = vmatprep.subr.mxu0 0.0
        %8891 = vmatpush1.msra.mxu0 0.0
        %8892 = vmatprep.subr.mxu0 0.0
        %8893 = vmatpush1.msra.mxu0 0.0
        %8894 = vmatprep.subr.mxu0 0.0
        %8895 = vmatpush1.msra.mxu0 0.0
        %8896 = vmatprep.subr.mxu0 0.0
        %8897 = vmatpush1.msra.mxu0 0.0
        %8898 = vmatprep.subr.mxu0 0.0
        %8899 = vmatpush1.msra.mxu0 0.0
        %8900 = vmatprep.subr.mxu0 0.0
        %8901 = vmatpush1.msra.mxu0 0.0
        %8902 = vmatprep.subr.mxu0 0.0
        %8903 = vmatpush1.msra.mxu0 0.0
        %8904 = vmatprep.subr.mxu0 0.0
        %8905 = vmatpush1.msra.mxu0 0.0
        %8906 = vmatprep.subr.mxu0 0.0
        %8907 = vmatpush1.msra.mxu0 0.0
        %8908 = vmatprep.subr.mxu0 0.0
        %8909 = vmatpush1.msra.mxu0 0.0
        %8910 = vmatprep.subr.mxu0 0.0
        %8911 = vmatpush1.msra.mxu0 0.0
        %8912 = vmatprep.subr.mxu0 0.0
        %8913 = vmatpush1.msra.mxu0 0.0
        %8914 = vmatprep.subr.mxu0 0.0
        %8915 = vmatpush1.msra.mxu0 0.0
        %8916 = vmatprep.subr.mxu0 0.0
        %8917 = vmatpush1.msra.mxu0 0.0
        %8918 = vmatprep.subr.mxu0 0.0
        %8919 = vmatpush1.msra.mxu0 0.0
        %8920 = vmatprep.subr.mxu0 0.0
        %8921 = vmatpush1.msra.mxu0 0.0
        %8922 = vmatprep.subr.mxu0 0.0
        %8923 = vmatpush1.msra.mxu0 0.0
        %8924 = vmatprep.subr.mxu0 0.0
        %8925 = vmatpush1.msra.mxu0 0.0
        %8926 = vmatprep.subr.mxu0 0.0
        %8927 = vmatpush1.msra.mxu0 0.0
        %8928 = vmatprep.subr.mxu0 0.0
        %8929 = vmatpush1.msra.mxu0 0.0
        %8930 = vmatprep.subr.mxu0 0.0
        %8931 = vmatpush1.msra.mxu0 0.0
        %8932 = vmatprep.subr.mxu0 0.0
        %8933 = vmatpush1.msra.mxu0 0.0
        %8934 = vmatprep.subr.mxu0 0.0
        %8935 = vmatpush1.msra.mxu0 0.0
        %8936 = vmatprep.subr.mxu0 0.0
        %8937 = vmatpush1.msra.mxu0 0.0
        %8938 = vmatprep.subr.mxu0 0.0
        %8939 = vmatpush1.msra.mxu0 0.0
        %8940 = vmatprep.mubr.f32.mxu0 0.0
        %8941 = vmatmul.mubr.f32.gmra.mrb[0].mxu0 %v8778
        %v8942 = vpop.f32.mrb[0].mxu0
        %v8943 = vadd.f32 0.0, %v8942
        %v8944 = vpop.f32.mrb[0].mxu0
        %8945 = vmatprep.mubr.f32.mxu0 0.0
        %8946 = vmatmul.mubr.f32.gmra.mrb[0].mxu0 %v8781
        %v8947 = vpop.f32.mrb[0].mxu0
        %v8948 = vadd.f32 0.0, %v8947
        %v8949 = vpop.f32.mrb[0].mxu0
        %8950 = vmatprep.mubr.f32.mxu0 0.0
        %8951 = vmatmul.mubr.f32.gmra.mrb[0].mxu0 %v8784
        %v8952 = vpop.f32.mrb[0].mxu0
        %v8953 = vadd.f32 0.0, %v8952
        %v8954 = vpop.f32.mrb[0].mxu0
        %8955 = vmatprep.mubr.f32.mxu0 0.0
        %8956 = vmatmul.mubr.f32.gmra.mrb[0].mxu0 %v8787
        %v8957 = vpop.f32.mrb[0].mxu0
        %v8958 = vadd.f32 0.0, %v8957
        %v8959 = vpop.f32.mrb[0].mxu0
        %8960 = vmatprep.mubr.f32.mxu0 0.0
        %8961 = vmatmul.mubr.f32.gmra.mrb[0].mxu0 %v8790
        %v8962 = vpop.f32.mrb[0].mxu0
        %v8963 = vadd.f32 0.0, %v8962
        %v8964 = vpop.f32.mrb[0].mxu0
        %8965 = vmatprep.mubr.f32.mxu0 0.0
        %8966 = vmatmul.mubr.f32.gmra.mrb[0].mxu0 %v8793
        %v8967 = vpop.f32.mrb[0].mxu0
        %v8968 = vadd.f32 0.0, %v8967
        %v8969 = vpop.f32.mrb[0].mxu0
        %8970 = vmatprep.mubr.f32.mxu0 0.0
        %8971 = vmatmul.mubr.f32.gmra.mrb[0].mxu0 %v8796
        %v8972 = vpop.f32.mrb[0].mxu0
        %v8973 = vadd.f32 0.0, %v8972
        %v8974 = vpop.f32.mrb[0].mxu0
        %8975 = vmatprep.mubr.f32.mxu0 0.0
        %8976 = vmatmul.mubr.f32.gmra.mrb[0].mxu0 %v8799
        %v8977 = vpop.f32.mrb[0].mxu0
        %v8978 = vadd.f32 0.0, %v8977
        %v8979 = vpop.f32.mrb[0].mxu0
        %8980 = vmatprep.mubr.f32.mxu0 0.0
        %8981 = vmatmul.mubr.f32.gmra.mrb[0].mxu0 %v8802
        %v8982 = vpop.f32.mrb[0].mxu0
        %v8983 = vadd.f32 0.0, %v8982
        %v8984 = vpop.f32.mrb[0].mxu0
        %8985 = vmatprep.mubr.f32.mxu0 0.0
        %8986 = vmatmul.mubr.f32.gmra.mrb[0].mxu0 %v8805
        %v8987 = vpop.f32.mrb[0].mxu0
        %v8988 = vadd.f32 0.0, %v8987
        %v8989 = vpop.f32.mrb[0].mxu0
        %8990 = vmatprep.mubr.f32.mxu0 0.0
        %8991 = vmatmul.mubr.f32.gmra.mrb[0].mxu0 %v8808
        %v8992 = vpop.f32.mrb[0].mxu0
        %v8993 = vadd.f32 0.0, %v8992
        %v8994 = vpop.f32.mrb[0].mxu0
        %8995 = vmatprep.mubr.f32.mxu0 0.0
        %8996 = vmatmul.mubr.f32.gmra.mrb[0].mxu0 %v8811
        %v8997 = vpop.f32.mrb[0].mxu0
        %v8998 = vadd.f32 0.0, %v8997
        %v8999 = vpop.f32.mrb[0].mxu0
        %9000 = vmatprep.mubr.f32.mxu0 0.0
        %9001 = vmatmul.mubr.f32.gmra.mrb[0].mxu0 %v8814
        %v9002 = vpop.f32.mrb[0].mxu0
        %v9003 = vadd.f32 0.0, %v9002
        %v9004 = vpop.f32.mrb[0].mxu0
        %9005 = vmatprep.mubr.f32.mxu0 0.0
        %9006 = vmatmul.mubr.f32.gmra.mrb[0].mxu0 %v8817
        %v9007 = vpop.f32.mrb[0].mxu0
        %v9008 = vadd.f32 0.0, %v9007
        %v9009 = vpop.f32.mrb[0].mxu0
        %9010 = vmatprep.mubr.f32.mxu0 0.0
        %9011 = vmatmul.mubr.f32.gmra.mrb[0].mxu0 %v8820
        %v9012 = vpop.f32.mrb[0].mxu0
        %v9013 = vadd.f32 0.0, %v9012
        %v9014 = vpop.f32.mrb[0].mxu0
        %9015 = vmatprep.mubr.f32.mxu0 0.0
        %9016 = vmatmul.mubr.f32.gmra.mrb[0].mxu0 %v8823
        %v9017 = vpop.f32.mrb[0].mxu0
        %v9018 = vadd.f32 0.0, %v9017
        %v9019 = vpop.f32.mrb[0].mxu0
        %9020 = vmatprep.mubr.f32.mxu0 0.0
        %9021 = vmatmul.mubr.f32.gmra.mrb[0].mxu0 %v8826
        %v9022 = vpop.f32.mrb[0].mxu0
        %v9023 = vadd.f32 0.0, %v9022
        %v9024 = vpop.f32.mrb[0].mxu0
        %9025 = vmatprep.mubr.f32.mxu0 0.0
        %9026 = vmatmul.mubr.f32.gmra.mrb[0].mxu0 %v8829
        %v9027 = vpop.f32.mrb[0].mxu0
        %v9028 = vadd.f32 0.0, %v9027
        %v9029 = vpop.f32.mrb[0].mxu0
        %9030 = vmatprep.mubr.f32.mxu0 0.0
        %9031 = vmatmul.mubr.f32.gmra.mrb[0].mxu0 %v8832
        %v9032 = vpop.f32.mrb[0].mxu0
        %v9033 = vadd.f32 0.0, %v9032
        %v9034 = vpop.f32.mrb[0].mxu0
        %9035 = vmatprep.mubr.f32.mxu0 0.0
        %9036 = vmatmul.mubr.f32.gmra.mrb[0].mxu0 %v8835
        %v9037 = vpop.f32.mrb[0].mxu0
        %v9038 = vadd.f32 0.0, %v9037
        %v9039 = vpop.f32.mrb[0].mxu0
        %9040 = vmatprep.mubr.f32.mxu0 0.0
        %9041 = vmatmul.mubr.f32.gmra.mrb[0].mxu0 %v8838
        %v9042 = vpop.f32.mrb[0].mxu0
        %v9043 = vadd.f32 0.0, %v9042
        %v9044 = vpop.f32.mrb[0].mxu0
        %9045 = vmatprep.mubr.f32.mxu0 0.0
        %9046 = vmatmul.mubr.f32.gmra.mrb[0].mxu0 %v8841
        %v9047 = vpop.f32.mrb[0].mxu0
        %v9048 = vadd.f32 0.0, %v9047
        %v9049 = vpop.f32.mrb[0].mxu0
        %9050 = vmatprep.mubr.f32.mxu0 0.0
        %9051 = vmatmul.mubr.f32.gmra.mrb[0].mxu0 %v8844
        %v9052 = vpop.f32.mrb[0].mxu0
        %v9053 = vadd.f32 0.0, %v9052
        %v9054 = vpop.f32.mrb[0].mxu0
        %9055 = vmatprep.mubr.f32.mxu0 0.0
        %9056 = vmatmul.mubr.f32.gmra.mrb[0].mxu0 %v8847
        %v9057 = vpop.f32.mrb[0].mxu0
        %v9058 = vadd.f32 0.0, %v9057
        %v9059 = vpop.f32.mrb[0].mxu0
        %9060 = vmatprep.mubr.f32.mxu0 0.0
        %9061 = vmatmul.mubr.f32.gmra.mrb[0].mxu0 %v8850
        %v9062 = vpop.f32.mrb[0].mxu0
        %v9063 = vadd.f32 0.0, %v9062
        %v9064 = vpop.f32.mrb[0].mxu0
        %9065 = vmatprep.mubr.f32.mxu0 0.0
        %9066 = vmatmul.mubr.f32.gmra.mrb[0].mxu0 %v8853
        %v9067 = vpop.f32.mrb[0].mxu0
        %v9068 = vadd.f32 0.0, %v9067
        %v9069 = vpop.f32.mrb[0].mxu0
        %9070 = vmatprep.mubr.f32.mxu0 0.0
        %9071 = vmatmul.mubr.f32.gmra.mrb[0].mxu0 %v8856
        %v9072 = vpop.f32.mrb[0].mxu0
        %v9073 = vadd.f32 0.0, %v9072
        %v9074 = vpop.f32.mrb[0].mxu0
        %9075 = vmatprep.mubr.f32.mxu0 0.0
        %9076 = vmatmul.mubr.f32.gmra.mrb[0].mxu0 %v8859
        %v9077 = vpop.f32.mrb[0].mxu0
        %v9078 = vadd.f32 0.0, %v9077
        %v9079 = vpop.f32.mrb[0].mxu0
        %9080 = vmatprep.mubr.f32.mxu0 0.0
        %9081 = vmatmul.mubr.f32.gmra.mrb[0].mxu0 %v8862
        %v9082 = vpop.f32.mrb[0].mxu0
        %v9083 = vadd.f32 0.0, %v9082
        %v9084 = vpop.f32.mrb[0].mxu0
        %9085 = vmatprep.mubr.f32.mxu0 0.0
        %9086 = vmatmul.mubr.f32.gmra.mrb[0].mxu0 %v8865
        %v9087 = vpop.f32.mrb[0].mxu0
        %v9088 = vadd.f32 0.0, %v9087
        %v9089 = vpop.f32.mrb[0].mxu0
        %9090 = vmatprep.mubr.f32.mxu0 0.0
        %9091 = vmatmul.mubr.f32.gmra.mrb[0].mxu0 %v8868
        %v9092 = vpop.f32.mrb[0].mxu0
        %v9093 = vadd.f32 0.0, %v9092
        %v9094 = vpop.f32.mrb[0].mxu0
        %9095 = vmatprep.mubr.f32.mxu0 0.0
        %9096 = vmatmul.mubr.f32.gmra.mrb[0].mxu0 %v8871
        %v9097 = vpop.f32.mrb[0].mxu0
        %v9098 = vadd.f32 0.0, %v9097
        %v9099 = vpop.f32.mrb[0].mxu0
        %9100 = vdwg.mxu0
        %v9101 = vadd.f32 %v8711, %v8943
        %v9102 = vadd.f32 %v8712, %v8948
        %v9103 = vadd.f32 %v8713, %v8953
        %v9104 = vadd.f32 %v8714, %v8958
        %v9105 = vadd.f32 %v8715, %v8963
        %v9106 = vadd.f32 %v8716, %v8968
        %v9107 = vadd.f32 %v8717, %v8973
        %v9108 = vadd.f32 %v8718, %v8978
        %v9109 = vadd.f32 %v8719, %v8983
        %v9110 = vadd.f32 %v8720, %v8988
        %v9111 = vadd.f32 %v8721, %v8993
        %v9112 = vadd.f32 %v8722, %v8998
        %v9113 = vadd.f32 %v8723, %v9003
        %v9114 = vadd.f32 %v8724, %v9008
        %v9115 = vadd.f32 %v8725, %v9013
        %v9116 = vadd.f32 %v8726, %v9018
        %v9117 = vadd.f32 %v8727, %v9023
        %v9118 = vadd.f32 %v8728, %v9028
        %v9119 = vadd.f32 %v8729, %v9033
        %v9120 = vadd.f32 %v8730, %v9038
        %v9121 = vadd.f32 %v8731, %v9043
        %v9122 = vadd.f32 %v8732, %v9048
        %v9123 = vadd.f32 %v8733, %v9053
        %v9124 = vadd.f32 %v8734, %v9058
        %v9125 = vadd.f32 %v8735, %v9063
        %v9126 = vadd.f32 %v8736, %v9068
        %v9127 = vadd.f32 %v8737, %v9073
        %v9128 = vadd.f32 %v8738, %v9078
        %v9129 = vadd.f32 %v8739, %v9083
        %v9130 = vadd.f32 %v8740, %v9088
        %v9131 = vadd.f32 %v8741, %v9093
        %v9132 = vadd.f32 %v8742, %v9098
        %v9133 = vld [vmem:[%s7962 + $0x3] sm:$0xff]
        %v9134 = vld [vmem:[%s7962 + $0xb] sm:$0xff]
        %v9135 = vld [vmem:[%s7962 + $0x13] sm:$0xff]
        %v9136 = vld [vmem:[%s7962 + $0x1b] sm:$0xff]
        %v9137 = vld [vmem:[%s7962 + $0x2b] sm:$0xff]
        %v9138 = vld [vmem:[%s7962 + $0x33] sm:$0xff]
        %v9139 = vld [vmem:[%s7962 + $0x3b] sm:$0xff]
        %v9140 = vld [vmem:[%s7962 + $0x43] sm:$0xff]
        %v9141 = vld [vmem:[%s7962 + $0x53] sm:$0xff]
        %v9142 = vld [vmem:[%s7962 + $0x5b] sm:$0xff]
        %v9143 = vld [vmem:[%s7962 + $0x63] sm:$0xff]
        %v9144 = vld [vmem:[%s7962 + $0x6b] sm:$0xff]
        %v9145 = vld [vmem:[%s7962 + $0x7b] sm:$0xff]
        %v9146 = vld [vmem:[%s7962 + $0x83] sm:$0xff]
        %v9147 = vld [vmem:[%s7962 + $0x8b] sm:$0xff]
        %v9148 = vld [vmem:[%s7962 + $0x93] sm:$0xff]
        %v9149 = vld [vmem:[%s7962 + $0xa3] sm:$0xff]
        %v9150 = vld [vmem:[%s7962 + $0xab] sm:$0xff]
        %v9151 = vld [vmem:[%s7962 + $0xb3] sm:$0xff]
        %v9152 = vld [vmem:[%s7962 + $0xbb] sm:$0xff]
        %v9153 = vld [vmem:[%s7962 + $0xcb] sm:$0xff]
        %v9154 = vld [vmem:[%s7962 + $0xd3] sm:$0xff]
        %v9155 = vld [vmem:[%s7962 + $0xdb] sm:$0xff]
        %v9156 = vld [vmem:[%s7962 + $0xe3] sm:$0xff]
        %v9157 = vld [vmem:[%s7962 + $0xf3] sm:$0xff]
        %v9158 = vld [vmem:[%s7962 + $0xfb] sm:$0xff]
        %v9159 = vld [vmem:[%s7962 + $0x103] sm:$0xff]
        %v9160 = vld [vmem:[%s7962 + $0x10b] sm:$0xff]
        %v9161 = vld [vmem:[%s7962 + $0x11b] sm:$0xff]
        %v9162 = vld [vmem:[%s7962 + $0x123] sm:$0xff]
        %v9163 = vld [vmem:[%s7962 + $0x12b] sm:$0xff]
        %v9164 = vld [vmem:[%s7962 + $0x133] sm:$0xff]
        %s9165 = scalar_lea.vmem %s1, 46
        %v9166 = vld [vmem:[%s9165] sm:$0x3]
        %v9168 = vsel %vm281, %v9133, 0
        %v9171 = vsel %vm281, %v9134, 0
        %v9174 = vsel %vm281, %v9135, 0
        %v9177 = vsel %vm281, %v9136, 0
        %v9180 = vsel %vm281, %v9137, 0
        %v9183 = vsel %vm281, %v9138, 0
        %v9186 = vsel %vm281, %v9139, 0
        %v9189 = vsel %vm281, %v9140, 0
        %v9192 = vsel %vm281, %v9141, 0
        %v9195 = vsel %vm281, %v9142, 0
        %v9198 = vsel %vm281, %v9143, 0
        %v9201 = vsel %vm281, %v9144, 0
        %v9204 = vsel %vm281, %v9145, 0
        %v9207 = vsel %vm281, %v9146, 0
        %v9210 = vsel %vm281, %v9147, 0
        %v9213 = vsel %vm281, %v9148, 0
        %v9216 = vsel %vm281, %v9149, 0
        %v9219 = vsel %vm281, %v9150, 0
        %v9222 = vsel %vm281, %v9151, 0
        %v9225 = vsel %vm281, %v9152, 0
        %v9228 = vsel %vm281, %v9153, 0
        %v9231 = vsel %vm281, %v9154, 0
        %v9234 = vsel %vm281, %v9155, 0
        %v9237 = vsel %vm281, %v9156, 0
        %v9240 = vsel %vm281, %v9157, 0
        %v9243 = vsel %vm281, %v9158, 0
        %v9246 = vsel %vm281, %v9159, 0
        %v9249 = vsel %vm281, %v9160, 0
        %v9252 = vsel %vm281, %v9161, 0
        %v9255 = vsel %vm281, %v9162, 0
        %v9258 = vsel %vm281, %v9163, 0
        %v9261 = vsel %vm281, %v9164, 0
        %v9264 = vsel %vm378, %v9166, 0
        %9266 = vmatprep.subr.mxu0 0.0
        %9267 = vmatpush1.msra.mxu0 %v9264
        %9268 = vmatprep.subr.mxu0 0.0
        %9269 = vmatpush1.msra.mxu0 0.0
        %9270 = vmatprep.subr.mxu0 0.0
        %9271 = vmatpush1.msra.mxu0 0.0
        %9272 = vmatprep.subr.mxu0 0.0
        %9273 = vmatpush1.msra.mxu0 0.0
        %9274 = vmatprep.subr.mxu0 0.0
        %9275 = vmatpush1.msra.mxu0 0.0
        %9276 = vmatprep.subr.mxu0 0.0
        %9277 = vmatpush1.msra.mxu0 0.0
        %9278 = vmatprep.subr.mxu0 0.0
        %9279 = vmatpush1.msra.mxu0 0.0
        %9280 = vmatprep.subr.mxu0 0.0
        %9281 = vmatpush1.msra.mxu0 0.0
        %9282 = vmatprep.subr.mxu0 0.0
        %9283 = vmatpush1.msra.mxu0 0.0
        %9284 = vmatprep.subr.mxu0 0.0
        %9285 = vmatpush1.msra.mxu0 0.0
        %9286 = vmatprep.subr.mxu0 0.0
        %9287 = vmatpush1.msra.mxu0 0.0
        %9288 = vmatprep.subr.mxu0 0.0
        %9289 = vmatpush1.msra.mxu0 0.0
        %9290 = vmatprep.subr.mxu0 0.0
        %9291 = vmatpush1.msra.mxu0 0.0
        %9292 = vmatprep.subr.mxu0 0.0
        %9293 = vmatpush1.msra.mxu0 0.0
        %9294 = vmatprep.subr.mxu0 0.0
        %9295 = vmatpush1.msra.mxu0 0.0
        %9296 = vmatprep.subr.mxu0 0.0
        %9297 = vmatpush1.msra.mxu0 0.0
        %9298 = vmatprep.subr.mxu0 0.0
        %9299 = vmatpush1.msra.mxu0 0.0
        %9300 = vmatprep.subr.mxu0 0.0
        %9301 = vmatpush1.msra.mxu0 0.0
        %9302 = vmatprep.subr.mxu0 0.0
        %9303 = vmatpush1.msra.mxu0 0.0
        %9304 = vmatprep.subr.mxu0 0.0
        %9305 = vmatpush1.msra.mxu0 0.0
        %9306 = vmatprep.subr.mxu0 0.0
        %9307 = vmatpush1.msra.mxu0 0.0
        %9308 = vmatprep.subr.mxu0 0.0
        %9309 = vmatpush1.msra.mxu0 0.0
        %9310 = vmatprep.subr.mxu0 0.0
        %9311 = vmatpush1.msra.mxu0 0.0
        %9312 = vmatprep.subr.mxu0 0.0
        %9313 = vmatpush1.msra.mxu0 0.0
        %9314 = vmatprep.subr.mxu0 0.0
        %9315 = vmatpush1.msra.mxu0 0.0
        %9316 = vmatprep.subr.mxu0 0.0
        %9317 = vmatpush1.msra.mxu0 0.0
        %9318 = vmatprep.subr.mxu0 0.0
        %9319 = vmatpush1.msra.mxu0 0.0
        %9320 = vmatprep.subr.mxu0 0.0
        %9321 = vmatpush1.msra.mxu0 0.0
        %9322 = vmatprep.subr.mxu0 0.0
        %9323 = vmatpush1.msra.mxu0 0.0
        %9324 = vmatprep.subr.mxu0 0.0
        %9325 = vmatpush1.msra.mxu0 0.0
        %9326 = vmatprep.subr.mxu0 0.0
        %9327 = vmatpush1.msra.mxu0 0.0
        %9328 = vmatprep.subr.mxu0 0.0
        %9329 = vmatpush1.msra.mxu0 0.0
        %9330 = vmatprep.mubr.f32.mxu0 0.0
        %9331 = vmatmul.mubr.f32.gmra.mrb[0].mxu0 %v9168
        %v9332 = vpop.f32.mrb[0].mxu0
        %v9333 = vadd.f32 0.0, %v9332
        %v9334 = vpop.f32.mrb[0].mxu0
        %9335 = vmatprep.mubr.f32.mxu0 0.0
        %9336 = vmatmul.mubr.f32.gmra.mrb[0].mxu0 %v9171
        %v9337 = vpop.f32.mrb[0].mxu0
        %v9338 = vadd.f32 0.0, %v9337
        %v9339 = vpop.f32.mrb[0].mxu0
        %9340 = vmatprep.mubr.f32.mxu0 0.0
        %9341 = vmatmul.mubr.f32.gmra.mrb[0].mxu0 %v9174
        %v9342 = vpop.f32.mrb[0].mxu0
        %v9343 = vadd.f32 0.0, %v9342
        %v9344 = vpop.f32.mrb[0].mxu0
        %9345 = vmatprep.mubr.f32.mxu0 0.0
        %9346 = vmatmul.mubr.f32.gmra.mrb[0].mxu0 %v9177
        %v9347 = vpop.f32.mrb[0].mxu0
        %v9348 = vadd.f32 0.0, %v9347
        %v9349 = vpop.f32.mrb[0].mxu0
        %9350 = vmatprep.mubr.f32.mxu0 0.0
        %9351 = vmatmul.mubr.f32.gmra.mrb[0].mxu0 %v9180
        %v9352 = vpop.f32.mrb[0].mxu0
        %v9353 = vadd.f32 0.0, %v9352
        %v9354 = vpop.f32.mrb[0].mxu0
        %9355 = vmatprep.mubr.f32.mxu0 0.0
        %9356 = vmatmul.mubr.f32.gmra.mrb[0].mxu0 %v9183
        %v9357 = vpop.f32.mrb[0].mxu0
        %v9358 = vadd.f32 0.0, %v9357
        %v9359 = vpop.f32.mrb[0].mxu0
        %9360 = vmatprep.mubr.f32.mxu0 0.0
        %9361 = vmatmul.mubr.f32.gmra.mrb[0].mxu0 %v9186
        %v9362 = vpop.f32.mrb[0].mxu0
        %v9363 = vadd.f32 0.0, %v9362
        %v9364 = vpop.f32.mrb[0].mxu0
        %9365 = vmatprep.mubr.f32.mxu0 0.0
        %9366 = vmatmul.mubr.f32.gmra.mrb[0].mxu0 %v9189
        %v9367 = vpop.f32.mrb[0].mxu0
        %v9368 = vadd.f32 0.0, %v9367
        %v9369 = vpop.f32.mrb[0].mxu0
        %9370 = vmatprep.mubr.f32.mxu0 0.0
        %9371 = vmatmul.mubr.f32.gmra.mrb[0].mxu0 %v9192
        %v9372 = vpop.f32.mrb[0].mxu0
        %v9373 = vadd.f32 0.0, %v9372
        %v9374 = vpop.f32.mrb[0].mxu0
        %9375 = vmatprep.mubr.f32.mxu0 0.0
        %9376 = vmatmul.mubr.f32.gmra.mrb[0].mxu0 %v9195
        %v9377 = vpop.f32.mrb[0].mxu0
        %v9378 = vadd.f32 0.0, %v9377
        %v9379 = vpop.f32.mrb[0].mxu0
        %9380 = vmatprep.mubr.f32.mxu0 0.0
        %9381 = vmatmul.mubr.f32.gmra.mrb[0].mxu0 %v9198
        %v9382 = vpop.f32.mrb[0].mxu0
        %v9383 = vadd.f32 0.0, %v9382
        %v9384 = vpop.f32.mrb[0].mxu0
        %9385 = vmatprep.mubr.f32.mxu0 0.0
        %9386 = vmatmul.mubr.f32.gmra.mrb[0].mxu0 %v9201
        %v9387 = vpop.f32.mrb[0].mxu0
        %v9388 = vadd.f32 0.0, %v9387
        %v9389 = vpop.f32.mrb[0].mxu0
        %9390 = vmatprep.mubr.f32.mxu0 0.0
        %9391 = vmatmul.mubr.f32.gmra.mrb[0].mxu0 %v9204
        %v9392 = vpop.f32.mrb[0].mxu0
        %v9393 = vadd.f32 0.0, %v9392
        %v9394 = vpop.f32.mrb[0].mxu0
        %9395 = vmatprep.mubr.f32.mxu0 0.0
        %9396 = vmatmul.mubr.f32.gmra.mrb[0].mxu0 %v9207
        %v9397 = vpop.f32.mrb[0].mxu0
        %v9398 = vadd.f32 0.0, %v9397
        %v9399 = vpop.f32.mrb[0].mxu0
        %9400 = vmatprep.mubr.f32.mxu0 0.0
        %9401 = vmatmul.mubr.f32.gmra.mrb[0].mxu0 %v9210
        %v9402 = vpop.f32.mrb[0].mxu0
        %v9403 = vadd.f32 0.0, %v9402
        %v9404 = vpop.f32.mrb[0].mxu0
        %9405 = vmatprep.mubr.f32.mxu0 0.0
        %9406 = vmatmul.mubr.f32.gmra.mrb[0].mxu0 %v9213
        %v9407 = vpop.f32.mrb[0].mxu0
        %v9408 = vadd.f32 0.0, %v9407
        %v9409 = vpop.f32.mrb[0].mxu0
        %9410 = vmatprep.mubr.f32.mxu0 0.0
        %9411 = vmatmul.mubr.f32.gmra.mrb[0].mxu0 %v9216
        %v9412 = vpop.f32.mrb[0].mxu0
        %v9413 = vadd.f32 0.0, %v9412
        %v9414 = vpop.f32.mrb[0].mxu0
        %9415 = vmatprep.mubr.f32.mxu0 0.0
        %9416 = vmatmul.mubr.f32.gmra.mrb[0].mxu0 %v9219
        %v9417 = vpop.f32.mrb[0].mxu0
        %v9418 = vadd.f32 0.0, %v9417
        %v9419 = vpop.f32.mrb[0].mxu0
        %9420 = vmatprep.mubr.f32.mxu0 0.0
        %9421 = vmatmul.mubr.f32.gmra.mrb[0].mxu0 %v9222
        %v9422 = vpop.f32.mrb[0].mxu0
        %v9423 = vadd.f32 0.0, %v9422
        %v9424 = vpop.f32.mrb[0].mxu0
        %9425 = vmatprep.mubr.f32.mxu0 0.0
        %9426 = vmatmul.mubr.f32.gmra.mrb[0].mxu0 %v9225
        %v9427 = vpop.f32.mrb[0].mxu0
        %v9428 = vadd.f32 0.0, %v9427
        %v9429 = vpop.f32.mrb[0].mxu0
        %9430 = vmatprep.mubr.f32.mxu0 0.0
        %9431 = vmatmul.mubr.f32.gmra.mrb[0].mxu0 %v9228
        %v9432 = vpop.f32.mrb[0].mxu0
        %v9433 = vadd.f32 0.0, %v9432
        %v9434 = vpop.f32.mrb[0].mxu0
        %9435 = vmatprep.mubr.f32.mxu0 0.0
        %9436 = vmatmul.mubr.f32.gmra.mrb[0].mxu0 %v9231
        %v9437 = vpop.f32.mrb[0].mxu0
        %v9438 = vadd.f32 0.0, %v9437
        %v9439 = vpop.f32.mrb[0].mxu0
        %9440 = vmatprep.mubr.f32.mxu0 0.0
        %9441 = vmatmul.mubr.f32.gmra.mrb[0].mxu0 %v9234
        %v9442 = vpop.f32.mrb[0].mxu0
        %v9443 = vadd.f32 0.0, %v9442
        %v9444 = vpop.f32.mrb[0].mxu0
        %9445 = vmatprep.mubr.f32.mxu0 0.0
        %9446 = vmatmul.mubr.f32.gmra.mrb[0].mxu0 %v9237
        %v9447 = vpop.f32.mrb[0].mxu0
        %v9448 = vadd.f32 0.0, %v9447
        %v9449 = vpop.f32.mrb[0].mxu0
        %9450 = vmatprep.mubr.f32.mxu0 0.0
        %9451 = vmatmul.mubr.f32.gmra.mrb[0].mxu0 %v9240
        %v9452 = vpop.f32.mrb[0].mxu0
        %v9453 = vadd.f32 0.0, %v9452
        %v9454 = vpop.f32.mrb[0].mxu0
        %9455 = vmatprep.mubr.f32.mxu0 0.0
        %9456 = vmatmul.mubr.f32.gmra.mrb[0].mxu0 %v9243
        %v9457 = vpop.f32.mrb[0].mxu0
        %v9458 = vadd.f32 0.0, %v9457
        %v9459 = vpop.f32.mrb[0].mxu0
        %9460 = vmatprep.mubr.f32.mxu0 0.0
        %9461 = vmatmul.mubr.f32.gmra.mrb[0].mxu0 %v9246
        %v9462 = vpop.f32.mrb[0].mxu0
        %v9463 = vadd.f32 0.0, %v9462
        %v9464 = vpop.f32.mrb[0].mxu0
        %9465 = vmatprep.mubr.f32.mxu0 0.0
        %9466 = vmatmul.mubr.f32.gmra.mrb[0].mxu0 %v9249
        %v9467 = vpop.f32.mrb[0].mxu0
        %v9468 = vadd.f32 0.0, %v9467
        %v9469 = vpop.f32.mrb[0].mxu0
        %9470 = vmatprep.mubr.f32.mxu0 0.0
        %9471 = vmatmul.mubr.f32.gmra.mrb[0].mxu0 %v9252
        %v9472 = vpop.f32.mrb[0].mxu0
        %v9473 = vadd.f32 0.0, %v9472
        %v9474 = vpop.f32.mrb[0].mxu0
        %9475 = vmatprep.mubr.f32.mxu0 0.0
        %9476 = vmatmul.mubr.f32.gmra.mrb[0].mxu0 %v9255
        %v9477 = vpop.f32.mrb[0].mxu0
        %v9478 = vadd.f32 0.0, %v9477
        %v9479 = vpop.f32.mrb[0].mxu0
        %9480 = vmatprep.mubr.f32.mxu0 0.0
        %9481 = vmatmul.mubr.f32.gmra.mrb[0].mxu0 %v9258
        %v9482 = vpop.f32.mrb[0].mxu0
        %v9483 = vadd.f32 0.0, %v9482
        %v9484 = vpop.f32.mrb[0].mxu0
        %9485 = vmatprep.mubr.f32.mxu0 0.0
        %9486 = vmatmul.mubr.f32.gmra.mrb[0].mxu0 %v9261
        %v9487 = vpop.f32.mrb[0].mxu0
        %v9488 = vadd.f32 0.0, %v9487
        %v9489 = vpop.f32.mrb[0].mxu0
        %9490 = vdwg.mxu0
        %v9491 = vadd.f32 %v9101, %v9333
        %v9492 = vadd.f32 %v9102, %v9338
        %v9493 = vadd.f32 %v9103, %v9343
        %v9494 = vadd.f32 %v9104, %v9348
        %v9495 = vadd.f32 %v9105, %v9353
        %v9496 = vadd.f32 %v9106, %v9358
        %v9497 = vadd.f32 %v9107, %v9363
        %v9498 = vadd.f32 %v9108, %v9368
        %v9499 = vadd.f32 %v9109, %v9373
        %v9500 = vadd.f32 %v9110, %v9378
        %v9501 = vadd.f32 %v9111, %v9383
        %v9502 = vadd.f32 %v9112, %v9388
        %v9503 = vadd.f32 %v9113, %v9393
        %v9504 = vadd.f32 %v9114, %v9398
        %v9505 = vadd.f32 %v9115, %v9403
        %v9506 = vadd.f32 %v9116, %v9408
        %v9507 = vadd.f32 %v9117, %v9413
        %v9508 = vadd.f32 %v9118, %v9418
        %v9509 = vadd.f32 %v9119, %v9423
        %v9510 = vadd.f32 %v9120, %v9428
        %v9511 = vadd.f32 %v9121, %v9433
        %v9512 = vadd.f32 %v9122, %v9438
        %v9513 = vadd.f32 %v9123, %v9443
        %v9514 = vadd.f32 %v9124, %v9448
        %v9515 = vadd.f32 %v9125, %v9453
        %v9516 = vadd.f32 %v9126, %v9458
        %v9517 = vadd.f32 %v9127, %v9463
        %v9518 = vadd.f32 %v9128, %v9468
        %v9519 = vadd.f32 %v9129, %v9473
        %v9520 = vadd.f32 %v9130, %v9478
        %v9521 = vadd.f32 %v9131, %v9483
        %v9522 = vadd.f32 %v9132, %v9488
        %v9523 = vld [vmem:[%s7962 + $0x4] sm:$0xff]
        %v9524 = vld [vmem:[%s7962 + $0xc] sm:$0xff]
        %v9525 = vld [vmem:[%s7962 + $0x14] sm:$0xff]
        %v9526 = vld [vmem:[%s7962 + $0x1c] sm:$0xff]
        %v9527 = vld [vmem:[%s7962 + $0x2c] sm:$0xff]
        %v9528 = vld [vmem:[%s7962 + $0x34] sm:$0xff]
        %v9529 = vld [vmem:[%s7962 + $0x3c] sm:$0xff]
        %v9530 = vld [vmem:[%s7962 + $0x44] sm:$0xff]
        %v9531 = vld [vmem:[%s7962 + $0x54] sm:$0xff]
        %v9532 = vld [vmem:[%s7962 + $0x5c] sm:$0xff]
        %v9533 = vld [vmem:[%s7962 + $0x64] sm:$0xff]
        %v9534 = vld [vmem:[%s7962 + $0x6c] sm:$0xff]
        %v9535 = vld [vmem:[%s7962 + $0x7c] sm:$0xff]
        %v9536 = vld [vmem:[%s7962 + $0x84] sm:$0xff]
        %v9537 = vld [vmem:[%s7962 + $0x8c] sm:$0xff]
        %v9538 = vld [vmem:[%s7962 + $0x94] sm:$0xff]
        %v9539 = vld [vmem:[%s7962 + $0xa4] sm:$0xff]
        %v9540 = vld [vmem:[%s7962 + $0xac] sm:$0xff]
        %v9541 = vld [vmem:[%s7962 + $0xb4] sm:$0xff]
        %v9542 = vld [vmem:[%s7962 + $0xbc] sm:$0xff]
        %v9543 = vld [vmem:[%s7962 + $0xcc] sm:$0xff]
        %v9544 = vld [vmem:[%s7962 + $0xd4] sm:$0xff]
        %v9545 = vld [vmem:[%s7962 + $0xdc] sm:$0xff]
        %v9546 = vld [vmem:[%s7962 + $0xe4] sm:$0xff]
        %v9547 = vld [vmem:[%s7962 + $0xf4] sm:$0xff]
        %v9548 = vld [vmem:[%s7962 + $0xfc] sm:$0xff]
        %v9549 = vld [vmem:[%s7962 + $0x104] sm:$0xff]
        %v9550 = vld [vmem:[%s7962 + $0x10c] sm:$0xff]
        %v9551 = vld [vmem:[%s7962 + $0x11c] sm:$0xff]
        %v9552 = vld [vmem:[%s7962 + $0x124] sm:$0xff]
        %v9553 = vld [vmem:[%s7962 + $0x12c] sm:$0xff]
        %v9554 = vld [vmem:[%s7962 + $0x134] sm:$0xff]
        %s9555 = scalar_lea.vmem %s1, 48
        %v9556 = vld [vmem:[%s9555] sm:$0x3]
        %v9558 = vsel %vm281, %v9523, 0
        %v9561 = vsel %vm281, %v9524, 0
        %v9564 = vsel %vm281, %v9525, 0
        %v9567 = vsel %vm281, %v9526, 0
        %v9570 = vsel %vm281, %v9527, 0
        %v9573 = vsel %vm281, %v9528, 0
        %v9576 = vsel %vm281, %v9529, 0
        %v9579 = vsel %vm281, %v9530, 0
        %v9582 = vsel %vm281, %v9531, 0
        %v9585 = vsel %vm281, %v9532, 0
        %v9588 = vsel %vm281, %v9533, 0
        %v9591 = vsel %vm281, %v9534, 0
        %v9594 = vsel %vm281, %v9535, 0
        %v9597 = vsel %vm281, %v9536, 0
        %v9600 = vsel %vm281, %v9537, 0
        %v9603 = vsel %vm281, %v9538, 0
        %v9606 = vsel %vm281, %v9539, 0
        %v9609 = vsel %vm281, %v9540, 0
        %v9612 = vsel %vm281, %v9541, 0
        %v9615 = vsel %vm281, %v9542, 0
        %v9618 = vsel %vm281, %v9543, 0
        %v9621 = vsel %vm281, %v9544, 0
        %v9624 = vsel %vm281, %v9545, 0
        %v9627 = vsel %vm281, %v9546, 0
        %v9630 = vsel %vm281, %v9547, 0
        %v9633 = vsel %vm281, %v9548, 0
        %v9636 = vsel %vm281, %v9549, 0
        %v9639 = vsel %vm281, %v9550, 0
        %v9642 = vsel %vm281, %v9551, 0
        %v9645 = vsel %vm281, %v9552, 0
        %v9648 = vsel %vm281, %v9553, 0
        %v9651 = vsel %vm281, %v9554, 0
        %v9654 = vsel %vm378, %v9556, 0
        %9656 = vmatprep.subr.mxu0 0.0
        %9657 = vmatpush1.msra.mxu0 %v9654
        %9658 = vmatprep.subr.mxu0 0.0
        %9659 = vmatpush1.msra.mxu0 0.0
        %9660 = vmatprep.subr.mxu0 0.0
        %9661 = vmatpush1.msra.mxu0 0.0
        %9662 = vmatprep.subr.mxu0 0.0
        %9663 = vmatpush1.msra.mxu0 0.0
        %9664 = vmatprep.subr.mxu0 0.0
        %9665 = vmatpush1.msra.mxu0 0.0
        %9666 = vmatprep.subr.mxu0 0.0
        %9667 = vmatpush1.msra.mxu0 0.0
        %9668 = vmatprep.subr.mxu0 0.0
        %9669 = vmatpush1.msra.mxu0 0.0
        %9670 = vmatprep.subr.mxu0 0.0
        %9671 = vmatpush1.msra.mxu0 0.0
        %9672 = vmatprep.subr.mxu0 0.0
        %9673 = vmatpush1.msra.mxu0 0.0
        %9674 = vmatprep.subr.mxu0 0.0
        %9675 = vmatpush1.msra.mxu0 0.0
        %9676 = vmatprep.subr.mxu0 0.0
        %9677 = vmatpush1.msra.mxu0 0.0
        %9678 = vmatprep.subr.mxu0 0.0
        %9679 = vmatpush1.msra.mxu0 0.0
        %9680 = vmatprep.subr.mxu0 0.0
        %9681 = vmatpush1.msra.mxu0 0.0
        %9682 = vmatprep.subr.mxu0 0.0
        %9683 = vmatpush1.msra.mxu0 0.0
        %9684 = vmatprep.subr.mxu0 0.0
        %9685 = vmatpush1.msra.mxu0 0.0
        %9686 = vmatprep.subr.mxu0 0.0
        %9687 = vmatpush1.msra.mxu0 0.0
        %9688 = vmatprep.subr.mxu0 0.0
        %9689 = vmatpush1.msra.mxu0 0.0
        %9690 = vmatprep.subr.mxu0 0.0
        %9691 = vmatpush1.msra.mxu0 0.0
        %9692 = vmatprep.subr.mxu0 0.0
        %9693 = vmatpush1.msra.mxu0 0.0
        %9694 = vmatprep.subr.mxu0 0.0
        %9695 = vmatpush1.msra.mxu0 0.0
        %9696 = vmatprep.subr.mxu0 0.0
        %9697 = vmatpush1.msra.mxu0 0.0
        %9698 = vmatprep.subr.mxu0 0.0
        %9699 = vmatpush1.msra.mxu0 0.0
        %9700 = vmatprep.subr.mxu0 0.0
        %9701 = vmatpush1.msra.mxu0 0.0
        %9702 = vmatprep.subr.mxu0 0.0
        %9703 = vmatpush1.msra.mxu0 0.0
        %9704 = vmatprep.subr.mxu0 0.0
        %9705 = vmatpush1.msra.mxu0 0.0
        %9706 = vmatprep.subr.mxu0 0.0
        %9707 = vmatpush1.msra.mxu0 0.0
        %9708 = vmatprep.subr.mxu0 0.0
        %9709 = vmatpush1.msra.mxu0 0.0
        %9710 = vmatprep.subr.mxu0 0.0
        %9711 = vmatpush1.msra.mxu0 0.0
        %9712 = vmatprep.subr.mxu0 0.0
        %9713 = vmatpush1.msra.mxu0 0.0
        %9714 = vmatprep.subr.mxu0 0.0
        %9715 = vmatpush1.msra.mxu0 0.0
        %9716 = vmatprep.subr.mxu0 0.0
        %9717 = vmatpush1.msra.mxu0 0.0
        %9718 = vmatprep.subr.mxu0 0.0
        %9719 = vmatpush1.msra.mxu0 0.0
        %9720 = vmatprep.mubr.f32.mxu0 0.0
        %9721 = vmatmul.mubr.f32.gmra.mrb[0].mxu0 %v9558
        %v9722 = vpop.f32.mrb[0].mxu0
        %v9723 = vadd.f32 0.0, %v9722
        %v9724 = vpop.f32.mrb[0].mxu0
        %9725 = vmatprep.mubr.f32.mxu0 0.0
        %9726 = vmatmul.mubr.f32.gmra.mrb[0].mxu0 %v9561
        %v9727 = vpop.f32.mrb[0].mxu0
        %v9728 = vadd.f32 0.0, %v9727
        %v9729 = vpop.f32.mrb[0].mxu0
        %9730 = vmatprep.mubr.f32.mxu0 0.0
        %9731 = vmatmul.mubr.f32.gmra.mrb[0].mxu0 %v9564
        %v9732 = vpop.f32.mrb[0].mxu0
        %v9733 = vadd.f32 0.0, %v9732
        %v9734 = vpop.f32.mrb[0].mxu0
        %9735 = vmatprep.mubr.f32.mxu0 0.0
        %9736 = vmatmul.mubr.f32.gmra.mrb[0].mxu0 %v9567
        %v9737 = vpop.f32.mrb[0].mxu0
        %v9738 = vadd.f32 0.0, %v9737
        %v9739 = vpop.f32.mrb[0].mxu0
        %9740 = vmatprep.mubr.f32.mxu0 0.0
        %9741 = vmatmul.mubr.f32.gmra.mrb[0].mxu0 %v9570
        %v9742 = vpop.f32.mrb[0].mxu0
        %v9743 = vadd.f32 0.0, %v9742
        %v9744 = vpop.f32.mrb[0].mxu0
        %9745 = vmatprep.mubr.f32.mxu0 0.0
        %9746 = vmatmul.mubr.f32.gmra.mrb[0].mxu0 %v9573
        %v9747 = vpop.f32.mrb[0].mxu0
        %v9748 = vadd.f32 0.0, %v9747
        %v9749 = vpop.f32.mrb[0].mxu0
        %9750 = vmatprep.mubr.f32.mxu0 0.0
        %9751 = vmatmul.mubr.f32.gmra.mrb[0].mxu0 %v9576
        %v9752 = vpop.f32.mrb[0].mxu0
        %v9753 = vadd.f32 0.0, %v9752
        %v9754 = vpop.f32.mrb[0].mxu0
        %9755 = vmatprep.mubr.f32.mxu0 0.0
        %9756 = vmatmul.mubr.f32.gmra.mrb[0].mxu0 %v9579
        %v9757 = vpop.f32.mrb[0].mxu0
        %v9758 = vadd.f32 0.0, %v9757
        %v9759 = vpop.f32.mrb[0].mxu0
        %9760 = vmatprep.mubr.f32.mxu0 0.0
        %9761 = vmatmul.mubr.f32.gmra.mrb[0].mxu0 %v9582
        %v9762 = vpop.f32.mrb[0].mxu0
        %v9763 = vadd.f32 0.0, %v9762
        %v9764 = vpop.f32.mrb[0].mxu0
        %9765 = vmatprep.mubr.f32.mxu0 0.0
        %9766 = vmatmul.mubr.f32.gmra.mrb[0].mxu0 %v9585
        %v9767 = vpop.f32.mrb[0].mxu0
        %v9768 = vadd.f32 0.0, %v9767
        %v9769 = vpop.f32.mrb[0].mxu0
        %9770 = vmatprep.mubr.f32.mxu0 0.0
        %9771 = vmatmul.mubr.f32.gmra.mrb[0].mxu0 %v9588
        %v9772 = vpop.f32.mrb[0].mxu0
        %v9773 = vadd.f32 0.0, %v9772
        %v9774 = vpop.f32.mrb[0].mxu0
        %9775 = vmatprep.mubr.f32.mxu0 0.0
        %9776 = vmatmul.mubr.f32.gmra.mrb[0].mxu0 %v9591
        %v9777 = vpop.f32.mrb[0].mxu0
        %v9778 = vadd.f32 0.0, %v9777
        %v9779 = vpop.f32.mrb[0].mxu0
        %9780 = vmatprep.mubr.f32.mxu0 0.0
        %9781 = vmatmul.mubr.f32.gmra.mrb[0].mxu0 %v9594
        %v9782 = vpop.f32.mrb[0].mxu0
        %v9783 = vadd.f32 0.0, %v9782
        %v9784 = vpop.f32.mrb[0].mxu0
        %9785 = vmatprep.mubr.f32.mxu0 0.0
        %9786 = vmatmul.mubr.f32.gmra.mrb[0].mxu0 %v9597
        %v9787 = vpop.f32.mrb[0].mxu0
        %v9788 = vadd.f32 0.0, %v9787
        %v9789 = vpop.f32.mrb[0].mxu0
        %9790 = vmatprep.mubr.f32.mxu0 0.0
        %9791 = vmatmul.mubr.f32.gmra.mrb[0].mxu0 %v9600
        %v9792 = vpop.f32.mrb[0].mxu0
        %v9793 = vadd.f32 0.0, %v9792
        %v9794 = vpop.f32.mrb[0].mxu0
        %9795 = vmatprep.mubr.f32.mxu0 0.0
        %9796 = vmatmul.mubr.f32.gmra.mrb[0].mxu0 %v9603
        %v9797 = vpop.f32.mrb[0].mxu0
        %v9798 = vadd.f32 0.0, %v9797
        %v9799 = vpop.f32.mrb[0].mxu0
        %9800 = vmatprep.mubr.f32.mxu0 0.0
        %9801 = vmatmul.mubr.f32.gmra.mrb[0].mxu0 %v9606
        %v9802 = vpop.f32.mrb[0].mxu0
        %v9803 = vadd.f32 0.0, %v9802
        %v9804 = vpop.f32.mrb[0].mxu0
        %9805 = vmatprep.mubr.f32.mxu0 0.0
        %9806 = vmatmul.mubr.f32.gmra.mrb[0].mxu0 %v9609
        %v9807 = vpop.f32.mrb[0].mxu0
        %v9808 = vadd.f32 0.0, %v9807
        %v9809 = vpop.f32.mrb[0].mxu0
        %9810 = vmatprep.mubr.f32.mxu0 0.0
        %9811 = vmatmul.mubr.f32.gmra.mrb[0].mxu0 %v9612
        %v9812 = vpop.f32.mrb[0].mxu0
        %v9813 = vadd.f32 0.0, %v9812
        %v9814 = vpop.f32.mrb[0].mxu0
        %9815 = vmatprep.mubr.f32.mxu0 0.0
        %9816 = vmatmul.mubr.f32.gmra.mrb[0].mxu0 %v9615
        %v9817 = vpop.f32.mrb[0].mxu0
        %v9818 = vadd.f32 0.0, %v9817
        %v9819 = vpop.f32.mrb[0].mxu0
        %9820 = vmatprep.mubr.f32.mxu0 0.0
        %9821 = vmatmul.mubr.f32.gmra.mrb[0].mxu0 %v9618
        %v9822 = vpop.f32.mrb[0].mxu0
        %v9823 = vadd.f32 0.0, %v9822
        %v9824 = vpop.f32.mrb[0].mxu0
        %9825 = vmatprep.mubr.f32.mxu0 0.0
        %9826 = vmatmul.mubr.f32.gmra.mrb[0].mxu0 %v9621
        %v9827 = vpop.f32.mrb[0].mxu0
        %v9828 = vadd.f32 0.0, %v9827
        %v9829 = vpop.f32.mrb[0].mxu0
        %9830 = vmatprep.mubr.f32.mxu0 0.0
        %9831 = vmatmul.mubr.f32.gmra.mrb[0].mxu0 %v9624
        %v9832 = vpop.f32.mrb[0].mxu0
        %v9833 = vadd.f32 0.0, %v9832
        %v9834 = vpop.f32.mrb[0].mxu0
        %9835 = vmatprep.mubr.f32.mxu0 0.0
        %9836 = vmatmul.mubr.f32.gmra.mrb[0].mxu0 %v9627
        %v9837 = vpop.f32.mrb[0].mxu0
        %v9838 = vadd.f32 0.0, %v9837
        %v9839 = vpop.f32.mrb[0].mxu0
        %9840 = vmatprep.mubr.f32.mxu0 0.0
        %9841 = vmatmul.mubr.f32.gmra.mrb[0].mxu0 %v9630
        %v9842 = vpop.f32.mrb[0].mxu0
        %v9843 = vadd.f32 0.0, %v9842
        %v9844 = vpop.f32.mrb[0].mxu0
        %9845 = vmatprep.mubr.f32.mxu0 0.0
        %9846 = vmatmul.mubr.f32.gmra.mrb[0].mxu0 %v9633
        %v9847 = vpop.f32.mrb[0].mxu0
        %v9848 = vadd.f32 0.0, %v9847
        %v9849 = vpop.f32.mrb[0].mxu0
        %9850 = vmatprep.mubr.f32.mxu0 0.0
        %9851 = vmatmul.mubr.f32.gmra.mrb[0].mxu0 %v9636
        %v9852 = vpop.f32.mrb[0].mxu0
        %v9853 = vadd.f32 0.0, %v9852
        %v9854 = vpop.f32.mrb[0].mxu0
        %9855 = vmatprep.mubr.f32.mxu0 0.0
        %9856 = vmatmul.mubr.f32.gmra.mrb[0].mxu0 %v9639
        %v9857 = vpop.f32.mrb[0].mxu0
        %v9858 = vadd.f32 0.0, %v9857
        %v9859 = vpop.f32.mrb[0].mxu0
        %9860 = vmatprep.mubr.f32.mxu0 0.0
        %9861 = vmatmul.mubr.f32.gmra.mrb[0].mxu0 %v9642
        %v9862 = vpop.f32.mrb[0].mxu0
        %v9863 = vadd.f32 0.0, %v9862
        %v9864 = vpop.f32.mrb[0].mxu0
        %9865 = vmatprep.mubr.f32.mxu0 0.0
        %9866 = vmatmul.mubr.f32.gmra.mrb[0].mxu0 %v9645
        %v9867 = vpop.f32.mrb[0].mxu0
        %v9868 = vadd.f32 0.0, %v9867
        %v9869 = vpop.f32.mrb[0].mxu0
        %9870 = vmatprep.mubr.f32.mxu0 0.0
        %9871 = vmatmul.mubr.f32.gmra.mrb[0].mxu0 %v9648
        %v9872 = vpop.f32.mrb[0].mxu0
        %v9873 = vadd.f32 0.0, %v9872
        %v9874 = vpop.f32.mrb[0].mxu0
        %9875 = vmatprep.mubr.f32.mxu0 0.0
        %9876 = vmatmul.mubr.f32.gmra.mrb[0].mxu0 %v9651
        %v9877 = vpop.f32.mrb[0].mxu0
        %v9878 = vadd.f32 0.0, %v9877
        %v9879 = vpop.f32.mrb[0].mxu0
        %9880 = vdwg.mxu0
        %v9881 = vadd.f32 %v9491, %v9723
        %v9882 = vadd.f32 %v9492, %v9728
        %v9883 = vadd.f32 %v9493, %v9733
        %v9884 = vadd.f32 %v9494, %v9738
        %v9885 = vadd.f32 %v9495, %v9743
        %v9886 = vadd.f32 %v9496, %v9748
        %v9887 = vadd.f32 %v9497, %v9753
        %v9888 = vadd.f32 %v9498, %v9758
        %v9889 = vadd.f32 %v9499, %v9763
        %v9890 = vadd.f32 %v9500, %v9768
        %v9891 = vadd.f32 %v9501, %v9773
        %v9892 = vadd.f32 %v9502, %v9778
        %v9893 = vadd.f32 %v9503, %v9783
        %v9894 = vadd.f32 %v9504, %v9788
        %v9895 = vadd.f32 %v9505, %v9793
        %v9896 = vadd.f32 %v9506, %v9798
        %v9897 = vadd.f32 %v9507, %v9803
        %v9898 = vadd.f32 %v9508, %v9808
        %v9899 = vadd.f32 %v9509, %v9813
        %v9900 = vadd.f32 %v9510, %v9818
        %v9901 = vadd.f32 %v9511, %v9823
        %v9902 = vadd.f32 %v9512, %v9828
        %v9903 = vadd.f32 %v9513, %v9833
        %v9904 = vadd.f32 %v9514, %v9838
        %v9905 = vadd.f32 %v9515, %v9843
        %v9906 = vadd.f32 %v9516, %v9848
        %v9907 = vadd.f32 %v9517, %v9853
        %v9908 = vadd.f32 %v9518, %v9858
        %v9909 = vadd.f32 %v9519, %v9863
        %v9910 = vadd.f32 %v9520, %v9868
        %v9911 = vadd.f32 %v9521, %v9873
        %v9912 = vadd.f32 %v9522, %v9878
        %v9913 = vld [vmem:[%s2] sm:$0x1]
        %v9915 = vlaneseq
        %v9916 = vshrl.u32 %v9915, 7
        %v9917 = vsub.s32 0, %v9916
        %v9918 = vrot.slane %v9913, %v9917
        %v9920 = vmul.f32 %v9881, %v9918
        %v9921 = vmul.f32 %v9882, %v9918
        %v9922 = vmul.f32 %v9883, %v9918
        %v9923 = vmul.f32 %v9884, %v9918
        %v9924 = vmul.f32 %v9885, %v9918
        %v9925 = vmul.f32 %v9886, %v9918
        %v9926 = vmul.f32 %v9887, %v9918
        %v9927 = vmul.f32 %v9888, %v9918
        %v9928 = vmul.f32 %v9889, %v9918
        %v9929 = vmul.f32 %v9890, %v9918
        %v9930 = vmul.f32 %v9891, %v9918
        %v9931 = vmul.f32 %v9892, %v9918
        %v9932 = vmul.f32 %v9893, %v9918
        %v9933 = vmul.f32 %v9894, %v9918
        %v9934 = vmul.f32 %v9895, %v9918
        %v9935 = vmul.f32 %v9896, %v9918
        %v9936 = vmul.f32 %v9897, %v9918
        %v9937 = vmul.f32 %v9898, %v9918
        %v9938 = vmul.f32 %v9899, %v9918
        %v9939 = vmul.f32 %v9900, %v9918
        %v9940 = vmul.f32 %v9901, %v9918
        %v9941 = vmul.f32 %v9902, %v9918
        %v9942 = vmul.f32 %v9903, %v9918
        %v9943 = vmul.f32 %v9904, %v9918
        %v9944 = vmul.f32 %v9905, %v9918
        %v9945 = vmul.f32 %v9906, %v9918
        %v9946 = vmul.f32 %v9907, %v9918
        %v9947 = vmul.f32 %v9908, %v9918
        %v9948 = vmul.f32 %v9909, %v9918
        %v9949 = vmul.f32 %v9910, %v9918
        %v9950 = vmul.f32 %v9911, %v9918
        %v9951 = vmul.f32 %v9912, %v9918
        %v9952 = vld [vmem:[%s3] sm:$0x1]
        %v9954 = vlaneseq
        %v9955 = vshrl.u32 %v9954, 7
        %v9956 = vsub.s32 0, %v9955
        %v9957 = vrot.slane %v9952, %v9956
        %v9959 = vadd.f32 %v9920, %v9957
        %v9960 = vadd.f32 %v9921, %v9957
        %v9961 = vadd.f32 %v9922, %v9957
        %v9962 = vadd.f32 %v9923, %v9957
        %v9963 = vadd.f32 %v9924, %v9957
        %v9964 = vadd.f32 %v9925, %v9957
        %v9965 = vadd.f32 %v9926, %v9957
        %v9966 = vadd.f32 %v9927, %v9957
        %v9967 = vadd.f32 %v9928, %v9957
        %v9968 = vadd.f32 %v9929, %v9957
        %v9969 = vadd.f32 %v9930, %v9957
        %v9970 = vadd.f32 %v9931, %v9957
        %v9971 = vadd.f32 %v9932, %v9957
        %v9972 = vadd.f32 %v9933, %v9957
        %v9973 = vadd.f32 %v9934, %v9957
        %v9974 = vadd.f32 %v9935, %v9957
        %v9975 = vadd.f32 %v9936, %v9957
        %v9976 = vadd.f32 %v9937, %v9957
        %v9977 = vadd.f32 %v9938, %v9957
        %v9978 = vadd.f32 %v9939, %v9957
        %v9979 = vadd.f32 %v9940, %v9957
        %v9980 = vadd.f32 %v9941, %v9957
        %v9981 = vadd.f32 %v9942, %v9957
        %v9982 = vadd.f32 %v9943, %v9957
        %v9983 = vadd.f32 %v9944, %v9957
        %v9984 = vadd.f32 %v9945, %v9957
        %v9985 = vadd.f32 %v9946, %v9957
        %v9986 = vadd.f32 %v9947, %v9957
        %v9987 = vadd.f32 %v9948, %v9957
        %v9988 = vadd.f32 %v9949, %v9957
        %v9989 = vadd.f32 %v9950, %v9957
        %v9990 = vadd.f32 %v9951, %v9957
        %v9991 = vmax.f32 %v9959, 0.0
        %v9992 = vmax.f32 %v9960, 0.0
        %v9993 = vmax.f32 %v9961, 0.0
        %v9994 = vmax.f32 %v9962, 0.0
        %v9995 = vmax.f32 %v9963, 0.0
        %v9996 = vmax.f32 %v9964, 0.0
        %v9997 = vmax.f32 %v9965, 0.0
        %v9998 = vmax.f32 %v9966, 0.0
        %v9999 = vmax.f32 %v9967, 0.0
        %v10000 = vmax.f32 %v9968, 0.0
        %v10001 = vmax.f32 %v9969, 0.0
        %v10002 = vmax.f32 %v9970, 0.0
        %v10003 = vmax.f32 %v9971, 0.0
        %v10004 = vmax.f32 %v9972, 0.0
        %v10005 = vmax.f32 %v9973, 0.0
        %v10006 = vmax.f32 %v9974, 0.0
        %v10007 = vmax.f32 %v9975, 0.0
        %v10008 = vmax.f32 %v9976, 0.0
        %v10009 = vmax.f32 %v9977, 0.0
        %v10010 = vmax.f32 %v9978, 0.0
        %v10011 = vmax.f32 %v9979, 0.0
        %v10012 = vmax.f32 %v9980, 0.0
        %v10013 = vmax.f32 %v9981, 0.0
        %v10014 = vmax.f32 %v9982, 0.0
        %v10015 = vmax.f32 %v9983, 0.0
        %v10016 = vmax.f32 %v9984, 0.0
        %v10017 = vmax.f32 %v9985, 0.0
        %v10018 = vmax.f32 %v9986, 0.0
        %v10019 = vmax.f32 %v9987, 0.0
        %v10020 = vmax.f32 %v9988, 0.0
        %v10021 = vmax.f32 %v9989, 0.0
        %v10022 = vmax.f32 %v9990, 0.0
        %vm10023 = vcmask 523264
        %10024 = vst.msk [vmem:[%s204] sm:$0xff] %vm10023, %v9991
        %10025 = vst.msk [vmem:[%s204 + $0x8] sm:$0xff] %vm10023, %v9992
        %10026 = vst.msk [vmem:[%s204 + $0x10] sm:$0xff] %vm10023, %v9993
        %10027 = vst.msk [vmem:[%s204 + $0x18] sm:$0xff] %vm10023, %v9994
        %10028 = vst.msk [vmem:[%s204 + $0x20] sm:$0xff] %vm10023, %v9995
        %10029 = vst.msk [vmem:[%s204 + $0x28] sm:$0xff] %vm10023, %v9996
        %10030 = vst.msk [vmem:[%s204 + $0x30] sm:$0xff] %vm10023, %v9997
        %10031 = vst.msk [vmem:[%s204 + $0x38] sm:$0xff] %vm10023, %v9998
        %10032 = vst.msk [vmem:[%s204 + $0x40] sm:$0xff] %vm10023, %v9999
        %10033 = vst.msk [vmem:[%s204 + $0x48] sm:$0xff] %vm10023, %v10000
        %10034 = vst.msk [vmem:[%s204 + $0x50] sm:$0xff] %vm10023, %v10001
        %10035 = vst.msk [vmem:[%s204 + $0x58] sm:$0xff] %vm10023, %v10002
        %10036 = vst.msk [vmem:[%s204 + $0x60] sm:$0xff] %vm10023, %v10003
        %10037 = vst.msk [vmem:[%s204 + $0x68] sm:$0xff] %vm10023, %v10004
        %10038 = vst.msk [vmem:[%s204 + $0x70] sm:$0xff] %vm10023, %v10005
        %10039 = vst.msk [vmem:[%s204 + $0x78] sm:$0xff] %vm10023, %v10006
        %10040 = vst.msk [vmem:[%s204 + $0x80] sm:$0xff] %vm10023, %v10007
        %10041 = vst.msk [vmem:[%s204 + $0x88] sm:$0xff] %vm10023, %v10008
        %10042 = vst.msk [vmem:[%s204 + $0x90] sm:$0xff] %vm10023, %v10009
        %10043 = vst.msk [vmem:[%s204 + $0x98] sm:$0xff] %vm10023, %v10010
        %10044 = vst.msk [vmem:[%s204 + $0xa0] sm:$0xff] %vm10023, %v10011
        %10045 = vst.msk [vmem:[%s204 + $0xa8] sm:$0xff] %vm10023, %v10012
        %10046 = vst.msk [vmem:[%s204 + $0xb0] sm:$0xff] %vm10023, %v10013
        %10047 = vst.msk [vmem:[%s204 + $0xb8] sm:$0xff] %vm10023, %v10014
        %10048 = vst.msk [vmem:[%s204 + $0xc0] sm:$0xff] %vm10023, %v10015
        %10049 = vst.msk [vmem:[%s204 + $0xc8] sm:$0xff] %vm10023, %v10016
        %10050 = vst.msk [vmem:[%s204 + $0xd0] sm:$0xff] %vm10023, %v10017
        %10051 = vst.msk [vmem:[%s204 + $0xd8] sm:$0xff] %vm10023, %v10018
        %10052 = vst.msk [vmem:[%s204 + $0xe0] sm:$0xff] %vm10023, %v10019
        %10053 = vst.msk [vmem:[%s204 + $0xe8] sm:$0xff] %vm10023, %v10020
        %10054 = vst.msk [vmem:[%s204 + $0xf0] sm:$0xff] %vm10023, %v10021
        %10055 = vst.msk [vmem:[%s204 + $0xf8] sm:$0xff] %vm10023, %v10022
        %s10056 = sand.u32 %s129, 1
        %s10057 = scalar_lea.sflag [#allocation3], %s10056
        %s10058 = sand.u32 %s129, 1
        %s10059 = smul.addr %s10058, 256
        %s10060 = scalar_lea.vmem [#allocation2], %s10059
        // Predicated region
        $region37: #{tpu_custom_call.1} parent=35 // pred_check
          %p10061 = pneg %p139
        $region38: #{tpu_custom_call.1} parent=35 // pred_check_branch
          %10063 = sbr.rel (%p10061) target = $region40
        $region39: #{tpu_custom_call.1} parent=35 // pred_region
          %s10064 = smul.u32 8, %s23
          %s10066 = ssub.s32 4096, 4096
          %10067 = vsyncadd %s10057, %s10066
          %s10068 = smul.addr %s10064, 4
          %s10069 = smul.addr %s22, 128
          %s10070 = sadd.s32 %s10068, %s10069
          %s10071 = smul.addr %s10070, 128
          %s10072 = scalar_lea.hbm %s4, %s10071
          %s10073 = sshll.u32 %s10060, 4
          %s10074 = int_to_ptr.vmem [resolvable:$true] %s10073
          %10079 = dma.vmem_to_hbm [thread:$0]  %s10074, 4096, %s10072, %s10057, 128, 128, 8
        $region40: #{tpu_custom_call.1} parent=35 // pred_fallthru
          _
      $region36: #{tpu_custom_call.1} parent=5 // pred_fallthru
        _
      %p10080 = scmp.le.s32.totalorder 2, %s13
      // Predicated region
      $region41: #{tpu_custom_call.1} parent=5 // pred_check
        %p10081 = pneg %p10080
      $region42: #{tpu_custom_call.1} parent=5 // pred_check_branch
        %10083 = sbr.rel (%p10081) target = $region44
      $region43: #{tpu_custom_call.1} parent=5 // pred_region
        %s10084 = ssub.s32 %s13, 2
        // Predicated region
        $region45: #{tpu_custom_call.1} parent=43 // pred_check
          %p10085 = pneg %p145
        $region46: #{tpu_custom_call.1} parent=43 // pred_check_branch
          %10087 = sbr.rel (%p10085) target = $region48
        $region47: #{tpu_custom_call.1} parent=43 // pred_region
          %s10088 = sand.u32 %s130, 1
          %s10089 = scalar_lea.sflag [#allocation3], %s10088
          %s10090 = sand.u32 %s130, 1
          %s10091 = smul.addr %s10090, 256
          %s10092 = scalar_lea.vmem [#allocation2], %s10091
          %10093 = dma.done %s10089, 4096
        $region48: #{tpu_custom_call.1} parent=43 // pred_fallthru
          _
      $region44: #{tpu_custom_call.1} parent=5 // pred_fallthru
        _
    $region6: #{tpu_custom_call.1} parent=1 // loop_footer
      %s17 = sadd.s32 1, %s13
    $region7: #{tpu_custom_call.1} parent=1 // loop_footer_branch
      %12 = sbr.rel target = $region3
    $region8: #{tpu_custom_call.1} parent=1 // loop_exit
      _
    %10094 = vsyncpa [#allocation3], 1
    %s10095 = scalar_lea.sflag [#allocation3], 1
    %10096 = vsyncpa %s10095, 1

</llo_original>
